<compile_context>
chip_gen: v7x
topology: tpu7x:2x2x1
jax: 0.10.0
libtpu: 0.0.40
codegen_flags: <defaults>
</compile_context>

<pallas_src>
import functools

import jax
import jax.numpy as jnp
from jax import lax
from jax.experimental import pallas as pl
from jax.experimental.pallas import tpu as pltpu


# ----------------------------------------------------------------------------
# Small helpers
# ----------------------------------------------------------------------------
def _round_up(x, m):
    return (x + m - 1) // m * m


def _pad_to(a, axis, size):
    pad = size - a.shape[axis]
    if pad == 0:
        return a
    cfg = [(0, 0)] * a.ndim
    cfg[axis] = (0, pad)
    return jnp.pad(a, cfg)


def _fold_bn(gamma, beta, mean, var, eps=1e-5):
    s = gamma / jnp.sqrt(var + eps)
    b = beta - mean * s
    return s, b           # 1-D per-channel scale / bias


# ----------------------------------------------------------------------------
# Kernel: one grid step = (one batch element, one tile of output rows)
# ----------------------------------------------------------------------------
def _bottleneck_kernel(x_hbm, w1_ref, b1_ref, w2_ref, b2_ref, w3_ref, wd_ref,
                       bout_ref, out_ref, x_vmem, dma_sem, *, stride, block_rows):
    sh, sw = stride
    TH = block_rows
    n = pl.program_id(0)          # batch element
    i = pl.program_id(1)          # output-row tile

    rows_in, W, Cin = x_vmem.shape          # rows_in = (TH-1)*sh + 3 (halo incl.)
    Pp = w1_ref.shape[1]                    # planes, padded to 128
    Coutp = w3_ref.shape[1]                 # planes*4, padded to 128
    Wo = (W - 3) // sw + 1

    # ---- fetch this tile's input rows (with 3x3 halo), HBM -> VMEM ---------
    row0 = i * (TH * sh)
    cp = pltpu.make_async_copy(x_hbm.at[n, pl.ds(row0, rows_in)], x_vmem, dma_sem)
    cp.start()
    cp.wait()
    # TODO(synk): double-buffer the input DMA across row tiles to overlap it
    # with compute (currently only weights/outputs are pipelined by Pallas).

    x = x_vmem[...]                                            # bf16 (rows_in,W,Cin)

    # ---- conv1 (1x1, BN scale folded) + bias + relu -> bf16 -----------------
    h = jnp.dot(x.reshape(rows_in * W, Cin), w1_ref[...],
                preferred_element_type=jnp.float32)
    h = jnp.maximum(h + b1_ref[...], 0.0).astype(jnp.bfloat16)
    h = h.reshape(rows_in, W, Pp)

    # ---- conv2 (3x3, stride, padding=0) as 9 tap matmuls + bias + relu ------
    acc2 = jnp.zeros((TH * Wo, Pp), jnp.float32)
    for kh in range(3):
        for kw in range(3):
            patch = lax.slice(
                h, (kh, kw, 0),
                (kh + (TH - 1) * sh + 1, kw + (Wo - 1) * sw + 1, Pp),
                (sh, sw, 1))
            acc2 += jnp.dot(patch.reshape(TH * Wo, Pp), w2_ref[kh, kw, :, :],
                            preferred_element_type=jnp.float32)
    h2 = jnp.maximum(acc2 + b2_ref[...], 0.0).astype(jnp.bfloat16)

    # ---- conv3 (1x1) and downsample (3x3) accumulate into ONE f32 buffer ----
    acc = jnp.dot(h2, w3_ref[...], preferred_element_type=jnp.float32)
    for kh in range(3):
        for kw in range(3):
            patch = lax.slice(
                x, (kh, kw, 0),
                (kh + (TH - 1) * sh + 1, kw + (Wo - 1) * sw + 1, Cin),
                (sh, sw, 1))
            acc += jnp.dot(patch.reshape(TH * Wo, Cin), wd_ref[kh, kw, :, :],
                           preferred_element_type=jnp.float32)

    # ---- fused bias (bn3 + bn_downsample) + final relu + lane-dense store ---
    out = jnp.maximum(acc + bout_ref[...], 0.0)
    out_ref[...] = out.reshape(1, TH, Wo, Coutp).astype(out_ref.dtype)


# ----------------------------------------------------------------------------
# Wrapper: PyTorch-facing (NCHW input, OIHW weights), BN folding, padding,
# layout plumbing, pallas_call.
# ----------------------------------------------------------------------------
def bottleneck_pallas(x_nchw, params, stride=(1, 1), block_rows=None):
    N, Cin, H, W = x_nchw.shape
    sh, sw = stride
    Ho = (H - 3) // sh + 1
    Wo = (W - 3) // sw + 1
    P = params['w1'].shape[0]
    Cout = params['w3'].shape[0]
    Pp = _round_up(P, 128)           # lane-pad intermediate channels
    Coutp = _round_up(Cout, 128)     # lane-pad output channels (dense stores)

    if block_rows is None:
        cap = min(Ho, 16)
        block_rows = max(d for d in range(1, cap + 1) if Ho % d == 0)
    TH = block_rows
    assert Ho % TH == 0, (Ho, TH)
    rows_in = (TH - 1) * sh + 3
    num_row_tiles = Ho // TH

    # ---- fold inference BatchNorm into weights (scale) + per-channel bias ---
    s1, b1 = _fold_bn(*params['bn1'])
    s2, b2 = _fold_bn(*params['bn2'])
    s3, b3 = _fold_bn(*params['bn3'])
    sd, bd = _fold_bn(*params['bnd'])

    # OIHW -> matmul layouts, BN scale folded into output columns, pad, bf16.
    w1 = params['w1'][:, :, 0, 0].T * s1[None, :]                          # (Cin,P)
    w2 = jnp.transpose(params['w2'], (2, 3, 1, 0)) * s2[None, None, None, :]  # (3,3,P,P)
    w3 = params['w3'][:, :, 0, 0].T * s3[None, :]                          # (P,Cout)
    wd = jnp.transpose(params['wd'], (2, 3, 1, 0)) * sd[None, None, None, :]  # (3,3,Cin,Cout)

    w1 = _pad_to(w1, 1, Pp).astype(jnp.bfloat16)
    w2 = _pad_to(_pad_to(w2, 2, Pp), 3, Pp).astype(jnp.bfloat16)
    w3 = _pad_to(_pad_to(w3, 0, Pp), 1, Coutp).astype(jnp.bfloat16)
    wd = _pad_to(wd, 3, Coutp).astype(jnp.bfloat16)

    b1p = _pad_to(b1.reshape(1, -1), 1, Pp).astype(jnp.float32)
    b2p = _pad_to(b2.reshape(1, -1), 1, Pp).astype(jnp.float32)
    boutp = _pad_to((b3 + bd).reshape(1, -1), 1, Coutp).astype(jnp.float32)  # bn3+bnd

    # NCHW -> NHWC (channels on TPU lanes), bf16 MXU inputs.  If the caller is
    # already NHWC this transpose (and the output one) can be dropped.
    x = jnp.transpose(x_nchw, (0, 2, 3, 1)).astype(jnp.bfloat16)

    kernel = functools.partial(_bottleneck_kernel, stride=(sh, sw), block_rows=TH)

    out_padded = pl.pallas_call(
        kernel,
        out_shape=jax.ShapeDtypeStruct((N, Ho, Wo, Coutp), jnp.float32),
        grid=(N, num_row_tiles),
        in_specs=[
            pl.BlockSpec(memory_space=pl.ANY),                  # x stays in HBM
            pl.BlockSpec(w1.shape, lambda n, i: (0, 0)),        # weights resident
            pl.BlockSpec(b1p.shape, lambda n, i: (0, 0)),
            pl.BlockSpec(w2.shape, lambda n, i: (0, 0, 0, 0)),
            pl.BlockSpec(b2p.shape, lambda n, i: (0, 0)),
            pl.BlockSpec(w3.shape, lambda n, i: (0, 0)),
            pl.BlockSpec(wd.shape, lambda n, i: (0, 0, 0, 0)),
            pl.BlockSpec(boutp.shape, lambda n, i: (0, 0)),
        ],
        out_specs=pl.BlockSpec((1, TH, Wo, Coutp), lambda n, i: (n, i, 0, 0)),
        scratch_shapes=[
            pltpu.VMEM((rows_in, W, Cin), jnp.bfloat16),        # halo input tile
            pltpu.SemaphoreType.DMA,
        ],
        compiler_params=pltpu.CompilerParams(
            dimension_semantics=("parallel", "parallel"),       # megacore on v7x
            vmem_limit_bytes=32 * 1024 * 1024),
    )(x, w1, b1p, w2, b2p, w3, wd, boutp)

    out = out_padded[:, :, :, :Cout]            # drop lane padding
    return jnp.transpose(out, (0, 3, 1, 2))     # back to NCHW


# ----------------------------------------------------------------------------
# Deterministic synthetic parameters with PyTorch shapes (OIHW weights)
# ----------------------------------------------------------------------------
def init_params(key, inplanes, planes):
    exp = 4
    ks = jax.random.split(key, 8)

    def w(k, shape, fan_in):
        return jax.random.normal(k, shape, jnp.float32) / jnp.sqrt(float(fan_in))

    def bn(k, c):
        k1, k2, k3, k4 = jax.random.split(k, 4)
        gamma = jax.random.uniform(k1, (c,), jnp.float32, 0.5, 1.5)
        beta = 0.1 * jax.random.normal(k2, (c,), jnp.float32)
        mean = 0.1 * jax.random.normal(k3, (c,), jnp.float32)
        var = jax.random.uniform(k4, (c,), jnp.float32, 0.5, 1.5)
        return (gamma, beta, mean, var)

    return dict(
        w1=w(ks[0], (planes, inplanes, 1, 1), inplanes),
        bn1=bn(ks[1], planes),
        w2=w(ks[2], (planes, planes, 3, 3), planes * 9),
        bn2=bn(ks[3], planes),
        w3=w(ks[4], (planes * exp, planes, 1, 1), planes),
        bn3=bn(ks[5], planes * exp),
        wd=w(ks[6], (planes * exp, inplanes, 3, 3), inplanes * 9),  # downsample conv
        bnd=bn(ks[7], planes * exp),
    )


# ----------------------------------------------------------------------------
# Pure-JAX f32 reference (PyTorch NCHW semantics) for the correctness check
# ----------------------------------------------------------------------------
def ref_forward(x, p, stride=(1, 1)):
    def conv(y, w, s=(1, 1)):
        return lax.conv_general_dilated(
            y, w, window_strides=s, padding='VALID',
            dimension_numbers=('NCHW', 'OIHW', 'NCHW'))

    def bn(y, stats, eps=1e-5):
        gamma, beta, mean, var = stats
        s = gamma / jnp.sqrt(var + eps)
        b = beta - mean * s
        return y * s[None, :, None, None] + b[None, :, None, None]

    out = jax.nn.relu(bn(conv(x, p['w1']), p['bn1']))
    out = jax.nn.relu(bn(conv(out, p['w2'], stride), p['bn2']))
    out = bn(conv(out, p['w3']), p['bn3'])
    res = bn(conv(x, p['wd'], stride), p['bnd'])
    return jax.nn.relu(out + res)


if __name__ == "__main__":
    key = jax.random.PRNGKey(0)
    kx, kp = jax.random.split(key)

    N, inplanes, planes, H, W = 2, 16, 8, 16, 16
    stride = (1, 1)

    x = jax.random.normal(kx, (N, inplanes, H, W), jnp.float32)
    params = init_params(kp, inplanes, planes)

    fwd = jax.jit(functools.partial(bottleneck_pallas, stride=stride, block_rows=7))
    out = jax.block_until_ready(fwd(x, params))     # grid = (2 batch, 2 row tiles)

    ref = ref_forward(x, params, stride)
    assert out.shape == ref.shape, (out.shape, ref.shape)
    # Kernel runs bf16 on the MXU with f32 accumulation; allow bf16-level error
    # vs the pure-f32 reference.
    if not jnp.allclose(out, ref, rtol=5e-2, atol=1e-1):
        raise AssertionError(
            f"mismatch: max abs err = {float(jnp.max(jnp.abs(out - ref)))}")

    print("KERNEL_OK")
</pallas_src>

<mosaic_0001>
module attributes {stable_mosaic.version = 11 : i64} {
  func.func @_bottleneck_kernel(%arg0: i32, %arg1: i32, %arg2: memref<2x16x16x16xbf16, #tpu.memory_space<any>>, %arg3: memref<16x128xbf16, #tpu.memory_space<vmem>>, %arg4: memref<1x128xf32, #tpu.memory_space<vmem>>, %arg5: memref<3x3x128x128xbf16, #tpu.memory_space<vmem>>, %arg6: memref<1x128xf32, #tpu.memory_space<vmem>>, %arg7: memref<128x128xbf16, #tpu.memory_space<vmem>>, %arg8: memref<3x3x16x128xbf16, #tpu.memory_space<vmem>>, %arg9: memref<1x128xf32, #tpu.memory_space<vmem>>, %arg10: memref<1x7x14x128xf32, #tpu.memory_space<vmem>>, %arg11: memref<9x16x16xbf16, #tpu.memory_space<vmem>>, %arg12: memref<!tpu.dma_semaphore, #tpu.memory_space<semaphore_mem>>) attributes {dimension_semantics = [#tpu.dimension_semantics<parallel>, #tpu.dimension_semantics<parallel>], iteration_bounds = array<i64: 2, 2>, scalar_prefetch = 0 : i64, scratch_operands = 2 : i64, tpu.core_type = #tpu.core_type<tc>, window_params = [{}, {pipeline_mode = #tpu.pipeline_mode<synchronous>, transform_indices = @transform_1, window_bounds = array<i64: 16, 128>}, {pipeline_mode = #tpu.pipeline_mode<synchronous>, transform_indices = @transform_2, window_bounds = array<i64: 1, 128>}, {pipeline_mode = #tpu.pipeline_mode<synchronous>, transform_indices = @transform_3, window_bounds = array<i64: 3, 3, 128, 128>}, {pipeline_mode = #tpu.pipeline_mode<synchronous>, transform_indices = @transform_4, window_bounds = array<i64: 1, 128>}, {pipeline_mode = #tpu.pipeline_mode<synchronous>, transform_indices = @transform_5, window_bounds = array<i64: 128, 128>}, {pipeline_mode = #tpu.pipeline_mode<synchronous>, transform_indices = @transform_6, window_bounds = array<i64: 3, 3, 16, 128>}, {pipeline_mode = #tpu.pipeline_mode<synchronous>, transform_indices = @transform_7, window_bounds = array<i64: 1, 128>}, {transform_indices = @transform_8, window_bounds = array<i64: 1, 7, 14, 128>}]} {
    %c7_i32 = arith.constant 7 : i32
    %0 = arith.muli %arg1, %c7_i32 : i32
    %c0_i32 = arith.constant 0 : i32
    %c0_i32_0 = arith.constant 0 : i32
    %1 = tpu.memref_slice %arg2[%arg0, %0, %c0_i32, %c0_i32_0] : memref<2x16x16x16xbf16, #tpu.memory_space<any>> -> memref<1x9x16x16xbf16, #tpu.memory_space<any>>
    %2 = tpu.memref_squeeze %1 : memref<1x9x16x16xbf16, #tpu.memory_space<any>> -> memref<9x16x16xbf16, #tpu.memory_space<any>>
    tpu.enqueue_dma source(%2 : memref<9x16x16xbf16, #tpu.memory_space<any>>) target(%arg11 : memref<9x16x16xbf16, #tpu.memory_space<vmem>>) target_semaphore(%arg12 : memref<!tpu.dma_semaphore, #tpu.memory_space<semaphore_mem>>)
    %c0_i32_1 = arith.constant 0 : i32
    %c0_i32_2 = arith.constant 0 : i32
    %3 = tpu.memref_slice %arg2[%arg0, %0, %c0_i32_1, %c0_i32_2] : memref<2x16x16x16xbf16, #tpu.memory_space<any>> -> memref<1x9x16x16xbf16, #tpu.memory_space<any>>
    %4 = tpu.memref_squeeze %3 : memref<1x9x16x16xbf16, #tpu.memory_space<any>> -> memref<9x16x16xbf16, #tpu.memory_space<any>>
    tpu.wait_dma2 semaphore(%arg12 : memref<!tpu.dma_semaphore, #tpu.memory_space<semaphore_mem>>) src(%4 : memref<9x16x16xbf16, #tpu.memory_space<any>>) dst(%arg11 : memref<9x16x16xbf16, #tpu.memory_space<vmem>>)
    %c0 = arith.constant 0 : index
    %c0_3 = arith.constant 0 : index
    %c0_4 = arith.constant 0 : index
    %5 = vector.load %arg11[%c0, %c0_3, %c0_4] : memref<9x16x16xbf16, #tpu.memory_space<vmem>>, vector<9x16x16xbf16>
    %6 = vector.shape_cast %5 : vector<9x16x16xbf16> to vector<144x16xbf16>
    %c0_5 = arith.constant 0 : index
    %c0_6 = arith.constant 0 : index
    %7 = vector.load %arg3[%c0_5, %c0_6] : memref<16x128xbf16, #tpu.memory_space<vmem>>, vector<16x128xbf16>
    %cst = arith.constant dense<0.000000e+00> : vector<144x128xf32>
    %8 = tpu.matmul %6, %7, %cst {dimension_numbers = #tpu.dot_dimension_numbers<[1], [0], [0], [1], [0, 0, 1, 1], [], []>} : vector<144x16xbf16>, vector<16x128xbf16>, vector<144x128xf32> -> vector<144x128xf32>
    %c0_7 = arith.constant 0 : index
    %c0_8 = arith.constant 0 : index
    %9 = vector.load %arg4[%c0_7, %c0_8] : memref<1x128xf32, #tpu.memory_space<vmem>>, vector<1x128xf32>
    %10 = vector.broadcast %9 : vector<1x128xf32> to vector<144x128xf32>
    %11 = arith.addf %8, %10 : vector<144x128xf32>
    %cst_9 = arith.constant 0.000000e+00 : f32
    %12 = vector.broadcast %cst_9 : f32 to vector<144x128xf32>
    %13 = arith.maximumf %11, %12 : vector<144x128xf32>
    %14 = arith.truncf %13 : vector<144x128xf32> to vector<144x128xbf16>
    %15 = vector.shape_cast %14 : vector<144x128xbf16> to vector<9x16x128xbf16>
    %cst_10 = arith.constant 0.000000e+00 : f32
    %16 = vector.broadcast %cst_10 : f32 to vector<98x128xf32>
    %17 = vector.extract_strided_slice %15 {offsets = [0, 0, 0], sizes = [7, 14, 128], strides = [1, 1, 1]} : vector<9x16x128xbf16> to vector<7x14x128xbf16>
    %18 = vector.shape_cast %17 : vector<7x14x128xbf16> to vector<98x128xbf16>
    %c0_11 = arith.constant 0 : index
    %c0_12 = arith.constant 0 : index
    %c0_13 = arith.constant 0 : index
    %c0_14 = arith.constant 0 : index
    %19 = vector.load %arg5[%c0_11, %c0_12, %c0_13, %c0_14] : memref<3x3x128x128xbf16, #tpu.memory_space<vmem>>, vector<1x1x128x128xbf16>
    %20 = vector.shape_cast %19 : vector<1x1x128x128xbf16> to vector<128x128xbf16>
    %cst_15 = arith.constant dense<0.000000e+00> : vector<98x128xf32>
    %21 = tpu.matmul %18, %20, %cst_15 {dimension_numbers = #tpu.dot_dimension_numbers<[1], [0], [0], [1], [0, 0, 1, 1], [], []>} : vector<98x128xbf16>, vector<128x128xbf16>, vector<98x128xf32> -> vector<98x128xf32>
    %22 = arith.addf %16, %21 : vector<98x128xf32>
    %23 = vector.extract_strided_slice %15 {offsets = [0, 1, 0], sizes = [7, 14, 128], strides = [1, 1, 1]} : vector<9x16x128xbf16> to vector<7x14x128xbf16>
    %24 = vector.shape_cast %23 : vector<7x14x128xbf16> to vector<98x128xbf16>
    %c0_16 = arith.constant 0 : index
    %c1 = arith.constant 1 : index
    %c0_17 = arith.constant 0 : index
    %c0_18 = arith.constant 0 : index
    %25 = vector.load %arg5[%c0_16, %c1, %c0_17, %c0_18] : memref<3x3x128x128xbf16, #tpu.memory_space<vmem>>, vector<1x1x128x128xbf16>
    %26 = vector.shape_cast %25 : vector<1x1x128x128xbf16> to vector<128x128xbf16>
    %cst_19 = arith.constant dense<0.000000e+00> : vector<98x128xf32>
    %27 = tpu.matmul %24, %26, %cst_19 {dimension_numbers = #tpu.dot_dimension_numbers<[1], [0], [0], [1], [0, 0, 1, 1], [], []>} : vector<98x128xbf16>, vector<128x128xbf16>, vector<98x128xf32> -> vector<98x128xf32>
    %28 = arith.addf %22, %27 : vector<98x128xf32>
    %29 = vector.extract_strided_slice %15 {offsets = [0, 2, 0], sizes = [7, 14, 128], strides = [1, 1, 1]} : vector<9x16x128xbf16> to vector<7x14x128xbf16>
    %30 = vector.shape_cast %29 : vector<7x14x128xbf16> to vector<98x128xbf16>
    %c0_20 = arith.constant 0 : index
    %c2 = arith.constant 2 : index
    %c0_21 = arith.constant 0 : index
    %c0_22 = arith.constant 0 : index
    %31 = vector.load %arg5[%c0_20, %c2, %c0_21, %c0_22] : memref<3x3x128x128xbf16, #tpu.memory_space<vmem>>, vector<1x1x128x128xbf16>
    %32 = vector.shape_cast %31 : vector<1x1x128x128xbf16> to vector<128x128xbf16>
    %cst_23 = arith.constant dense<0.000000e+00> : vector<98x128xf32>
    %33 = tpu.matmul %30, %32, %cst_23 {dimension_numbers = #tpu.dot_dimension_numbers<[1], [0], [0], [1], [0, 0, 1, 1], [], []>} : vector<98x128xbf16>, vector<128x128xbf16>, vector<98x128xf32> -> vector<98x128xf32>
    %34 = arith.addf %28, %33 : vector<98x128xf32>
    %35 = vector.extract_strided_slice %15 {offsets = [1, 0, 0], sizes = [7, 14, 128], strides = [1, 1, 1]} : vector<9x16x128xbf16> to vector<7x14x128xbf16>
    %36 = vector.shape_cast %35 : vector<7x14x128xbf16> to vector<98x128xbf16>
    %c1_24 = arith.constant 1 : index
    %c0_25 = arith.constant 0 : index
    %c0_26 = arith.constant 0 : index
    %c0_27 = arith.constant 0 : index
    %37 = vector.load %arg5[%c1_24, %c0_25, %c0_26, %c0_27] : memref<3x3x128x128xbf16, #tpu.memory_space<vmem>>, vector<1x1x128x128xbf16>
    %38 = vector.shape_cast %37 : vector<1x1x128x128xbf16> to vector<128x128xbf16>
    %cst_28 = arith.constant dense<0.000000e+00> : vector<98x128xf32>
    %39 = tpu.matmul %36, %38, %cst_28 {dimension_numbers = #tpu.dot_dimension_numbers<[1], [0], [0], [1], [0, 0, 1, 1], [], []>} : vector<98x128xbf16>, vector<128x128xbf16>, vector<98x128xf32> -> vector<98x128xf32>
    %40 = arith.addf %34, %39 : vector<98x128xf32>
    %41 = vector.extract_strided_slice %15 {offsets = [1, 1, 0], sizes = [7, 14, 128], strides = [1, 1, 1]} : vector<9x16x128xbf16> to vector<7x14x128xbf16>
    %42 = vector.shape_cast %41 : vector<7x14x128xbf16> to vector<98x128xbf16>
    %c1_29 = arith.constant 1 : index
    %c1_30 = arith.constant 1 : index
    %c0_31 = arith.constant 0 : index
    %c0_32 = arith.constant 0 : index
    %43 = vector.load %arg5[%c1_29, %c1_30, %c0_31, %c0_32] : memref<3x3x128x128xbf16, #tpu.memory_space<vmem>>, vector<1x1x128x128xbf16>
    %44 = vector.shape_cast %43 : vector<1x1x128x128xbf16> to vector<128x128xbf16>
    %cst_33 = arith.constant dense<0.000000e+00> : vector<98x128xf32>
    %45 = tpu.matmul %42, %44, %cst_33 {dimension_numbers = #tpu.dot_dimension_numbers<[1], [0], [0], [1], [0, 0, 1, 1], [], []>} : vector<98x128xbf16>, vector<128x128xbf16>, vector<98x128xf32> -> vector<98x128xf32>
    %46 = arith.addf %40, %45 : vector<98x128xf32>
    %47 = vector.extract_strided_slice %15 {offsets = [1, 2, 0], sizes = [7, 14, 128], strides = [1, 1, 1]} : vector<9x16x128xbf16> to vector<7x14x128xbf16>
    %48 = vector.shape_cast %47 : vector<7x14x128xbf16> to vector<98x128xbf16>
    %c1_34 = arith.constant 1 : index
    %c2_35 = arith.constant 2 : index
    %c0_36 = arith.constant 0 : index
    %c0_37 = arith.constant 0 : index
    %49 = vector.load %arg5[%c1_34, %c2_35, %c0_36, %c0_37] : memref<3x3x128x128xbf16, #tpu.memory_space<vmem>>, vector<1x1x128x128xbf16>
    %50 = vector.shape_cast %49 : vector<1x1x128x128xbf16> to vector<128x128xbf16>
    %cst_38 = arith.constant dense<0.000000e+00> : vector<98x128xf32>
    %51 = tpu.matmul %48, %50, %cst_38 {dimension_numbers = #tpu.dot_dimension_numbers<[1], [0], [0], [1], [0, 0, 1, 1], [], []>} : vector<98x128xbf16>, vector<128x128xbf16>, vector<98x128xf32> -> vector<98x128xf32>
    %52 = arith.addf %46, %51 : vector<98x128xf32>
    %53 = vector.extract_strided_slice %15 {offsets = [2, 0, 0], sizes = [7, 14, 128], strides = [1, 1, 1]} : vector<9x16x128xbf16> to vector<7x14x128xbf16>
    %54 = vector.shape_cast %53 : vector<7x14x128xbf16> to vector<98x128xbf16>
    %c2_39 = arith.constant 2 : index
    %c0_40 = arith.constant 0 : index
    %c0_41 = arith.constant 0 : index
    %c0_42 = arith.constant 0 : index
    %55 = vector.load %arg5[%c2_39, %c0_40, %c0_41, %c0_42] : memref<3x3x128x128xbf16, #tpu.memory_space<vmem>>, vector<1x1x128x128xbf16>
    %56 = vector.shape_cast %55 : vector<1x1x128x128xbf16> to vector<128x128xbf16>
    %cst_43 = arith.constant dense<0.000000e+00> : vector<98x128xf32>
    %57 = tpu.matmul %54, %56, %cst_43 {dimension_numbers = #tpu.dot_dimension_numbers<[1], [0], [0], [1], [0, 0, 1, 1], [], []>} : vector<98x128xbf16>, vector<128x128xbf16>, vector<98x128xf32> -> vector<98x128xf32>
    %58 = arith.addf %52, %57 : vector<98x128xf32>
    %59 = vector.extract_strided_slice %15 {offsets = [2, 1, 0], sizes = [7, 14, 128], strides = [1, 1, 1]} : vector<9x16x128xbf16> to vector<7x14x128xbf16>
    %60 = vector.shape_cast %59 : vector<7x14x128xbf16> to vector<98x128xbf16>
    %c2_44 = arith.constant 2 : index
    %c1_45 = arith.constant 1 : index
    %c0_46 = arith.constant 0 : index
    %c0_47 = arith.constant 0 : index
    %61 = vector.load %arg5[%c2_44, %c1_45, %c0_46, %c0_47] : memref<3x3x128x128xbf16, #tpu.memory_space<vmem>>, vector<1x1x128x128xbf16>
    %62 = vector.shape_cast %61 : vector<1x1x128x128xbf16> to vector<128x128xbf16>
    %cst_48 = arith.constant dense<0.000000e+00> : vector<98x128xf32>
    %63 = tpu.matmul %60, %62, %cst_48 {dimension_numbers = #tpu.dot_dimension_numbers<[1], [0], [0], [1], [0, 0, 1, 1], [], []>} : vector<98x128xbf16>, vector<128x128xbf16>, vector<98x128xf32> -> vector<98x128xf32>
    %64 = arith.addf %58, %63 : vector<98x128xf32>
    %65 = vector.extract_strided_slice %15 {offsets = [2, 2, 0], sizes = [7, 14, 128], strides = [1, 1, 1]} : vector<9x16x128xbf16> to vector<7x14x128xbf16>
    %66 = vector.shape_cast %65 : vector<7x14x128xbf16> to vector<98x128xbf16>
    %c2_49 = arith.constant 2 : index
    %c2_50 = arith.constant 2 : index
    %c0_51 = arith.constant 0 : index
    %c0_52 = arith.constant 0 : index
    %67 = vector.load %arg5[%c2_49, %c2_50, %c0_51, %c0_52] : memref<3x3x128x128xbf16, #tpu.memory_space<vmem>>, vector<1x1x128x128xbf16>
    %68 = vector.shape_cast %67 : vector<1x1x128x128xbf16> to vector<128x128xbf16>
    %cst_53 = arith.constant dense<0.000000e+00> : vector<98x128xf32>
    %69 = tpu.matmul %66, %68, %cst_53 {dimension_numbers = #tpu.dot_dimension_numbers<[1], [0], [0], [1], [0, 0, 1, 1], [], []>} : vector<98x128xbf16>, vector<128x128xbf16>, vector<98x128xf32> -> vector<98x128xf32>
    %70 = arith.addf %64, %69 : vector<98x128xf32>
    %c0_54 = arith.constant 0 : index
    %c0_55 = arith.constant 0 : index
    %71 = vector.load %arg6[%c0_54, %c0_55] : memref<1x128xf32, #tpu.memory_space<vmem>>, vector<1x128xf32>
    %72 = vector.broadcast %71 : vector<1x128xf32> to vector<98x128xf32>
    %73 = arith.addf %70, %72 : vector<98x128xf32>
    %cst_56 = arith.constant 0.000000e+00 : f32
    %74 = vector.broadcast %cst_56 : f32 to vector<98x128xf32>
    %75 = arith.maximumf %73, %74 : vector<98x128xf32>
    %76 = arith.truncf %75 : vector<98x128xf32> to vector<98x128xbf16>
    %c0_57 = arith.constant 0 : index
    %c0_58 = arith.constant 0 : index
    %77 = vector.load %arg7[%c0_57, %c0_58] : memref<128x128xbf16, #tpu.memory_space<vmem>>, vector<128x128xbf16>
    %cst_59 = arith.constant dense<0.000000e+00> : vector<98x128xf32>
    %78 = tpu.matmul %76, %77, %cst_59 {dimension_numbers = #tpu.dot_dimension_numbers<[1], [0], [0], [1], [0, 0, 1, 1], [], []>} : vector<98x128xbf16>, vector<128x128xbf16>, vector<98x128xf32> -> vector<98x128xf32>
    %79 = vector.extract_strided_slice %5 {offsets = [0, 0, 0], sizes = [7, 14, 16], strides = [1, 1, 1]} : vector<9x16x16xbf16> to vector<7x14x16xbf16>
    %80 = vector.shape_cast %79 : vector<7x14x16xbf16> to vector<98x16xbf16>
    %c0_60 = arith.constant 0 : index
    %c0_61 = arith.constant 0 : index
    %c0_62 = arith.constant 0 : index
    %c0_63 = arith.constant 0 : index
    %81 = vector.load %arg8[%c0_60, %c0_61, %c0_62, %c0_63] : memref<3x3x16x128xbf16, #tpu.memory_space<vmem>>, vector<1x1x16x128xbf16>
    %82 = vector.shape_cast %81 : vector<1x1x16x128xbf16> to vector<16x128xbf16>
    %cst_64 = arith.constant dense<0.000000e+00> : vector<98x128xf32>
    %83 = tpu.matmul %80, %82, %cst_64 {dimension_numbers = #tpu.dot_dimension_numbers<[1], [0], [0], [1], [0, 0, 1, 1], [], []>} : vector<98x16xbf16>, vector<16x128xbf16>, vector<98x128xf32> -> vector<98x128xf32>
    %84 = arith.addf %78, %83 : vector<98x128xf32>
    %85 = vector.extract_strided_slice %5 {offsets = [0, 1, 0], sizes = [7, 14, 16], strides = [1, 1, 1]} : vector<9x16x16xbf16> to vector<7x14x16xbf16>
    %86 = vector.shape_cast %85 : vector<7x14x16xbf16> to vector<98x16xbf16>
    %c0_65 = arith.constant 0 : index
    %c1_66 = arith.constant 1 : index
    %c0_67 = arith.constant 0 : index
    %c0_68 = arith.constant 0 : index
    %87 = vector.load %arg8[%c0_65, %c1_66, %c0_67, %c0_68] : memref<3x3x16x128xbf16, #tpu.memory_space<vmem>>, vector<1x1x16x128xbf16>
    %88 = vector.shape_cast %87 : vector<1x1x16x128xbf16> to vector<16x128xbf16>
    %cst_69 = arith.constant dense<0.000000e+00> : vector<98x128xf32>
    %89 = tpu.matmul %86, %88, %cst_69 {dimension_numbers = #tpu.dot_dimension_numbers<[1], [0], [0], [1], [0, 0, 1, 1], [], []>} : vector<98x16xbf16>, vector<16x128xbf16>, vector<98x128xf32> -> vector<98x128xf32>
    %90 = arith.addf %84, %89 : vector<98x128xf32>
    %91 = vector.extract_strided_slice %5 {offsets = [0, 2, 0], sizes = [7, 14, 16], strides = [1, 1, 1]} : vector<9x16x16xbf16> to vector<7x14x16xbf16>
    %92 = vector.shape_cast %91 : vector<7x14x16xbf16> to vector<98x16xbf16>
    %c0_70 = arith.constant 0 : index
    %c2_71 = arith.constant 2 : index
    %c0_72 = arith.constant 0 : index
    %c0_73 = arith.constant 0 : index
    %93 = vector.load %arg8[%c0_70, %c2_71, %c0_72, %c0_73] : memref<3x3x16x128xbf16, #tpu.memory_space<vmem>>, vector<1x1x16x128xbf16>
    %94 = vector.shape_cast %93 : vector<1x1x16x128xbf16> to vector<16x128xbf16>
    %cst_74 = arith.constant dense<0.000000e+00> : vector<98x128xf32>
    %95 = tpu.matmul %92, %94, %cst_74 {dimension_numbers = #tpu.dot_dimension_numbers<[1], [0], [0], [1], [0, 0, 1, 1], [], []>} : vector<98x16xbf16>, vector<16x128xbf16>, vector<98x128xf32> -> vector<98x128xf32>
    %96 = arith.addf %90, %95 : vector<98x128xf32>
    %97 = vector.extract_strided_slice %5 {offsets = [1, 0, 0], sizes = [7, 14, 16], strides = [1, 1, 1]} : vector<9x16x16xbf16> to vector<7x14x16xbf16>
    %98 = vector.shape_cast %97 : vector<7x14x16xbf16> to vector<98x16xbf16>
    %c1_75 = arith.constant 1 : index
    %c0_76 = arith.constant 0 : index
    %c0_77 = arith.constant 0 : index
    %c0_78 = arith.constant 0 : index
    %99 = vector.load %arg8[%c1_75, %c0_76, %c0_77, %c0_78] : memref<3x3x16x128xbf16, #tpu.memory_space<vmem>>, vector<1x1x16x128xbf16>
    %100 = vector.shape_cast %99 : vector<1x1x16x128xbf16> to vector<16x128xbf16>
    %cst_79 = arith.constant dense<0.000000e+00> : vector<98x128xf32>
    %101 = tpu.matmul %98, %100, %cst_79 {dimension_numbers = #tpu.dot_dimension_numbers<[1], [0], [0], [1], [0, 0, 1, 1], [], []>} : vector<98x16xbf16>, vector<16x128xbf16>, vector<98x128xf32> -> vector<98x128xf32>
    %102 = arith.addf %96, %101 : vector<98x128xf32>
    %103 = vector.extract_strided_slice %5 {offsets = [1, 1, 0], sizes = [7, 14, 16], strides = [1, 1, 1]} : vector<9x16x16xbf16> to vector<7x14x16xbf16>
    %104 = vector.shape_cast %103 : vector<7x14x16xbf16> to vector<98x16xbf16>
    %c1_80 = arith.constant 1 : index
    %c1_81 = arith.constant 1 : index
    %c0_82 = arith.constant 0 : index
    %c0_83 = arith.constant 0 : index
    %105 = vector.load %arg8[%c1_80, %c1_81, %c0_82, %c0_83] : memref<3x3x16x128xbf16, #tpu.memory_space<vmem>>, vector<1x1x16x128xbf16>
    %106 = vector.shape_cast %105 : vector<1x1x16x128xbf16> to vector<16x128xbf16>
    %cst_84 = arith.constant dense<0.000000e+00> : vector<98x128xf32>
    %107 = tpu.matmul %104, %106, %cst_84 {dimension_numbers = #tpu.dot_dimension_numbers<[1], [0], [0], [1], [0, 0, 1, 1], [], []>} : vector<98x16xbf16>, vector<16x128xbf16>, vector<98x128xf32> -> vector<98x128xf32>
    %108 = arith.addf %102, %107 : vector<98x128xf32>
    %109 = vector.extract_strided_slice %5 {offsets = [1, 2, 0], sizes = [7, 14, 16], strides = [1, 1, 1]} : vector<9x16x16xbf16> to vector<7x14x16xbf16>
    %110 = vector.shape_cast %109 : vector<7x14x16xbf16> to vector<98x16xbf16>
    %c1_85 = arith.constant 1 : index
    %c2_86 = arith.constant 2 : index
    %c0_87 = arith.constant 0 : index
    %c0_88 = arith.constant 0 : index
    %111 = vector.load %arg8[%c1_85, %c2_86, %c0_87, %c0_88] : memref<3x3x16x128xbf16, #tpu.memory_space<vmem>>, vector<1x1x16x128xbf16>
    %112 = vector.shape_cast %111 : vector<1x1x16x128xbf16> to vector<16x128xbf16>
    %cst_89 = arith.constant dense<0.000000e+00> : vector<98x128xf32>
    %113 = tpu.matmul %110, %112, %cst_89 {dimension_numbers = #tpu.dot_dimension_numbers<[1], [0], [0], [1], [0, 0, 1, 1], [], []>} : vector<98x16xbf16>, vector<16x128xbf16>, vector<98x128xf32> -> vector<98x128xf32>
    %114 = arith.addf %108, %113 : vector<98x128xf32>
    %115 = vector.extract_strided_slice %5 {offsets = [2, 0, 0], sizes = [7, 14, 16], strides = [1, 1, 1]} : vector<9x16x16xbf16> to vector<7x14x16xbf16>
    %116 = vector.shape_cast %115 : vector<7x14x16xbf16> to vector<98x16xbf16>
    %c2_90 = arith.constant 2 : index
    %c0_91 = arith.constant 0 : index
    %c0_92 = arith.constant 0 : index
    %c0_93 = arith.constant 0 : index
    %117 = vector.load %arg8[%c2_90, %c0_91, %c0_92, %c0_93] : memref<3x3x16x128xbf16, #tpu.memory_space<vmem>>, vector<1x1x16x128xbf16>
    %118 = vector.shape_cast %117 : vector<1x1x16x128xbf16> to vector<16x128xbf16>
    %cst_94 = arith.constant dense<0.000000e+00> : vector<98x128xf32>
    %119 = tpu.matmul %116, %118, %cst_94 {dimension_numbers = #tpu.dot_dimension_numbers<[1], [0], [0], [1], [0, 0, 1, 1], [], []>} : vector<98x16xbf16>, vector<16x128xbf16>, vector<98x128xf32> -> vector<98x128xf32>
    %120 = arith.addf %114, %119 : vector<98x128xf32>
    %121 = vector.extract_strided_slice %5 {offsets = [2, 1, 0], sizes = [7, 14, 16], strides = [1, 1, 1]} : vector<9x16x16xbf16> to vector<7x14x16xbf16>
    %122 = vector.shape_cast %121 : vector<7x14x16xbf16> to vector<98x16xbf16>
    %c2_95 = arith.constant 2 : index
    %c1_96 = arith.constant 1 : index
    %c0_97 = arith.constant 0 : index
    %c0_98 = arith.constant 0 : index
    %123 = vector.load %arg8[%c2_95, %c1_96, %c0_97, %c0_98] : memref<3x3x16x128xbf16, #tpu.memory_space<vmem>>, vector<1x1x16x128xbf16>
    %124 = vector.shape_cast %123 : vector<1x1x16x128xbf16> to vector<16x128xbf16>
    %cst_99 = arith.constant dense<0.000000e+00> : vector<98x128xf32>
    %125 = tpu.matmul %122, %124, %cst_99 {dimension_numbers = #tpu.dot_dimension_numbers<[1], [0], [0], [1], [0, 0, 1, 1], [], []>} : vector<98x16xbf16>, vector<16x128xbf16>, vector<98x128xf32> -> vector<98x128xf32>
    %126 = arith.addf %120, %125 : vector<98x128xf32>
    %127 = vector.extract_strided_slice %5 {offsets = [2, 2, 0], sizes = [7, 14, 16], strides = [1, 1, 1]} : vector<9x16x16xbf16> to vector<7x14x16xbf16>
    %128 = vector.shape_cast %127 : vector<7x14x16xbf16> to vector<98x16xbf16>
    %c2_100 = arith.constant 2 : index
    %c2_101 = arith.constant 2 : index
    %c0_102 = arith.constant 0 : index
    %c0_103 = arith.constant 0 : index
    %129 = vector.load %arg8[%c2_100, %c2_101, %c0_102, %c0_103] : memref<3x3x16x128xbf16, #tpu.memory_space<vmem>>, vector<1x1x16x128xbf16>
    %130 = vector.shape_cast %129 : vector<1x1x16x128xbf16> to vector<16x128xbf16>
    %cst_104 = arith.constant dense<0.000000e+00> : vector<98x128xf32>
    %131 = tpu.matmul %128, %130, %cst_104 {dimension_numbers = #tpu.dot_dimension_numbers<[1], [0], [0], [1], [0, 0, 1, 1], [], []>} : vector<98x16xbf16>, vector<16x128xbf16>, vector<98x128xf32> -> vector<98x128xf32>
    %132 = arith.addf %126, %131 : vector<98x128xf32>
    %c0_105 = arith.constant 0 : index
    %c0_106 = arith.constant 0 : index
    %133 = vector.load %arg9[%c0_105, %c0_106] : memref<1x128xf32, #tpu.memory_space<vmem>>, vector<1x128xf32>
    %134 = vector.broadcast %133 : vector<1x128xf32> to vector<98x128xf32>
    %135 = arith.addf %132, %134 : vector<98x128xf32>
    %cst_107 = arith.constant 0.000000e+00 : f32
    %136 = vector.broadcast %cst_107 : f32 to vector<98x128xf32>
    %137 = arith.maximumf %135, %136 : vector<98x128xf32>
    %138 = vector.shape_cast %137 : vector<98x128xf32> to vector<1x7x14x128xf32>
    %c0_108 = arith.constant 0 : index
    %c0_109 = arith.constant 0 : index
    %c0_110 = arith.constant 0 : index
    %c0_111 = arith.constant 0 : index
    %139 = vector.load %arg10[%c0_108, %c0_109, %c0_110, %c0_111] : memref<1x7x14x128xf32, #tpu.memory_space<vmem>>, vector<1x7x14x128xf32>
    tpu.vector_store %arg10[%c0_108, %c0_109, %c0_110, %c0_111], %138 {strides = array<i32>} : memref<1x7x14x128xf32, #tpu.memory_space<vmem>>, vector<1x7x14x128xf32>,
    return
  }
  func.func @transform_1(%arg0: i32, %arg1: i32) -> (i32, i32) {
    %c0_i32 = arith.constant 0 : i32
    %c0_i32_0 = arith.constant 0 : i32
    %c0_i32_1 = arith.constant 0 : i32
    return %c0_i32, %c0_i32_0 : i32, i32
  }
  func.func @transform_2(%arg0: i32, %arg1: i32) -> (i32, i32) {
    %c0_i32 = arith.constant 0 : i32
    %c0_i32_0 = arith.constant 0 : i32
    %c0_i32_1 = arith.constant 0 : i32
    return %c0_i32, %c0_i32_0 : i32, i32
  }
  func.func @transform_3(%arg0: i32, %arg1: i32) -> (i32, i32, i32, i32) {
    %c0_i32 = arith.constant 0 : i32
    %c0_i32_0 = arith.constant 0 : i32
    %c0_i32_1 = arith.constant 0 : i32
    %c0_i32_2 = arith.constant 0 : i32
    %c0_i32_3 = arith.constant 0 : i32
    return %c0_i32, %c0_i32_0, %c0_i32_1, %c0_i32_2 : i32, i32, i32, i32
  }
  func.func @transform_4(%arg0: i32, %arg1: i32) -> (i32, i32) {
    %c0_i32 = arith.constant 0 : i32
    %c0_i32_0 = arith.constant 0 : i32
    %c0_i32_1 = arith.constant 0 : i32
    return %c0_i32, %c0_i32_0 : i32, i32
  }
  func.func @transform_5(%arg0: i32, %arg1: i32) -> (i32, i32) {
    %c0_i32 = arith.constant 0 : i32
    %c0_i32_0 = arith.constant 0 : i32
    %c0_i32_1 = arith.constant 0 : i32
    return %c0_i32, %c0_i32_0 : i32, i32
  }
  func.func @transform_6(%arg0: i32, %arg1: i32) -> (i32, i32, i32, i32) {
    %c0_i32 = arith.constant 0 : i32
    %c0_i32_0 = arith.constant 0 : i32
    %c0_i32_1 = arith.constant 0 : i32
    %c0_i32_2 = arith.constant 0 : i32
    %c0_i32_3 = arith.constant 0 : i32
    return %c0_i32, %c0_i32_0, %c0_i32_1, %c0_i32_2 : i32, i32, i32, i32
  }
  func.func @transform_7(%arg0: i32, %arg1: i32) -> (i32, i32) {
    %c0_i32 = arith.constant 0 : i32
    %c0_i32_0 = arith.constant 0 : i32
    %c0_i32_1 = arith.constant 0 : i32
    return %c0_i32, %c0_i32_0 : i32, i32
  }
  func.func @transform_8(%arg0: i32, %arg1: i32) -> (i32, i32, i32, i32) {
    %c0_i32 = arith.constant 0 : i32
    %c0_i32_0 = arith.constant 0 : i32
    %c0_i32_1 = arith.constant 0 : i32
    return %arg0, %arg1, %c0_i32, %c0_i32_0 : i32, i32, i32, i32
  }
}

</mosaic_0001>

<llo_original>
// kernel: bottleneck_pallas.1
$region0: #{bottleneck_pallas.1}
  #allocation0 [shape = 'u32[]', space=smem, size = 0x4, offset = 0x4, fixed_abs, tag = 'smem constant byte address 0x4 - core index']
  #allocation1 [shape = 'u32[144,128]{1,0:T(1,128)}', space=vmem, size = 0x12000, scoped, tag = 'internal scratch']
  #allocation2 [shape = 'bf16[9,16,16]{2,1,0:T(16,128)(2,1)}', space=vmem, size = 0x9000, scoped, tag = 'scratch operand']
  #allocation3 [shape = 's32[1]{0}', space=sflag, size = 0x4, scoped, tag = 'scratch operand']
  #allocation4 [shape = 's32[]', space=sflag, size = 0x4, offset = 0, fixed_abs, tag = 'sflag constant byte address 0x0 - dummy sync flag']
  %s0 = inlined_call_operand.vmem [shape: bf16[2,16,16,16], index: 0, kind: input, shape index: {}]
  %s1 = inlined_call_operand.vmem [shape: bf16[16,128], index: 1, kind: input, shape index: {}]
  %s2 = inlined_call_operand.vmem [shape: f32[1,128], index: 2, kind: input, shape index: {}]
  %s3 = inlined_call_operand.vmem [shape: bf16[3,3,128,128], index: 3, kind: input, shape index: {}]
  %s4 = inlined_call_operand.vmem [shape: f32[1,128], index: 4, kind: input, shape index: {}]
  %s5 = inlined_call_operand.vmem [shape: bf16[128,128], index: 5, kind: input, shape index: {}]
  %s6 = inlined_call_operand.vmem [shape: bf16[3,3,16,128], index: 6, kind: input, shape index: {}]
  %s7 = inlined_call_operand.vmem [shape: f32[1,128], index: 7, kind: input, shape index: {}]
  %s8 = inlined_call_operand.vmem [shape: f32[2,14,14,128], index: 8, kind: output, shape index: {}]
  %s9 = sld [smem:[#allocation0]]
  $region95: #{bottleneck_pallas.1} parent=0
    _
  %s11 = ssub.s32 1, %s9
  %s12 = scalar_select 0, %s11, %s9
  loop: start=0, step=1, limit=6
  $region2: #{bottleneck_pallas.1} parent=0 // loop_pre_header
    _
  $region3: #{bottleneck_pallas.1} parent=0 // loop_header
    %s14 = sphi 0, %s18
    %p15 = scmp.ge.s32.totalorder %s14, 6
    %s21 = sphi 0, %s33
    %s22 = sphi 0, %s29
    %s23 = sphi 0, %s21
    %s24 = sphi 0, %s22
    %s25 = sphi 0, %s23
    %s26 = sphi 0, %s24
    %s34 = sphi 0, %s34
    %s36 = sphi 0, %s34
    %s37 = sphi 0, %s36
    %s51 = sphi 0, %s37
    %s55 = sphi 0, %s55
    %s57 = sphi 0, %s55
    %s58 = sphi 0, %s57
    %s72 = sphi 0, %s58
    %s76 = sphi 0, %s76
    %s78 = sphi 0, %s76
    %s79 = sphi 0, %s78
    %s93 = sphi 0, %s79
    %s97 = sphi 0, %s97
    %s99 = sphi 0, %s97
    %s100 = sphi 0, %s99
    %s114 = sphi 0, %s100
    %s118 = sphi 0, %s118
    %s120 = sphi 0, %s118
    %s121 = sphi 0, %s120
    %s135 = sphi 0, %s121
    %s139 = sphi 0, %s139
    %s141 = sphi 0, %s139
    %s142 = sphi 0, %s141
    %s156 = sphi 0, %s142
    %s160 = sphi 0, %s160
    %s162 = sphi 0, %s160
    %s163 = sphi 0, %s162
    %s177 = sphi 0, %s163
    %s185 = sphi 0, %s187
    %s188 = sphi 0, %s185
    %s189 = sphi 0, %s188
    %s205 = sphi 0, %s189
  $region4: #{bottleneck_pallas.1} parent=0 // loop_header_branch
    %17 = sbr.rel (%p15) target = $region8
  $region5: #{bottleneck_pallas.1} parent=0 // loop_body
    %s19 = ssub.s32 %s14, 1
    %s20 = ssub.s32 %s14, 2
    %s27 = sadd.s32 1, %s22
    %p28 = scmp.ge.s32.totalorder %s27, 2
    %s29 = scalar_select %p28, 0, %s27
    %s30 = sadd.s32 1, %s21
    %s31 = scalar_select %p28, %s30, %s21
    %p32 = scmp.ge.s32.totalorder %s31, 2
    %s33 = scalar_select %p32, 0, %s31
    %s35 = sadd.s32 %s34, 1
    %p38 = scmp.eq.s32.totalorder %s14, 3
    %p39 = scmp.ne.s32.totalorder %s34, %s36
    %p40 = scmp.eq.s32.totalorder %s14, 0
    %p41 = por %p39, %p40
    %p42 = scmp.ne.s32.totalorder %s34, %s36
    %p43 = scmp.eq.s32.totalorder %s19, 3
    %p44 = por %p42, %p43
    %p45 = scmp.ne.s32.totalorder %s36, %s37
    %p46 = scmp.eq.s32.totalorder %s19, 0
    %p47 = por %p45, %p46
    %p48 = scmp.ne.s32.totalorder %s36, %s37
    %p49 = scmp.eq.s32.totalorder %s20, 3
    %p50 = por %p48, %p49
    %p52 = scmp.ne.s32.totalorder %s37, %s51
    %p53 = scmp.eq.s32.totalorder %s20, 0
    %p54 = por %p52, %p53
    %s56 = sadd.s32 %s55, 1
    %p59 = scmp.eq.s32.totalorder %s14, 3
    %p60 = scmp.ne.s32.totalorder %s55, %s57
    %p61 = scmp.eq.s32.totalorder %s14, 0
    %p62 = por %p60, %p61
    %p63 = scmp.ne.s32.totalorder %s55, %s57
    %p64 = scmp.eq.s32.totalorder %s19, 3
    %p65 = por %p63, %p64
    %p66 = scmp.ne.s32.totalorder %s57, %s58
    %p67 = scmp.eq.s32.totalorder %s19, 0
    %p68 = por %p66, %p67
    %p69 = scmp.ne.s32.totalorder %s57, %s58
    %p70 = scmp.eq.s32.totalorder %s20, 3
    %p71 = por %p69, %p70
    %p73 = scmp.ne.s32.totalorder %s58, %s72
    %p74 = scmp.eq.s32.totalorder %s20, 0
    %p75 = por %p73, %p74
    %s77 = sadd.s32 %s76, 1
    %p80 = scmp.eq.s32.totalorder %s14, 3
    %p81 = scmp.ne.s32.totalorder %s76, %s78
    %p82 = scmp.eq.s32.totalorder %s14, 0
    %p83 = por %p81, %p82
    %p84 = scmp.ne.s32.totalorder %s76, %s78
    %p85 = scmp.eq.s32.totalorder %s19, 3
    %p86 = por %p84, %p85
    %p87 = scmp.ne.s32.totalorder %s78, %s79
    %p88 = scmp.eq.s32.totalorder %s19, 0
    %p89 = por %p87, %p88
    %p90 = scmp.ne.s32.totalorder %s78, %s79
    %p91 = scmp.eq.s32.totalorder %s20, 3
    %p92 = por %p90, %p91
    %p94 = scmp.ne.s32.totalorder %s79, %s93
    %p95 = scmp.eq.s32.totalorder %s20, 0
    %p96 = por %p94, %p95
    %s98 = sadd.s32 %s97, 1
    %p101 = scmp.eq.s32.totalorder %s14, 3
    %p102 = scmp.ne.s32.totalorder %s97, %s99
    %p103 = scmp.eq.s32.totalorder %s14, 0
    %p104 = por %p102, %p103
    %p105 = scmp.ne.s32.totalorder %s97, %s99
    %p106 = scmp.eq.s32.totalorder %s19, 3
    %p107 = por %p105, %p106
    %p108 = scmp.ne.s32.totalorder %s99, %s100
    %p109 = scmp.eq.s32.totalorder %s19, 0
    %p110 = por %p108, %p109
    %p111 = scmp.ne.s32.totalorder %s99, %s100
    %p112 = scmp.eq.s32.totalorder %s20, 3
    %p113 = por %p111, %p112
    %p115 = scmp.ne.s32.totalorder %s100, %s114
    %p116 = scmp.eq.s32.totalorder %s20, 0
    %p117 = por %p115, %p116
    %s119 = sadd.s32 %s118, 1
    %p122 = scmp.eq.s32.totalorder %s14, 3
    %p123 = scmp.ne.s32.totalorder %s118, %s120
    %p124 = scmp.eq.s32.totalorder %s14, 0
    %p125 = por %p123, %p124
    %p126 = scmp.ne.s32.totalorder %s118, %s120
    %p127 = scmp.eq.s32.totalorder %s19, 3
    %p128 = por %p126, %p127
    %p129 = scmp.ne.s32.totalorder %s120, %s121
    %p130 = scmp.eq.s32.totalorder %s19, 0
    %p131 = por %p129, %p130
    %p132 = scmp.ne.s32.totalorder %s120, %s121
    %p133 = scmp.eq.s32.totalorder %s20, 3
    %p134 = por %p132, %p133
    %p136 = scmp.ne.s32.totalorder %s121, %s135
    %p137 = scmp.eq.s32.totalorder %s20, 0
    %p138 = por %p136, %p137
    %s140 = sadd.s32 %s139, 1
    %p143 = scmp.eq.s32.totalorder %s14, 3
    %p144 = scmp.ne.s32.totalorder %s139, %s141
    %p145 = scmp.eq.s32.totalorder %s14, 0
    %p146 = por %p144, %p145
    %p147 = scmp.ne.s32.totalorder %s139, %s141
    %p148 = scmp.eq.s32.totalorder %s19, 3
    %p149 = por %p147, %p148
    %p150 = scmp.ne.s32.totalorder %s141, %s142
    %p151 = scmp.eq.s32.totalorder %s19, 0
    %p152 = por %p150, %p151
    %p153 = scmp.ne.s32.totalorder %s141, %s142
    %p154 = scmp.eq.s32.totalorder %s20, 3
    %p155 = por %p153, %p154
    %p157 = scmp.ne.s32.totalorder %s142, %s156
    %p158 = scmp.eq.s32.totalorder %s20, 0
    %p159 = por %p157, %p158
    %s161 = sadd.s32 %s160, 1
    %p164 = scmp.eq.s32.totalorder %s14, 3
    %p165 = scmp.ne.s32.totalorder %s160, %s162
    %p166 = scmp.eq.s32.totalorder %s14, 0
    %p167 = por %p165, %p166
    %p168 = scmp.ne.s32.totalorder %s160, %s162
    %p169 = scmp.eq.s32.totalorder %s19, 3
    %p170 = por %p168, %p169
    %p171 = scmp.ne.s32.totalorder %s162, %s163
    %p172 = scmp.eq.s32.totalorder %s19, 0
    %p173 = por %p171, %p172
    %p174 = scmp.ne.s32.totalorder %s162, %s163
    %p175 = scmp.eq.s32.totalorder %s20, 3
    %p176 = por %p174, %p175
    %p178 = scmp.ne.s32.totalorder %s163, %s177
    %p179 = scmp.eq.s32.totalorder %s20, 0
    %p180 = por %p178, %p179
    %s181 = ssub.s32 %s21, %s33
    %s182 = ssub.s32 %s22, %s29
    %s183 = sor.u32 %s181, %s182
    %p184 = scmp.eq.s32.totalorder %s183, 0
    %s186 = sadd.s32 %s185, 1
    %s187 = scalar_select %p184, %s185, %s186
    %p190 = pneg %p184
    %p191 = scmp.eq.s32.totalorder %s14, 3
    %p192 = por %p190, %p191
    %p193 = scmp.ne.s32.totalorder %s185, %s188
    %p194 = scmp.eq.s32.totalorder %s14, 0
    %p195 = por %p193, %p194
    %p196 = scmp.ne.s32.totalorder %s185, %s188
    %p197 = scmp.eq.s32.totalorder %s19, 3
    %p198 = por %p196, %p197
    %p199 = scmp.ne.s32.totalorder %s188, %s189
    %p200 = scmp.eq.s32.totalorder %s19, 0
    %p201 = por %p199, %p200
    %p202 = scmp.ne.s32.totalorder %s188, %s189
    %p203 = scmp.eq.s32.totalorder %s20, 3
    %p204 = por %p202, %p203
    %p206 = scmp.ne.s32.totalorder %s189, %s205
    %p207 = scmp.eq.s32.totalorder %s20, 0
    %p208 = por %p206, %p207
    %p209 = scmp.le.s32.totalorder 1, %s14
    %p210 = scmp.lt.s32.totalorder %s14, 5
    %p211 = pnand %p209, %p210
    %p212 = pneg %p211
    // Predicated region
    $region9: #{bottleneck_pallas.1} parent=5 // pred_check
      _
    $region10: #{bottleneck_pallas.1} parent=5 // pred_check_branch
      %214 = sbr.rel (%p211) target = $region12
    $region11: #{bottleneck_pallas.1} parent=5 // pred_region
      %s215 = ssub.s32 %s14, 1
      // Predicated region
      $region13: #{bottleneck_pallas.1} parent=11 // pred_check
        %p216 = pneg %p47
      $region14: #{bottleneck_pallas.1} parent=11 // pred_check_branch
        %218 = sbr.rel (%p216) target = $region16
      $region15: #{bottleneck_pallas.1} parent=11 // pred_region
        _
      $region16: #{bottleneck_pallas.1} parent=11 // pred_fallthru
        _
      // Predicated region
      $region17: #{bottleneck_pallas.1} parent=11 // pred_check
        %p219 = pneg %p68
      $region18: #{bottleneck_pallas.1} parent=11 // pred_check_branch
        %221 = sbr.rel (%p219) target = $region20
      $region19: #{bottleneck_pallas.1} parent=11 // pred_region
        _
      $region20: #{bottleneck_pallas.1} parent=11 // pred_fallthru
        _
      // Predicated region
      $region21: #{bottleneck_pallas.1} parent=11 // pred_check
        %p222 = pneg %p89
      $region22: #{bottleneck_pallas.1} parent=11 // pred_check_branch
        %224 = sbr.rel (%p222) target = $region24
      $region23: #{bottleneck_pallas.1} parent=11 // pred_region
        _
      $region24: #{bottleneck_pallas.1} parent=11 // pred_fallthru
        _
      // Predicated region
      $region25: #{bottleneck_pallas.1} parent=11 // pred_check
        %p225 = pneg %p110
      $region26: #{bottleneck_pallas.1} parent=11 // pred_check_branch
        %227 = sbr.rel (%p225) target = $region28
      $region27: #{bottleneck_pallas.1} parent=11 // pred_region
        _
      $region28: #{bottleneck_pallas.1} parent=11 // pred_fallthru
        _
      // Predicated region
      $region29: #{bottleneck_pallas.1} parent=11 // pred_check
        %p228 = pneg %p131
      $region30: #{bottleneck_pallas.1} parent=11 // pred_check_branch
        %230 = sbr.rel (%p228) target = $region32
      $region31: #{bottleneck_pallas.1} parent=11 // pred_region
        _
      $region32: #{bottleneck_pallas.1} parent=11 // pred_fallthru
        _
      // Predicated region
      $region33: #{bottleneck_pallas.1} parent=11 // pred_check
        %p231 = pneg %p152
      $region34: #{bottleneck_pallas.1} parent=11 // pred_check_branch
        %233 = sbr.rel (%p231) target = $region36
      $region35: #{bottleneck_pallas.1} parent=11 // pred_region
        _
      $region36: #{bottleneck_pallas.1} parent=11 // pred_fallthru
        _
      // Predicated region
      $region37: #{bottleneck_pallas.1} parent=11 // pred_check
        %p234 = pneg %p173
      $region38: #{bottleneck_pallas.1} parent=11 // pred_check_branch
        %236 = sbr.rel (%p234) target = $region40
      $region39: #{bottleneck_pallas.1} parent=11 // pred_region
        _
      $region40: #{bottleneck_pallas.1} parent=11 // pred_fallthru
        _
    $region12: #{bottleneck_pallas.1} parent=5 // pred_fallthru
      _
    %p237 = scmp.lt.s32.totalorder %s14, 4
    // Predicated region
    $region41: #{bottleneck_pallas.1} parent=5 // pred_check
      %p238 = pneg %p237
    $region42: #{bottleneck_pallas.1} parent=5 // pred_check_branch
      %240 = sbr.rel (%p238) target = $region44
    $region43: #{bottleneck_pallas.1} parent=5 // pred_region
      _
    $region44: #{bottleneck_pallas.1} parent=5 // pred_fallthru
      _
    %p241 = scmp.le.s32.totalorder 1, %s14
    %p242 = scmp.lt.s32.totalorder %s14, 5
    %p243 = pnand %p241, %p242
    %p244 = pneg %p243
    // Predicated region
    $region45: #{bottleneck_pallas.1} parent=5 // pred_check
      _
    $region46: #{bottleneck_pallas.1} parent=5 // pred_check_branch
      %246 = sbr.rel (%p243) target = $region48
    $region47: #{bottleneck_pallas.1} parent=5 // pred_region
      %s247 = ssub.s32 %s14, 1
      %p248 = pneg %p47
      %p249 = pneg %p44
      %p250 = pneg %p68
      %p251 = pneg %p65
      %p252 = pneg %p89
      %p253 = pneg %p86
      %p254 = pneg %p110
      %p255 = pneg %p107
      %p256 = pneg %p131
      %p257 = pneg %p128
      %p258 = pneg %p152
      %p259 = pneg %p149
      %p260 = pneg %p173
      %p261 = pneg %p170
      %p262 = pneg %p201
      %p263 = pneg %p198
      %s264 = smul.u32 7, %s24
      %p265 = scmp.lt.s32.totalorder %s23, 1
      %s266 = scalar_select %p265, %s23, 1
      %p267 = scmp.lt.s32.totalorder %s264, 13
      %s268 = scalar_select %p267, %s264, 13
      %s269 = smul.addr %s268, 2
      %s270 = smul.addr %s266, 28
      %s271 = sadd.s32 %s269, %s270
      %s272 = smul.addr %s271, 8
      %s273 = scalar_lea.vmem %s8, %s272
      %s274 = smul.u32 7, %s24
      %p275 = scmp.lt.s32.totalorder %s23, 1
      %s276 = scalar_select %p275, %s23, 1
      %p277 = scmp.lt.s32.totalorder %s274, 13
      %s278 = scalar_select %p277, %s274, 13
      %s279 = smul.addr %s278, 2
      %s280 = smul.addr %s276, 28
      %s281 = sadd.s32 %s279, %s280
      %s282 = smul.addr %s281, 8
      %s283 = scalar_lea.vmem %s8, %s282
      %s284 = smul.u32 7, %s24
      %s286 = smul.u32 %s24, 7
      %s287 = smul.u32 %s286, 2
      %s288 = smul.u32 %s23, 32
      %s289 = sadd.s32 %s287, %s288
      %s290 = smul.addr %s289, 4
      %s291 = scalar_lea.vmem %s0, %s290
      %p293 = scmp.lt.u32.totalorder 72, 8
      %p294 = pneg %p293
      // Predicated region
      $region49: #{bottleneck_pallas.1} parent=47 // pred_check
        _
      $region50: #{bottleneck_pallas.1} parent=47 // pred_check_branch
        %296 = sbr.rel (%p293) target = $region52
      $region51: #{bottleneck_pallas.1} parent=47 // pred_region
        %s311 = sand.u32 72, 7
        %p312 = scmp.eq.s32.totalorder %s311, 0
        // Predicated region
        $region64: #{bottleneck_pallas.1} parent=51 // pred_check
          %p313 = pneg %p312
        $region65: #{bottleneck_pallas.1} parent=51 // pred_check_branch
          %315 = sbr.rel (%p313) target = $region67
        $region66: #{bottleneck_pallas.1} parent=51 // pred_region
          loop: start=0, step=1, limit=1
          $region68: #{bottleneck_pallas.1} parent=66 // loop_pre_header
            _
          $region69: #{bottleneck_pallas.1} parent=66 // loop_header
            %s317 = sphi 0, %s321
            %p318 = scmp.ge.s32.totalorder %s317, 1
            %s322 = sphi %s291, %s291
            %s323 = sphi [#allocation2], [#allocation2]
          $region70: #{bottleneck_pallas.1} parent=66 // loop_header_branch
            %320 = sbr.rel (%p318) target = $region74
          $region71: #{bottleneck_pallas.1} parent=66 // loop_body
            %v324 = vld [vmem:[%s322] sm:$0xff]
            %325 = vst [vmem:[%s323] sm:$0xff] %v324
            %v326 = vld [vmem:[%s322 + $0x8] sm:$0xff]
            %327 = vst [vmem:[%s323 + $0x8] sm:$0xff] %v326
            %v328 = vld [vmem:[%s322 + $0x10] sm:$0xff]
            %329 = vst [vmem:[%s323 + $0x10] sm:$0xff] %v328
            %v330 = vld [vmem:[%s322 + $0x18] sm:$0xff]
            %331 = vst [vmem:[%s323 + $0x18] sm:$0xff] %v330
            %v332 = vld [vmem:[%s322 + $0x20] sm:$0xff]
            %333 = vst [vmem:[%s323 + $0x20] sm:$0xff] %v332
            %v334 = vld [vmem:[%s322 + $0x28] sm:$0xff]
            %335 = vst [vmem:[%s323 + $0x28] sm:$0xff] %v334
            %v336 = vld [vmem:[%s322 + $0x30] sm:$0xff]
            %337 = vst [vmem:[%s323 + $0x30] sm:$0xff] %v336
            %v338 = vld [vmem:[%s322 + $0x38] sm:$0xff]
            %339 = vst [vmem:[%s323 + $0x38] sm:$0xff] %v338
            %v340 = vld [vmem:[%s322 + $0x40] sm:$0xff]
            %341 = vst [vmem:[%s323 + $0x40] sm:$0xff] %v340
          $region72: #{bottleneck_pallas.1} parent=66 // loop_footer
            %s321 = sadd.s32 1, %s317
          $region73: #{bottleneck_pallas.1} parent=66 // loop_footer_branch
            %316 = sbr.rel target = $region69
          $region74: #{bottleneck_pallas.1} parent=66 // loop_exit
            _
        $region67: #{bottleneck_pallas.1} parent=51 // pred_fallthru
          _
        %p342 = pneg %p312
        // Predicated region
        $region75: #{bottleneck_pallas.1} parent=51 // pred_check
          _
        $region76: #{bottleneck_pallas.1} parent=51 // pred_check_branch
          %344 = sbr.rel (%p312) target = $region78
        $region77: #{bottleneck_pallas.1} parent=51 // pred_region
          %s345 = sand.u32 72, 7
        $region78: #{bottleneck_pallas.1} parent=51 // pred_fallthru
          _
      $region52: #{bottleneck_pallas.1} parent=47 // pred_fallthru
        _
      // Predicated region
      $region53: #{bottleneck_pallas.1} parent=47 // pred_check
        %p297 = pneg %p293
      $region54: #{bottleneck_pallas.1} parent=47 // pred_check_branch
        %299 = sbr.rel (%p297) target = $region56
      $region55: #{bottleneck_pallas.1} parent=47 // pred_region
        %s300 = sshllo.u32 0, 72
        loop: start=0, step=1, limit=1
        $region57: #{bottleneck_pallas.1} parent=55 // loop_pre_header
          _
        $region58: #{bottleneck_pallas.1} parent=55 // loop_header
          %s302 = sphi 0, %s306
          %p303 = scmp.ge.s32.totalorder %s302, 1
          %s307 = sphi %s291, %s291
          %s308 = sphi [#allocation2], [#allocation2]
        $region59: #{bottleneck_pallas.1} parent=55 // loop_header_branch
          %305 = sbr.rel (%p303) target = $region63
        $region60: #{bottleneck_pallas.1} parent=55 // loop_body
          %v309 = vld [vmem:[%s307] sm:%s300]
          %310 = vst [vmem:[%s308] sm:%s300] %v309
        $region61: #{bottleneck_pallas.1} parent=55 // loop_footer
          %s306 = sadd.s32 1, %s302
        $region62: #{bottleneck_pallas.1} parent=55 // loop_footer_branch
          %301 = sbr.rel target = $region58
        $region63: #{bottleneck_pallas.1} parent=55 // loop_exit
          _
      $region56: #{bottleneck_pallas.1} parent=47 // pred_fallthru
        _
      // Predicated region
      $region79: #{bottleneck_pallas.1} parent=47 // pred_check
        _
      $region80: #{bottleneck_pallas.1} parent=47 // pred_check_branch
        %348 = sbr.rel (0) target = $region82
      $region81: #{bottleneck_pallas.1} parent=47 // pred_region
        %349 = vsyncadd [#allocation3], 1152
      $region82: #{bottleneck_pallas.1} parent=47 // pred_fallthru
        _
      %s350 = smul.u32 4, 9
      %s351 = smul.u32 %s350, 2
      %s352 = smul.u32 %s351, 1
      %s353 = sshll.u32 %s352, 4
      %354 = dma.done [#allocation3], %s353
      %v355 = vld [vmem:[#allocation2] sm:$0xff]
      %v356 = vld [vmem:[#allocation2 + $0x8] sm:$0xff]
      %v357 = vld [vmem:[#allocation2 + $0x10] sm:$0xff]
      %v358 = vld [vmem:[#allocation2 + $0x18] sm:$0xff]
      %v359 = vld [vmem:[#allocation2 + $0x20] sm:$0xff]
      %v360 = vld [vmem:[#allocation2 + $0x28] sm:$0xff]
      %v361 = vld [vmem:[#allocation2 + $0x30] sm:$0xff]
      %v362 = vld [vmem:[#allocation2 + $0x38] sm:$0xff]
      %v363 = vld [vmem:[#allocation2 + $0x40] sm:$0xff]
      %v364 = vld [vmem:[%s1] sm:$0xf]
      %v365 = vld [vmem:[%s1 + $0x4] sm:$0xf]
      %v366 = vld [vmem:[%s2] sm:$0x1]
      %v368 = vlaneseq
      %v369 = vshrl.u32 %v368, 7
      %v370 = vsub.s32 0, %v369
      %v371 = vrot.slane %v366, %v370
      %v375 = vunpack.c.l.b16 %v364
      %v376 = vunpack.c.l.b16 %v365
      %v377 = vpack.c.b16 %v376, %v375
      %vm379 = vcmask 130048
      %v381 = vsel %vm379, %v355, 0
      %v384 = vsel %vm379, %v356, 0
      %v387 = vsel %vm379, %v357, 0
      %v390 = vsel %vm379, %v358, 0
      %v393 = vsel %vm379, %v359, 0
      %v396 = vsel %vm379, %v360, 0
      %v399 = vsel %vm379, %v361, 0
      %v402 = vsel %vm379, %v362, 0
      %v405 = vsel %vm379, %v363, 0
      %407 = vmatprep.subr.bf16.mxu0 0
      %408 = vmatpush1.bf16.msra.mxu0 %v377
      %409 = vmatprep.subr.bf16.mxu0 0
      %410 = vmatpush1.bf16.msra.mxu0 0
      %411 = vmatprep.subr.bf16.mxu0 0
      %412 = vmatpush1.bf16.msra.mxu0 0
      %413 = vmatprep.subr.bf16.mxu0 0
      %414 = vmatpush1.bf16.msra.mxu0 0
      %415 = vmatprep.subr.bf16.mxu0 0
      %416 = vmatpush1.bf16.msra.mxu0 0
      %417 = vmatprep.subr.bf16.mxu0 0
      %418 = vmatpush1.bf16.msra.mxu0 0
      %419 = vmatprep.subr.bf16.mxu0 0
      %420 = vmatpush1.bf16.msra.mxu0 0
      %421 = vmatprep.subr.bf16.mxu0 0
      %422 = vmatpush1.bf16.msra.mxu0 0
      %423 = vmatprep.subr.bf16.mxu0 0
      %424 = vmatpush1.bf16.msra.mxu0 0
      %425 = vmatprep.subr.bf16.mxu0 0
      %426 = vmatpush1.bf16.msra.mxu0 0
      %427 = vmatprep.subr.bf16.mxu0 0
      %428 = vmatpush1.bf16.msra.mxu0 0
      %429 = vmatprep.subr.bf16.mxu0 0
      %430 = vmatpush1.bf16.msra.mxu0 0
      %431 = vmatprep.subr.bf16.mxu0 0
      %432 = vmatpush1.bf16.msra.mxu0 0
      %433 = vmatprep.subr.bf16.mxu0 0
      %434 = vmatpush1.bf16.msra.mxu0 0
      %435 = vmatprep.subr.bf16.mxu0 0
      %436 = vmatpush1.bf16.msra.mxu0 0
      %437 = vmatprep.subr.bf16.mxu0 0
      %438 = vmatpush1.bf16.msra.mxu0 0
      %439 = vmatprep.mubr.bf16.mxu0 0
      %440 = vmatmul.mubr.bf16.gmra.mrb[0].mxu0 %v381
      %v441 = vpop.f32.mrb[0].mxu0
      %v442 = vadd.f32 %v371, %v441
      %v443 = vpop.f32.mrb[0].mxu0
      %v444 = vpop.f32.mrb[0].mxu0
      %v445 = vadd.f32 %v371, %v444
      %v446 = vpop.f32.mrb[0].mxu0
      %447 = vmatprep.mubr.bf16.mxu0 0
      %448 = vmatmul.mubr.bf16.gmra.mrb[0].mxu0 %v384
      %v449 = vpop.f32.mrb[0].mxu0
      %v450 = vadd.f32 %v371, %v449
      %v451 = vpop.f32.mrb[0].mxu0
      %v452 = vpop.f32.mrb[0].mxu0
      %v453 = vadd.f32 %v371, %v452
      %v454 = vpop.f32.mrb[0].mxu0
      %455 = vmatprep.mubr.bf16.mxu0 0
      %456 = vmatmul.mubr.bf16.gmra.mrb[0].mxu0 %v387
      %v457 = vpop.f32.mrb[0].mxu0
      %v458 = vadd.f32 %v371, %v457
      %v459 = vpop.f32.mrb[0].mxu0
      %v460 = vpop.f32.mrb[0].mxu0
      %v461 = vadd.f32 %v371, %v460
      %v462 = vpop.f32.mrb[0].mxu0
      %463 = vmatprep.mubr.bf16.mxu0 0
      %464 = vmatmul.mubr.bf16.gmra.mrb[0].mxu0 %v390
      %v465 = vpop.f32.mrb[0].mxu0
      %v466 = vadd.f32 %v371, %v465
      %v467 = vpop.f32.mrb[0].mxu0
      %v468 = vpop.f32.mrb[0].mxu0
      %v469 = vadd.f32 %v371, %v468
      %v470 = vpop.f32.mrb[0].mxu0
      %471 = vmatprep.mubr.bf16.mxu0 0
      %472 = vmatmul.mubr.bf16.gmra.mrb[0].mxu0 %v393
      %v473 = vpop.f32.mrb[0].mxu0
      %v474 = vadd.f32 %v371, %v473
      %v475 = vpop.f32.mrb[0].mxu0
      %v476 = vpop.f32.mrb[0].mxu0
      %v477 = vadd.f32 %v371, %v476
      %v478 = vpop.f32.mrb[0].mxu0
      %479 = vmatprep.mubr.bf16.mxu0 0
      %480 = vmatmul.mubr.bf16.gmra.mrb[0].mxu0 %v396
      %v481 = vpop.f32.mrb[0].mxu0
      %v482 = vadd.f32 %v371, %v481
      %v483 = vpop.f32.mrb[0].mxu0
      %v484 = vpop.f32.mrb[0].mxu0
      %v485 = vadd.f32 %v371, %v484
      %v486 = vpop.f32.mrb[0].mxu0
      %487 = vmatprep.mubr.bf16.mxu0 0
      %488 = vmatmul.mubr.bf16.gmra.mrb[0].mxu0 %v399
      %v489 = vpop.f32.mrb[0].mxu0
      %v490 = vadd.f32 %v371, %v489
      %v491 = vpop.f32.mrb[0].mxu0
      %v492 = vpop.f32.mrb[0].mxu0
      %v493 = vadd.f32 %v371, %v492
      %v494 = vpop.f32.mrb[0].mxu0
      %495 = vmatprep.mubr.bf16.mxu0 0
      %496 = vmatmul.mubr.bf16.gmra.mrb[0].mxu0 %v402
      %v497 = vpop.f32.mrb[0].mxu0
      %v498 = vadd.f32 %v371, %v497
      %v499 = vpop.f32.mrb[0].mxu0
      %v500 = vpop.f32.mrb[0].mxu0
      %v501 = vadd.f32 %v371, %v500
      %v502 = vpop.f32.mrb[0].mxu0
      %503 = vmatprep.mubr.bf16.mxu0 0
      %504 = vmatmul.mubr.bf16.gmra.mrb[0].mxu0 %v405
      %v505 = vpop.f32.mrb[0].mxu0
      %v506 = vadd.f32 %v371, %v505
      %v507 = vpop.f32.mrb[0].mxu0
      %v508 = vpop.f32.mrb[0].mxu0
      %v509 = vadd.f32 %v371, %v508
      %v510 = vpop.f32.mrb[0].mxu0
      %511 = vdwg.mxu0
      %v512 = vmax.f32 %v442, 0.0
      %v513 = vmax.f32 %v445, 0.0
      %v514 = vmax.f32 %v450, 0.0
      %v515 = vmax.f32 %v453, 0.0
      %v516 = vmax.f32 %v458, 0.0
      %v517 = vmax.f32 %v461, 0.0
      %v518 = vmax.f32 %v466, 0.0
      %v519 = vmax.f32 %v469, 0.0
      %v520 = vmax.f32 %v474, 0.0
      %v521 = vmax.f32 %v477, 0.0
      %v522 = vmax.f32 %v482, 0.0
      %v523 = vmax.f32 %v485, 0.0
      %v524 = vmax.f32 %v490, 0.0
      %v525 = vmax.f32 %v493, 0.0
      %v526 = vmax.f32 %v498, 0.0
      %v527 = vmax.f32 %v501, 0.0
      %v528 = vmax.f32 %v506, 0.0
      %v529 = vmax.f32 %v509, 0.0
      %v530 = vpack.c.bf16 %v513, %v512
      %v531 = vpack.c.bf16 %v515, %v514
      %v532 = vpack.c.bf16 %v517, %v516
      %v533 = vpack.c.bf16 %v519, %v518
      %v534 = vpack.c.bf16 %v521, %v520
      %v535 = vpack.c.bf16 %v523, %v522
      %v536 = vpack.c.bf16 %v525, %v524
      %v537 = vpack.c.bf16 %v527, %v526
      %v538 = vpack.c.bf16 %v529, %v528
      %v546 = vcombine.high %v530, %v530
      %v548 = vunpack.c.l.s4 1966171168
      %v549 = vunpack.c.0.s8 %v548
      %v550 = vlaneseq
      %v551 = vshrl.u32 %v550, 7
      %v552 = vsub.s32 %v549, %v551
      %v553 = vrot.slane %v530, %v552
      %v555 = vunpack.c.l.s4 1966171168
      %v556 = vunpack.c.0.s8 %v555
      %v557 = vlaneseq
      %v558 = vshrl.u32 %v557, 7
      %v559 = vsub.s32 %v556, %v558
      %v560 = vrot.slane %v546, %v559
      %v561 = vcombine.high %v553, %v553
      %v562 = vcombine.high %v560, %v560
      %v564 = vunpack.c.l.s4 1966171168
      %v565 = vunpack.c.0.s8 %v564
      %v566 = vlaneseq
      %v567 = vshrl.u32 %v566, 7
      %v568 = vsub.s32 %v565, %v567
      %v569 = vrot.slane %v553, %v568
      %v571 = vunpack.c.l.s4 1966171168
      %v572 = vunpack.c.0.s8 %v571
      %v573 = vlaneseq
      %v574 = vshrl.u32 %v573, 7
      %v575 = vsub.s32 %v572, %v574
      %v576 = vrot.slane %v560, %v575
      %v578 = vunpack.c.l.s4 1966171168
      %v579 = vunpack.c.0.s8 %v578
      %v580 = vlaneseq
      %v581 = vshrl.u32 %v580, 7
      %v582 = vsub.s32 %v579, %v581
      %v583 = vrot.slane %v561, %v582
      %v585 = vunpack.c.l.s4 1966171168
      %v586 = vunpack.c.0.s8 %v585
      %v587 = vlaneseq
      %v588 = vshrl.u32 %v587, 7
      %v589 = vsub.s32 %v586, %v588
      %v590 = vrot.slane %v562, %v589
      %v591 = vcombine.high %v569, %v569
      %v592 = vcombine.high %v576, %v576
      %v593 = vcombine.high %v583, %v583
      %v594 = vcombine.high %v531, %v531
      %v596 = vunpack.c.l.s4 1966171168
      %v597 = vunpack.c.0.s8 %v596
      %v598 = vlaneseq
      %v599 = vshrl.u32 %v598, 7
      %v600 = vsub.s32 %v597, %v599
      %v601 = vrot.slane %v531, %v600
      %v603 = vunpack.c.l.s4 1966171168
      %v604 = vunpack.c.0.s8 %v603
      %v605 = vlaneseq
      %v606 = vshrl.u32 %v605, 7
      %v607 = vsub.s32 %v604, %v606
      %v608 = vrot.slane %v594, %v607
      %v609 = vcombine.high %v601, %v601
      %v610 = vcombine.high %v608, %v608
      %v612 = vunpack.c.l.s4 1966171168
      %v613 = vunpack.c.0.s8 %v612
      %v614 = vlaneseq
      %v615 = vshrl.u32 %v614, 7
      %v616 = vsub.s32 %v613, %v615
      %v617 = vrot.slane %v601, %v616
      %v619 = vunpack.c.l.s4 1966171168
      %v620 = vunpack.c.0.s8 %v619
      %v621 = vlaneseq
      %v622 = vshrl.u32 %v621, 7
      %v623 = vsub.s32 %v620, %v622
      %v624 = vrot.slane %v608, %v623
      %v626 = vunpack.c.l.s4 1966171168
      %v627 = vunpack.c.0.s8 %v626
      %v628 = vlaneseq
      %v629 = vshrl.u32 %v628, 7
      %v630 = vsub.s32 %v627, %v629
      %v631 = vrot.slane %v609, %v630
      %v633 = vunpack.c.l.s4 1966171168
      %v634 = vunpack.c.0.s8 %v633
      %v635 = vlaneseq
      %v636 = vshrl.u32 %v635, 7
      %v637 = vsub.s32 %v634, %v636
      %v638 = vrot.slane %v610, %v637
      %v639 = vcombine.high %v617, %v617
      %v640 = vcombine.high %v624, %v624
      %v641 = vcombine.high %v631, %v631
      %v642 = vcombine.high %v532, %v532
      %v644 = vunpack.c.l.s4 1966171168
      %v645 = vunpack.c.0.s8 %v644
      %v646 = vlaneseq
      %v647 = vshrl.u32 %v646, 7
      %v648 = vsub.s32 %v645, %v647
      %v649 = vrot.slane %v532, %v648
      %v651 = vunpack.c.l.s4 1966171168
      %v652 = vunpack.c.0.s8 %v651
      %v653 = vlaneseq
      %v654 = vshrl.u32 %v653, 7
      %v655 = vsub.s32 %v652, %v654
      %v656 = vrot.slane %v642, %v655
      %v657 = vcombine.high %v649, %v649
      %v658 = vcombine.high %v656, %v656
      %v660 = vunpack.c.l.s4 1966171168
      %v661 = vunpack.c.0.s8 %v660
      %v662 = vlaneseq
      %v663 = vshrl.u32 %v662, 7
      %v664 = vsub.s32 %v661, %v663
      %v665 = vrot.slane %v649, %v664
      %v667 = vunpack.c.l.s4 1966171168
      %v668 = vunpack.c.0.s8 %v667
      %v669 = vlaneseq
      %v670 = vshrl.u32 %v669, 7
      %v671 = vsub.s32 %v668, %v670
      %v672 = vrot.slane %v656, %v671
      %v674 = vunpack.c.l.s4 1966171168
      %v675 = vunpack.c.0.s8 %v674
      %v676 = vlaneseq
      %v677 = vshrl.u32 %v676, 7
      %v678 = vsub.s32 %v675, %v677
      %v679 = vrot.slane %v657, %v678
      %v681 = vunpack.c.l.s4 1966171168
      %v682 = vunpack.c.0.s8 %v681
      %v683 = vlaneseq
      %v684 = vshrl.u32 %v683, 7
      %v685 = vsub.s32 %v682, %v684
      %v686 = vrot.slane %v658, %v685
      %v687 = vcombine.high %v665, %v665
      %v688 = vcombine.high %v672, %v672
      %v689 = vcombine.high %v679, %v679
      %v690 = vcombine.high %v533, %v533
      %v692 = vunpack.c.l.s4 1966171168
      %v693 = vunpack.c.0.s8 %v692
      %v694 = vlaneseq
      %v695 = vshrl.u32 %v694, 7
      %v696 = vsub.s32 %v693, %v695
      %v697 = vrot.slane %v533, %v696
      %v699 = vunpack.c.l.s4 1966171168
      %v700 = vunpack.c.0.s8 %v699
      %v701 = vlaneseq
      %v702 = vshrl.u32 %v701, 7
      %v703 = vsub.s32 %v700, %v702
      %v704 = vrot.slane %v690, %v703
      %v705 = vcombine.high %v697, %v697
      %v706 = vcombine.high %v704, %v704
      %v708 = vunpack.c.l.s4 1966171168
      %v709 = vunpack.c.0.s8 %v708
      %v710 = vlaneseq
      %v711 = vshrl.u32 %v710, 7
      %v712 = vsub.s32 %v709, %v711
      %v713 = vrot.slane %v697, %v712
      %v715 = vunpack.c.l.s4 1966171168
      %v716 = vunpack.c.0.s8 %v715
      %v717 = vlaneseq
      %v718 = vshrl.u32 %v717, 7
      %v719 = vsub.s32 %v716, %v718
      %v720 = vrot.slane %v704, %v719
      %v722 = vunpack.c.l.s4 1966171168
      %v723 = vunpack.c.0.s8 %v722
      %v724 = vlaneseq
      %v725 = vshrl.u32 %v724, 7
      %v726 = vsub.s32 %v723, %v725
      %v727 = vrot.slane %v705, %v726
      %v729 = vunpack.c.l.s4 1966171168
      %v730 = vunpack.c.0.s8 %v729
      %v731 = vlaneseq
      %v732 = vshrl.u32 %v731, 7
      %v733 = vsub.s32 %v730, %v732
      %v734 = vrot.slane %v706, %v733
      %v735 = vcombine.high %v713, %v713
      %v736 = vcombine.high %v720, %v720
      %v737 = vcombine.high %v727, %v727
      %v738 = vcombine.high %v534, %v534
      %v740 = vunpack.c.l.s4 1966171168
      %v741 = vunpack.c.0.s8 %v740
      %v742 = vlaneseq
      %v743 = vshrl.u32 %v742, 7
      %v744 = vsub.s32 %v741, %v743
      %v745 = vrot.slane %v534, %v744
      %v747 = vunpack.c.l.s4 1966171168
      %v748 = vunpack.c.0.s8 %v747
      %v749 = vlaneseq
      %v750 = vshrl.u32 %v749, 7
      %v751 = vsub.s32 %v748, %v750
      %v752 = vrot.slane %v738, %v751
      %v753 = vcombine.high %v745, %v745
      %v754 = vcombine.high %v752, %v752
      %v756 = vunpack.c.l.s4 1966171168
      %v757 = vunpack.c.0.s8 %v756
      %v758 = vlaneseq
      %v759 = vshrl.u32 %v758, 7
      %v760 = vsub.s32 %v757, %v759
      %v761 = vrot.slane %v745, %v760
      %v763 = vunpack.c.l.s4 1966171168
      %v764 = vunpack.c.0.s8 %v763
      %v765 = vlaneseq
      %v766 = vshrl.u32 %v765, 7
      %v767 = vsub.s32 %v764, %v766
      %v768 = vrot.slane %v752, %v767
      %v770 = vunpack.c.l.s4 1966171168
      %v771 = vunpack.c.0.s8 %v770
      %v772 = vlaneseq
      %v773 = vshrl.u32 %v772, 7
      %v774 = vsub.s32 %v771, %v773
      %v775 = vrot.slane %v753, %v774
      %v777 = vunpack.c.l.s4 1966171168
      %v778 = vunpack.c.0.s8 %v777
      %v779 = vlaneseq
      %v780 = vshrl.u32 %v779, 7
      %v781 = vsub.s32 %v778, %v780
      %v782 = vrot.slane %v754, %v781
      %v783 = vcombine.high %v761, %v761
      %v784 = vcombine.high %v768, %v768
      %v785 = vcombine.high %v775, %v775
      %v786 = vcombine.high %v535, %v535
      %v788 = vunpack.c.l.s4 1966171168
      %v789 = vunpack.c.0.s8 %v788
      %v790 = vlaneseq
      %v791 = vshrl.u32 %v790, 7
      %v792 = vsub.s32 %v789, %v791
      %v793 = vrot.slane %v535, %v792
      %v795 = vunpack.c.l.s4 1966171168
      %v796 = vunpack.c.0.s8 %v795
      %v797 = vlaneseq
      %v798 = vshrl.u32 %v797, 7
      %v799 = vsub.s32 %v796, %v798
      %v800 = vrot.slane %v786, %v799
      %v801 = vcombine.high %v793, %v793
      %v802 = vcombine.high %v800, %v800
      %v804 = vunpack.c.l.s4 1966171168
      %v805 = vunpack.c.0.s8 %v804
      %v806 = vlaneseq
      %v807 = vshrl.u32 %v806, 7
      %v808 = vsub.s32 %v805, %v807
      %v809 = vrot.slane %v793, %v808
      %v811 = vunpack.c.l.s4 1966171168
      %v812 = vunpack.c.0.s8 %v811
      %v813 = vlaneseq
      %v814 = vshrl.u32 %v813, 7
      %v815 = vsub.s32 %v812, %v814
      %v816 = vrot.slane %v800, %v815
      %v818 = vunpack.c.l.s4 1966171168
      %v819 = vunpack.c.0.s8 %v818
      %v820 = vlaneseq
      %v821 = vshrl.u32 %v820, 7
      %v822 = vsub.s32 %v819, %v821
      %v823 = vrot.slane %v801, %v822
      %v825 = vunpack.c.l.s4 1966171168
      %v826 = vunpack.c.0.s8 %v825
      %v827 = vlaneseq
      %v828 = vshrl.u32 %v827, 7
      %v829 = vsub.s32 %v826, %v828
      %v830 = vrot.slane %v802, %v829
      %v831 = vcombine.high %v809, %v809
      %v832 = vcombine.high %v816, %v816
      %v833 = vcombine.high %v823, %v823
      %v834 = vcombine.high %v536, %v536
      %v836 = vunpack.c.l.s4 1966171168
      %v837 = vunpack.c.0.s8 %v836
      %v838 = vlaneseq
      %v839 = vshrl.u32 %v838, 7
      %v840 = vsub.s32 %v837, %v839
      %v841 = vrot.slane %v536, %v840
      %v843 = vunpack.c.l.s4 1966171168
      %v844 = vunpack.c.0.s8 %v843
      %v845 = vlaneseq
      %v846 = vshrl.u32 %v845, 7
      %v847 = vsub.s32 %v844, %v846
      %v848 = vrot.slane %v834, %v847
      %v849 = vcombine.high %v841, %v841
      %v850 = vcombine.high %v848, %v848
      %v852 = vunpack.c.l.s4 1966171168
      %v853 = vunpack.c.0.s8 %v852
      %v854 = vlaneseq
      %v855 = vshrl.u32 %v854, 7
      %v856 = vsub.s32 %v853, %v855
      %v857 = vrot.slane %v841, %v856
      %v859 = vunpack.c.l.s4 1966171168
      %v860 = vunpack.c.0.s8 %v859
      %v861 = vlaneseq
      %v862 = vshrl.u32 %v861, 7
      %v863 = vsub.s32 %v860, %v862
      %v864 = vrot.slane %v848, %v863
      %v866 = vunpack.c.l.s4 1966171168
      %v867 = vunpack.c.0.s8 %v866
      %v868 = vlaneseq
      %v869 = vshrl.u32 %v868, 7
      %v870 = vsub.s32 %v867, %v869
      %v871 = vrot.slane %v849, %v870
      %v873 = vunpack.c.l.s4 1966171168
      %v874 = vunpack.c.0.s8 %v873
      %v875 = vlaneseq
      %v876 = vshrl.u32 %v875, 7
      %v877 = vsub.s32 %v874, %v876
      %v878 = vrot.slane %v850, %v877
      %v879 = vcombine.high %v857, %v857
      %v880 = vcombine.high %v864, %v864
      %v881 = vcombine.high %v871, %v871
      %v882 = vld [vmem:[%s3] sm:$0xf]
      %v883 = vld [vmem:[%s3 + $0x4] sm:$0xf]
      %v884 = vld [vmem:[%s3 + $0x8] sm:$0xf]
      %v885 = vld [vmem:[%s3 + $0xc] sm:$0xf]
      %v886 = vld [vmem:[%s3 + $0x10] sm:$0xf]
      %v887 = vld [vmem:[%s3 + $0x14] sm:$0xf]
      %v888 = vld [vmem:[%s3 + $0x18] sm:$0xf]
      %v889 = vld [vmem:[%s3 + $0x1c] sm:$0xf]
      %v890 = vld [vmem:[%s3 + $0x20] sm:$0xf]
      %v891 = vld [vmem:[%s3 + $0x24] sm:$0xf]
      %v892 = vld [vmem:[%s3 + $0x28] sm:$0xf]
      %v893 = vld [vmem:[%s3 + $0x2c] sm:$0xf]
      %v894 = vld [vmem:[%s3 + $0x30] sm:$0xf]
      %v895 = vld [vmem:[%s3 + $0x34] sm:$0xf]
      %v896 = vld [vmem:[%s3 + $0x38] sm:$0xf]
      %v897 = vld [vmem:[%s3 + $0x3c] sm:$0xf]
      %v898 = vcombine.high %v590, %v590
      %v899 = vcombine.high %v638, %v638
      %v900 = vcombine.high %v686, %v686
      %v901 = vcombine.high %v734, %v734
      %v902 = vcombine.high %v782, %v782
      %v903 = vcombine.high %v830, %v830
      %v904 = vcombine.high %v878, %v878
      %vm905 = vsmask.f32 256
      %vm906 = vsmask.f32 1284
      %vm907 = vmor %vm905, %vm906
      %vm908 = vsmask.f32 2312
      %vm909 = vmor %vm907, %vm908
      %vm910 = vsmask.f32 3340
      %vm911 = vmor %vm909, %vm910
      %vm912 = vsmask.f32 4368
      %vm913 = vmor %vm911, %vm912
      %vm914 = vsmask.f32 5396
      %vm915 = vmor %vm913, %vm914
      %vm916 = vsmask.f32 6424
      %vm917 = vmor %vm915, %vm916
      %vm918 = vsmask.f32 7452
      %vm919 = vmor %vm917, %vm918
      %v921 = vshrl.u32 %v569, 16
      %v923 = vrot.slane %v921, 7
      %v924 = vrot.slane %v923, 1
      %v926 = vshll.u32 %v583, 16
      %v928 = vsel %vm919, %v924, %v926
      %v929 = vshrl.u32 %v583, 16
      %v931 = vrot.slane %v929, 7
      %v932 = vrot.slane %v931, 1
      %v934 = vshll.u32 %v591, 16
      %v936 = vsel %vm919, %v932, %v934
      %v937 = vshrl.u32 %v591, 16
      %v939 = vrot.slane %v937, 7
      %v940 = vrot.slane %v939, 1
      %v942 = vshll.u32 %v593, 16
      %v944 = vsel %vm919, %v940, %v942
      %v945 = vshrl.u32 %v593, 16
      %v947 = vrot.slane %v945, 7
      %v948 = vrot.slane %v947, 1
      %v950 = vshll.u32 %v576, 16
      %v952 = vsel %vm919, %v948, %v950
      %v953 = vshrl.u32 %v576, 16
      %v955 = vrot.slane %v953, 7
      %v956 = vrot.slane %v955, 1
      %v958 = vshll.u32 %v590, 16
      %v960 = vsel %vm919, %v956, %v958
      %v961 = vshrl.u32 %v590, 16
      %v963 = vrot.slane %v961, 7
      %v964 = vrot.slane %v963, 1
      %v966 = vshll.u32 %v592, 16
      %v968 = vsel %vm919, %v964, %v966
      %v969 = vshrl.u32 %v592, 16
      %v971 = vrot.slane %v969, 7
      %v972 = vrot.slane %v971, 1
      %v974 = vshll.u32 %v898, 16
      %v976 = vsel %vm919, %v972, %v974
      %v978 = vshrl.u32 %v617, 16
      %v980 = vrot.slane %v978, 7
      %v981 = vrot.slane %v980, 1
      %v983 = vshll.u32 %v631, 16
      %v985 = vsel %vm919, %v981, %v983
      %v986 = vshrl.u32 %v631, 16
      %v988 = vrot.slane %v986, 7
      %v989 = vrot.slane %v988, 1
      %v991 = vshll.u32 %v639, 16
      %v993 = vsel %vm919, %v989, %v991
      %v994 = vshrl.u32 %v639, 16
      %v996 = vrot.slane %v994, 7
      %v997 = vrot.slane %v996, 1
      %v999 = vshll.u32 %v641, 16
      %v1001 = vsel %vm919, %v997, %v999
      %v1002 = vshrl.u32 %v641, 16
      %v1004 = vrot.slane %v1002, 7
      %v1005 = vrot.slane %v1004, 1
      %v1007 = vshll.u32 %v624, 16
      %v1009 = vsel %vm919, %v1005, %v1007
      %v1010 = vshrl.u32 %v624, 16
      %v1012 = vrot.slane %v1010, 7
      %v1013 = vrot.slane %v1012, 1
      %v1015 = vshll.u32 %v638, 16
      %v1017 = vsel %vm919, %v1013, %v1015
      %v1018 = vshrl.u32 %v638, 16
      %v1020 = vrot.slane %v1018, 7
      %v1021 = vrot.slane %v1020, 1
      %v1023 = vshll.u32 %v640, 16
      %v1025 = vsel %vm919, %v1021, %v1023
      %v1026 = vshrl.u32 %v640, 16
      %v1028 = vrot.slane %v1026, 7
      %v1029 = vrot.slane %v1028, 1
      %v1031 = vshll.u32 %v899, 16
      %v1033 = vsel %vm919, %v1029, %v1031
      %v1035 = vshrl.u32 %v665, 16
      %v1037 = vrot.slane %v1035, 7
      %v1038 = vrot.slane %v1037, 1
      %v1040 = vshll.u32 %v679, 16
      %v1042 = vsel %vm919, %v1038, %v1040
      %v1043 = vshrl.u32 %v679, 16
      %v1045 = vrot.slane %v1043, 7
      %v1046 = vrot.slane %v1045, 1
      %v1048 = vshll.u32 %v687, 16
      %v1050 = vsel %vm919, %v1046, %v1048
      %v1051 = vshrl.u32 %v687, 16
      %v1053 = vrot.slane %v1051, 7
      %v1054 = vrot.slane %v1053, 1
      %v1056 = vshll.u32 %v689, 16
      %v1058 = vsel %vm919, %v1054, %v1056
      %v1059 = vshrl.u32 %v689, 16
      %v1061 = vrot.slane %v1059, 7
      %v1062 = vrot.slane %v1061, 1
      %v1064 = vshll.u32 %v672, 16
      %v1066 = vsel %vm919, %v1062, %v1064
      %v1067 = vshrl.u32 %v672, 16
      %v1069 = vrot.slane %v1067, 7
      %v1070 = vrot.slane %v1069, 1
      %v1072 = vshll.u32 %v686, 16
      %v1074 = vsel %vm919, %v1070, %v1072
      %v1075 = vshrl.u32 %v686, 16
      %v1077 = vrot.slane %v1075, 7
      %v1078 = vrot.slane %v1077, 1
      %v1080 = vshll.u32 %v688, 16
      %v1082 = vsel %vm919, %v1078, %v1080
      %v1083 = vshrl.u32 %v688, 16
      %v1085 = vrot.slane %v1083, 7
      %v1086 = vrot.slane %v1085, 1
      %v1088 = vshll.u32 %v900, 16
      %v1090 = vsel %vm919, %v1086, %v1088
      %v1092 = vshrl.u32 %v713, 16
      %v1094 = vrot.slane %v1092, 7
      %v1095 = vrot.slane %v1094, 1
      %v1097 = vshll.u32 %v727, 16
      %v1099 = vsel %vm919, %v1095, %v1097
      %v1100 = vshrl.u32 %v727, 16
      %v1102 = vrot.slane %v1100, 7
      %v1103 = vrot.slane %v1102, 1
      %v1105 = vshll.u32 %v735, 16
      %v1107 = vsel %vm919, %v1103, %v1105
      %v1108 = vshrl.u32 %v735, 16
      %v1110 = vrot.slane %v1108, 7
      %v1111 = vrot.slane %v1110, 1
      %v1113 = vshll.u32 %v737, 16
      %v1115 = vsel %vm919, %v1111, %v1113
      %v1116 = vshrl.u32 %v737, 16
      %v1118 = vrot.slane %v1116, 7
      %v1119 = vrot.slane %v1118, 1
      %v1121 = vshll.u32 %v720, 16
      %v1123 = vsel %vm919, %v1119, %v1121
      %v1124 = vshrl.u32 %v720, 16
      %v1126 = vrot.slane %v1124, 7
      %v1127 = vrot.slane %v1126, 1
      %v1129 = vshll.u32 %v734, 16
      %v1131 = vsel %vm919, %v1127, %v1129
      %v1132 = vshrl.u32 %v734, 16
      %v1134 = vrot.slane %v1132, 7
      %v1135 = vrot.slane %v1134, 1
      %v1137 = vshll.u32 %v736, 16
      %v1139 = vsel %vm919, %v1135, %v1137
      %v1140 = vshrl.u32 %v736, 16
      %v1142 = vrot.slane %v1140, 7
      %v1143 = vrot.slane %v1142, 1
      %v1145 = vshll.u32 %v901, 16
      %v1147 = vsel %vm919, %v1143, %v1145
      %v1149 = vshrl.u32 %v761, 16
      %v1151 = vrot.slane %v1149, 7
      %v1152 = vrot.slane %v1151, 1
      %v1154 = vshll.u32 %v775, 16
      %v1156 = vsel %vm919, %v1152, %v1154
      %v1157 = vshrl.u32 %v775, 16
      %v1159 = vrot.slane %v1157, 7
      %v1160 = vrot.slane %v1159, 1
      %v1162 = vshll.u32 %v783, 16
      %v1164 = vsel %vm919, %v1160, %v1162
      %v1165 = vshrl.u32 %v783, 16
      %v1167 = vrot.slane %v1165, 7
      %v1168 = vrot.slane %v1167, 1
      %v1170 = vshll.u32 %v785, 16
      %v1172 = vsel %vm919, %v1168, %v1170
      %v1173 = vshrl.u32 %v785, 16
      %v1175 = vrot.slane %v1173, 7
      %v1176 = vrot.slane %v1175, 1
      %v1178 = vshll.u32 %v768, 16
      %v1180 = vsel %vm919, %v1176, %v1178
      %v1181 = vshrl.u32 %v768, 16
      %v1183 = vrot.slane %v1181, 7
      %v1184 = vrot.slane %v1183, 1
      %v1186 = vshll.u32 %v782, 16
      %v1188 = vsel %vm919, %v1184, %v1186
      %v1189 = vshrl.u32 %v782, 16
      %v1191 = vrot.slane %v1189, 7
      %v1192 = vrot.slane %v1191, 1
      %v1194 = vshll.u32 %v784, 16
      %v1196 = vsel %vm919, %v1192, %v1194
      %v1197 = vshrl.u32 %v784, 16
      %v1199 = vrot.slane %v1197, 7
      %v1200 = vrot.slane %v1199, 1
      %v1202 = vshll.u32 %v902, 16
      %v1204 = vsel %vm919, %v1200, %v1202
      %v1206 = vshrl.u32 %v809, 16
      %v1208 = vrot.slane %v1206, 7
      %v1209 = vrot.slane %v1208, 1
      %v1211 = vshll.u32 %v823, 16
      %v1213 = vsel %vm919, %v1209, %v1211
      %v1214 = vshrl.u32 %v823, 16
      %v1216 = vrot.slane %v1214, 7
      %v1217 = vrot.slane %v1216, 1
      %v1219 = vshll.u32 %v831, 16
      %v1221 = vsel %vm919, %v1217, %v1219
      %v1222 = vshrl.u32 %v831, 16
      %v1224 = vrot.slane %v1222, 7
      %v1225 = vrot.slane %v1224, 1
      %v1227 = vshll.u32 %v833, 16
      %v1229 = vsel %vm919, %v1225, %v1227
      %v1230 = vshrl.u32 %v833, 16
      %v1232 = vrot.slane %v1230, 7
      %v1233 = vrot.slane %v1232, 1
      %v1235 = vshll.u32 %v816, 16
      %v1237 = vsel %vm919, %v1233, %v1235
      %v1238 = vshrl.u32 %v816, 16
      %v1240 = vrot.slane %v1238, 7
      %v1241 = vrot.slane %v1240, 1
      %v1243 = vshll.u32 %v830, 16
      %v1245 = vsel %vm919, %v1241, %v1243
      %v1246 = vshrl.u32 %v830, 16
      %v1248 = vrot.slane %v1246, 7
      %v1249 = vrot.slane %v1248, 1
      %v1251 = vshll.u32 %v832, 16
      %v1253 = vsel %vm919, %v1249, %v1251
      %v1254 = vshrl.u32 %v832, 16
      %v1256 = vrot.slane %v1254, 7
      %v1257 = vrot.slane %v1256, 1
      %v1259 = vshll.u32 %v903, 16
      %v1261 = vsel %vm919, %v1257, %v1259
      %v1263 = vshrl.u32 %v857, 16
      %v1265 = vrot.slane %v1263, 7
      %v1266 = vrot.slane %v1265, 1
      %v1268 = vshll.u32 %v871, 16
      %v1270 = vsel %vm919, %v1266, %v1268
      %v1271 = vshrl.u32 %v871, 16
      %v1273 = vrot.slane %v1271, 7
      %v1274 = vrot.slane %v1273, 1
      %v1276 = vshll.u32 %v879, 16
      %v1278 = vsel %vm919, %v1274, %v1276
      %v1279 = vshrl.u32 %v879, 16
      %v1281 = vrot.slane %v1279, 7
      %v1282 = vrot.slane %v1281, 1
      %v1284 = vshll.u32 %v881, 16
      %v1286 = vsel %vm919, %v1282, %v1284
      %v1287 = vshrl.u32 %v881, 16
      %v1289 = vrot.slane %v1287, 7
      %v1290 = vrot.slane %v1289, 1
      %v1292 = vshll.u32 %v864, 16
      %v1294 = vsel %vm919, %v1290, %v1292
      %v1295 = vshrl.u32 %v864, 16
      %v1297 = vrot.slane %v1295, 7
      %v1298 = vrot.slane %v1297, 1
      %v1300 = vshll.u32 %v878, 16
      %v1302 = vsel %vm919, %v1298, %v1300
      %v1303 = vshrl.u32 %v878, 16
      %v1305 = vrot.slane %v1303, 7
      %v1306 = vrot.slane %v1305, 1
      %v1308 = vshll.u32 %v880, 16
      %v1310 = vsel %vm919, %v1306, %v1308
      %v1311 = vshrl.u32 %v880, 16
      %v1313 = vrot.slane %v1311, 7
      %v1314 = vrot.slane %v1313, 1
      %v1316 = vshll.u32 %v904, 16
      %v1318 = vsel %vm919, %v1314, %v1316
      %s1319 = scalar_lea.vmem %s3, 64
      %v1320 = vld [vmem:[%s1319] sm:$0xf]
      %v1321 = vld [vmem:[%s1319 + $0x4] sm:$0xf]
      %v1322 = vld [vmem:[%s1319 + $0x8] sm:$0xf]
      %v1323 = vld [vmem:[%s1319 + $0xc] sm:$0xf]
      %v1324 = vld [vmem:[%s1319 + $0x10] sm:$0xf]
      %v1325 = vld [vmem:[%s1319 + $0x14] sm:$0xf]
      %v1326 = vld [vmem:[%s1319 + $0x18] sm:$0xf]
      %v1327 = vld [vmem:[%s1319 + $0x1c] sm:$0xf]
      %v1328 = vld [vmem:[%s1319 + $0x20] sm:$0xf]
      %v1329 = vld [vmem:[%s1319 + $0x24] sm:$0xf]
      %v1330 = vld [vmem:[%s1319 + $0x28] sm:$0xf]
      %v1331 = vld [vmem:[%s1319 + $0x2c] sm:$0xf]
      %v1332 = vld [vmem:[%s1319 + $0x30] sm:$0xf]
      %v1333 = vld [vmem:[%s1319 + $0x34] sm:$0xf]
      %v1334 = vld [vmem:[%s1319 + $0x38] sm:$0xf]
      %v1335 = vld [vmem:[%s1319 + $0x3c] sm:$0xf]
      %v1336 = vcombine.low %v928, %v936
      %v1337 = vcombine.low %v944, %v952
      %v1338 = vcombine.low %v960, %v968
      %v1339 = vcombine.low %v976, %v985
      %v1341 = vunpack.c.l.s4 1966171168
      %v1342 = vunpack.c.0.s8 %v1341
      %v1343 = vlaneseq
      %v1344 = vshrl.u32 %v1343, 7
      %v1345 = vsub.s32 %v1342, %v1344
      %v1346 = vrot.slane %v1336, %v1345
      %v1348 = vunpack.c.l.s4 1966171168
      %v1349 = vunpack.c.0.s8 %v1348
      %v1350 = vlaneseq
      %v1351 = vshrl.u32 %v1350, 7
      %v1352 = vsub.s32 %v1349, %v1351
      %v1353 = vrot.slane %v1337, %v1352
      %v1355 = vunpack.c.l.s4 1966171168
      %v1356 = vunpack.c.0.s8 %v1355
      %v1357 = vlaneseq
      %v1358 = vshrl.u32 %v1357, 7
      %v1359 = vsub.s32 %v1356, %v1358
      %v1360 = vrot.slane %v1338, %v1359
      %v1362 = vunpack.c.l.s4 1966171168
      %v1363 = vunpack.c.0.s8 %v1362
      %v1364 = vlaneseq
      %v1365 = vshrl.u32 %v1364, 7
      %v1366 = vsub.s32 %v1363, %v1365
      %v1367 = vrot.slane %v1339, %v1366
      %v1368 = vcombine.low %v1346, %v1353
      %v1369 = vcombine.low %v1360, %v1367
      %v1371 = vunpack.c.l.s4 1966171168
      %v1372 = vunpack.c.0.s8 %v1371
      %v1373 = vlaneseq
      %v1374 = vshrl.u32 %v1373, 7
      %v1375 = vsub.s32 %v1372, %v1374
      %v1376 = vrot.slane %v1368, %v1375
      %v1378 = vunpack.c.l.s4 1966171168
      %v1379 = vunpack.c.0.s8 %v1378
      %v1380 = vlaneseq
      %v1381 = vshrl.u32 %v1380, 7
      %v1382 = vsub.s32 %v1379, %v1381
      %v1383 = vrot.slane %v1369, %v1382
      %v1384 = vcombine.low %v1376, %v1383
      %v1385 = vcombine.low %v993, %v1001
      %v1386 = vcombine.low %v1009, %v1017
      %v1387 = vcombine.low %v1025, %v1033
      %v1388 = vcombine.low %v1042, %v1050
      %v1390 = vunpack.c.l.s4 1966171168
      %v1391 = vunpack.c.0.s8 %v1390
      %v1392 = vlaneseq
      %v1393 = vshrl.u32 %v1392, 7
      %v1394 = vsub.s32 %v1391, %v1393
      %v1395 = vrot.slane %v1385, %v1394
      %v1397 = vunpack.c.l.s4 1966171168
      %v1398 = vunpack.c.0.s8 %v1397
      %v1399 = vlaneseq
      %v1400 = vshrl.u32 %v1399, 7
      %v1401 = vsub.s32 %v1398, %v1400
      %v1402 = vrot.slane %v1386, %v1401
      %v1404 = vunpack.c.l.s4 1966171168
      %v1405 = vunpack.c.0.s8 %v1404
      %v1406 = vlaneseq
      %v1407 = vshrl.u32 %v1406, 7
      %v1408 = vsub.s32 %v1405, %v1407
      %v1409 = vrot.slane %v1387, %v1408
      %v1411 = vunpack.c.l.s4 1966171168
      %v1412 = vunpack.c.0.s8 %v1411
      %v1413 = vlaneseq
      %v1414 = vshrl.u32 %v1413, 7
      %v1415 = vsub.s32 %v1412, %v1414
      %v1416 = vrot.slane %v1388, %v1415
      %v1417 = vcombine.low %v1395, %v1402
      %v1418 = vcombine.low %v1409, %v1416
      %v1420 = vunpack.c.l.s4 1966171168
      %v1421 = vunpack.c.0.s8 %v1420
      %v1422 = vlaneseq
      %v1423 = vshrl.u32 %v1422, 7
      %v1424 = vsub.s32 %v1421, %v1423
      %v1425 = vrot.slane %v1417, %v1424
      %v1427 = vunpack.c.l.s4 1966171168
      %v1428 = vunpack.c.0.s8 %v1427
      %v1429 = vlaneseq
      %v1430 = vshrl.u32 %v1429, 7
      %v1431 = vsub.s32 %v1428, %v1430
      %v1432 = vrot.slane %v1418, %v1431
      %v1433 = vcombine.low %v1425, %v1432
      %v1434 = vcombine.low %v1058, %v1066
      %v1435 = vcombine.low %v1074, %v1082
      %v1436 = vcombine.low %v1090, %v1099
      %v1437 = vcombine.low %v1107, %v1115
      %v1439 = vunpack.c.l.s4 1966171168
      %v1440 = vunpack.c.0.s8 %v1439
      %v1441 = vlaneseq
      %v1442 = vshrl.u32 %v1441, 7
      %v1443 = vsub.s32 %v1440, %v1442
      %v1444 = vrot.slane %v1434, %v1443
      %v1446 = vunpack.c.l.s4 1966171168
      %v1447 = vunpack.c.0.s8 %v1446
      %v1448 = vlaneseq
      %v1449 = vshrl.u32 %v1448, 7
      %v1450 = vsub.s32 %v1447, %v1449
      %v1451 = vrot.slane %v1435, %v1450
      %v1453 = vunpack.c.l.s4 1966171168
      %v1454 = vunpack.c.0.s8 %v1453
      %v1455 = vlaneseq
      %v1456 = vshrl.u32 %v1455, 7
      %v1457 = vsub.s32 %v1454, %v1456
      %v1458 = vrot.slane %v1436, %v1457
      %v1460 = vunpack.c.l.s4 1966171168
      %v1461 = vunpack.c.0.s8 %v1460
      %v1462 = vlaneseq
      %v1463 = vshrl.u32 %v1462, 7
      %v1464 = vsub.s32 %v1461, %v1463
      %v1465 = vrot.slane %v1437, %v1464
      %v1466 = vcombine.low %v1444, %v1451
      %v1467 = vcombine.low %v1458, %v1465
      %v1469 = vunpack.c.l.s4 1966171168
      %v1470 = vunpack.c.0.s8 %v1469
      %v1471 = vlaneseq
      %v1472 = vshrl.u32 %v1471, 7
      %v1473 = vsub.s32 %v1470, %v1472
      %v1474 = vrot.slane %v1466, %v1473
      %v1476 = vunpack.c.l.s4 1966171168
      %v1477 = vunpack.c.0.s8 %v1476
      %v1478 = vlaneseq
      %v1479 = vshrl.u32 %v1478, 7
      %v1480 = vsub.s32 %v1477, %v1479
      %v1481 = vrot.slane %v1467, %v1480
      %v1482 = vcombine.low %v1474, %v1481
      %v1483 = vcombine.low %v1123, %v1131
      %v1484 = vcombine.low %v1139, %v1147
      %v1485 = vcombine.low %v1156, %v1164
      %v1486 = vcombine.low %v1172, %v1180
      %v1488 = vunpack.c.l.s4 1966171168
      %v1489 = vunpack.c.0.s8 %v1488
      %v1490 = vlaneseq
      %v1491 = vshrl.u32 %v1490, 7
      %v1492 = vsub.s32 %v1489, %v1491
      %v1493 = vrot.slane %v1483, %v1492
      %v1495 = vunpack.c.l.s4 1966171168
      %v1496 = vunpack.c.0.s8 %v1495
      %v1497 = vlaneseq
      %v1498 = vshrl.u32 %v1497, 7
      %v1499 = vsub.s32 %v1496, %v1498
      %v1500 = vrot.slane %v1484, %v1499
      %v1502 = vunpack.c.l.s4 1966171168
      %v1503 = vunpack.c.0.s8 %v1502
      %v1504 = vlaneseq
      %v1505 = vshrl.u32 %v1504, 7
      %v1506 = vsub.s32 %v1503, %v1505
      %v1507 = vrot.slane %v1485, %v1506
      %v1509 = vunpack.c.l.s4 1966171168
      %v1510 = vunpack.c.0.s8 %v1509
      %v1511 = vlaneseq
      %v1512 = vshrl.u32 %v1511, 7
      %v1513 = vsub.s32 %v1510, %v1512
      %v1514 = vrot.slane %v1486, %v1513
      %v1515 = vcombine.low %v1493, %v1500
      %v1516 = vcombine.low %v1507, %v1514
      %v1518 = vunpack.c.l.s4 1966171168
      %v1519 = vunpack.c.0.s8 %v1518
      %v1520 = vlaneseq
      %v1521 = vshrl.u32 %v1520, 7
      %v1522 = vsub.s32 %v1519, %v1521
      %v1523 = vrot.slane %v1515, %v1522
      %v1525 = vunpack.c.l.s4 1966171168
      %v1526 = vunpack.c.0.s8 %v1525
      %v1527 = vlaneseq
      %v1528 = vshrl.u32 %v1527, 7
      %v1529 = vsub.s32 %v1526, %v1528
      %v1530 = vrot.slane %v1516, %v1529
      %v1531 = vcombine.low %v1523, %v1530
      %v1532 = vcombine.low %v1188, %v1196
      %v1533 = vcombine.low %v1204, %v1213
      %v1534 = vcombine.low %v1221, %v1229
      %v1535 = vcombine.low %v1237, %v1245
      %v1537 = vunpack.c.l.s4 1966171168
      %v1538 = vunpack.c.0.s8 %v1537
      %v1539 = vlaneseq
      %v1540 = vshrl.u32 %v1539, 7
      %v1541 = vsub.s32 %v1538, %v1540
      %v1542 = vrot.slane %v1532, %v1541
      %v1544 = vunpack.c.l.s4 1966171168
      %v1545 = vunpack.c.0.s8 %v1544
      %v1546 = vlaneseq
      %v1547 = vshrl.u32 %v1546, 7
      %v1548 = vsub.s32 %v1545, %v1547
      %v1549 = vrot.slane %v1533, %v1548
      %v1551 = vunpack.c.l.s4 1966171168
      %v1552 = vunpack.c.0.s8 %v1551
      %v1553 = vlaneseq
      %v1554 = vshrl.u32 %v1553, 7
      %v1555 = vsub.s32 %v1552, %v1554
      %v1556 = vrot.slane %v1534, %v1555
      %v1558 = vunpack.c.l.s4 1966171168
      %v1559 = vunpack.c.0.s8 %v1558
      %v1560 = vlaneseq
      %v1561 = vshrl.u32 %v1560, 7
      %v1562 = vsub.s32 %v1559, %v1561
      %v1563 = vrot.slane %v1535, %v1562
      %v1564 = vcombine.low %v1542, %v1549
      %v1565 = vcombine.low %v1556, %v1563
      %v1567 = vunpack.c.l.s4 1966171168
      %v1568 = vunpack.c.0.s8 %v1567
      %v1569 = vlaneseq
      %v1570 = vshrl.u32 %v1569, 7
      %v1571 = vsub.s32 %v1568, %v1570
      %v1572 = vrot.slane %v1564, %v1571
      %v1574 = vunpack.c.l.s4 1966171168
      %v1575 = vunpack.c.0.s8 %v1574
      %v1576 = vlaneseq
      %v1577 = vshrl.u32 %v1576, 7
      %v1578 = vsub.s32 %v1575, %v1577
      %v1579 = vrot.slane %v1565, %v1578
      %v1580 = vcombine.low %v1572, %v1579
      %v1581 = vcombine.low %v1253, %v1261
      %v1582 = vcombine.low %v1270, %v1278
      %v1583 = vcombine.low %v1286, %v1294
      %v1584 = vcombine.low %v1302, %v1310
      %v1586 = vunpack.c.l.s4 1966171168
      %v1587 = vunpack.c.0.s8 %v1586
      %v1588 = vlaneseq
      %v1589 = vshrl.u32 %v1588, 7
      %v1590 = vsub.s32 %v1587, %v1589
      %v1591 = vrot.slane %v1581, %v1590
      %v1593 = vunpack.c.l.s4 1966171168
      %v1594 = vunpack.c.0.s8 %v1593
      %v1595 = vlaneseq
      %v1596 = vshrl.u32 %v1595, 7
      %v1597 = vsub.s32 %v1594, %v1596
      %v1598 = vrot.slane %v1582, %v1597
      %v1600 = vunpack.c.l.s4 1966171168
      %v1601 = vunpack.c.0.s8 %v1600
      %v1602 = vlaneseq
      %v1603 = vshrl.u32 %v1602, 7
      %v1604 = vsub.s32 %v1601, %v1603
      %v1605 = vrot.slane %v1583, %v1604
      %v1607 = vunpack.c.l.s4 1966171168
      %v1608 = vunpack.c.0.s8 %v1607
      %v1609 = vlaneseq
      %v1610 = vshrl.u32 %v1609, 7
      %v1611 = vsub.s32 %v1608, %v1610
      %v1612 = vrot.slane %v1584, %v1611
      %v1613 = vcombine.low %v1591, %v1598
      %v1614 = vcombine.low %v1605, %v1612
      %v1616 = vunpack.c.l.s4 1966171168
      %v1617 = vunpack.c.0.s8 %v1616
      %v1618 = vlaneseq
      %v1619 = vshrl.u32 %v1618, 7
      %v1620 = vsub.s32 %v1617, %v1619
      %v1621 = vrot.slane %v1613, %v1620
      %v1623 = vunpack.c.l.s4 1966171168
      %v1624 = vunpack.c.0.s8 %v1623
      %v1625 = vlaneseq
      %v1626 = vshrl.u32 %v1625, 7
      %v1627 = vsub.s32 %v1624, %v1626
      %v1628 = vrot.slane %v1614, %v1627
      %v1629 = vcombine.low %v1621, %v1628
      %v1631 = vunpack.c.l.s4 1966171168
      %v1632 = vunpack.c.0.s8 %v1631
      %v1633 = vlaneseq
      %v1634 = vshrl.u32 %v1633, 7
      %v1635 = vsub.s32 %v1632, %v1634
      %v1636 = vrot.slane %v1318, %v1635
      %v1638 = vunpack.c.l.s4 1966171168
      %v1639 = vunpack.c.0.s8 %v1638
      %v1640 = vlaneseq
      %v1641 = vshrl.u32 %v1640, 7
      %v1642 = vsub.s32 %v1639, %v1641
      %v1643 = vrot.slane %v1636, %v1642
      %v1667 = vunpack.c.l.b16 %v1320
      %v1668 = vunpack.c.l.b16 %v1321
      %v1669 = vunpack.c.l.b16 %v1322
      %v1670 = vunpack.c.l.b16 %v1323
      %v1671 = vunpack.c.l.b16 %v1324
      %v1672 = vunpack.c.l.b16 %v1325
      %v1673 = vunpack.c.l.b16 %v1326
      %v1674 = vunpack.c.l.b16 %v1327
      %v1675 = vunpack.c.l.b16 %v1328
      %v1676 = vunpack.c.l.b16 %v1329
      %v1677 = vunpack.c.l.b16 %v1330
      %v1678 = vunpack.c.l.b16 %v1331
      %v1679 = vunpack.c.l.b16 %v1332
      %v1680 = vunpack.c.l.b16 %v1333
      %v1681 = vunpack.c.l.b16 %v1334
      %v1682 = vunpack.c.l.b16 %v1335
      %v1683 = vpack.c.b16 %v1668, %v1667
      %v1684 = vpack.c.b16 %v1670, %v1669
      %v1685 = vpack.c.b16 %v1672, %v1671
      %v1686 = vpack.c.b16 %v1674, %v1673
      %v1687 = vpack.c.b16 %v1676, %v1675
      %v1688 = vpack.c.b16 %v1678, %v1677
      %v1689 = vpack.c.b16 %v1680, %v1679
      %v1690 = vpack.c.b16 %v1682, %v1681
      %1699 = vmatprep.subr.bf16.mxu0 0
      %1700 = vmatpush1.bf16.msra.mxu0 %v1683
      %1701 = vmatprep.subr.bf16.mxu0 0
      %1702 = vmatpush1.bf16.msra.mxu0 %v1684
      %1703 = vmatprep.subr.bf16.mxu0 0
      %1704 = vmatpush1.bf16.msra.mxu0 %v1685
      %1705 = vmatprep.subr.bf16.mxu0 0
      %1706 = vmatpush1.bf16.msra.mxu0 %v1686
      %1707 = vmatprep.subr.bf16.mxu0 0
      %1708 = vmatpush1.bf16.msra.mxu0 %v1687
      %1709 = vmatprep.subr.bf16.mxu0 0
      %1710 = vmatpush1.bf16.msra.mxu0 %v1688
      %1711 = vmatprep.subr.bf16.mxu0 0
      %1712 = vmatpush1.bf16.msra.mxu0 %v1689
      %1713 = vmatprep.subr.bf16.mxu0 0
      %1714 = vmatpush1.bf16.msra.mxu0 %v1690
      %1715 = vmatprep.subr.bf16.mxu0 0
      %1716 = vmatpush1.bf16.msra.mxu0 0
      %1717 = vmatprep.subr.bf16.mxu0 0
      %1718 = vmatpush1.bf16.msra.mxu0 0
      %1719 = vmatprep.subr.bf16.mxu0 0
      %1720 = vmatpush1.bf16.msra.mxu0 0
      %1721 = vmatprep.subr.bf16.mxu0 0
      %1722 = vmatpush1.bf16.msra.mxu0 0
      %1723 = vmatprep.subr.bf16.mxu0 0
      %1724 = vmatpush1.bf16.msra.mxu0 0
      %1725 = vmatprep.subr.bf16.mxu0 0
      %1726 = vmatpush1.bf16.msra.mxu0 0
      %1727 = vmatprep.subr.bf16.mxu0 0
      %1728 = vmatpush1.bf16.msra.mxu0 0
      %1729 = vmatprep.subr.bf16.mxu0 0
      %1730 = vmatpush1.bf16.msra.mxu0 0
      %1731 = vmatprep.mubr.bf16.mxu0 0
      %1732 = vmatmul.mubr.bf16.gmra.mrb[0].mxu0 %v1384
      %v1733 = vpop.f32.mrb[0].mxu0
      %v1734 = vadd.f32 0.0, %v1733
      %v1735 = vpop.f32.mrb[0].mxu0
      %v1736 = vpop.f32.mrb[0].mxu0
      %v1737 = vadd.f32 0.0, %v1736
      %v1738 = vpop.f32.mrb[0].mxu0
      %1739 = vmatprep.mubr.bf16.mxu0 0
      %1740 = vmatmul.mubr.bf16.gmra.mrb[0].mxu0 %v1433
      %v1741 = vpop.f32.mrb[0].mxu0
      %v1742 = vadd.f32 0.0, %v1741
      %v1743 = vpop.f32.mrb[0].mxu0
      %v1744 = vpop.f32.mrb[0].mxu0
      %v1745 = vadd.f32 0.0, %v1744
      %v1746 = vpop.f32.mrb[0].mxu0
      %1747 = vmatprep.mubr.bf16.mxu0 0
      %1748 = vmatmul.mubr.bf16.gmra.mrb[0].mxu0 %v1482
      %v1749 = vpop.f32.mrb[0].mxu0
      %v1750 = vadd.f32 0.0, %v1749
      %v1751 = vpop.f32.mrb[0].mxu0
      %v1752 = vpop.f32.mrb[0].mxu0
      %v1753 = vadd.f32 0.0, %v1752
      %v1754 = vpop.f32.mrb[0].mxu0
      %1755 = vmatprep.mubr.bf16.mxu0 0
      %1756 = vmatmul.mubr.bf16.gmra.mrb[0].mxu0 %v1531
      %v1757 = vpop.f32.mrb[0].mxu0
      %v1758 = vadd.f32 0.0, %v1757
      %v1759 = vpop.f32.mrb[0].mxu0
      %v1760 = vpop.f32.mrb[0].mxu0
      %v1761 = vadd.f32 0.0, %v1760
      %v1762 = vpop.f32.mrb[0].mxu0
      %1763 = vmatprep.mubr.bf16.mxu0 0
      %1764 = vmatmul.mubr.bf16.gmra.mrb[0].mxu0 %v1580
      %v1765 = vpop.f32.mrb[0].mxu0
      %v1766 = vadd.f32 0.0, %v1765
      %v1767 = vpop.f32.mrb[0].mxu0
      %v1768 = vpop.f32.mrb[0].mxu0
      %v1769 = vadd.f32 0.0, %v1768
      %v1770 = vpop.f32.mrb[0].mxu0
      %1771 = vmatprep.mubr.bf16.mxu0 0
      %1772 = vmatmul.mubr.bf16.gmra.mrb[0].mxu0 %v1629
      %v1773 = vpop.f32.mrb[0].mxu0
      %v1774 = vadd.f32 0.0, %v1773
      %v1775 = vpop.f32.mrb[0].mxu0
      %v1776 = vpop.f32.mrb[0].mxu0
      %v1777 = vadd.f32 0.0, %v1776
      %v1778 = vpop.f32.mrb[0].mxu0
      %1779 = vmatprep.mubr.bf16.mxu0 0
      %1780 = vmatmul.mubr.bf16.gmra.mrb[0].mxu0 %v1643
      %v1781 = vpop.f32.mrb[0].mxu0
      %v1782 = vadd.f32 0.0, %v1781
      %v1783 = vpop.f32.mrb[0].mxu0
      %v1784 = vpop.f32.mrb[0].mxu0
      %v1785 = vpop.f32.mrb[0].mxu0
      %1786 = vdwg.mxu0
      %v1787 = vcombine.low %v569, %v583
      %v1788 = vcombine.low %v591, %v593
      %v1789 = vcombine.low %v576, %v590
      %v1790 = vcombine.low %v592, %v617
      %v1792 = vunpack.c.l.s4 1966171168
      %v1793 = vunpack.c.0.s8 %v1792
      %v1794 = vlaneseq
      %v1795 = vshrl.u32 %v1794, 7
      %v1796 = vsub.s32 %v1793, %v1795
      %v1797 = vrot.slane %v1787, %v1796
      %v1799 = vunpack.c.l.s4 1966171168
      %v1800 = vunpack.c.0.s8 %v1799
      %v1801 = vlaneseq
      %v1802 = vshrl.u32 %v1801, 7
      %v1803 = vsub.s32 %v1800, %v1802
      %v1804 = vrot.slane %v1788, %v1803
      %v1806 = vunpack.c.l.s4 1966171168
      %v1807 = vunpack.c.0.s8 %v1806
      %v1808 = vlaneseq
      %v1809 = vshrl.u32 %v1808, 7
      %v1810 = vsub.s32 %v1807, %v1809
      %v1811 = vrot.slane %v1789, %v1810
      %v1813 = vunpack.c.l.s4 1966171168
      %v1814 = vunpack.c.0.s8 %v1813
      %v1815 = vlaneseq
      %v1816 = vshrl.u32 %v1815, 7
      %v1817 = vsub.s32 %v1814, %v1816
      %v1818 = vrot.slane %v1790, %v1817
      %v1819 = vcombine.low %v1797, %v1804
      %v1820 = vcombine.low %v1811, %v1818
      %v1822 = vunpack.c.l.s4 1966171168
      %v1823 = vunpack.c.0.s8 %v1822
      %v1824 = vlaneseq
      %v1825 = vshrl.u32 %v1824, 7
      %v1826 = vsub.s32 %v1823, %v1825
      %v1827 = vrot.slane %v1819, %v1826
      %v1829 = vunpack.c.l.s4 1966171168
      %v1830 = vunpack.c.0.s8 %v1829
      %v1831 = vlaneseq
      %v1832 = vshrl.u32 %v1831, 7
      %v1833 = vsub.s32 %v1830, %v1832
      %v1834 = vrot.slane %v1820, %v1833
      %v1835 = vcombine.low %v1827, %v1834
      %v1836 = vcombine.low %v631, %v639
      %v1837 = vcombine.low %v641, %v624
      %v1838 = vcombine.low %v638, %v640
      %v1839 = vcombine.low %v665, %v679
      %v1841 = vunpack.c.l.s4 1966171168
      %v1842 = vunpack.c.0.s8 %v1841
      %v1843 = vlaneseq
      %v1844 = vshrl.u32 %v1843, 7
      %v1845 = vsub.s32 %v1842, %v1844
      %v1846 = vrot.slane %v1836, %v1845
      %v1848 = vunpack.c.l.s4 1966171168
      %v1849 = vunpack.c.0.s8 %v1848
      %v1850 = vlaneseq
      %v1851 = vshrl.u32 %v1850, 7
      %v1852 = vsub.s32 %v1849, %v1851
      %v1853 = vrot.slane %v1837, %v1852
      %v1855 = vunpack.c.l.s4 1966171168
      %v1856 = vunpack.c.0.s8 %v1855
      %v1857 = vlaneseq
      %v1858 = vshrl.u32 %v1857, 7
      %v1859 = vsub.s32 %v1856, %v1858
      %v1860 = vrot.slane %v1838, %v1859
      %v1862 = vunpack.c.l.s4 1966171168
      %v1863 = vunpack.c.0.s8 %v1862
      %v1864 = vlaneseq
      %v1865 = vshrl.u32 %v1864, 7
      %v1866 = vsub.s32 %v1863, %v1865
      %v1867 = vrot.slane %v1839, %v1866
      %v1868 = vcombine.low %v1846, %v1853
      %v1869 = vcombine.low %v1860, %v1867
      %v1871 = vunpack.c.l.s4 1966171168
      %v1872 = vunpack.c.0.s8 %v1871
      %v1873 = vlaneseq
      %v1874 = vshrl.u32 %v1873, 7
      %v1875 = vsub.s32 %v1872, %v1874
      %v1876 = vrot.slane %v1868, %v1875
      %v1878 = vunpack.c.l.s4 1966171168
      %v1879 = vunpack.c.0.s8 %v1878
      %v1880 = vlaneseq
      %v1881 = vshrl.u32 %v1880, 7
      %v1882 = vsub.s32 %v1879, %v1881
      %v1883 = vrot.slane %v1869, %v1882
      %v1884 = vcombine.low %v1876, %v1883
      %v1885 = vcombine.low %v687, %v689
      %v1886 = vcombine.low %v672, %v686
      %v1887 = vcombine.low %v688, %v713
      %v1888 = vcombine.low %v727, %v735
      %v1890 = vunpack.c.l.s4 1966171168
      %v1891 = vunpack.c.0.s8 %v1890
      %v1892 = vlaneseq
      %v1893 = vshrl.u32 %v1892, 7
      %v1894 = vsub.s32 %v1891, %v1893
      %v1895 = vrot.slane %v1885, %v1894
      %v1897 = vunpack.c.l.s4 1966171168
      %v1898 = vunpack.c.0.s8 %v1897
      %v1899 = vlaneseq
      %v1900 = vshrl.u32 %v1899, 7
      %v1901 = vsub.s32 %v1898, %v1900
      %v1902 = vrot.slane %v1886, %v1901
      %v1904 = vunpack.c.l.s4 1966171168
      %v1905 = vunpack.c.0.s8 %v1904
      %v1906 = vlaneseq
      %v1907 = vshrl.u32 %v1906, 7
      %v1908 = vsub.s32 %v1905, %v1907
      %v1909 = vrot.slane %v1887, %v1908
      %v1911 = vunpack.c.l.s4 1966171168
      %v1912 = vunpack.c.0.s8 %v1911
      %v1913 = vlaneseq
      %v1914 = vshrl.u32 %v1913, 7
      %v1915 = vsub.s32 %v1912, %v1914
      %v1916 = vrot.slane %v1888, %v1915
      %v1917 = vcombine.low %v1895, %v1902
      %v1918 = vcombine.low %v1909, %v1916
      %v1920 = vunpack.c.l.s4 1966171168
      %v1921 = vunpack.c.0.s8 %v1920
      %v1922 = vlaneseq
      %v1923 = vshrl.u32 %v1922, 7
      %v1924 = vsub.s32 %v1921, %v1923
      %v1925 = vrot.slane %v1917, %v1924
      %v1927 = vunpack.c.l.s4 1966171168
      %v1928 = vunpack.c.0.s8 %v1927
      %v1929 = vlaneseq
      %v1930 = vshrl.u32 %v1929, 7
      %v1931 = vsub.s32 %v1928, %v1930
      %v1932 = vrot.slane %v1918, %v1931
      %v1933 = vcombine.low %v1925, %v1932
      %v1934 = vcombine.low %v737, %v720
      %v1935 = vcombine.low %v734, %v736
      %v1936 = vcombine.low %v761, %v775
      %v1937 = vcombine.low %v783, %v785
      %v1939 = vunpack.c.l.s4 1966171168
      %v1940 = vunpack.c.0.s8 %v1939
      %v1941 = vlaneseq
      %v1942 = vshrl.u32 %v1941, 7
      %v1943 = vsub.s32 %v1940, %v1942
      %v1944 = vrot.slane %v1934, %v1943
      %v1946 = vunpack.c.l.s4 1966171168
      %v1947 = vunpack.c.0.s8 %v1946
      %v1948 = vlaneseq
      %v1949 = vshrl.u32 %v1948, 7
      %v1950 = vsub.s32 %v1947, %v1949
      %v1951 = vrot.slane %v1935, %v1950
      %v1953 = vunpack.c.l.s4 1966171168
      %v1954 = vunpack.c.0.s8 %v1953
      %v1955 = vlaneseq
      %v1956 = vshrl.u32 %v1955, 7
      %v1957 = vsub.s32 %v1954, %v1956
      %v1958 = vrot.slane %v1936, %v1957
      %v1960 = vunpack.c.l.s4 1966171168
      %v1961 = vunpack.c.0.s8 %v1960
      %v1962 = vlaneseq
      %v1963 = vshrl.u32 %v1962, 7
      %v1964 = vsub.s32 %v1961, %v1963
      %v1965 = vrot.slane %v1937, %v1964
      %v1966 = vcombine.low %v1944, %v1951
      %v1967 = vcombine.low %v1958, %v1965
      %v1969 = vunpack.c.l.s4 1966171168
      %v1970 = vunpack.c.0.s8 %v1969
      %v1971 = vlaneseq
      %v1972 = vshrl.u32 %v1971, 7
      %v1973 = vsub.s32 %v1970, %v1972
      %v1974 = vrot.slane %v1966, %v1973
      %v1976 = vunpack.c.l.s4 1966171168
      %v1977 = vunpack.c.0.s8 %v1976
      %v1978 = vlaneseq
      %v1979 = vshrl.u32 %v1978, 7
      %v1980 = vsub.s32 %v1977, %v1979
      %v1981 = vrot.slane %v1967, %v1980
      %v1982 = vcombine.low %v1974, %v1981
      %v1983 = vcombine.low %v768, %v782
      %v1984 = vcombine.low %v784, %v809
      %v1985 = vcombine.low %v823, %v831
      %v1986 = vcombine.low %v833, %v816
      %v1988 = vunpack.c.l.s4 1966171168
      %v1989 = vunpack.c.0.s8 %v1988
      %v1990 = vlaneseq
      %v1991 = vshrl.u32 %v1990, 7
      %v1992 = vsub.s32 %v1989, %v1991
      %v1993 = vrot.slane %v1983, %v1992
      %v1995 = vunpack.c.l.s4 1966171168
      %v1996 = vunpack.c.0.s8 %v1995
      %v1997 = vlaneseq
      %v1998 = vshrl.u32 %v1997, 7
      %v1999 = vsub.s32 %v1996, %v1998
      %v2000 = vrot.slane %v1984, %v1999
      %v2002 = vunpack.c.l.s4 1966171168
      %v2003 = vunpack.c.0.s8 %v2002
      %v2004 = vlaneseq
      %v2005 = vshrl.u32 %v2004, 7
      %v2006 = vsub.s32 %v2003, %v2005
      %v2007 = vrot.slane %v1985, %v2006
      %v2009 = vunpack.c.l.s4 1966171168
      %v2010 = vunpack.c.0.s8 %v2009
      %v2011 = vlaneseq
      %v2012 = vshrl.u32 %v2011, 7
      %v2013 = vsub.s32 %v2010, %v2012
      %v2014 = vrot.slane %v1986, %v2013
      %v2015 = vcombine.low %v1993, %v2000
      %v2016 = vcombine.low %v2007, %v2014
      %v2018 = vunpack.c.l.s4 1966171168
      %v2019 = vunpack.c.0.s8 %v2018
      %v2020 = vlaneseq
      %v2021 = vshrl.u32 %v2020, 7
      %v2022 = vsub.s32 %v2019, %v2021
      %v2023 = vrot.slane %v2015, %v2022
      %v2025 = vunpack.c.l.s4 1966171168
      %v2026 = vunpack.c.0.s8 %v2025
      %v2027 = vlaneseq
      %v2028 = vshrl.u32 %v2027, 7
      %v2029 = vsub.s32 %v2026, %v2028
      %v2030 = vrot.slane %v2016, %v2029
      %v2031 = vcombine.low %v2023, %v2030
      %v2032 = vcombine.low %v830, %v832
      %v2033 = vcombine.low %v857, %v871
      %v2034 = vcombine.low %v879, %v881
      %v2035 = vcombine.low %v864, %v878
      %v2037 = vunpack.c.l.s4 1966171168
      %v2038 = vunpack.c.0.s8 %v2037
      %v2039 = vlaneseq
      %v2040 = vshrl.u32 %v2039, 7
      %v2041 = vsub.s32 %v2038, %v2040
      %v2042 = vrot.slane %v2032, %v2041
      %v2044 = vunpack.c.l.s4 1966171168
      %v2045 = vunpack.c.0.s8 %v2044
      %v2046 = vlaneseq
      %v2047 = vshrl.u32 %v2046, 7
      %v2048 = vsub.s32 %v2045, %v2047
      %v2049 = vrot.slane %v2033, %v2048
      %v2051 = vunpack.c.l.s4 1966171168
      %v2052 = vunpack.c.0.s8 %v2051
      %v2053 = vlaneseq
      %v2054 = vshrl.u32 %v2053, 7
      %v2055 = vsub.s32 %v2052, %v2054
      %v2056 = vrot.slane %v2034, %v2055
      %v2058 = vunpack.c.l.s4 1966171168
      %v2059 = vunpack.c.0.s8 %v2058
      %v2060 = vlaneseq
      %v2061 = vshrl.u32 %v2060, 7
      %v2062 = vsub.s32 %v2059, %v2061
      %v2063 = vrot.slane %v2035, %v2062
      %v2064 = vcombine.low %v2042, %v2049
      %v2065 = vcombine.low %v2056, %v2063
      %v2067 = vunpack.c.l.s4 1966171168
      %v2068 = vunpack.c.0.s8 %v2067
      %v2069 = vlaneseq
      %v2070 = vshrl.u32 %v2069, 7
      %v2071 = vsub.s32 %v2068, %v2070
      %v2072 = vrot.slane %v2064, %v2071
      %v2074 = vunpack.c.l.s4 1966171168
      %v2075 = vunpack.c.0.s8 %v2074
      %v2076 = vlaneseq
      %v2077 = vshrl.u32 %v2076, 7
      %v2078 = vsub.s32 %v2075, %v2077
      %v2079 = vrot.slane %v2065, %v2078
      %v2080 = vcombine.low %v2072, %v2079
      %v2082 = vunpack.c.l.s4 1966171168
      %v2083 = vunpack.c.0.s8 %v2082
      %v2084 = vlaneseq
      %v2085 = vshrl.u32 %v2084, 7
      %v2086 = vsub.s32 %v2083, %v2085
      %v2087 = vrot.slane %v880, %v2086
      %v2089 = vunpack.c.l.s4 1966171168
      %v2090 = vunpack.c.0.s8 %v2089
      %v2091 = vlaneseq
      %v2092 = vshrl.u32 %v2091, 7
      %v2093 = vsub.s32 %v2090, %v2092
      %v2094 = vrot.slane %v2087, %v2093
      %v2118 = vunpack.c.l.b16 %v882
      %v2119 = vunpack.c.l.b16 %v883
      %v2120 = vunpack.c.l.b16 %v884
      %v2121 = vunpack.c.l.b16 %v885
      %v2122 = vunpack.c.l.b16 %v886
      %v2123 = vunpack.c.l.b16 %v887
      %v2124 = vunpack.c.l.b16 %v888
      %v2125 = vunpack.c.l.b16 %v889
      %v2126 = vunpack.c.l.b16 %v890
      %v2127 = vunpack.c.l.b16 %v891
      %v2128 = vunpack.c.l.b16 %v892
      %v2129 = vunpack.c.l.b16 %v893
      %v2130 = vunpack.c.l.b16 %v894
      %v2131 = vunpack.c.l.b16 %v895
      %v2132 = vunpack.c.l.b16 %v896
      %v2133 = vunpack.c.l.b16 %v897
      %v2134 = vpack.c.b16 %v2119, %v2118
      %v2135 = vpack.c.b16 %v2121, %v2120
      %v2136 = vpack.c.b16 %v2123, %v2122
      %v2137 = vpack.c.b16 %v2125, %v2124
      %v2138 = vpack.c.b16 %v2127, %v2126
      %v2139 = vpack.c.b16 %v2129, %v2128
      %v2140 = vpack.c.b16 %v2131, %v2130
      %v2141 = vpack.c.b16 %v2133, %v2132
      %2150 = vmatprep.subr.bf16.mxu0 0
      %2151 = vmatpush1.bf16.msra.mxu0 %v2134
      %2152 = vmatprep.subr.bf16.mxu0 0
      %2153 = vmatpush1.bf16.msra.mxu0 %v2135
      %2154 = vmatprep.subr.bf16.mxu0 0
      %2155 = vmatpush1.bf16.msra.mxu0 %v2136
      %2156 = vmatprep.subr.bf16.mxu0 0
      %2157 = vmatpush1.bf16.msra.mxu0 %v2137
      %2158 = vmatprep.subr.bf16.mxu0 0
      %2159 = vmatpush1.bf16.msra.mxu0 %v2138
      %2160 = vmatprep.subr.bf16.mxu0 0
      %2161 = vmatpush1.bf16.msra.mxu0 %v2139
      %2162 = vmatprep.subr.bf16.mxu0 0
      %2163 = vmatpush1.bf16.msra.mxu0 %v2140
      %2164 = vmatprep.subr.bf16.mxu0 0
      %2165 = vmatpush1.bf16.msra.mxu0 %v2141
      %2166 = vmatprep.subr.bf16.mxu0 0
      %2167 = vmatpush1.bf16.msra.mxu0 0
      %2168 = vmatprep.subr.bf16.mxu0 0
      %2169 = vmatpush1.bf16.msra.mxu0 0
      %2170 = vmatprep.subr.bf16.mxu0 0
      %2171 = vmatpush1.bf16.msra.mxu0 0
      %2172 = vmatprep.subr.bf16.mxu0 0
      %2173 = vmatpush1.bf16.msra.mxu0 0
      %2174 = vmatprep.subr.bf16.mxu0 0
      %2175 = vmatpush1.bf16.msra.mxu0 0
      %2176 = vmatprep.subr.bf16.mxu0 0
      %2177 = vmatpush1.bf16.msra.mxu0 0
      %2178 = vmatprep.subr.bf16.mxu0 0
      %2179 = vmatpush1.bf16.msra.mxu0 0
      %2180 = vmatprep.subr.bf16.mxu0 0
      %2181 = vmatpush1.bf16.msra.mxu0 0
      %2182 = vmatprep.mubr.bf16.mxu0 0
      %2183 = vmatmul.mubr.bf16.gmra.mrb[0].mxu0 %v1835
      %v2184 = vpop.f32.mrb[0].mxu0
      %v2185 = vadd.f32 %v1734, %v2184
      %v2186 = vpop.f32.mrb[0].mxu0
      %v2187 = vpop.f32.mrb[0].mxu0
      %v2188 = vadd.f32 %v1737, %v2187
      %v2189 = vpop.f32.mrb[0].mxu0
      %2190 = vmatprep.mubr.bf16.mxu0 0
      %2191 = vmatmul.mubr.bf16.gmra.mrb[0].mxu0 %v1884
      %v2192 = vpop.f32.mrb[0].mxu0
      %v2193 = vadd.f32 %v1742, %v2192
      %v2194 = vpop.f32.mrb[0].mxu0
      %v2195 = vpop.f32.mrb[0].mxu0
      %v2196 = vadd.f32 %v1745, %v2195
      %v2197 = vpop.f32.mrb[0].mxu0
      %2198 = vmatprep.mubr.bf16.mxu0 0
      %2199 = vmatmul.mubr.bf16.gmra.mrb[0].mxu0 %v1933
      %v2200 = vpop.f32.mrb[0].mxu0
      %v2201 = vadd.f32 %v1750, %v2200
      %v2202 = vpop.f32.mrb[0].mxu0
      %v2203 = vpop.f32.mrb[0].mxu0
      %v2204 = vadd.f32 %v1753, %v2203
      %v2205 = vpop.f32.mrb[0].mxu0
      %2206 = vmatprep.mubr.bf16.mxu0 0
      %2207 = vmatmul.mubr.bf16.gmra.mrb[0].mxu0 %v1982
      %v2208 = vpop.f32.mrb[0].mxu0
      %v2209 = vadd.f32 %v1758, %v2208
      %v2210 = vpop.f32.mrb[0].mxu0
      %v2211 = vpop.f32.mrb[0].mxu0
      %v2212 = vadd.f32 %v1761, %v2211
      %v2213 = vpop.f32.mrb[0].mxu0
      %2214 = vmatprep.mubr.bf16.mxu0 0
      %2215 = vmatmul.mubr.bf16.gmra.mrb[0].mxu0 %v2031
      %v2216 = vpop.f32.mrb[0].mxu0
      %v2217 = vadd.f32 %v1766, %v2216
      %v2218 = vpop.f32.mrb[0].mxu0
      %v2219 = vpop.f32.mrb[0].mxu0
      %v2220 = vadd.f32 %v1769, %v2219
      %v2221 = vpop.f32.mrb[0].mxu0
      %2222 = vmatprep.mubr.bf16.mxu0 0
      %2223 = vmatmul.mubr.bf16.gmra.mrb[0].mxu0 %v2080
      %v2224 = vpop.f32.mrb[0].mxu0
      %v2225 = vadd.f32 %v1774, %v2224
      %v2226 = vpop.f32.mrb[0].mxu0
      %v2227 = vpop.f32.mrb[0].mxu0
      %v2228 = vadd.f32 %v1777, %v2227
      %v2229 = vpop.f32.mrb[0].mxu0
      %2230 = vmatprep.mubr.bf16.mxu0 0
      %2231 = vmatmul.mubr.bf16.gmra.mrb[0].mxu0 %v2094
      %v2232 = vpop.f32.mrb[0].mxu0
      %v2233 = vadd.f32 %v1782, %v2232
      %v2234 = vpop.f32.mrb[0].mxu0
      %v2235 = vpop.f32.mrb[0].mxu0
      %v2236 = vpop.f32.mrb[0].mxu0
      %2237 = vdwg.mxu0
      %s2238 = scalar_lea.vmem %s3, 128
      %v2239 = vld [vmem:[%s2238] sm:$0xf]
      %v2240 = vld [vmem:[%s2238 + $0x4] sm:$0xf]
      %v2241 = vld [vmem:[%s2238 + $0x8] sm:$0xf]
      %v2242 = vld [vmem:[%s2238 + $0xc] sm:$0xf]
      %v2243 = vld [vmem:[%s2238 + $0x10] sm:$0xf]
      %v2244 = vld [vmem:[%s2238 + $0x14] sm:$0xf]
      %v2245 = vld [vmem:[%s2238 + $0x18] sm:$0xf]
      %v2246 = vld [vmem:[%s2238 + $0x1c] sm:$0xf]
      %v2247 = vld [vmem:[%s2238 + $0x20] sm:$0xf]
      %v2248 = vld [vmem:[%s2238 + $0x24] sm:$0xf]
      %v2249 = vld [vmem:[%s2238 + $0x28] sm:$0xf]
      %v2250 = vld [vmem:[%s2238 + $0x2c] sm:$0xf]
      %v2251 = vld [vmem:[%s2238 + $0x30] sm:$0xf]
      %v2252 = vld [vmem:[%s2238 + $0x34] sm:$0xf]
      %v2253 = vld [vmem:[%s2238 + $0x38] sm:$0xf]
      %v2254 = vld [vmem:[%s2238 + $0x3c] sm:$0xf]
      %v2255 = vcombine.low %v583, %v591
      %v2256 = vcombine.low %v593, %v576
      %v2257 = vcombine.low %v590, %v592
      %v2258 = vcombine.low %v898, %v631
      %v2260 = vunpack.c.l.s4 1966171168
      %v2261 = vunpack.c.0.s8 %v2260
      %v2262 = vlaneseq
      %v2263 = vshrl.u32 %v2262, 7
      %v2264 = vsub.s32 %v2261, %v2263
      %v2265 = vrot.slane %v2255, %v2264
      %v2267 = vunpack.c.l.s4 1966171168
      %v2268 = vunpack.c.0.s8 %v2267
      %v2269 = vlaneseq
      %v2270 = vshrl.u32 %v2269, 7
      %v2271 = vsub.s32 %v2268, %v2270
      %v2272 = vrot.slane %v2256, %v2271
      %v2274 = vunpack.c.l.s4 1966171168
      %v2275 = vunpack.c.0.s8 %v2274
      %v2276 = vlaneseq
      %v2277 = vshrl.u32 %v2276, 7
      %v2278 = vsub.s32 %v2275, %v2277
      %v2279 = vrot.slane %v2257, %v2278
      %v2281 = vunpack.c.l.s4 1966171168
      %v2282 = vunpack.c.0.s8 %v2281
      %v2283 = vlaneseq
      %v2284 = vshrl.u32 %v2283, 7
      %v2285 = vsub.s32 %v2282, %v2284
      %v2286 = vrot.slane %v2258, %v2285
      %v2287 = vcombine.low %v2265, %v2272
      %v2288 = vcombine.low %v2279, %v2286
      %v2290 = vunpack.c.l.s4 1966171168
      %v2291 = vunpack.c.0.s8 %v2290
      %v2292 = vlaneseq
      %v2293 = vshrl.u32 %v2292, 7
      %v2294 = vsub.s32 %v2291, %v2293
      %v2295 = vrot.slane %v2287, %v2294
      %v2297 = vunpack.c.l.s4 1966171168
      %v2298 = vunpack.c.0.s8 %v2297
      %v2299 = vlaneseq
      %v2300 = vshrl.u32 %v2299, 7
      %v2301 = vsub.s32 %v2298, %v2300
      %v2302 = vrot.slane %v2288, %v2301
      %v2303 = vcombine.low %v2295, %v2302
      %v2304 = vcombine.low %v639, %v641
      %v2305 = vcombine.low %v624, %v638
      %v2306 = vcombine.low %v640, %v899
      %v2307 = vcombine.low %v679, %v687
      %v2309 = vunpack.c.l.s4 1966171168
      %v2310 = vunpack.c.0.s8 %v2309
      %v2311 = vlaneseq
      %v2312 = vshrl.u32 %v2311, 7
      %v2313 = vsub.s32 %v2310, %v2312
      %v2314 = vrot.slane %v2304, %v2313
      %v2316 = vunpack.c.l.s4 1966171168
      %v2317 = vunpack.c.0.s8 %v2316
      %v2318 = vlaneseq
      %v2319 = vshrl.u32 %v2318, 7
      %v2320 = vsub.s32 %v2317, %v2319
      %v2321 = vrot.slane %v2305, %v2320
      %v2323 = vunpack.c.l.s4 1966171168
      %v2324 = vunpack.c.0.s8 %v2323
      %v2325 = vlaneseq
      %v2326 = vshrl.u32 %v2325, 7
      %v2327 = vsub.s32 %v2324, %v2326
      %v2328 = vrot.slane %v2306, %v2327
      %v2330 = vunpack.c.l.s4 1966171168
      %v2331 = vunpack.c.0.s8 %v2330
      %v2332 = vlaneseq
      %v2333 = vshrl.u32 %v2332, 7
      %v2334 = vsub.s32 %v2331, %v2333
      %v2335 = vrot.slane %v2307, %v2334
      %v2336 = vcombine.low %v2314, %v2321
      %v2337 = vcombine.low %v2328, %v2335
      %v2339 = vunpack.c.l.s4 1966171168
      %v2340 = vunpack.c.0.s8 %v2339
      %v2341 = vlaneseq
      %v2342 = vshrl.u32 %v2341, 7
      %v2343 = vsub.s32 %v2340, %v2342
      %v2344 = vrot.slane %v2336, %v2343
      %v2346 = vunpack.c.l.s4 1966171168
      %v2347 = vunpack.c.0.s8 %v2346
      %v2348 = vlaneseq
      %v2349 = vshrl.u32 %v2348, 7
      %v2350 = vsub.s32 %v2347, %v2349
      %v2351 = vrot.slane %v2337, %v2350
      %v2352 = vcombine.low %v2344, %v2351
      %v2353 = vcombine.low %v689, %v672
      %v2354 = vcombine.low %v686, %v688
      %v2355 = vcombine.low %v900, %v727
      %v2356 = vcombine.low %v735, %v737
      %v2358 = vunpack.c.l.s4 1966171168
      %v2359 = vunpack.c.0.s8 %v2358
      %v2360 = vlaneseq
      %v2361 = vshrl.u32 %v2360, 7
      %v2362 = vsub.s32 %v2359, %v2361
      %v2363 = vrot.slane %v2353, %v2362
      %v2365 = vunpack.c.l.s4 1966171168
      %v2366 = vunpack.c.0.s8 %v2365
      %v2367 = vlaneseq
      %v2368 = vshrl.u32 %v2367, 7
      %v2369 = vsub.s32 %v2366, %v2368
      %v2370 = vrot.slane %v2354, %v2369
      %v2372 = vunpack.c.l.s4 1966171168
      %v2373 = vunpack.c.0.s8 %v2372
      %v2374 = vlaneseq
      %v2375 = vshrl.u32 %v2374, 7
      %v2376 = vsub.s32 %v2373, %v2375
      %v2377 = vrot.slane %v2355, %v2376
      %v2379 = vunpack.c.l.s4 1966171168
      %v2380 = vunpack.c.0.s8 %v2379
      %v2381 = vlaneseq
      %v2382 = vshrl.u32 %v2381, 7
      %v2383 = vsub.s32 %v2380, %v2382
      %v2384 = vrot.slane %v2356, %v2383
      %v2385 = vcombine.low %v2363, %v2370
      %v2386 = vcombine.low %v2377, %v2384
      %v2388 = vunpack.c.l.s4 1966171168
      %v2389 = vunpack.c.0.s8 %v2388
      %v2390 = vlaneseq
      %v2391 = vshrl.u32 %v2390, 7
      %v2392 = vsub.s32 %v2389, %v2391
      %v2393 = vrot.slane %v2385, %v2392
      %v2395 = vunpack.c.l.s4 1966171168
      %v2396 = vunpack.c.0.s8 %v2395
      %v2397 = vlaneseq
      %v2398 = vshrl.u32 %v2397, 7
      %v2399 = vsub.s32 %v2396, %v2398
      %v2400 = vrot.slane %v2386, %v2399
      %v2401 = vcombine.low %v2393, %v2400
      %v2402 = vcombine.low %v720, %v734
      %v2403 = vcombine.low %v736, %v901
      %v2404 = vcombine.low %v775, %v783
      %v2405 = vcombine.low %v785, %v768
      %v2407 = vunpack.c.l.s4 1966171168
      %v2408 = vunpack.c.0.s8 %v2407
      %v2409 = vlaneseq
      %v2410 = vshrl.u32 %v2409, 7
      %v2411 = vsub.s32 %v2408, %v2410
      %v2412 = vrot.slane %v2402, %v2411
      %v2414 = vunpack.c.l.s4 1966171168
      %v2415 = vunpack.c.0.s8 %v2414
      %v2416 = vlaneseq
      %v2417 = vshrl.u32 %v2416, 7
      %v2418 = vsub.s32 %v2415, %v2417
      %v2419 = vrot.slane %v2403, %v2418
      %v2421 = vunpack.c.l.s4 1966171168
      %v2422 = vunpack.c.0.s8 %v2421
      %v2423 = vlaneseq
      %v2424 = vshrl.u32 %v2423, 7
      %v2425 = vsub.s32 %v2422, %v2424
      %v2426 = vrot.slane %v2404, %v2425
      %v2428 = vunpack.c.l.s4 1966171168
      %v2429 = vunpack.c.0.s8 %v2428
      %v2430 = vlaneseq
      %v2431 = vshrl.u32 %v2430, 7
      %v2432 = vsub.s32 %v2429, %v2431
      %v2433 = vrot.slane %v2405, %v2432
      %v2434 = vcombine.low %v2412, %v2419
      %v2435 = vcombine.low %v2426, %v2433
      %v2437 = vunpack.c.l.s4 1966171168
      %v2438 = vunpack.c.0.s8 %v2437
      %v2439 = vlaneseq
      %v2440 = vshrl.u32 %v2439, 7
      %v2441 = vsub.s32 %v2438, %v2440
      %v2442 = vrot.slane %v2434, %v2441
      %v2444 = vunpack.c.l.s4 1966171168
      %v2445 = vunpack.c.0.s8 %v2444
      %v2446 = vlaneseq
      %v2447 = vshrl.u32 %v2446, 7
      %v2448 = vsub.s32 %v2445, %v2447
      %v2449 = vrot.slane %v2435, %v2448
      %v2450 = vcombine.low %v2442, %v2449
      %v2451 = vcombine.low %v782, %v784
      %v2452 = vcombine.low %v902, %v823
      %v2453 = vcombine.low %v831, %v833
      %v2454 = vcombine.low %v816, %v830
      %v2456 = vunpack.c.l.s4 1966171168
      %v2457 = vunpack.c.0.s8 %v2456
      %v2458 = vlaneseq
      %v2459 = vshrl.u32 %v2458, 7
      %v2460 = vsub.s32 %v2457, %v2459
      %v2461 = vrot.slane %v2451, %v2460
      %v2463 = vunpack.c.l.s4 1966171168
      %v2464 = vunpack.c.0.s8 %v2463
      %v2465 = vlaneseq
      %v2466 = vshrl.u32 %v2465, 7
      %v2467 = vsub.s32 %v2464, %v2466
      %v2468 = vrot.slane %v2452, %v2467
      %v2470 = vunpack.c.l.s4 1966171168
      %v2471 = vunpack.c.0.s8 %v2470
      %v2472 = vlaneseq
      %v2473 = vshrl.u32 %v2472, 7
      %v2474 = vsub.s32 %v2471, %v2473
      %v2475 = vrot.slane %v2453, %v2474
      %v2477 = vunpack.c.l.s4 1966171168
      %v2478 = vunpack.c.0.s8 %v2477
      %v2479 = vlaneseq
      %v2480 = vshrl.u32 %v2479, 7
      %v2481 = vsub.s32 %v2478, %v2480
      %v2482 = vrot.slane %v2454, %v2481
      %v2483 = vcombine.low %v2461, %v2468
      %v2484 = vcombine.low %v2475, %v2482
      %v2486 = vunpack.c.l.s4 1966171168
      %v2487 = vunpack.c.0.s8 %v2486
      %v2488 = vlaneseq
      %v2489 = vshrl.u32 %v2488, 7
      %v2490 = vsub.s32 %v2487, %v2489
      %v2491 = vrot.slane %v2483, %v2490
      %v2493 = vunpack.c.l.s4 1966171168
      %v2494 = vunpack.c.0.s8 %v2493
      %v2495 = vlaneseq
      %v2496 = vshrl.u32 %v2495, 7
      %v2497 = vsub.s32 %v2494, %v2496
      %v2498 = vrot.slane %v2484, %v2497
      %v2499 = vcombine.low %v2491, %v2498
      %v2500 = vcombine.low %v832, %v903
      %v2501 = vcombine.low %v871, %v879
      %v2502 = vcombine.low %v881, %v864
      %v2503 = vcombine.low %v878, %v880
      %v2505 = vunpack.c.l.s4 1966171168
      %v2506 = vunpack.c.0.s8 %v2505
      %v2507 = vlaneseq
      %v2508 = vshrl.u32 %v2507, 7
      %v2509 = vsub.s32 %v2506, %v2508
      %v2510 = vrot.slane %v2500, %v2509
      %v2512 = vunpack.c.l.s4 1966171168
      %v2513 = vunpack.c.0.s8 %v2512
      %v2514 = vlaneseq
      %v2515 = vshrl.u32 %v2514, 7
      %v2516 = vsub.s32 %v2513, %v2515
      %v2517 = vrot.slane %v2501, %v2516
      %v2519 = vunpack.c.l.s4 1966171168
      %v2520 = vunpack.c.0.s8 %v2519
      %v2521 = vlaneseq
      %v2522 = vshrl.u32 %v2521, 7
      %v2523 = vsub.s32 %v2520, %v2522
      %v2524 = vrot.slane %v2502, %v2523
      %v2526 = vunpack.c.l.s4 1966171168
      %v2527 = vunpack.c.0.s8 %v2526
      %v2528 = vlaneseq
      %v2529 = vshrl.u32 %v2528, 7
      %v2530 = vsub.s32 %v2527, %v2529
      %v2531 = vrot.slane %v2503, %v2530
      %v2532 = vcombine.low %v2510, %v2517
      %v2533 = vcombine.low %v2524, %v2531
      %v2535 = vunpack.c.l.s4 1966171168
      %v2536 = vunpack.c.0.s8 %v2535
      %v2537 = vlaneseq
      %v2538 = vshrl.u32 %v2537, 7
      %v2539 = vsub.s32 %v2536, %v2538
      %v2540 = vrot.slane %v2532, %v2539
      %v2542 = vunpack.c.l.s4 1966171168
      %v2543 = vunpack.c.0.s8 %v2542
      %v2544 = vlaneseq
      %v2545 = vshrl.u32 %v2544, 7
      %v2546 = vsub.s32 %v2543, %v2545
      %v2547 = vrot.slane %v2533, %v2546
      %v2548 = vcombine.low %v2540, %v2547
      %v2550 = vunpack.c.l.s4 1966171168
      %v2551 = vunpack.c.0.s8 %v2550
      %v2552 = vlaneseq
      %v2553 = vshrl.u32 %v2552, 7
      %v2554 = vsub.s32 %v2551, %v2553
      %v2555 = vrot.slane %v904, %v2554
      %v2557 = vunpack.c.l.s4 1966171168
      %v2558 = vunpack.c.0.s8 %v2557
      %v2559 = vlaneseq
      %v2560 = vshrl.u32 %v2559, 7
      %v2561 = vsub.s32 %v2558, %v2560
      %v2562 = vrot.slane %v2555, %v2561
      %v2586 = vunpack.c.l.b16 %v2239
      %v2587 = vunpack.c.l.b16 %v2240
      %v2588 = vunpack.c.l.b16 %v2241
      %v2589 = vunpack.c.l.b16 %v2242
      %v2590 = vunpack.c.l.b16 %v2243
      %v2591 = vunpack.c.l.b16 %v2244
      %v2592 = vunpack.c.l.b16 %v2245
      %v2593 = vunpack.c.l.b16 %v2246
      %v2594 = vunpack.c.l.b16 %v2247
      %v2595 = vunpack.c.l.b16 %v2248
      %v2596 = vunpack.c.l.b16 %v2249
      %v2597 = vunpack.c.l.b16 %v2250
      %v2598 = vunpack.c.l.b16 %v2251
      %v2599 = vunpack.c.l.b16 %v2252
      %v2600 = vunpack.c.l.b16 %v2253
      %v2601 = vunpack.c.l.b16 %v2254
      %v2602 = vpack.c.b16 %v2587, %v2586
      %v2603 = vpack.c.b16 %v2589, %v2588
      %v2604 = vpack.c.b16 %v2591, %v2590
      %v2605 = vpack.c.b16 %v2593, %v2592
      %v2606 = vpack.c.b16 %v2595, %v2594
      %v2607 = vpack.c.b16 %v2597, %v2596
      %v2608 = vpack.c.b16 %v2599, %v2598
      %v2609 = vpack.c.b16 %v2601, %v2600
      %2618 = vmatprep.subr.bf16.mxu0 0
      %2619 = vmatpush1.bf16.msra.mxu0 %v2602
      %2620 = vmatprep.subr.bf16.mxu0 0
      %2621 = vmatpush1.bf16.msra.mxu0 %v2603
      %2622 = vmatprep.subr.bf16.mxu0 0
      %2623 = vmatpush1.bf16.msra.mxu0 %v2604
      %2624 = vmatprep.subr.bf16.mxu0 0
      %2625 = vmatpush1.bf16.msra.mxu0 %v2605
      %2626 = vmatprep.subr.bf16.mxu0 0
      %2627 = vmatpush1.bf16.msra.mxu0 %v2606
      %2628 = vmatprep.subr.bf16.mxu0 0
      %2629 = vmatpush1.bf16.msra.mxu0 %v2607
      %2630 = vmatprep.subr.bf16.mxu0 0
      %2631 = vmatpush1.bf16.msra.mxu0 %v2608
      %2632 = vmatprep.subr.bf16.mxu0 0
      %2633 = vmatpush1.bf16.msra.mxu0 %v2609
      %2634 = vmatprep.subr.bf16.mxu0 0
      %2635 = vmatpush1.bf16.msra.mxu0 0
      %2636 = vmatprep.subr.bf16.mxu0 0
      %2637 = vmatpush1.bf16.msra.mxu0 0
      %2638 = vmatprep.subr.bf16.mxu0 0
      %2639 = vmatpush1.bf16.msra.mxu0 0
      %2640 = vmatprep.subr.bf16.mxu0 0
      %2641 = vmatpush1.bf16.msra.mxu0 0
      %2642 = vmatprep.subr.bf16.mxu0 0
      %2643 = vmatpush1.bf16.msra.mxu0 0
      %2644 = vmatprep.subr.bf16.mxu0 0
      %2645 = vmatpush1.bf16.msra.mxu0 0
      %2646 = vmatprep.subr.bf16.mxu0 0
      %2647 = vmatpush1.bf16.msra.mxu0 0
      %2648 = vmatprep.subr.bf16.mxu0 0
      %2649 = vmatpush1.bf16.msra.mxu0 0
      %2650 = vmatprep.mubr.bf16.mxu0 0
      %2651 = vmatmul.mubr.bf16.gmra.mrb[0].mxu0 %v2303
      %v2652 = vpop.f32.mrb[0].mxu0
      %v2653 = vadd.f32 0.0, %v2652
      %v2654 = vpop.f32.mrb[0].mxu0
      %v2655 = vpop.f32.mrb[0].mxu0
      %v2656 = vadd.f32 0.0, %v2655
      %v2657 = vpop.f32.mrb[0].mxu0
      %2658 = vmatprep.mubr.bf16.mxu0 0
      %2659 = vmatmul.mubr.bf16.gmra.mrb[0].mxu0 %v2352
      %v2660 = vpop.f32.mrb[0].mxu0
      %v2661 = vadd.f32 0.0, %v2660
      %v2662 = vpop.f32.mrb[0].mxu0
      %v2663 = vpop.f32.mrb[0].mxu0
      %v2664 = vadd.f32 0.0, %v2663
      %v2665 = vpop.f32.mrb[0].mxu0
      %2666 = vmatprep.mubr.bf16.mxu0 0
      %2667 = vmatmul.mubr.bf16.gmra.mrb[0].mxu0 %v2401
      %v2668 = vpop.f32.mrb[0].mxu0
      %v2669 = vadd.f32 0.0, %v2668
      %v2670 = vpop.f32.mrb[0].mxu0
      %v2671 = vpop.f32.mrb[0].mxu0
      %v2672 = vadd.f32 0.0, %v2671
      %v2673 = vpop.f32.mrb[0].mxu0
      %2674 = vmatprep.mubr.bf16.mxu0 0
      %2675 = vmatmul.mubr.bf16.gmra.mrb[0].mxu0 %v2450
      %v2676 = vpop.f32.mrb[0].mxu0
      %v2677 = vadd.f32 0.0, %v2676
      %v2678 = vpop.f32.mrb[0].mxu0
      %v2679 = vpop.f32.mrb[0].mxu0
      %v2680 = vadd.f32 0.0, %v2679
      %v2681 = vpop.f32.mrb[0].mxu0
      %2682 = vmatprep.mubr.bf16.mxu0 0
      %2683 = vmatmul.mubr.bf16.gmra.mrb[0].mxu0 %v2499
      %v2684 = vpop.f32.mrb[0].mxu0
      %v2685 = vadd.f32 0.0, %v2684
      %v2686 = vpop.f32.mrb[0].mxu0
      %v2687 = vpop.f32.mrb[0].mxu0
      %v2688 = vadd.f32 0.0, %v2687
      %v2689 = vpop.f32.mrb[0].mxu0
      %2690 = vmatprep.mubr.bf16.mxu0 0
      %2691 = vmatmul.mubr.bf16.gmra.mrb[0].mxu0 %v2548
      %v2692 = vpop.f32.mrb[0].mxu0
      %v2693 = vadd.f32 0.0, %v2692
      %v2694 = vpop.f32.mrb[0].mxu0
      %v2695 = vpop.f32.mrb[0].mxu0
      %v2696 = vadd.f32 0.0, %v2695
      %v2697 = vpop.f32.mrb[0].mxu0
      %2698 = vmatprep.mubr.bf16.mxu0 0
      %2699 = vmatmul.mubr.bf16.gmra.mrb[0].mxu0 %v2562
      %v2700 = vpop.f32.mrb[0].mxu0
      %v2701 = vadd.f32 0.0, %v2700
      %v2702 = vpop.f32.mrb[0].mxu0
      %v2703 = vpop.f32.mrb[0].mxu0
      %v2704 = vpop.f32.mrb[0].mxu0
      %2705 = vdwg.mxu0
      %v2706 = vadd.f32 %v2185, %v2653
      %v2707 = vadd.f32 %v2188, %v2656
      %v2708 = vadd.f32 %v2193, %v2661
      %v2709 = vadd.f32 %v2196, %v2664
      %v2710 = vadd.f32 %v2201, %v2669
      %v2711 = vadd.f32 %v2204, %v2672
      %v2712 = vadd.f32 %v2209, %v2677
      %v2713 = vadd.f32 %v2212, %v2680
      %v2714 = vadd.f32 %v2217, %v2685
      %v2715 = vadd.f32 %v2220, %v2688
      %v2716 = vadd.f32 %v2225, %v2693
      %v2717 = vadd.f32 %v2228, %v2696
      %v2718 = vadd.f32 %v2233, %v2701
      %v2720 = vcombine.high %v537, %v537
      %v2722 = vunpack.c.l.s4 1966171168
      %v2723 = vunpack.c.0.s8 %v2722
      %v2724 = vlaneseq
      %v2725 = vshrl.u32 %v2724, 7
      %v2726 = vsub.s32 %v2723, %v2725
      %v2727 = vrot.slane %v537, %v2726
      %v2729 = vunpack.c.l.s4 1966171168
      %v2730 = vunpack.c.0.s8 %v2729
      %v2731 = vlaneseq
      %v2732 = vshrl.u32 %v2731, 7
      %v2733 = vsub.s32 %v2730, %v2732
      %v2734 = vrot.slane %v2720, %v2733
      %v2735 = vcombine.high %v2727, %v2727
      %v2736 = vcombine.high %v2734, %v2734
      %v2738 = vunpack.c.l.s4 1966171168
      %v2739 = vunpack.c.0.s8 %v2738
      %v2740 = vlaneseq
      %v2741 = vshrl.u32 %v2740, 7
      %v2742 = vsub.s32 %v2739, %v2741
      %v2743 = vrot.slane %v2727, %v2742
      %v2745 = vunpack.c.l.s4 1966171168
      %v2746 = vunpack.c.0.s8 %v2745
      %v2747 = vlaneseq
      %v2748 = vshrl.u32 %v2747, 7
      %v2749 = vsub.s32 %v2746, %v2748
      %v2750 = vrot.slane %v2734, %v2749
      %v2752 = vunpack.c.l.s4 1966171168
      %v2753 = vunpack.c.0.s8 %v2752
      %v2754 = vlaneseq
      %v2755 = vshrl.u32 %v2754, 7
      %v2756 = vsub.s32 %v2753, %v2755
      %v2757 = vrot.slane %v2735, %v2756
      %v2759 = vunpack.c.l.s4 1966171168
      %v2760 = vunpack.c.0.s8 %v2759
      %v2761 = vlaneseq
      %v2762 = vshrl.u32 %v2761, 7
      %v2763 = vsub.s32 %v2760, %v2762
      %v2764 = vrot.slane %v2736, %v2763
      %v2765 = vcombine.high %v2743, %v2743
      %v2766 = vcombine.high %v2750, %v2750
      %v2767 = vcombine.high %v2757, %v2757
      %s2768 = scalar_lea.vmem %s3, 192
      %v2769 = vld [vmem:[%s2768] sm:$0xf]
      %v2770 = vld [vmem:[%s2768 + $0x4] sm:$0xf]
      %v2771 = vld [vmem:[%s2768 + $0x8] sm:$0xf]
      %v2772 = vld [vmem:[%s2768 + $0xc] sm:$0xf]
      %v2773 = vld [vmem:[%s2768 + $0x10] sm:$0xf]
      %v2774 = vld [vmem:[%s2768 + $0x14] sm:$0xf]
      %v2775 = vld [vmem:[%s2768 + $0x18] sm:$0xf]
      %v2776 = vld [vmem:[%s2768 + $0x1c] sm:$0xf]
      %v2777 = vld [vmem:[%s2768 + $0x20] sm:$0xf]
      %v2778 = vld [vmem:[%s2768 + $0x24] sm:$0xf]
      %v2779 = vld [vmem:[%s2768 + $0x28] sm:$0xf]
      %v2780 = vld [vmem:[%s2768 + $0x2c] sm:$0xf]
      %v2781 = vld [vmem:[%s2768 + $0x30] sm:$0xf]
      %v2782 = vld [vmem:[%s2768 + $0x34] sm:$0xf]
      %v2783 = vld [vmem:[%s2768 + $0x38] sm:$0xf]
      %v2784 = vld [vmem:[%s2768 + $0x3c] sm:$0xf]
      %v2785 = vcombine.low %v617, %v631
      %v2786 = vcombine.low %v640, %v665
      %v2788 = vunpack.c.l.s4 1966171168
      %v2789 = vunpack.c.0.s8 %v2788
      %v2790 = vlaneseq
      %v2791 = vshrl.u32 %v2790, 7
      %v2792 = vsub.s32 %v2789, %v2791
      %v2793 = vrot.slane %v2785, %v2792
      %v2795 = vunpack.c.l.s4 1966171168
      %v2796 = vunpack.c.0.s8 %v2795
      %v2797 = vlaneseq
      %v2798 = vshrl.u32 %v2797, 7
      %v2799 = vsub.s32 %v2796, %v2798
      %v2800 = vrot.slane %v2786, %v2799
      %v2801 = vcombine.low %v2793, %v2314
      %v2802 = vcombine.low %v2321, %v2800
      %v2804 = vunpack.c.l.s4 1966171168
      %v2805 = vunpack.c.0.s8 %v2804
      %v2806 = vlaneseq
      %v2807 = vshrl.u32 %v2806, 7
      %v2808 = vsub.s32 %v2805, %v2807
      %v2809 = vrot.slane %v2801, %v2808
      %v2811 = vunpack.c.l.s4 1966171168
      %v2812 = vunpack.c.0.s8 %v2811
      %v2813 = vlaneseq
      %v2814 = vshrl.u32 %v2813, 7
      %v2815 = vsub.s32 %v2812, %v2814
      %v2816 = vrot.slane %v2802, %v2815
      %v2817 = vcombine.low %v2809, %v2816
      %v2818 = vcombine.low %v713, %v727
      %v2820 = vunpack.c.l.s4 1966171168
      %v2821 = vunpack.c.0.s8 %v2820
      %v2822 = vlaneseq
      %v2823 = vshrl.u32 %v2822, 7
      %v2824 = vsub.s32 %v2821, %v2823
      %v2825 = vrot.slane %v2818, %v2824
      %v2826 = vcombine.low %v2335, %v2363
      %v2827 = vcombine.low %v2370, %v2825
      %v2829 = vunpack.c.l.s4 1966171168
      %v2830 = vunpack.c.0.s8 %v2829
      %v2831 = vlaneseq
      %v2832 = vshrl.u32 %v2831, 7
      %v2833 = vsub.s32 %v2830, %v2832
      %v2834 = vrot.slane %v2826, %v2833
      %v2836 = vunpack.c.l.s4 1966171168
      %v2837 = vunpack.c.0.s8 %v2836
      %v2838 = vlaneseq
      %v2839 = vshrl.u32 %v2838, 7
      %v2840 = vsub.s32 %v2837, %v2839
      %v2841 = vrot.slane %v2827, %v2840
      %v2842 = vcombine.low %v2834, %v2841
      %v2843 = vcombine.low %v736, %v761
      %v2845 = vunpack.c.l.s4 1966171168
      %v2846 = vunpack.c.0.s8 %v2845
      %v2847 = vlaneseq
      %v2848 = vshrl.u32 %v2847, 7
      %v2849 = vsub.s32 %v2846, %v2848
      %v2850 = vrot.slane %v2843, %v2849
      %v2851 = vcombine.low %v2384, %v2412
      %v2852 = vcombine.low %v2850, %v2426
      %v2854 = vunpack.c.l.s4 1966171168
      %v2855 = vunpack.c.0.s8 %v2854
      %v2856 = vlaneseq
      %v2857 = vshrl.u32 %v2856, 7
      %v2858 = vsub.s32 %v2855, %v2857
      %v2859 = vrot.slane %v2851, %v2858
      %v2861 = vunpack.c.l.s4 1966171168
      %v2862 = vunpack.c.0.s8 %v2861
      %v2863 = vlaneseq
      %v2864 = vshrl.u32 %v2863, 7
      %v2865 = vsub.s32 %v2862, %v2864
      %v2866 = vrot.slane %v2852, %v2865
      %v2867 = vcombine.low %v2859, %v2866
      %v2868 = vcombine.low %v809, %v823
      %v2870 = vunpack.c.l.s4 1966171168
      %v2871 = vunpack.c.0.s8 %v2870
      %v2872 = vlaneseq
      %v2873 = vshrl.u32 %v2872, 7
      %v2874 = vsub.s32 %v2871, %v2873
      %v2875 = vrot.slane %v2868, %v2874
      %v2876 = vcombine.low %v2433, %v2461
      %v2877 = vcombine.low %v2875, %v2475
      %v2879 = vunpack.c.l.s4 1966171168
      %v2880 = vunpack.c.0.s8 %v2879
      %v2881 = vlaneseq
      %v2882 = vshrl.u32 %v2881, 7
      %v2883 = vsub.s32 %v2880, %v2882
      %v2884 = vrot.slane %v2876, %v2883
      %v2886 = vunpack.c.l.s4 1966171168
      %v2887 = vunpack.c.0.s8 %v2886
      %v2888 = vlaneseq
      %v2889 = vshrl.u32 %v2888, 7
      %v2890 = vsub.s32 %v2887, %v2889
      %v2891 = vrot.slane %v2877, %v2890
      %v2892 = vcombine.low %v2884, %v2891
      %v2893 = vcombine.low %v832, %v857
      %v2895 = vunpack.c.l.s4 1966171168
      %v2896 = vunpack.c.0.s8 %v2895
      %v2897 = vlaneseq
      %v2898 = vshrl.u32 %v2897, 7
      %v2899 = vsub.s32 %v2896, %v2898
      %v2900 = vrot.slane %v2893, %v2899
      %v2901 = vcombine.low %v2482, %v2900
      %v2902 = vcombine.low %v2517, %v2524
      %v2904 = vunpack.c.l.s4 1966171168
      %v2905 = vunpack.c.0.s8 %v2904
      %v2906 = vlaneseq
      %v2907 = vshrl.u32 %v2906, 7
      %v2908 = vsub.s32 %v2905, %v2907
      %v2909 = vrot.slane %v2901, %v2908
      %v2911 = vunpack.c.l.s4 1966171168
      %v2912 = vunpack.c.0.s8 %v2911
      %v2913 = vlaneseq
      %v2914 = vshrl.u32 %v2913, 7
      %v2915 = vsub.s32 %v2912, %v2914
      %v2916 = vrot.slane %v2902, %v2915
      %v2917 = vcombine.low %v2909, %v2916
      %v2918 = vcombine.low %v2743, %v2757
      %v2919 = vcombine.low %v2765, %v2767
      %v2920 = vcombine.low %v2750, %v2764
      %v2922 = vunpack.c.l.s4 1966171168
      %v2923 = vunpack.c.0.s8 %v2922
      %v2924 = vlaneseq
      %v2925 = vshrl.u32 %v2924, 7
      %v2926 = vsub.s32 %v2923, %v2925
      %v2927 = vrot.slane %v2918, %v2926
      %v2929 = vunpack.c.l.s4 1966171168
      %v2930 = vunpack.c.0.s8 %v2929
      %v2931 = vlaneseq
      %v2932 = vshrl.u32 %v2931, 7
      %v2933 = vsub.s32 %v2930, %v2932
      %v2934 = vrot.slane %v2919, %v2933
      %v2936 = vunpack.c.l.s4 1966171168
      %v2937 = vunpack.c.0.s8 %v2936
      %v2938 = vlaneseq
      %v2939 = vshrl.u32 %v2938, 7
      %v2940 = vsub.s32 %v2937, %v2939
      %v2941 = vrot.slane %v2920, %v2940
      %v2942 = vcombine.low %v2531, %v2927
      %v2943 = vcombine.low %v2934, %v2941
      %v2945 = vunpack.c.l.s4 1966171168
      %v2946 = vunpack.c.0.s8 %v2945
      %v2947 = vlaneseq
      %v2948 = vshrl.u32 %v2947, 7
      %v2949 = vsub.s32 %v2946, %v2948
      %v2950 = vrot.slane %v2942, %v2949
      %v2952 = vunpack.c.l.s4 1966171168
      %v2953 = vunpack.c.0.s8 %v2952
      %v2954 = vlaneseq
      %v2955 = vshrl.u32 %v2954, 7
      %v2956 = vsub.s32 %v2953, %v2955
      %v2957 = vrot.slane %v2943, %v2956
      %v2958 = vcombine.low %v2950, %v2957
      %v2960 = vunpack.c.l.s4 1966171168
      %v2961 = vunpack.c.0.s8 %v2960
      %v2962 = vlaneseq
      %v2963 = vshrl.u32 %v2962, 7
      %v2964 = vsub.s32 %v2961, %v2963
      %v2965 = vrot.slane %v2766, %v2964
      %v2967 = vunpack.c.l.s4 1966171168
      %v2968 = vunpack.c.0.s8 %v2967
      %v2969 = vlaneseq
      %v2970 = vshrl.u32 %v2969, 7
      %v2971 = vsub.s32 %v2968, %v2970
      %v2972 = vrot.slane %v2965, %v2971
      %v2996 = vunpack.c.l.b16 %v2769
      %v2997 = vunpack.c.l.b16 %v2770
      %v2998 = vunpack.c.l.b16 %v2771
      %v2999 = vunpack.c.l.b16 %v2772
      %v3000 = vunpack.c.l.b16 %v2773
      %v3001 = vunpack.c.l.b16 %v2774
      %v3002 = vunpack.c.l.b16 %v2775
      %v3003 = vunpack.c.l.b16 %v2776
      %v3004 = vunpack.c.l.b16 %v2777
      %v3005 = vunpack.c.l.b16 %v2778
      %v3006 = vunpack.c.l.b16 %v2779
      %v3007 = vunpack.c.l.b16 %v2780
      %v3008 = vunpack.c.l.b16 %v2781
      %v3009 = vunpack.c.l.b16 %v2782
      %v3010 = vunpack.c.l.b16 %v2783
      %v3011 = vunpack.c.l.b16 %v2784
      %v3012 = vpack.c.b16 %v2997, %v2996
      %v3013 = vpack.c.b16 %v2999, %v2998
      %v3014 = vpack.c.b16 %v3001, %v3000
      %v3015 = vpack.c.b16 %v3003, %v3002
      %v3016 = vpack.c.b16 %v3005, %v3004
      %v3017 = vpack.c.b16 %v3007, %v3006
      %v3018 = vpack.c.b16 %v3009, %v3008
      %v3019 = vpack.c.b16 %v3011, %v3010
      %3028 = vmatprep.subr.bf16.mxu0 0
      %3029 = vmatpush1.bf16.msra.mxu0 %v3012
      %3030 = vmatprep.subr.bf16.mxu0 0
      %3031 = vmatpush1.bf16.msra.mxu0 %v3013
      %3032 = vmatprep.subr.bf16.mxu0 0
      %3033 = vmatpush1.bf16.msra.mxu0 %v3014
      %3034 = vmatprep.subr.bf16.mxu0 0
      %3035 = vmatpush1.bf16.msra.mxu0 %v3015
      %3036 = vmatprep.subr.bf16.mxu0 0
      %3037 = vmatpush1.bf16.msra.mxu0 %v3016
      %3038 = vmatprep.subr.bf16.mxu0 0
      %3039 = vmatpush1.bf16.msra.mxu0 %v3017
      %3040 = vmatprep.subr.bf16.mxu0 0
      %3041 = vmatpush1.bf16.msra.mxu0 %v3018
      %3042 = vmatprep.subr.bf16.mxu0 0
      %3043 = vmatpush1.bf16.msra.mxu0 %v3019
      %3044 = vmatprep.subr.bf16.mxu0 0
      %3045 = vmatpush1.bf16.msra.mxu0 0
      %3046 = vmatprep.subr.bf16.mxu0 0
      %3047 = vmatpush1.bf16.msra.mxu0 0
      %3048 = vmatprep.subr.bf16.mxu0 0
      %3049 = vmatpush1.bf16.msra.mxu0 0
      %3050 = vmatprep.subr.bf16.mxu0 0
      %3051 = vmatpush1.bf16.msra.mxu0 0
      %3052 = vmatprep.subr.bf16.mxu0 0
      %3053 = vmatpush1.bf16.msra.mxu0 0
      %3054 = vmatprep.subr.bf16.mxu0 0
      %3055 = vmatpush1.bf16.msra.mxu0 0
      %3056 = vmatprep.subr.bf16.mxu0 0
      %3057 = vmatpush1.bf16.msra.mxu0 0
      %3058 = vmatprep.subr.bf16.mxu0 0
      %3059 = vmatpush1.bf16.msra.mxu0 0
      %3060 = vmatprep.mubr.bf16.mxu0 0
      %3061 = vmatmul.mubr.bf16.gmra.mrb[0].mxu0 %v2817
      %v3062 = vpop.f32.mrb[0].mxu0
      %v3063 = vadd.f32 0.0, %v3062
      %v3064 = vpop.f32.mrb[0].mxu0
      %v3065 = vpop.f32.mrb[0].mxu0
      %v3066 = vadd.f32 0.0, %v3065
      %v3067 = vpop.f32.mrb[0].mxu0
      %3068 = vmatprep.mubr.bf16.mxu0 0
      %3069 = vmatmul.mubr.bf16.gmra.mrb[0].mxu0 %v2842
      %v3070 = vpop.f32.mrb[0].mxu0
      %v3071 = vadd.f32 0.0, %v3070
      %v3072 = vpop.f32.mrb[0].mxu0
      %v3073 = vpop.f32.mrb[0].mxu0
      %v3074 = vadd.f32 0.0, %v3073
      %v3075 = vpop.f32.mrb[0].mxu0
      %3076 = vmatprep.mubr.bf16.mxu0 0
      %3077 = vmatmul.mubr.bf16.gmra.mrb[0].mxu0 %v2867
      %v3078 = vpop.f32.mrb[0].mxu0
      %v3079 = vadd.f32 0.0, %v3078
      %v3080 = vpop.f32.mrb[0].mxu0
      %v3081 = vpop.f32.mrb[0].mxu0
      %v3082 = vadd.f32 0.0, %v3081
      %v3083 = vpop.f32.mrb[0].mxu0
      %3084 = vmatprep.mubr.bf16.mxu0 0
      %3085 = vmatmul.mubr.bf16.gmra.mrb[0].mxu0 %v2892
      %v3086 = vpop.f32.mrb[0].mxu0
      %v3087 = vadd.f32 0.0, %v3086
      %v3088 = vpop.f32.mrb[0].mxu0
      %v3089 = vpop.f32.mrb[0].mxu0
      %v3090 = vadd.f32 0.0, %v3089
      %v3091 = vpop.f32.mrb[0].mxu0
      %3092 = vmatprep.mubr.bf16.mxu0 0
      %3093 = vmatmul.mubr.bf16.gmra.mrb[0].mxu0 %v2917
      %v3094 = vpop.f32.mrb[0].mxu0
      %v3095 = vadd.f32 0.0, %v3094
      %v3096 = vpop.f32.mrb[0].mxu0
      %v3097 = vpop.f32.mrb[0].mxu0
      %v3098 = vadd.f32 0.0, %v3097
      %v3099 = vpop.f32.mrb[0].mxu0
      %3100 = vmatprep.mubr.bf16.mxu0 0
      %3101 = vmatmul.mubr.bf16.gmra.mrb[0].mxu0 %v2958
      %v3102 = vpop.f32.mrb[0].mxu0
      %v3103 = vadd.f32 0.0, %v3102
      %v3104 = vpop.f32.mrb[0].mxu0
      %v3105 = vpop.f32.mrb[0].mxu0
      %v3106 = vadd.f32 0.0, %v3105
      %v3107 = vpop.f32.mrb[0].mxu0
      %3108 = vmatprep.mubr.bf16.mxu0 0
      %3109 = vmatmul.mubr.bf16.gmra.mrb[0].mxu0 %v2972
      %v3110 = vpop.f32.mrb[0].mxu0
      %v3111 = vadd.f32 0.0, %v3110
      %v3112 = vpop.f32.mrb[0].mxu0
      %v3113 = vpop.f32.mrb[0].mxu0
      %v3114 = vpop.f32.mrb[0].mxu0
      %3115 = vdwg.mxu0
      %v3116 = vadd.f32 %v2706, %v3063
      %v3117 = vadd.f32 %v2707, %v3066
      %v3118 = vadd.f32 %v2708, %v3071
      %v3119 = vadd.f32 %v2709, %v3074
      %v3120 = vadd.f32 %v2710, %v3079
      %v3121 = vadd.f32 %v2711, %v3082
      %v3122 = vadd.f32 %v2712, %v3087
      %v3123 = vadd.f32 %v2713, %v3090
      %v3124 = vadd.f32 %v2714, %v3095
      %v3125 = vadd.f32 %v2715, %v3098
      %v3126 = vadd.f32 %v2716, %v3103
      %v3127 = vadd.f32 %v2717, %v3106
      %v3128 = vadd.f32 %v2718, %v3111
      %v3129 = vcombine.high %v2764, %v2764
      %v3131 = vshrl.u32 %v2743, 16
      %v3133 = vrot.slane %v3131, 7
      %v3134 = vrot.slane %v3133, 1
      %v3136 = vshll.u32 %v2757, 16
      %v3138 = vsel %vm919, %v3134, %v3136
      %v3139 = vshrl.u32 %v2757, 16
      %v3141 = vrot.slane %v3139, 7
      %v3142 = vrot.slane %v3141, 1
      %v3144 = vshll.u32 %v2765, 16
      %v3146 = vsel %vm919, %v3142, %v3144
      %v3147 = vshrl.u32 %v2765, 16
      %v3149 = vrot.slane %v3147, 7
      %v3150 = vrot.slane %v3149, 1
      %v3152 = vshll.u32 %v2767, 16
      %v3154 = vsel %vm919, %v3150, %v3152
      %v3155 = vshrl.u32 %v2767, 16
      %v3157 = vrot.slane %v3155, 7
      %v3158 = vrot.slane %v3157, 1
      %v3160 = vshll.u32 %v2750, 16
      %v3162 = vsel %vm919, %v3158, %v3160
      %v3163 = vshrl.u32 %v2750, 16
      %v3165 = vrot.slane %v3163, 7
      %v3166 = vrot.slane %v3165, 1
      %v3168 = vshll.u32 %v2764, 16
      %v3170 = vsel %vm919, %v3166, %v3168
      %v3171 = vshrl.u32 %v2764, 16
      %v3173 = vrot.slane %v3171, 7
      %v3174 = vrot.slane %v3173, 1
      %v3176 = vshll.u32 %v2766, 16
      %v3178 = vsel %vm919, %v3174, %v3176
      %v3179 = vshrl.u32 %v2766, 16
      %v3181 = vrot.slane %v3179, 7
      %v3182 = vrot.slane %v3181, 1
      %v3184 = vshll.u32 %v3129, 16
      %v3186 = vsel %vm919, %v3182, %v3184
      %s3187 = scalar_lea.vmem %s3, 256
      %v3188 = vld [vmem:[%s3187] sm:$0xf]
      %v3189 = vld [vmem:[%s3187 + $0x4] sm:$0xf]
      %v3190 = vld [vmem:[%s3187 + $0x8] sm:$0xf]
      %v3191 = vld [vmem:[%s3187 + $0xc] sm:$0xf]
      %v3192 = vld [vmem:[%s3187 + $0x10] sm:$0xf]
      %v3193 = vld [vmem:[%s3187 + $0x14] sm:$0xf]
      %v3194 = vld [vmem:[%s3187 + $0x18] sm:$0xf]
      %v3195 = vld [vmem:[%s3187 + $0x1c] sm:$0xf]
      %v3196 = vld [vmem:[%s3187 + $0x20] sm:$0xf]
      %v3197 = vld [vmem:[%s3187 + $0x24] sm:$0xf]
      %v3198 = vld [vmem:[%s3187 + $0x28] sm:$0xf]
      %v3199 = vld [vmem:[%s3187 + $0x2c] sm:$0xf]
      %v3200 = vld [vmem:[%s3187 + $0x30] sm:$0xf]
      %v3201 = vld [vmem:[%s3187 + $0x34] sm:$0xf]
      %v3202 = vld [vmem:[%s3187 + $0x38] sm:$0xf]
      %v3203 = vld [vmem:[%s3187 + $0x3c] sm:$0xf]
      %v3204 = vcombine.low %v985, %v993
      %v3205 = vcombine.low %v1001, %v1009
      %v3206 = vcombine.low %v1017, %v1025
      %v3207 = vcombine.low %v1033, %v1042
      %v3209 = vunpack.c.l.s4 1966171168
      %v3210 = vunpack.c.0.s8 %v3209
      %v3211 = vlaneseq
      %v3212 = vshrl.u32 %v3211, 7
      %v3213 = vsub.s32 %v3210, %v3212
      %v3214 = vrot.slane %v3204, %v3213
      %v3216 = vunpack.c.l.s4 1966171168
      %v3217 = vunpack.c.0.s8 %v3216
      %v3218 = vlaneseq
      %v3219 = vshrl.u32 %v3218, 7
      %v3220 = vsub.s32 %v3217, %v3219
      %v3221 = vrot.slane %v3205, %v3220
      %v3223 = vunpack.c.l.s4 1966171168
      %v3224 = vunpack.c.0.s8 %v3223
      %v3225 = vlaneseq
      %v3226 = vshrl.u32 %v3225, 7
      %v3227 = vsub.s32 %v3224, %v3226
      %v3228 = vrot.slane %v3206, %v3227
      %v3230 = vunpack.c.l.s4 1966171168
      %v3231 = vunpack.c.0.s8 %v3230
      %v3232 = vlaneseq
      %v3233 = vshrl.u32 %v3232, 7
      %v3234 = vsub.s32 %v3231, %v3233
      %v3235 = vrot.slane %v3207, %v3234
      %v3236 = vcombine.low %v3214, %v3221
      %v3237 = vcombine.low %v3228, %v3235
      %v3239 = vunpack.c.l.s4 1966171168
      %v3240 = vunpack.c.0.s8 %v3239
      %v3241 = vlaneseq
      %v3242 = vshrl.u32 %v3241, 7
      %v3243 = vsub.s32 %v3240, %v3242
      %v3244 = vrot.slane %v3236, %v3243
      %v3246 = vunpack.c.l.s4 1966171168
      %v3247 = vunpack.c.0.s8 %v3246
      %v3248 = vlaneseq
      %v3249 = vshrl.u32 %v3248, 7
      %v3250 = vsub.s32 %v3247, %v3249
      %v3251 = vrot.slane %v3237, %v3250
      %v3252 = vcombine.low %v3244, %v3251
      %v3253 = vcombine.low %v1050, %v1058
      %v3254 = vcombine.low %v1066, %v1074
      %v3255 = vcombine.low %v1082, %v1090
      %v3256 = vcombine.low %v1099, %v1107
      %v3258 = vunpack.c.l.s4 1966171168
      %v3259 = vunpack.c.0.s8 %v3258
      %v3260 = vlaneseq
      %v3261 = vshrl.u32 %v3260, 7
      %v3262 = vsub.s32 %v3259, %v3261
      %v3263 = vrot.slane %v3253, %v3262
      %v3265 = vunpack.c.l.s4 1966171168
      %v3266 = vunpack.c.0.s8 %v3265
      %v3267 = vlaneseq
      %v3268 = vshrl.u32 %v3267, 7
      %v3269 = vsub.s32 %v3266, %v3268
      %v3270 = vrot.slane %v3254, %v3269
      %v3272 = vunpack.c.l.s4 1966171168
      %v3273 = vunpack.c.0.s8 %v3272
      %v3274 = vlaneseq
      %v3275 = vshrl.u32 %v3274, 7
      %v3276 = vsub.s32 %v3273, %v3275
      %v3277 = vrot.slane %v3255, %v3276
      %v3279 = vunpack.c.l.s4 1966171168
      %v3280 = vunpack.c.0.s8 %v3279
      %v3281 = vlaneseq
      %v3282 = vshrl.u32 %v3281, 7
      %v3283 = vsub.s32 %v3280, %v3282
      %v3284 = vrot.slane %v3256, %v3283
      %v3285 = vcombine.low %v3263, %v3270
      %v3286 = vcombine.low %v3277, %v3284
      %v3288 = vunpack.c.l.s4 1966171168
      %v3289 = vunpack.c.0.s8 %v3288
      %v3290 = vlaneseq
      %v3291 = vshrl.u32 %v3290, 7
      %v3292 = vsub.s32 %v3289, %v3291
      %v3293 = vrot.slane %v3285, %v3292
      %v3295 = vunpack.c.l.s4 1966171168
      %v3296 = vunpack.c.0.s8 %v3295
      %v3297 = vlaneseq
      %v3298 = vshrl.u32 %v3297, 7
      %v3299 = vsub.s32 %v3296, %v3298
      %v3300 = vrot.slane %v3286, %v3299
      %v3301 = vcombine.low %v3293, %v3300
      %v3302 = vcombine.low %v1115, %v1123
      %v3303 = vcombine.low %v1131, %v1139
      %v3304 = vcombine.low %v1147, %v1156
      %v3305 = vcombine.low %v1164, %v1172
      %v3307 = vunpack.c.l.s4 1966171168
      %v3308 = vunpack.c.0.s8 %v3307
      %v3309 = vlaneseq
      %v3310 = vshrl.u32 %v3309, 7
      %v3311 = vsub.s32 %v3308, %v3310
      %v3312 = vrot.slane %v3302, %v3311
      %v3314 = vunpack.c.l.s4 1966171168
      %v3315 = vunpack.c.0.s8 %v3314
      %v3316 = vlaneseq
      %v3317 = vshrl.u32 %v3316, 7
      %v3318 = vsub.s32 %v3315, %v3317
      %v3319 = vrot.slane %v3303, %v3318
      %v3321 = vunpack.c.l.s4 1966171168
      %v3322 = vunpack.c.0.s8 %v3321
      %v3323 = vlaneseq
      %v3324 = vshrl.u32 %v3323, 7
      %v3325 = vsub.s32 %v3322, %v3324
      %v3326 = vrot.slane %v3304, %v3325
      %v3328 = vunpack.c.l.s4 1966171168
      %v3329 = vunpack.c.0.s8 %v3328
      %v3330 = vlaneseq
      %v3331 = vshrl.u32 %v3330, 7
      %v3332 = vsub.s32 %v3329, %v3331
      %v3333 = vrot.slane %v3305, %v3332
      %v3334 = vcombine.low %v3312, %v3319
      %v3335 = vcombine.low %v3326, %v3333
      %v3337 = vunpack.c.l.s4 1966171168
      %v3338 = vunpack.c.0.s8 %v3337
      %v3339 = vlaneseq
      %v3340 = vshrl.u32 %v3339, 7
      %v3341 = vsub.s32 %v3338, %v3340
      %v3342 = vrot.slane %v3334, %v3341
      %v3344 = vunpack.c.l.s4 1966171168
      %v3345 = vunpack.c.0.s8 %v3344
      %v3346 = vlaneseq
      %v3347 = vshrl.u32 %v3346, 7
      %v3348 = vsub.s32 %v3345, %v3347
      %v3349 = vrot.slane %v3335, %v3348
      %v3350 = vcombine.low %v3342, %v3349
      %v3351 = vcombine.low %v1180, %v1188
      %v3352 = vcombine.low %v1196, %v1204
      %v3353 = vcombine.low %v1213, %v1221
      %v3354 = vcombine.low %v1229, %v1237
      %v3356 = vunpack.c.l.s4 1966171168
      %v3357 = vunpack.c.0.s8 %v3356
      %v3358 = vlaneseq
      %v3359 = vshrl.u32 %v3358, 7
      %v3360 = vsub.s32 %v3357, %v3359
      %v3361 = vrot.slane %v3351, %v3360
      %v3363 = vunpack.c.l.s4 1966171168
      %v3364 = vunpack.c.0.s8 %v3363
      %v3365 = vlaneseq
      %v3366 = vshrl.u32 %v3365, 7
      %v3367 = vsub.s32 %v3364, %v3366
      %v3368 = vrot.slane %v3352, %v3367
      %v3370 = vunpack.c.l.s4 1966171168
      %v3371 = vunpack.c.0.s8 %v3370
      %v3372 = vlaneseq
      %v3373 = vshrl.u32 %v3372, 7
      %v3374 = vsub.s32 %v3371, %v3373
      %v3375 = vrot.slane %v3353, %v3374
      %v3377 = vunpack.c.l.s4 1966171168
      %v3378 = vunpack.c.0.s8 %v3377
      %v3379 = vlaneseq
      %v3380 = vshrl.u32 %v3379, 7
      %v3381 = vsub.s32 %v3378, %v3380
      %v3382 = vrot.slane %v3354, %v3381
      %v3383 = vcombine.low %v3361, %v3368
      %v3384 = vcombine.low %v3375, %v3382
      %v3386 = vunpack.c.l.s4 1966171168
      %v3387 = vunpack.c.0.s8 %v3386
      %v3388 = vlaneseq
      %v3389 = vshrl.u32 %v3388, 7
      %v3390 = vsub.s32 %v3387, %v3389
      %v3391 = vrot.slane %v3383, %v3390
      %v3393 = vunpack.c.l.s4 1966171168
      %v3394 = vunpack.c.0.s8 %v3393
      %v3395 = vlaneseq
      %v3396 = vshrl.u32 %v3395, 7
      %v3397 = vsub.s32 %v3394, %v3396
      %v3398 = vrot.slane %v3384, %v3397
      %v3399 = vcombine.low %v3391, %v3398
      %v3400 = vcombine.low %v1245, %v1253
      %v3401 = vcombine.low %v1261, %v1270
      %v3402 = vcombine.low %v1278, %v1286
      %v3403 = vcombine.low %v1294, %v1302
      %v3405 = vunpack.c.l.s4 1966171168
      %v3406 = vunpack.c.0.s8 %v3405
      %v3407 = vlaneseq
      %v3408 = vshrl.u32 %v3407, 7
      %v3409 = vsub.s32 %v3406, %v3408
      %v3410 = vrot.slane %v3400, %v3409
      %v3412 = vunpack.c.l.s4 1966171168
      %v3413 = vunpack.c.0.s8 %v3412
      %v3414 = vlaneseq
      %v3415 = vshrl.u32 %v3414, 7
      %v3416 = vsub.s32 %v3413, %v3415
      %v3417 = vrot.slane %v3401, %v3416
      %v3419 = vunpack.c.l.s4 1966171168
      %v3420 = vunpack.c.0.s8 %v3419
      %v3421 = vlaneseq
      %v3422 = vshrl.u32 %v3421, 7
      %v3423 = vsub.s32 %v3420, %v3422
      %v3424 = vrot.slane %v3402, %v3423
      %v3426 = vunpack.c.l.s4 1966171168
      %v3427 = vunpack.c.0.s8 %v3426
      %v3428 = vlaneseq
      %v3429 = vshrl.u32 %v3428, 7
      %v3430 = vsub.s32 %v3427, %v3429
      %v3431 = vrot.slane %v3403, %v3430
      %v3432 = vcombine.low %v3410, %v3417
      %v3433 = vcombine.low %v3424, %v3431
      %v3435 = vunpack.c.l.s4 1966171168
      %v3436 = vunpack.c.0.s8 %v3435
      %v3437 = vlaneseq
      %v3438 = vshrl.u32 %v3437, 7
      %v3439 = vsub.s32 %v3436, %v3438
      %v3440 = vrot.slane %v3432, %v3439
      %v3442 = vunpack.c.l.s4 1966171168
      %v3443 = vunpack.c.0.s8 %v3442
      %v3444 = vlaneseq
      %v3445 = vshrl.u32 %v3444, 7
      %v3446 = vsub.s32 %v3443, %v3445
      %v3447 = vrot.slane %v3433, %v3446
      %v3448 = vcombine.low %v3440, %v3447
      %v3449 = vcombine.low %v1310, %v1318
      %v3450 = vcombine.low %v3138, %v3146
      %v3451 = vcombine.low %v3154, %v3162
      %v3452 = vcombine.low %v3170, %v3178
      %v3454 = vunpack.c.l.s4 1966171168
      %v3455 = vunpack.c.0.s8 %v3454
      %v3456 = vlaneseq
      %v3457 = vshrl.u32 %v3456, 7
      %v3458 = vsub.s32 %v3455, %v3457
      %v3459 = vrot.slane %v3449, %v3458
      %v3461 = vunpack.c.l.s4 1966171168
      %v3462 = vunpack.c.0.s8 %v3461
      %v3463 = vlaneseq
      %v3464 = vshrl.u32 %v3463, 7
      %v3465 = vsub.s32 %v3462, %v3464
      %v3466 = vrot.slane %v3450, %v3465
      %v3468 = vunpack.c.l.s4 1966171168
      %v3469 = vunpack.c.0.s8 %v3468
      %v3470 = vlaneseq
      %v3471 = vshrl.u32 %v3470, 7
      %v3472 = vsub.s32 %v3469, %v3471
      %v3473 = vrot.slane %v3451, %v3472
      %v3475 = vunpack.c.l.s4 1966171168
      %v3476 = vunpack.c.0.s8 %v3475
      %v3477 = vlaneseq
      %v3478 = vshrl.u32 %v3477, 7
      %v3479 = vsub.s32 %v3476, %v3478
      %v3480 = vrot.slane %v3452, %v3479
      %v3481 = vcombine.low %v3459, %v3466
      %v3482 = vcombine.low %v3473, %v3480
      %v3484 = vunpack.c.l.s4 1966171168
      %v3485 = vunpack.c.0.s8 %v3484
      %v3486 = vlaneseq
      %v3487 = vshrl.u32 %v3486, 7
      %v3488 = vsub.s32 %v3485, %v3487
      %v3489 = vrot.slane %v3481, %v3488
      %v3491 = vunpack.c.l.s4 1966171168
      %v3492 = vunpack.c.0.s8 %v3491
      %v3493 = vlaneseq
      %v3494 = vshrl.u32 %v3493, 7
      %v3495 = vsub.s32 %v3492, %v3494
      %v3496 = vrot.slane %v3482, %v3495
      %v3497 = vcombine.low %v3489, %v3496
      %v3499 = vunpack.c.l.s4 1966171168
      %v3500 = vunpack.c.0.s8 %v3499
      %v3501 = vlaneseq
      %v3502 = vshrl.u32 %v3501, 7
      %v3503 = vsub.s32 %v3500, %v3502
      %v3504 = vrot.slane %v3186, %v3503
      %v3506 = vunpack.c.l.s4 1966171168
      %v3507 = vunpack.c.0.s8 %v3506
      %v3508 = vlaneseq
      %v3509 = vshrl.u32 %v3508, 7
      %v3510 = vsub.s32 %v3507, %v3509
      %v3511 = vrot.slane %v3504, %v3510
      %v3535 = vunpack.c.l.b16 %v3188
      %v3536 = vunpack.c.l.b16 %v3189
      %v3537 = vunpack.c.l.b16 %v3190
      %v3538 = vunpack.c.l.b16 %v3191
      %v3539 = vunpack.c.l.b16 %v3192
      %v3540 = vunpack.c.l.b16 %v3193
      %v3541 = vunpack.c.l.b16 %v3194
      %v3542 = vunpack.c.l.b16 %v3195
      %v3543 = vunpack.c.l.b16 %v3196
      %v3544 = vunpack.c.l.b16 %v3197
      %v3545 = vunpack.c.l.b16 %v3198
      %v3546 = vunpack.c.l.b16 %v3199
      %v3547 = vunpack.c.l.b16 %v3200
      %v3548 = vunpack.c.l.b16 %v3201
      %v3549 = vunpack.c.l.b16 %v3202
      %v3550 = vunpack.c.l.b16 %v3203
      %v3551 = vpack.c.b16 %v3536, %v3535
      %v3552 = vpack.c.b16 %v3538, %v3537
      %v3553 = vpack.c.b16 %v3540, %v3539
      %v3554 = vpack.c.b16 %v3542, %v3541
      %v3555 = vpack.c.b16 %v3544, %v3543
      %v3556 = vpack.c.b16 %v3546, %v3545
      %v3557 = vpack.c.b16 %v3548, %v3547
      %v3558 = vpack.c.b16 %v3550, %v3549
      %3567 = vmatprep.subr.bf16.mxu0 0
      %3568 = vmatpush1.bf16.msra.mxu0 %v3551
      %3569 = vmatprep.subr.bf16.mxu0 0
      %3570 = vmatpush1.bf16.msra.mxu0 %v3552
      %3571 = vmatprep.subr.bf16.mxu0 0
      %3572 = vmatpush1.bf16.msra.mxu0 %v3553
      %3573 = vmatprep.subr.bf16.mxu0 0
      %3574 = vmatpush1.bf16.msra.mxu0 %v3554
      %3575 = vmatprep.subr.bf16.mxu0 0
      %3576 = vmatpush1.bf16.msra.mxu0 %v3555
      %3577 = vmatprep.subr.bf16.mxu0 0
      %3578 = vmatpush1.bf16.msra.mxu0 %v3556
      %3579 = vmatprep.subr.bf16.mxu0 0
      %3580 = vmatpush1.bf16.msra.mxu0 %v3557
      %3581 = vmatprep.subr.bf16.mxu0 0
      %3582 = vmatpush1.bf16.msra.mxu0 %v3558
      %3583 = vmatprep.subr.bf16.mxu0 0
      %3584 = vmatpush1.bf16.msra.mxu0 0
      %3585 = vmatprep.subr.bf16.mxu0 0
      %3586 = vmatpush1.bf16.msra.mxu0 0
      %3587 = vmatprep.subr.bf16.mxu0 0
      %3588 = vmatpush1.bf16.msra.mxu0 0
      %3589 = vmatprep.subr.bf16.mxu0 0
      %3590 = vmatpush1.bf16.msra.mxu0 0
      %3591 = vmatprep.subr.bf16.mxu0 0
      %3592 = vmatpush1.bf16.msra.mxu0 0
      %3593 = vmatprep.subr.bf16.mxu0 0
      %3594 = vmatpush1.bf16.msra.mxu0 0
      %3595 = vmatprep.subr.bf16.mxu0 0
      %3596 = vmatpush1.bf16.msra.mxu0 0
      %3597 = vmatprep.subr.bf16.mxu0 0
      %3598 = vmatpush1.bf16.msra.mxu0 0
      %3599 = vmatprep.mubr.bf16.mxu0 0
      %3600 = vmatmul.mubr.bf16.gmra.mrb[0].mxu0 %v3252
      %v3601 = vpop.f32.mrb[0].mxu0
      %v3602 = vadd.f32 0.0, %v3601
      %v3603 = vpop.f32.mrb[0].mxu0
      %v3604 = vpop.f32.mrb[0].mxu0
      %v3605 = vadd.f32 0.0, %v3604
      %v3606 = vpop.f32.mrb[0].mxu0
      %3607 = vmatprep.mubr.bf16.mxu0 0
      %3608 = vmatmul.mubr.bf16.gmra.mrb[0].mxu0 %v3301
      %v3609 = vpop.f32.mrb[0].mxu0
      %v3610 = vadd.f32 0.0, %v3609
      %v3611 = vpop.f32.mrb[0].mxu0
      %v3612 = vpop.f32.mrb[0].mxu0
      %v3613 = vadd.f32 0.0, %v3612
      %v3614 = vpop.f32.mrb[0].mxu0
      %3615 = vmatprep.mubr.bf16.mxu0 0
      %3616 = vmatmul.mubr.bf16.gmra.mrb[0].mxu0 %v3350
      %v3617 = vpop.f32.mrb[0].mxu0
      %v3618 = vadd.f32 0.0, %v3617
      %v3619 = vpop.f32.mrb[0].mxu0
      %v3620 = vpop.f32.mrb[0].mxu0
      %v3621 = vadd.f32 0.0, %v3620
      %v3622 = vpop.f32.mrb[0].mxu0
      %3623 = vmatprep.mubr.bf16.mxu0 0
      %3624 = vmatmul.mubr.bf16.gmra.mrb[0].mxu0 %v3399
      %v3625 = vpop.f32.mrb[0].mxu0
      %v3626 = vadd.f32 0.0, %v3625
      %v3627 = vpop.f32.mrb[0].mxu0
      %v3628 = vpop.f32.mrb[0].mxu0
      %v3629 = vadd.f32 0.0, %v3628
      %v3630 = vpop.f32.mrb[0].mxu0
      %3631 = vmatprep.mubr.bf16.mxu0 0
      %3632 = vmatmul.mubr.bf16.gmra.mrb[0].mxu0 %v3448
      %v3633 = vpop.f32.mrb[0].mxu0
      %v3634 = vadd.f32 0.0, %v3633
      %v3635 = vpop.f32.mrb[0].mxu0
      %v3636 = vpop.f32.mrb[0].mxu0
      %v3637 = vadd.f32 0.0, %v3636
      %v3638 = vpop.f32.mrb[0].mxu0
      %3639 = vmatprep.mubr.bf16.mxu0 0
      %3640 = vmatmul.mubr.bf16.gmra.mrb[0].mxu0 %v3497
      %v3641 = vpop.f32.mrb[0].mxu0
      %v3642 = vadd.f32 0.0, %v3641
      %v3643 = vpop.f32.mrb[0].mxu0
      %v3644 = vpop.f32.mrb[0].mxu0
      %v3645 = vadd.f32 0.0, %v3644
      %v3646 = vpop.f32.mrb[0].mxu0
      %3647 = vmatprep.mubr.bf16.mxu0 0
      %3648 = vmatmul.mubr.bf16.gmra.mrb[0].mxu0 %v3511
      %v3649 = vpop.f32.mrb[0].mxu0
      %v3650 = vadd.f32 0.0, %v3649
      %v3651 = vpop.f32.mrb[0].mxu0
      %v3652 = vpop.f32.mrb[0].mxu0
      %v3653 = vpop.f32.mrb[0].mxu0
      %3654 = vdwg.mxu0
      %v3655 = vadd.f32 %v3116, %v3602
      %v3656 = vadd.f32 %v3117, %v3605
      %v3657 = vadd.f32 %v3118, %v3610
      %v3658 = vadd.f32 %v3119, %v3613
      %v3659 = vadd.f32 %v3120, %v3618
      %v3660 = vadd.f32 %v3121, %v3621
      %v3661 = vadd.f32 %v3122, %v3626
      %v3662 = vadd.f32 %v3123, %v3629
      %v3663 = vadd.f32 %v3124, %v3634
      %v3664 = vadd.f32 %v3125, %v3637
      %v3665 = vadd.f32 %v3126, %v3642
      %v3666 = vadd.f32 %v3127, %v3645
      %v3667 = vadd.f32 %v3128, %v3650
      %s3668 = scalar_lea.vmem %s3, 320
      %v3669 = vld [vmem:[%s3668] sm:$0xf]
      %v3670 = vld [vmem:[%s3668 + $0x4] sm:$0xf]
      %v3671 = vld [vmem:[%s3668 + $0x8] sm:$0xf]
      %v3672 = vld [vmem:[%s3668 + $0xc] sm:$0xf]
      %v3673 = vld [vmem:[%s3668 + $0x10] sm:$0xf]
      %v3674 = vld [vmem:[%s3668 + $0x14] sm:$0xf]
      %v3675 = vld [vmem:[%s3668 + $0x18] sm:$0xf]
      %v3676 = vld [vmem:[%s3668 + $0x1c] sm:$0xf]
      %v3677 = vld [vmem:[%s3668 + $0x20] sm:$0xf]
      %v3678 = vld [vmem:[%s3668 + $0x24] sm:$0xf]
      %v3679 = vld [vmem:[%s3668 + $0x28] sm:$0xf]
      %v3680 = vld [vmem:[%s3668 + $0x2c] sm:$0xf]
      %v3681 = vld [vmem:[%s3668 + $0x30] sm:$0xf]
      %v3682 = vld [vmem:[%s3668 + $0x34] sm:$0xf]
      %v3683 = vld [vmem:[%s3668 + $0x38] sm:$0xf]
      %v3684 = vld [vmem:[%s3668 + $0x3c] sm:$0xf]
      %v3685 = vcombine.low %v899, %v679
      %v3687 = vunpack.c.l.s4 1966171168
      %v3688 = vunpack.c.0.s8 %v3687
      %v3689 = vlaneseq
      %v3690 = vshrl.u32 %v3689, 7
      %v3691 = vsub.s32 %v3688, %v3690
      %v3692 = vrot.slane %v3685, %v3691
      %v3693 = vcombine.low %v1860, %v3692
      %v3695 = vunpack.c.l.s4 1966171168
      %v3696 = vunpack.c.0.s8 %v3695
      %v3697 = vlaneseq
      %v3698 = vshrl.u32 %v3697, 7
      %v3699 = vsub.s32 %v3696, %v3698
      %v3700 = vrot.slane %v3693, %v3699
      %v3701 = vcombine.low %v1876, %v3700
      %v3702 = vcombine.low %v688, %v900
      %v3704 = vunpack.c.l.s4 1966171168
      %v3705 = vunpack.c.0.s8 %v3704
      %v3706 = vlaneseq
      %v3707 = vshrl.u32 %v3706, 7
      %v3708 = vsub.s32 %v3705, %v3707
      %v3709 = vrot.slane %v3702, %v3708
      %v3710 = vcombine.low %v3709, %v1916
      %v3712 = vunpack.c.l.s4 1966171168
      %v3713 = vunpack.c.0.s8 %v3712
      %v3714 = vlaneseq
      %v3715 = vshrl.u32 %v3714, 7
      %v3716 = vsub.s32 %v3713, %v3715
      %v3717 = vrot.slane %v3710, %v3716
      %v3718 = vcombine.low %v1925, %v3717
      %v3719 = vcombine.low %v901, %v775
      %v3721 = vunpack.c.l.s4 1966171168
      %v3722 = vunpack.c.0.s8 %v3721
      %v3723 = vlaneseq
      %v3724 = vshrl.u32 %v3723, 7
      %v3725 = vsub.s32 %v3722, %v3724
      %v3726 = vrot.slane %v3719, %v3725
      %v3727 = vcombine.low %v3726, %v1965
      %v3729 = vunpack.c.l.s4 1966171168
      %v3730 = vunpack.c.0.s8 %v3729
      %v3731 = vlaneseq
      %v3732 = vshrl.u32 %v3731, 7
      %v3733 = vsub.s32 %v3730, %v3732
      %v3734 = vrot.slane %v3727, %v3733
      %v3735 = vcombine.low %v1974, %v3734
      %v3736 = vcombine.low %v784, %v902
      %v3738 = vunpack.c.l.s4 1966171168
      %v3739 = vunpack.c.0.s8 %v3738
      %v3740 = vlaneseq
      %v3741 = vshrl.u32 %v3740, 7
      %v3742 = vsub.s32 %v3739, %v3741
      %v3743 = vrot.slane %v3736, %v3742
      %v3744 = vcombine.low %v1993, %v3743
      %v3746 = vunpack.c.l.s4 1966171168
      %v3747 = vunpack.c.0.s8 %v3746
      %v3748 = vlaneseq
      %v3749 = vshrl.u32 %v3748, 7
      %v3750 = vsub.s32 %v3747, %v3749
      %v3751 = vrot.slane %v3744, %v3750
      %v3752 = vcombine.low %v3751, %v2030
      %v3753 = vcombine.low %v903, %v871
      %v3755 = vunpack.c.l.s4 1966171168
      %v3756 = vunpack.c.0.s8 %v3755
      %v3757 = vlaneseq
      %v3758 = vshrl.u32 %v3757, 7
      %v3759 = vsub.s32 %v3756, %v3758
      %v3760 = vrot.slane %v3753, %v3759
      %v3761 = vcombine.low %v2042, %v3760
      %v3763 = vunpack.c.l.s4 1966171168
      %v3764 = vunpack.c.0.s8 %v3763
      %v3765 = vlaneseq
      %v3766 = vshrl.u32 %v3765, 7
      %v3767 = vsub.s32 %v3764, %v3766
      %v3768 = vrot.slane %v3761, %v3767
      %v3769 = vcombine.low %v3768, %v2079
      %v3770 = vcombine.low %v880, %v904
      %v3771 = vcombine.low %v2757, %v2765
      %v3772 = vcombine.low %v2767, %v2750
      %v3773 = vcombine.low %v2764, %v2766
      %v3775 = vunpack.c.l.s4 1966171168
      %v3776 = vunpack.c.0.s8 %v3775
      %v3777 = vlaneseq
      %v3778 = vshrl.u32 %v3777, 7
      %v3779 = vsub.s32 %v3776, %v3778
      %v3780 = vrot.slane %v3770, %v3779
      %v3782 = vunpack.c.l.s4 1966171168
      %v3783 = vunpack.c.0.s8 %v3782
      %v3784 = vlaneseq
      %v3785 = vshrl.u32 %v3784, 7
      %v3786 = vsub.s32 %v3783, %v3785
      %v3787 = vrot.slane %v3771, %v3786
      %v3789 = vunpack.c.l.s4 1966171168
      %v3790 = vunpack.c.0.s8 %v3789
      %v3791 = vlaneseq
      %v3792 = vshrl.u32 %v3791, 7
      %v3793 = vsub.s32 %v3790, %v3792
      %v3794 = vrot.slane %v3772, %v3793
      %v3796 = vunpack.c.l.s4 1966171168
      %v3797 = vunpack.c.0.s8 %v3796
      %v3798 = vlaneseq
      %v3799 = vshrl.u32 %v3798, 7
      %v3800 = vsub.s32 %v3797, %v3799
      %v3801 = vrot.slane %v3773, %v3800
      %v3802 = vcombine.low %v3780, %v3787
      %v3803 = vcombine.low %v3794, %v3801
      %v3805 = vunpack.c.l.s4 1966171168
      %v3806 = vunpack.c.0.s8 %v3805
      %v3807 = vlaneseq
      %v3808 = vshrl.u32 %v3807, 7
      %v3809 = vsub.s32 %v3806, %v3808
      %v3810 = vrot.slane %v3802, %v3809
      %v3812 = vunpack.c.l.s4 1966171168
      %v3813 = vunpack.c.0.s8 %v3812
      %v3814 = vlaneseq
      %v3815 = vshrl.u32 %v3814, 7
      %v3816 = vsub.s32 %v3813, %v3815
      %v3817 = vrot.slane %v3803, %v3816
      %v3818 = vcombine.low %v3810, %v3817
      %v3820 = vunpack.c.l.s4 1966171168
      %v3821 = vunpack.c.0.s8 %v3820
      %v3822 = vlaneseq
      %v3823 = vshrl.u32 %v3822, 7
      %v3824 = vsub.s32 %v3821, %v3823
      %v3825 = vrot.slane %v3129, %v3824
      %v3827 = vunpack.c.l.s4 1966171168
      %v3828 = vunpack.c.0.s8 %v3827
      %v3829 = vlaneseq
      %v3830 = vshrl.u32 %v3829, 7
      %v3831 = vsub.s32 %v3828, %v3830
      %v3832 = vrot.slane %v3825, %v3831
      %v3856 = vunpack.c.l.b16 %v3669
      %v3857 = vunpack.c.l.b16 %v3670
      %v3858 = vunpack.c.l.b16 %v3671
      %v3859 = vunpack.c.l.b16 %v3672
      %v3860 = vunpack.c.l.b16 %v3673
      %v3861 = vunpack.c.l.b16 %v3674
      %v3862 = vunpack.c.l.b16 %v3675
      %v3863 = vunpack.c.l.b16 %v3676
      %v3864 = vunpack.c.l.b16 %v3677
      %v3865 = vunpack.c.l.b16 %v3678
      %v3866 = vunpack.c.l.b16 %v3679
      %v3867 = vunpack.c.l.b16 %v3680
      %v3868 = vunpack.c.l.b16 %v3681
      %v3869 = vunpack.c.l.b16 %v3682
      %v3870 = vunpack.c.l.b16 %v3683
      %v3871 = vunpack.c.l.b16 %v3684
      %v3872 = vpack.c.b16 %v3857, %v3856
      %v3873 = vpack.c.b16 %v3859, %v3858
      %v3874 = vpack.c.b16 %v3861, %v3860
      %v3875 = vpack.c.b16 %v3863, %v3862
      %v3876 = vpack.c.b16 %v3865, %v3864
      %v3877 = vpack.c.b16 %v3867, %v3866
      %v3878 = vpack.c.b16 %v3869, %v3868
      %v3879 = vpack.c.b16 %v3871, %v3870
      %3888 = vmatprep.subr.bf16.mxu0 0
      %3889 = vmatpush1.bf16.msra.mxu0 %v3872
      %3890 = vmatprep.subr.bf16.mxu0 0
      %3891 = vmatpush1.bf16.msra.mxu0 %v3873
      %3892 = vmatprep.subr.bf16.mxu0 0
      %3893 = vmatpush1.bf16.msra.mxu0 %v3874
      %3894 = vmatprep.subr.bf16.mxu0 0
      %3895 = vmatpush1.bf16.msra.mxu0 %v3875
      %3896 = vmatprep.subr.bf16.mxu0 0
      %3897 = vmatpush1.bf16.msra.mxu0 %v3876
      %3898 = vmatprep.subr.bf16.mxu0 0
      %3899 = vmatpush1.bf16.msra.mxu0 %v3877
      %3900 = vmatprep.subr.bf16.mxu0 0
      %3901 = vmatpush1.bf16.msra.mxu0 %v3878
      %3902 = vmatprep.subr.bf16.mxu0 0
      %3903 = vmatpush1.bf16.msra.mxu0 %v3879
      %3904 = vmatprep.subr.bf16.mxu0 0
      %3905 = vmatpush1.bf16.msra.mxu0 0
      %3906 = vmatprep.subr.bf16.mxu0 0
      %3907 = vmatpush1.bf16.msra.mxu0 0
      %3908 = vmatprep.subr.bf16.mxu0 0
      %3909 = vmatpush1.bf16.msra.mxu0 0
      %3910 = vmatprep.subr.bf16.mxu0 0
      %3911 = vmatpush1.bf16.msra.mxu0 0
      %3912 = vmatprep.subr.bf16.mxu0 0
      %3913 = vmatpush1.bf16.msra.mxu0 0
      %3914 = vmatprep.subr.bf16.mxu0 0
      %3915 = vmatpush1.bf16.msra.mxu0 0
      %3916 = vmatprep.subr.bf16.mxu0 0
      %3917 = vmatpush1.bf16.msra.mxu0 0
      %3918 = vmatprep.subr.bf16.mxu0 0
      %3919 = vmatpush1.bf16.msra.mxu0 0
      %3920 = vmatprep.mubr.bf16.mxu0 0
      %3921 = vmatmul.mubr.bf16.gmra.mrb[0].mxu0 %v3701
      %v3922 = vpop.f32.mrb[0].mxu0
      %v3923 = vadd.f32 0.0, %v3922
      %v3924 = vpop.f32.mrb[0].mxu0
      %v3925 = vpop.f32.mrb[0].mxu0
      %v3926 = vadd.f32 0.0, %v3925
      %v3927 = vpop.f32.mrb[0].mxu0
      %3928 = vmatprep.mubr.bf16.mxu0 0
      %3929 = vmatmul.mubr.bf16.gmra.mrb[0].mxu0 %v3718
      %v3930 = vpop.f32.mrb[0].mxu0
      %v3931 = vadd.f32 0.0, %v3930
      %v3932 = vpop.f32.mrb[0].mxu0
      %v3933 = vpop.f32.mrb[0].mxu0
      %v3934 = vadd.f32 0.0, %v3933
      %v3935 = vpop.f32.mrb[0].mxu0
      %3936 = vmatprep.mubr.bf16.mxu0 0
      %3937 = vmatmul.mubr.bf16.gmra.mrb[0].mxu0 %v3735
      %v3938 = vpop.f32.mrb[0].mxu0
      %v3939 = vadd.f32 0.0, %v3938
      %v3940 = vpop.f32.mrb[0].mxu0
      %v3941 = vpop.f32.mrb[0].mxu0
      %v3942 = vadd.f32 0.0, %v3941
      %v3943 = vpop.f32.mrb[0].mxu0
      %3944 = vmatprep.mubr.bf16.mxu0 0
      %3945 = vmatmul.mubr.bf16.gmra.mrb[0].mxu0 %v3752
      %v3946 = vpop.f32.mrb[0].mxu0
      %v3947 = vadd.f32 0.0, %v3946
      %v3948 = vpop.f32.mrb[0].mxu0
      %v3949 = vpop.f32.mrb[0].mxu0
      %v3950 = vadd.f32 0.0, %v3949
      %v3951 = vpop.f32.mrb[0].mxu0
      %3952 = vmatprep.mubr.bf16.mxu0 0
      %3953 = vmatmul.mubr.bf16.gmra.mrb[0].mxu0 %v3769
      %v3954 = vpop.f32.mrb[0].mxu0
      %v3955 = vadd.f32 0.0, %v3954
      %v3956 = vpop.f32.mrb[0].mxu0
      %v3957 = vpop.f32.mrb[0].mxu0
      %v3958 = vadd.f32 0.0, %v3957
      %v3959 = vpop.f32.mrb[0].mxu0
      %3960 = vmatprep.mubr.bf16.mxu0 0
      %3961 = vmatmul.mubr.bf16.gmra.mrb[0].mxu0 %v3818
      %v3962 = vpop.f32.mrb[0].mxu0
      %v3963 = vadd.f32 0.0, %v3962
      %v3964 = vpop.f32.mrb[0].mxu0
      %v3965 = vpop.f32.mrb[0].mxu0
      %v3966 = vadd.f32 0.0, %v3965
      %v3967 = vpop.f32.mrb[0].mxu0
      %3968 = vmatprep.mubr.bf16.mxu0 0
      %3969 = vmatmul.mubr.bf16.gmra.mrb[0].mxu0 %v3832
      %v3970 = vpop.f32.mrb[0].mxu0
      %v3971 = vadd.f32 0.0, %v3970
      %v3972 = vpop.f32.mrb[0].mxu0
      %v3973 = vpop.f32.mrb[0].mxu0
      %v3974 = vpop.f32.mrb[0].mxu0
      %3975 = vdwg.mxu0
      %v3976 = vadd.f32 %v3655, %v3923
      %v3977 = vadd.f32 %v3656, %v3926
      %v3978 = vadd.f32 %v3657, %v3931
      %v3979 = vadd.f32 %v3658, %v3934
      %v3980 = vadd.f32 %v3659, %v3939
      %v3981 = vadd.f32 %v3660, %v3942
      %v3982 = vadd.f32 %v3661, %v3947
      %v3983 = vadd.f32 %v3662, %v3950
      %v3984 = vadd.f32 %v3663, %v3955
      %v3985 = vadd.f32 %v3664, %v3958
      %v3986 = vadd.f32 %v3665, %v3963
      %v3987 = vadd.f32 %v3666, %v3966
      %v3988 = vadd.f32 %v3667, %v3971
      %v3990 = vcombine.high %v538, %v538
      %v3992 = vunpack.c.l.s4 1966171168
      %v3993 = vunpack.c.0.s8 %v3992
      %v3994 = vlaneseq
      %v3995 = vshrl.u32 %v3994, 7
      %v3996 = vsub.s32 %v3993, %v3995
      %v3997 = vrot.slane %v538, %v3996
      %v3999 = vunpack.c.l.s4 1966171168
      %v4000 = vunpack.c.0.s8 %v3999
      %v4001 = vlaneseq
      %v4002 = vshrl.u32 %v4001, 7
      %v4003 = vsub.s32 %v4000, %v4002
      %v4004 = vrot.slane %v3990, %v4003
      %v4005 = vcombine.high %v3997, %v3997
      %v4006 = vcombine.high %v4004, %v4004
      %v4008 = vunpack.c.l.s4 1966171168
      %v4009 = vunpack.c.0.s8 %v4008
      %v4010 = vlaneseq
      %v4011 = vshrl.u32 %v4010, 7
      %v4012 = vsub.s32 %v4009, %v4011
      %v4013 = vrot.slane %v3997, %v4012
      %v4015 = vunpack.c.l.s4 1966171168
      %v4016 = vunpack.c.0.s8 %v4015
      %v4017 = vlaneseq
      %v4018 = vshrl.u32 %v4017, 7
      %v4019 = vsub.s32 %v4016, %v4018
      %v4020 = vrot.slane %v4004, %v4019
      %v4022 = vunpack.c.l.s4 1966171168
      %v4023 = vunpack.c.0.s8 %v4022
      %v4024 = vlaneseq
      %v4025 = vshrl.u32 %v4024, 7
      %v4026 = vsub.s32 %v4023, %v4025
      %v4027 = vrot.slane %v4005, %v4026
      %v4029 = vunpack.c.l.s4 1966171168
      %v4030 = vunpack.c.0.s8 %v4029
      %v4031 = vlaneseq
      %v4032 = vshrl.u32 %v4031, 7
      %v4033 = vsub.s32 %v4030, %v4032
      %v4034 = vrot.slane %v4006, %v4033
      %v4035 = vcombine.high %v4013, %v4013
      %v4036 = vcombine.high %v4020, %v4020
      %v4037 = vcombine.high %v4027, %v4027
      %s4038 = scalar_lea.vmem %s3, 384
      %v4039 = vld [vmem:[%s4038] sm:$0xf]
      %v4040 = vld [vmem:[%s4038 + $0x4] sm:$0xf]
      %v4041 = vld [vmem:[%s4038 + $0x8] sm:$0xf]
      %v4042 = vld [vmem:[%s4038 + $0xc] sm:$0xf]
      %v4043 = vld [vmem:[%s4038 + $0x10] sm:$0xf]
      %v4044 = vld [vmem:[%s4038 + $0x14] sm:$0xf]
      %v4045 = vld [vmem:[%s4038 + $0x18] sm:$0xf]
      %v4046 = vld [vmem:[%s4038 + $0x1c] sm:$0xf]
      %v4047 = vld [vmem:[%s4038 + $0x20] sm:$0xf]
      %v4048 = vld [vmem:[%s4038 + $0x24] sm:$0xf]
      %v4049 = vld [vmem:[%s4038 + $0x28] sm:$0xf]
      %v4050 = vld [vmem:[%s4038 + $0x2c] sm:$0xf]
      %v4051 = vld [vmem:[%s4038 + $0x30] sm:$0xf]
      %v4052 = vld [vmem:[%s4038 + $0x34] sm:$0xf]
      %v4053 = vld [vmem:[%s4038 + $0x38] sm:$0xf]
      %v4054 = vld [vmem:[%s4038 + $0x3c] sm:$0xf]
      %v4055 = vcombine.low %v1867, %v1895
      %v4056 = vcombine.low %v1902, %v1909
      %v4058 = vunpack.c.l.s4 1966171168
      %v4059 = vunpack.c.0.s8 %v4058
      %v4060 = vlaneseq
      %v4061 = vshrl.u32 %v4060, 7
      %v4062 = vsub.s32 %v4059, %v4061
      %v4063 = vrot.slane %v4055, %v4062
      %v4065 = vunpack.c.l.s4 1966171168
      %v4066 = vunpack.c.0.s8 %v4065
      %v4067 = vlaneseq
      %v4068 = vshrl.u32 %v4067, 7
      %v4069 = vsub.s32 %v4066, %v4068
      %v4070 = vrot.slane %v4056, %v4069
      %v4071 = vcombine.low %v4063, %v4070
      %v4072 = vcombine.low %v1916, %v1944
      %v4073 = vcombine.low %v1951, %v1958
      %v4075 = vunpack.c.l.s4 1966171168
      %v4076 = vunpack.c.0.s8 %v4075
      %v4077 = vlaneseq
      %v4078 = vshrl.u32 %v4077, 7
      %v4079 = vsub.s32 %v4076, %v4078
      %v4080 = vrot.slane %v4072, %v4079
      %v4082 = vunpack.c.l.s4 1966171168
      %v4083 = vunpack.c.0.s8 %v4082
      %v4084 = vlaneseq
      %v4085 = vshrl.u32 %v4084, 7
      %v4086 = vsub.s32 %v4083, %v4085
      %v4087 = vrot.slane %v4073, %v4086
      %v4088 = vcombine.low %v4080, %v4087
      %v4089 = vcombine.low %v1965, %v1993
      %v4090 = vcombine.low %v2000, %v2007
      %v4092 = vunpack.c.l.s4 1966171168
      %v4093 = vunpack.c.0.s8 %v4092
      %v4094 = vlaneseq
      %v4095 = vshrl.u32 %v4094, 7
      %v4096 = vsub.s32 %v4093, %v4095
      %v4097 = vrot.slane %v4089, %v4096
      %v4099 = vunpack.c.l.s4 1966171168
      %v4100 = vunpack.c.0.s8 %v4099
      %v4101 = vlaneseq
      %v4102 = vshrl.u32 %v4101, 7
      %v4103 = vsub.s32 %v4100, %v4102
      %v4104 = vrot.slane %v4090, %v4103
      %v4105 = vcombine.low %v4097, %v4104
      %v4106 = vcombine.low %v2014, %v2042
      %v4107 = vcombine.low %v2049, %v2056
      %v4109 = vunpack.c.l.s4 1966171168
      %v4110 = vunpack.c.0.s8 %v4109
      %v4111 = vlaneseq
      %v4112 = vshrl.u32 %v4111, 7
      %v4113 = vsub.s32 %v4110, %v4112
      %v4114 = vrot.slane %v4106, %v4113
      %v4116 = vunpack.c.l.s4 1966171168
      %v4117 = vunpack.c.0.s8 %v4116
      %v4118 = vlaneseq
      %v4119 = vshrl.u32 %v4118, 7
      %v4120 = vsub.s32 %v4117, %v4119
      %v4121 = vrot.slane %v4107, %v4120
      %v4122 = vcombine.low %v4114, %v4121
      %v4123 = vcombine.low %v880, %v2743
      %v4125 = vunpack.c.l.s4 1966171168
      %v4126 = vunpack.c.0.s8 %v4125
      %v4127 = vlaneseq
      %v4128 = vshrl.u32 %v4127, 7
      %v4129 = vsub.s32 %v4126, %v4128
      %v4130 = vrot.slane %v4123, %v4129
      %v4131 = vcombine.low %v2063, %v4130
      %v4132 = vcombine.low %v3787, %v3794
      %v4134 = vunpack.c.l.s4 1966171168
      %v4135 = vunpack.c.0.s8 %v4134
      %v4136 = vlaneseq
      %v4137 = vshrl.u32 %v4136, 7
      %v4138 = vsub.s32 %v4135, %v4137
      %v4139 = vrot.slane %v4131, %v4138
      %v4141 = vunpack.c.l.s4 1966171168
      %v4142 = vunpack.c.0.s8 %v4141
      %v4143 = vlaneseq
      %v4144 = vshrl.u32 %v4143, 7
      %v4145 = vsub.s32 %v4142, %v4144
      %v4146 = vrot.slane %v4132, %v4145
      %v4147 = vcombine.low %v4139, %v4146
      %v4148 = vcombine.low %v4013, %v4027
      %v4149 = vcombine.low %v4035, %v4037
      %v4150 = vcombine.low %v4020, %v4034
      %v4152 = vunpack.c.l.s4 1966171168
      %v4153 = vunpack.c.0.s8 %v4152
      %v4154 = vlaneseq
      %v4155 = vshrl.u32 %v4154, 7
      %v4156 = vsub.s32 %v4153, %v4155
      %v4157 = vrot.slane %v4148, %v4156
      %v4159 = vunpack.c.l.s4 1966171168
      %v4160 = vunpack.c.0.s8 %v4159
      %v4161 = vlaneseq
      %v4162 = vshrl.u32 %v4161, 7
      %v4163 = vsub.s32 %v4160, %v4162
      %v4164 = vrot.slane %v4149, %v4163
      %v4166 = vunpack.c.l.s4 1966171168
      %v4167 = vunpack.c.0.s8 %v4166
      %v4168 = vlaneseq
      %v4169 = vshrl.u32 %v4168, 7
      %v4170 = vsub.s32 %v4167, %v4169
      %v4171 = vrot.slane %v4150, %v4170
      %v4172 = vcombine.low %v3801, %v4157
      %v4173 = vcombine.low %v4164, %v4171
      %v4175 = vunpack.c.l.s4 1966171168
      %v4176 = vunpack.c.0.s8 %v4175
      %v4177 = vlaneseq
      %v4178 = vshrl.u32 %v4177, 7
      %v4179 = vsub.s32 %v4176, %v4178
      %v4180 = vrot.slane %v4172, %v4179
      %v4182 = vunpack.c.l.s4 1966171168
      %v4183 = vunpack.c.0.s8 %v4182
      %v4184 = vlaneseq
      %v4185 = vshrl.u32 %v4184, 7
      %v4186 = vsub.s32 %v4183, %v4185
      %v4187 = vrot.slane %v4173, %v4186
      %v4188 = vcombine.low %v4180, %v4187
      %v4190 = vunpack.c.l.s4 1966171168
      %v4191 = vunpack.c.0.s8 %v4190
      %v4192 = vlaneseq
      %v4193 = vshrl.u32 %v4192, 7
      %v4194 = vsub.s32 %v4191, %v4193
      %v4195 = vrot.slane %v4036, %v4194
      %v4197 = vunpack.c.l.s4 1966171168
      %v4198 = vunpack.c.0.s8 %v4197
      %v4199 = vlaneseq
      %v4200 = vshrl.u32 %v4199, 7
      %v4201 = vsub.s32 %v4198, %v4200
      %v4202 = vrot.slane %v4195, %v4201
      %v4226 = vunpack.c.l.b16 %v4039
      %v4227 = vunpack.c.l.b16 %v4040
      %v4228 = vunpack.c.l.b16 %v4041
      %v4229 = vunpack.c.l.b16 %v4042
      %v4230 = vunpack.c.l.b16 %v4043
      %v4231 = vunpack.c.l.b16 %v4044
      %v4232 = vunpack.c.l.b16 %v4045
      %v4233 = vunpack.c.l.b16 %v4046
      %v4234 = vunpack.c.l.b16 %v4047
      %v4235 = vunpack.c.l.b16 %v4048
      %v4236 = vunpack.c.l.b16 %v4049
      %v4237 = vunpack.c.l.b16 %v4050
      %v4238 = vunpack.c.l.b16 %v4051
      %v4239 = vunpack.c.l.b16 %v4052
      %v4240 = vunpack.c.l.b16 %v4053
      %v4241 = vunpack.c.l.b16 %v4054
      %v4242 = vpack.c.b16 %v4227, %v4226
      %v4243 = vpack.c.b16 %v4229, %v4228
      %v4244 = vpack.c.b16 %v4231, %v4230
      %v4245 = vpack.c.b16 %v4233, %v4232
      %v4246 = vpack.c.b16 %v4235, %v4234
      %v4247 = vpack.c.b16 %v4237, %v4236
      %v4248 = vpack.c.b16 %v4239, %v4238
      %v4249 = vpack.c.b16 %v4241, %v4240
      %4258 = vmatprep.subr.bf16.mxu0 0
      %4259 = vmatpush1.bf16.msra.mxu0 %v4242
      %4260 = vmatprep.subr.bf16.mxu0 0
      %4261 = vmatpush1.bf16.msra.mxu0 %v4243
      %4262 = vmatprep.subr.bf16.mxu0 0
      %4263 = vmatpush1.bf16.msra.mxu0 %v4244
      %4264 = vmatprep.subr.bf16.mxu0 0
      %4265 = vmatpush1.bf16.msra.mxu0 %v4245
      %4266 = vmatprep.subr.bf16.mxu0 0
      %4267 = vmatpush1.bf16.msra.mxu0 %v4246
      %4268 = vmatprep.subr.bf16.mxu0 0
      %4269 = vmatpush1.bf16.msra.mxu0 %v4247
      %4270 = vmatprep.subr.bf16.mxu0 0
      %4271 = vmatpush1.bf16.msra.mxu0 %v4248
      %4272 = vmatprep.subr.bf16.mxu0 0
      %4273 = vmatpush1.bf16.msra.mxu0 %v4249
      %4274 = vmatprep.subr.bf16.mxu0 0
      %4275 = vmatpush1.bf16.msra.mxu0 0
      %4276 = vmatprep.subr.bf16.mxu0 0
      %4277 = vmatpush1.bf16.msra.mxu0 0
      %4278 = vmatprep.subr.bf16.mxu0 0
      %4279 = vmatpush1.bf16.msra.mxu0 0
      %4280 = vmatprep.subr.bf16.mxu0 0
      %4281 = vmatpush1.bf16.msra.mxu0 0
      %4282 = vmatprep.subr.bf16.mxu0 0
      %4283 = vmatpush1.bf16.msra.mxu0 0
      %4284 = vmatprep.subr.bf16.mxu0 0
      %4285 = vmatpush1.bf16.msra.mxu0 0
      %4286 = vmatprep.subr.bf16.mxu0 0
      %4287 = vmatpush1.bf16.msra.mxu0 0
      %4288 = vmatprep.subr.bf16.mxu0 0
      %4289 = vmatpush1.bf16.msra.mxu0 0
      %4290 = vmatprep.mubr.bf16.mxu0 0
      %4291 = vmatmul.mubr.bf16.gmra.mrb[0].mxu0 %v4071
      %v4292 = vpop.f32.mrb[0].mxu0
      %v4293 = vadd.f32 0.0, %v4292
      %v4294 = vpop.f32.mrb[0].mxu0
      %v4295 = vpop.f32.mrb[0].mxu0
      %v4296 = vadd.f32 0.0, %v4295
      %v4297 = vpop.f32.mrb[0].mxu0
      %4298 = vmatprep.mubr.bf16.mxu0 0
      %4299 = vmatmul.mubr.bf16.gmra.mrb[0].mxu0 %v4088
      %v4300 = vpop.f32.mrb[0].mxu0
      %v4301 = vadd.f32 0.0, %v4300
      %v4302 = vpop.f32.mrb[0].mxu0
      %v4303 = vpop.f32.mrb[0].mxu0
      %v4304 = vadd.f32 0.0, %v4303
      %v4305 = vpop.f32.mrb[0].mxu0
      %4306 = vmatprep.mubr.bf16.mxu0 0
      %4307 = vmatmul.mubr.bf16.gmra.mrb[0].mxu0 %v4105
      %v4308 = vpop.f32.mrb[0].mxu0
      %v4309 = vadd.f32 0.0, %v4308
      %v4310 = vpop.f32.mrb[0].mxu0
      %v4311 = vpop.f32.mrb[0].mxu0
      %v4312 = vadd.f32 0.0, %v4311
      %v4313 = vpop.f32.mrb[0].mxu0
      %4314 = vmatprep.mubr.bf16.mxu0 0
      %4315 = vmatmul.mubr.bf16.gmra.mrb[0].mxu0 %v4122
      %v4316 = vpop.f32.mrb[0].mxu0
      %v4317 = vadd.f32 0.0, %v4316
      %v4318 = vpop.f32.mrb[0].mxu0
      %v4319 = vpop.f32.mrb[0].mxu0
      %v4320 = vadd.f32 0.0, %v4319
      %v4321 = vpop.f32.mrb[0].mxu0
      %4322 = vmatprep.mubr.bf16.mxu0 0
      %4323 = vmatmul.mubr.bf16.gmra.mrb[0].mxu0 %v4147
      %v4324 = vpop.f32.mrb[0].mxu0
      %v4325 = vadd.f32 0.0, %v4324
      %v4326 = vpop.f32.mrb[0].mxu0
      %v4327 = vpop.f32.mrb[0].mxu0
      %v4328 = vadd.f32 0.0, %v4327
      %v4329 = vpop.f32.mrb[0].mxu0
      %4330 = vmatprep.mubr.bf16.mxu0 0
      %4331 = vmatmul.mubr.bf16.gmra.mrb[0].mxu0 %v4188
      %v4332 = vpop.f32.mrb[0].mxu0
      %v4333 = vadd.f32 0.0, %v4332
      %v4334 = vpop.f32.mrb[0].mxu0
      %v4335 = vpop.f32.mrb[0].mxu0
      %v4336 = vadd.f32 0.0, %v4335
      %v4337 = vpop.f32.mrb[0].mxu0
      %4338 = vmatprep.mubr.bf16.mxu0 0
      %4339 = vmatmul.mubr.bf16.gmra.mrb[0].mxu0 %v4202
      %v4340 = vpop.f32.mrb[0].mxu0
      %v4341 = vadd.f32 0.0, %v4340
      %v4342 = vpop.f32.mrb[0].mxu0
      %v4343 = vpop.f32.mrb[0].mxu0
      %v4344 = vpop.f32.mrb[0].mxu0
      %4345 = vdwg.mxu0
      %v4346 = vadd.f32 %v3976, %v4293
      %v4347 = vadd.f32 %v3977, %v4296
      %v4348 = vadd.f32 %v3978, %v4301
      %v4349 = vadd.f32 %v3979, %v4304
      %v4350 = vadd.f32 %v3980, %v4309
      %v4351 = vadd.f32 %v3981, %v4312
      %v4352 = vadd.f32 %v3982, %v4317
      %v4353 = vadd.f32 %v3983, %v4320
      %v4354 = vadd.f32 %v3984, %v4325
      %v4355 = vadd.f32 %v3985, %v4328
      %v4356 = vadd.f32 %v3986, %v4333
      %v4357 = vadd.f32 %v3987, %v4336
      %v4358 = vadd.f32 %v3988, %v4341
      %v4359 = vcombine.high %v4034, %v4034
      %v4361 = vshrl.u32 %v4013, 16
      %v4363 = vrot.slane %v4361, 7
      %v4364 = vrot.slane %v4363, 1
      %v4366 = vshll.u32 %v4027, 16
      %v4368 = vsel %vm919, %v4364, %v4366
      %v4369 = vshrl.u32 %v4027, 16
      %v4371 = vrot.slane %v4369, 7
      %v4372 = vrot.slane %v4371, 1
      %v4374 = vshll.u32 %v4035, 16
      %v4376 = vsel %vm919, %v4372, %v4374
      %v4377 = vshrl.u32 %v4035, 16
      %v4379 = vrot.slane %v4377, 7
      %v4380 = vrot.slane %v4379, 1
      %v4382 = vshll.u32 %v4037, 16
      %v4384 = vsel %vm919, %v4380, %v4382
      %v4385 = vshrl.u32 %v4037, 16
      %v4387 = vrot.slane %v4385, 7
      %v4388 = vrot.slane %v4387, 1
      %v4390 = vshll.u32 %v4020, 16
      %v4392 = vsel %vm919, %v4388, %v4390
      %v4393 = vshrl.u32 %v4020, 16
      %v4395 = vrot.slane %v4393, 7
      %v4396 = vrot.slane %v4395, 1
      %v4398 = vshll.u32 %v4034, 16
      %v4400 = vsel %vm919, %v4396, %v4398
      %v4401 = vshrl.u32 %v4034, 16
      %v4403 = vrot.slane %v4401, 7
      %v4404 = vrot.slane %v4403, 1
      %v4406 = vshll.u32 %v4036, 16
      %v4408 = vsel %vm919, %v4404, %v4406
      %v4409 = vshrl.u32 %v4036, 16
      %v4411 = vrot.slane %v4409, 7
      %v4412 = vrot.slane %v4411, 1
      %v4414 = vshll.u32 %v4359, 16
      %v4416 = vsel %vm919, %v4412, %v4414
      %s4417 = scalar_lea.vmem %s3, 448
      %v4418 = vld [vmem:[%s4417] sm:$0xf]
      %v4419 = vld [vmem:[%s4417 + $0x4] sm:$0xf]
      %v4420 = vld [vmem:[%s4417 + $0x8] sm:$0xf]
      %v4421 = vld [vmem:[%s4417 + $0xc] sm:$0xf]
      %v4422 = vld [vmem:[%s4417 + $0x10] sm:$0xf]
      %v4423 = vld [vmem:[%s4417 + $0x14] sm:$0xf]
      %v4424 = vld [vmem:[%s4417 + $0x18] sm:$0xf]
      %v4425 = vld [vmem:[%s4417 + $0x1c] sm:$0xf]
      %v4426 = vld [vmem:[%s4417 + $0x20] sm:$0xf]
      %v4427 = vld [vmem:[%s4417 + $0x24] sm:$0xf]
      %v4428 = vld [vmem:[%s4417 + $0x28] sm:$0xf]
      %v4429 = vld [vmem:[%s4417 + $0x2c] sm:$0xf]
      %v4430 = vld [vmem:[%s4417 + $0x30] sm:$0xf]
      %v4431 = vld [vmem:[%s4417 + $0x34] sm:$0xf]
      %v4432 = vld [vmem:[%s4417 + $0x38] sm:$0xf]
      %v4433 = vld [vmem:[%s4417 + $0x3c] sm:$0xf]
      %v4434 = vcombine.low %v1416, %v1444
      %v4435 = vcombine.low %v1451, %v1458
      %v4437 = vunpack.c.l.s4 1966171168
      %v4438 = vunpack.c.0.s8 %v4437
      %v4439 = vlaneseq
      %v4440 = vshrl.u32 %v4439, 7
      %v4441 = vsub.s32 %v4438, %v4440
      %v4442 = vrot.slane %v4434, %v4441
      %v4444 = vunpack.c.l.s4 1966171168
      %v4445 = vunpack.c.0.s8 %v4444
      %v4446 = vlaneseq
      %v4447 = vshrl.u32 %v4446, 7
      %v4448 = vsub.s32 %v4445, %v4447
      %v4449 = vrot.slane %v4435, %v4448
      %v4450 = vcombine.low %v4442, %v4449
      %v4451 = vcombine.low %v1465, %v1493
      %v4452 = vcombine.low %v1500, %v1507
      %v4454 = vunpack.c.l.s4 1966171168
      %v4455 = vunpack.c.0.s8 %v4454
      %v4456 = vlaneseq
      %v4457 = vshrl.u32 %v4456, 7
      %v4458 = vsub.s32 %v4455, %v4457
      %v4459 = vrot.slane %v4451, %v4458
      %v4461 = vunpack.c.l.s4 1966171168
      %v4462 = vunpack.c.0.s8 %v4461
      %v4463 = vlaneseq
      %v4464 = vshrl.u32 %v4463, 7
      %v4465 = vsub.s32 %v4462, %v4464
      %v4466 = vrot.slane %v4452, %v4465
      %v4467 = vcombine.low %v4459, %v4466
      %v4468 = vcombine.low %v1514, %v1542
      %v4469 = vcombine.low %v1549, %v1556
      %v4471 = vunpack.c.l.s4 1966171168
      %v4472 = vunpack.c.0.s8 %v4471
      %v4473 = vlaneseq
      %v4474 = vshrl.u32 %v4473, 7
      %v4475 = vsub.s32 %v4472, %v4474
      %v4476 = vrot.slane %v4468, %v4475
      %v4478 = vunpack.c.l.s4 1966171168
      %v4479 = vunpack.c.0.s8 %v4478
      %v4480 = vlaneseq
      %v4481 = vshrl.u32 %v4480, 7
      %v4482 = vsub.s32 %v4479, %v4481
      %v4483 = vrot.slane %v4469, %v4482
      %v4484 = vcombine.low %v4476, %v4483
      %v4485 = vcombine.low %v1563, %v1591
      %v4486 = vcombine.low %v1598, %v1605
      %v4488 = vunpack.c.l.s4 1966171168
      %v4489 = vunpack.c.0.s8 %v4488
      %v4490 = vlaneseq
      %v4491 = vshrl.u32 %v4490, 7
      %v4492 = vsub.s32 %v4489, %v4491
      %v4493 = vrot.slane %v4485, %v4492
      %v4495 = vunpack.c.l.s4 1966171168
      %v4496 = vunpack.c.0.s8 %v4495
      %v4497 = vlaneseq
      %v4498 = vshrl.u32 %v4497, 7
      %v4499 = vsub.s32 %v4496, %v4498
      %v4500 = vrot.slane %v4486, %v4499
      %v4501 = vcombine.low %v4493, %v4500
      %v4502 = vcombine.low %v1318, %v3138
      %v4503 = vcombine.low %v3146, %v3154
      %v4504 = vcombine.low %v3162, %v3170
      %v4506 = vunpack.c.l.s4 1966171168
      %v4507 = vunpack.c.0.s8 %v4506
      %v4508 = vlaneseq
      %v4509 = vshrl.u32 %v4508, 7
      %v4510 = vsub.s32 %v4507, %v4509
      %v4511 = vrot.slane %v4502, %v4510
      %v4513 = vunpack.c.l.s4 1966171168
      %v4514 = vunpack.c.0.s8 %v4513
      %v4515 = vlaneseq
      %v4516 = vshrl.u32 %v4515, 7
      %v4517 = vsub.s32 %v4514, %v4516
      %v4518 = vrot.slane %v4503, %v4517
      %v4520 = vunpack.c.l.s4 1966171168
      %v4521 = vunpack.c.0.s8 %v4520
      %v4522 = vlaneseq
      %v4523 = vshrl.u32 %v4522, 7
      %v4524 = vsub.s32 %v4521, %v4523
      %v4525 = vrot.slane %v4504, %v4524
      %v4526 = vcombine.low %v1612, %v4511
      %v4527 = vcombine.low %v4518, %v4525
      %v4529 = vunpack.c.l.s4 1966171168
      %v4530 = vunpack.c.0.s8 %v4529
      %v4531 = vlaneseq
      %v4532 = vshrl.u32 %v4531, 7
      %v4533 = vsub.s32 %v4530, %v4532
      %v4534 = vrot.slane %v4526, %v4533
      %v4536 = vunpack.c.l.s4 1966171168
      %v4537 = vunpack.c.0.s8 %v4536
      %v4538 = vlaneseq
      %v4539 = vshrl.u32 %v4538, 7
      %v4540 = vsub.s32 %v4537, %v4539
      %v4541 = vrot.slane %v4527, %v4540
      %v4542 = vcombine.low %v4534, %v4541
      %v4543 = vcombine.low %v3178, %v3186
      %v4544 = vcombine.low %v4368, %v4376
      %v4545 = vcombine.low %v4384, %v4392
      %v4546 = vcombine.low %v4400, %v4408
      %v4548 = vunpack.c.l.s4 1966171168
      %v4549 = vunpack.c.0.s8 %v4548
      %v4550 = vlaneseq
      %v4551 = vshrl.u32 %v4550, 7
      %v4552 = vsub.s32 %v4549, %v4551
      %v4553 = vrot.slane %v4543, %v4552
      %v4555 = vunpack.c.l.s4 1966171168
      %v4556 = vunpack.c.0.s8 %v4555
      %v4557 = vlaneseq
      %v4558 = vshrl.u32 %v4557, 7
      %v4559 = vsub.s32 %v4556, %v4558
      %v4560 = vrot.slane %v4544, %v4559
      %v4562 = vunpack.c.l.s4 1966171168
      %v4563 = vunpack.c.0.s8 %v4562
      %v4564 = vlaneseq
      %v4565 = vshrl.u32 %v4564, 7
      %v4566 = vsub.s32 %v4563, %v4565
      %v4567 = vrot.slane %v4545, %v4566
      %v4569 = vunpack.c.l.s4 1966171168
      %v4570 = vunpack.c.0.s8 %v4569
      %v4571 = vlaneseq
      %v4572 = vshrl.u32 %v4571, 7
      %v4573 = vsub.s32 %v4570, %v4572
      %v4574 = vrot.slane %v4546, %v4573
      %v4575 = vcombine.low %v4553, %v4560
      %v4576 = vcombine.low %v4567, %v4574
      %v4578 = vunpack.c.l.s4 1966171168
      %v4579 = vunpack.c.0.s8 %v4578
      %v4580 = vlaneseq
      %v4581 = vshrl.u32 %v4580, 7
      %v4582 = vsub.s32 %v4579, %v4581
      %v4583 = vrot.slane %v4575, %v4582
      %v4585 = vunpack.c.l.s4 1966171168
      %v4586 = vunpack.c.0.s8 %v4585
      %v4587 = vlaneseq
      %v4588 = vshrl.u32 %v4587, 7
      %v4589 = vsub.s32 %v4586, %v4588
      %v4590 = vrot.slane %v4576, %v4589
      %v4591 = vcombine.low %v4583, %v4590
      %v4593 = vunpack.c.l.s4 1966171168
      %v4594 = vunpack.c.0.s8 %v4593
      %v4595 = vlaneseq
      %v4596 = vshrl.u32 %v4595, 7
      %v4597 = vsub.s32 %v4594, %v4596
      %v4598 = vrot.slane %v4416, %v4597
      %v4600 = vunpack.c.l.s4 1966171168
      %v4601 = vunpack.c.0.s8 %v4600
      %v4602 = vlaneseq
      %v4603 = vshrl.u32 %v4602, 7
      %v4604 = vsub.s32 %v4601, %v4603
      %v4605 = vrot.slane %v4598, %v4604
      %v4629 = vunpack.c.l.b16 %v4418
      %v4630 = vunpack.c.l.b16 %v4419
      %v4631 = vunpack.c.l.b16 %v4420
      %v4632 = vunpack.c.l.b16 %v4421
      %v4633 = vunpack.c.l.b16 %v4422
      %v4634 = vunpack.c.l.b16 %v4423
      %v4635 = vunpack.c.l.b16 %v4424
      %v4636 = vunpack.c.l.b16 %v4425
      %v4637 = vunpack.c.l.b16 %v4426
      %v4638 = vunpack.c.l.b16 %v4427
      %v4639 = vunpack.c.l.b16 %v4428
      %v4640 = vunpack.c.l.b16 %v4429
      %v4641 = vunpack.c.l.b16 %v4430
      %v4642 = vunpack.c.l.b16 %v4431
      %v4643 = vunpack.c.l.b16 %v4432
      %v4644 = vunpack.c.l.b16 %v4433
      %v4645 = vpack.c.b16 %v4630, %v4629
      %v4646 = vpack.c.b16 %v4632, %v4631
      %v4647 = vpack.c.b16 %v4634, %v4633
      %v4648 = vpack.c.b16 %v4636, %v4635
      %v4649 = vpack.c.b16 %v4638, %v4637
      %v4650 = vpack.c.b16 %v4640, %v4639
      %v4651 = vpack.c.b16 %v4642, %v4641
      %v4652 = vpack.c.b16 %v4644, %v4643
      %4661 = vmatprep.subr.bf16.mxu0 0
      %4662 = vmatpush1.bf16.msra.mxu0 %v4645
      %4663 = vmatprep.subr.bf16.mxu0 0
      %4664 = vmatpush1.bf16.msra.mxu0 %v4646
      %4665 = vmatprep.subr.bf16.mxu0 0
      %4666 = vmatpush1.bf16.msra.mxu0 %v4647
      %4667 = vmatprep.subr.bf16.mxu0 0
      %4668 = vmatpush1.bf16.msra.mxu0 %v4648
      %4669 = vmatprep.subr.bf16.mxu0 0
      %4670 = vmatpush1.bf16.msra.mxu0 %v4649
      %4671 = vmatprep.subr.bf16.mxu0 0
      %4672 = vmatpush1.bf16.msra.mxu0 %v4650
      %4673 = vmatprep.subr.bf16.mxu0 0
      %4674 = vmatpush1.bf16.msra.mxu0 %v4651
      %4675 = vmatprep.subr.bf16.mxu0 0
      %4676 = vmatpush1.bf16.msra.mxu0 %v4652
      %4677 = vmatprep.subr.bf16.mxu0 0
      %4678 = vmatpush1.bf16.msra.mxu0 0
      %4679 = vmatprep.subr.bf16.mxu0 0
      %4680 = vmatpush1.bf16.msra.mxu0 0
      %4681 = vmatprep.subr.bf16.mxu0 0
      %4682 = vmatpush1.bf16.msra.mxu0 0
      %4683 = vmatprep.subr.bf16.mxu0 0
      %4684 = vmatpush1.bf16.msra.mxu0 0
      %4685 = vmatprep.subr.bf16.mxu0 0
      %4686 = vmatpush1.bf16.msra.mxu0 0
      %4687 = vmatprep.subr.bf16.mxu0 0
      %4688 = vmatpush1.bf16.msra.mxu0 0
      %4689 = vmatprep.subr.bf16.mxu0 0
      %4690 = vmatpush1.bf16.msra.mxu0 0
      %4691 = vmatprep.subr.bf16.mxu0 0
      %4692 = vmatpush1.bf16.msra.mxu0 0
      %4693 = vmatprep.mubr.bf16.mxu0 0
      %4694 = vmatmul.mubr.bf16.gmra.mrb[0].mxu0 %v4450
      %v4695 = vpop.f32.mrb[0].mxu0
      %v4696 = vadd.f32 0.0, %v4695
      %v4697 = vpop.f32.mrb[0].mxu0
      %v4698 = vpop.f32.mrb[0].mxu0
      %v4699 = vadd.f32 0.0, %v4698
      %v4700 = vpop.f32.mrb[0].mxu0
      %4701 = vmatprep.mubr.bf16.mxu0 0
      %4702 = vmatmul.mubr.bf16.gmra.mrb[0].mxu0 %v4467
      %v4703 = vpop.f32.mrb[0].mxu0
      %v4704 = vadd.f32 0.0, %v4703
      %v4705 = vpop.f32.mrb[0].mxu0
      %v4706 = vpop.f32.mrb[0].mxu0
      %v4707 = vadd.f32 0.0, %v4706
      %v4708 = vpop.f32.mrb[0].mxu0
      %4709 = vmatprep.mubr.bf16.mxu0 0
      %4710 = vmatmul.mubr.bf16.gmra.mrb[0].mxu0 %v4484
      %v4711 = vpop.f32.mrb[0].mxu0
      %v4712 = vadd.f32 0.0, %v4711
      %v4713 = vpop.f32.mrb[0].mxu0
      %v4714 = vpop.f32.mrb[0].mxu0
      %v4715 = vadd.f32 0.0, %v4714
      %v4716 = vpop.f32.mrb[0].mxu0
      %4717 = vmatprep.mubr.bf16.mxu0 0
      %4718 = vmatmul.mubr.bf16.gmra.mrb[0].mxu0 %v4501
      %v4719 = vpop.f32.mrb[0].mxu0
      %v4720 = vadd.f32 0.0, %v4719
      %v4721 = vpop.f32.mrb[0].mxu0
      %v4722 = vpop.f32.mrb[0].mxu0
      %v4723 = vadd.f32 0.0, %v4722
      %v4724 = vpop.f32.mrb[0].mxu0
      %4725 = vmatprep.mubr.bf16.mxu0 0
      %4726 = vmatmul.mubr.bf16.gmra.mrb[0].mxu0 %v4542
      %v4727 = vpop.f32.mrb[0].mxu0
      %v4728 = vadd.f32 0.0, %v4727
      %v4729 = vpop.f32.mrb[0].mxu0
      %v4730 = vpop.f32.mrb[0].mxu0
      %v4731 = vadd.f32 0.0, %v4730
      %v4732 = vpop.f32.mrb[0].mxu0
      %4733 = vmatprep.mubr.bf16.mxu0 0
      %4734 = vmatmul.mubr.bf16.gmra.mrb[0].mxu0 %v4591
      %v4735 = vpop.f32.mrb[0].mxu0
      %v4736 = vadd.f32 0.0, %v4735
      %v4737 = vpop.f32.mrb[0].mxu0
      %v4738 = vpop.f32.mrb[0].mxu0
      %v4739 = vadd.f32 0.0, %v4738
      %v4740 = vpop.f32.mrb[0].mxu0
      %4741 = vmatprep.mubr.bf16.mxu0 0
      %4742 = vmatmul.mubr.bf16.gmra.mrb[0].mxu0 %v4605
      %v4743 = vpop.f32.mrb[0].mxu0
      %v4744 = vadd.f32 0.0, %v4743
      %v4745 = vpop.f32.mrb[0].mxu0
      %v4746 = vpop.f32.mrb[0].mxu0
      %v4747 = vpop.f32.mrb[0].mxu0
      %4748 = vdwg.mxu0
      %v4749 = vadd.f32 %v4346, %v4696
      %v4750 = vadd.f32 %v4347, %v4699
      %v4751 = vadd.f32 %v4348, %v4704
      %v4752 = vadd.f32 %v4349, %v4707
      %v4753 = vadd.f32 %v4350, %v4712
      %v4754 = vadd.f32 %v4351, %v4715
      %v4755 = vadd.f32 %v4352, %v4720
      %v4756 = vadd.f32 %v4353, %v4723
      %v4757 = vadd.f32 %v4354, %v4728
      %v4758 = vadd.f32 %v4355, %v4731
      %v4759 = vadd.f32 %v4356, %v4736
      %v4760 = vadd.f32 %v4357, %v4739
      %v4761 = vadd.f32 %v4358, %v4744
      %s4762 = scalar_lea.vmem %s3, 512
      %v4763 = vld [vmem:[%s4762] sm:$0xf]
      %v4764 = vld [vmem:[%s4762 + $0x4] sm:$0xf]
      %v4765 = vld [vmem:[%s4762 + $0x8] sm:$0xf]
      %v4766 = vld [vmem:[%s4762 + $0xc] sm:$0xf]
      %v4767 = vld [vmem:[%s4762 + $0x10] sm:$0xf]
      %v4768 = vld [vmem:[%s4762 + $0x14] sm:$0xf]
      %v4769 = vld [vmem:[%s4762 + $0x18] sm:$0xf]
      %v4770 = vld [vmem:[%s4762 + $0x1c] sm:$0xf]
      %v4771 = vld [vmem:[%s4762 + $0x20] sm:$0xf]
      %v4772 = vld [vmem:[%s4762 + $0x24] sm:$0xf]
      %v4773 = vld [vmem:[%s4762 + $0x28] sm:$0xf]
      %v4774 = vld [vmem:[%s4762 + $0x2c] sm:$0xf]
      %v4775 = vld [vmem:[%s4762 + $0x30] sm:$0xf]
      %v4776 = vld [vmem:[%s4762 + $0x34] sm:$0xf]
      %v4777 = vld [vmem:[%s4762 + $0x38] sm:$0xf]
      %v4778 = vld [vmem:[%s4762 + $0x3c] sm:$0xf]
      %v4779 = vcombine.low %v2370, %v2377
      %v4781 = vunpack.c.l.s4 1966171168
      %v4782 = vunpack.c.0.s8 %v4781
      %v4783 = vlaneseq
      %v4784 = vshrl.u32 %v4783, 7
      %v4785 = vsub.s32 %v4782, %v4784
      %v4786 = vrot.slane %v4779, %v4785
      %v4787 = vcombine.low %v2834, %v4786
      %v4788 = vcombine.low %v2419, %v2426
      %v4790 = vunpack.c.l.s4 1966171168
      %v4791 = vunpack.c.0.s8 %v4790
      %v4792 = vlaneseq
      %v4793 = vshrl.u32 %v4792, 7
      %v4794 = vsub.s32 %v4791, %v4793
      %v4795 = vrot.slane %v4788, %v4794
      %v4796 = vcombine.low %v2859, %v4795
      %v4797 = vcombine.low %v2468, %v2475
      %v4799 = vunpack.c.l.s4 1966171168
      %v4800 = vunpack.c.0.s8 %v4799
      %v4801 = vlaneseq
      %v4802 = vshrl.u32 %v4801, 7
      %v4803 = vsub.s32 %v4800, %v4802
      %v4804 = vrot.slane %v4797, %v4803
      %v4805 = vcombine.low %v2884, %v4804
      %v4806 = vcombine.low %v2482, %v2510
      %v4808 = vunpack.c.l.s4 1966171168
      %v4809 = vunpack.c.0.s8 %v4808
      %v4810 = vlaneseq
      %v4811 = vshrl.u32 %v4810, 7
      %v4812 = vsub.s32 %v4809, %v4811
      %v4813 = vrot.slane %v4806, %v4812
      %v4814 = vcombine.low %v4813, %v2916
      %v4815 = vcombine.low %v904, %v2757
      %v4817 = vunpack.c.l.s4 1966171168
      %v4818 = vunpack.c.0.s8 %v4817
      %v4819 = vlaneseq
      %v4820 = vshrl.u32 %v4819, 7
      %v4821 = vsub.s32 %v4818, %v4820
      %v4822 = vrot.slane %v4815, %v4821
      %v4823 = vcombine.low %v2531, %v4822
      %v4825 = vunpack.c.l.s4 1966171168
      %v4826 = vunpack.c.0.s8 %v4825
      %v4827 = vlaneseq
      %v4828 = vshrl.u32 %v4827, 7
      %v4829 = vsub.s32 %v4826, %v4828
      %v4830 = vrot.slane %v4823, %v4829
      %v4831 = vcombine.low %v4830, %v2957
      %v4832 = vcombine.low %v2766, %v3129
      %v4833 = vcombine.low %v4027, %v4035
      %v4834 = vcombine.low %v4037, %v4020
      %v4835 = vcombine.low %v4034, %v4036
      %v4837 = vunpack.c.l.s4 1966171168
      %v4838 = vunpack.c.0.s8 %v4837
      %v4839 = vlaneseq
      %v4840 = vshrl.u32 %v4839, 7
      %v4841 = vsub.s32 %v4838, %v4840
      %v4842 = vrot.slane %v4832, %v4841
      %v4844 = vunpack.c.l.s4 1966171168
      %v4845 = vunpack.c.0.s8 %v4844
      %v4846 = vlaneseq
      %v4847 = vshrl.u32 %v4846, 7
      %v4848 = vsub.s32 %v4845, %v4847
      %v4849 = vrot.slane %v4833, %v4848
      %v4851 = vunpack.c.l.s4 1966171168
      %v4852 = vunpack.c.0.s8 %v4851
      %v4853 = vlaneseq
      %v4854 = vshrl.u32 %v4853, 7
      %v4855 = vsub.s32 %v4852, %v4854
      %v4856 = vrot.slane %v4834, %v4855
      %v4858 = vunpack.c.l.s4 1966171168
      %v4859 = vunpack.c.0.s8 %v4858
      %v4860 = vlaneseq
      %v4861 = vshrl.u32 %v4860, 7
      %v4862 = vsub.s32 %v4859, %v4861
      %v4863 = vrot.slane %v4835, %v4862
      %v4864 = vcombine.low %v4842, %v4849
      %v4865 = vcombine.low %v4856, %v4863
      %v4867 = vunpack.c.l.s4 1966171168
      %v4868 = vunpack.c.0.s8 %v4867
      %v4869 = vlaneseq
      %v4870 = vshrl.u32 %v4869, 7
      %v4871 = vsub.s32 %v4868, %v4870
      %v4872 = vrot.slane %v4864, %v4871
      %v4874 = vunpack.c.l.s4 1966171168
      %v4875 = vunpack.c.0.s8 %v4874
      %v4876 = vlaneseq
      %v4877 = vshrl.u32 %v4876, 7
      %v4878 = vsub.s32 %v4875, %v4877
      %v4879 = vrot.slane %v4865, %v4878
      %v4880 = vcombine.low %v4872, %v4879
      %v4882 = vunpack.c.l.s4 1966171168
      %v4883 = vunpack.c.0.s8 %v4882
      %v4884 = vlaneseq
      %v4885 = vshrl.u32 %v4884, 7
      %v4886 = vsub.s32 %v4883, %v4885
      %v4887 = vrot.slane %v4359, %v4886
      %v4889 = vunpack.c.l.s4 1966171168
      %v4890 = vunpack.c.0.s8 %v4889
      %v4891 = vlaneseq
      %v4892 = vshrl.u32 %v4891, 7
      %v4893 = vsub.s32 %v4890, %v4892
      %v4894 = vrot.slane %v4887, %v4893
      %v4918 = vunpack.c.l.b16 %v4763
      %v4919 = vunpack.c.l.b16 %v4764
      %v4920 = vunpack.c.l.b16 %v4765
      %v4921 = vunpack.c.l.b16 %v4766
      %v4922 = vunpack.c.l.b16 %v4767
      %v4923 = vunpack.c.l.b16 %v4768
      %v4924 = vunpack.c.l.b16 %v4769
      %v4925 = vunpack.c.l.b16 %v4770
      %v4926 = vunpack.c.l.b16 %v4771
      %v4927 = vunpack.c.l.b16 %v4772
      %v4928 = vunpack.c.l.b16 %v4773
      %v4929 = vunpack.c.l.b16 %v4774
      %v4930 = vunpack.c.l.b16 %v4775
      %v4931 = vunpack.c.l.b16 %v4776
      %v4932 = vunpack.c.l.b16 %v4777
      %v4933 = vunpack.c.l.b16 %v4778
      %v4934 = vpack.c.b16 %v4919, %v4918
      %v4935 = vpack.c.b16 %v4921, %v4920
      %v4936 = vpack.c.b16 %v4923, %v4922
      %v4937 = vpack.c.b16 %v4925, %v4924
      %v4938 = vpack.c.b16 %v4927, %v4926
      %v4939 = vpack.c.b16 %v4929, %v4928
      %v4940 = vpack.c.b16 %v4931, %v4930
      %v4941 = vpack.c.b16 %v4933, %v4932
      %4950 = vmatprep.subr.bf16.mxu0 0
      %4951 = vmatpush1.bf16.msra.mxu0 %v4934
      %4952 = vmatprep.subr.bf16.mxu0 0
      %4953 = vmatpush1.bf16.msra.mxu0 %v4935
      %4954 = vmatprep.subr.bf16.mxu0 0
      %4955 = vmatpush1.bf16.msra.mxu0 %v4936
      %4956 = vmatprep.subr.bf16.mxu0 0
      %4957 = vmatpush1.bf16.msra.mxu0 %v4937
      %4958 = vmatprep.subr.bf16.mxu0 0
      %4959 = vmatpush1.bf16.msra.mxu0 %v4938
      %4960 = vmatprep.subr.bf16.mxu0 0
      %4961 = vmatpush1.bf16.msra.mxu0 %v4939
      %4962 = vmatprep.subr.bf16.mxu0 0
      %4963 = vmatpush1.bf16.msra.mxu0 %v4940
      %4964 = vmatprep.subr.bf16.mxu0 0
      %4965 = vmatpush1.bf16.msra.mxu0 %v4941
      %4966 = vmatprep.subr.bf16.mxu0 0
      %4967 = vmatpush1.bf16.msra.mxu0 0
      %4968 = vmatprep.subr.bf16.mxu0 0
      %4969 = vmatpush1.bf16.msra.mxu0 0
      %4970 = vmatprep.subr.bf16.mxu0 0
      %4971 = vmatpush1.bf16.msra.mxu0 0
      %4972 = vmatprep.subr.bf16.mxu0 0
      %4973 = vmatpush1.bf16.msra.mxu0 0
      %4974 = vmatprep.subr.bf16.mxu0 0
      %4975 = vmatpush1.bf16.msra.mxu0 0
      %4976 = vmatprep.subr.bf16.mxu0 0
      %4977 = vmatpush1.bf16.msra.mxu0 0
      %4978 = vmatprep.subr.bf16.mxu0 0
      %4979 = vmatpush1.bf16.msra.mxu0 0
      %4980 = vmatprep.subr.bf16.mxu0 0
      %4981 = vmatpush1.bf16.msra.mxu0 0
      %4982 = vmatprep.mubr.bf16.mxu0 0
      %4983 = vmatmul.mubr.bf16.gmra.mrb[0].mxu0 %v4787
      %v4984 = vpop.f32.mrb[0].mxu0
      %v4985 = vadd.f32 0.0, %v4984
      %v4986 = vpop.f32.mrb[0].mxu0
      %v4987 = vpop.f32.mrb[0].mxu0
      %v4988 = vadd.f32 0.0, %v4987
      %v4989 = vpop.f32.mrb[0].mxu0
      %4990 = vmatprep.mubr.bf16.mxu0 0
      %4991 = vmatmul.mubr.bf16.gmra.mrb[0].mxu0 %v4796
      %v4992 = vpop.f32.mrb[0].mxu0
      %v4993 = vadd.f32 0.0, %v4992
      %v4994 = vpop.f32.mrb[0].mxu0
      %v4995 = vpop.f32.mrb[0].mxu0
      %v4996 = vadd.f32 0.0, %v4995
      %v4997 = vpop.f32.mrb[0].mxu0
      %4998 = vmatprep.mubr.bf16.mxu0 0
      %4999 = vmatmul.mubr.bf16.gmra.mrb[0].mxu0 %v4805
      %v5000 = vpop.f32.mrb[0].mxu0
      %v5001 = vadd.f32 0.0, %v5000
      %v5002 = vpop.f32.mrb[0].mxu0
      %v5003 = vpop.f32.mrb[0].mxu0
      %v5004 = vadd.f32 0.0, %v5003
      %v5005 = vpop.f32.mrb[0].mxu0
      %5006 = vmatprep.mubr.bf16.mxu0 0
      %5007 = vmatmul.mubr.bf16.gmra.mrb[0].mxu0 %v4814
      %v5008 = vpop.f32.mrb[0].mxu0
      %v5009 = vadd.f32 0.0, %v5008
      %v5010 = vpop.f32.mrb[0].mxu0
      %v5011 = vpop.f32.mrb[0].mxu0
      %v5012 = vadd.f32 0.0, %v5011
      %v5013 = vpop.f32.mrb[0].mxu0
      %5014 = vmatprep.mubr.bf16.mxu0 0
      %5015 = vmatmul.mubr.bf16.gmra.mrb[0].mxu0 %v4831
      %v5016 = vpop.f32.mrb[0].mxu0
      %v5017 = vadd.f32 0.0, %v5016
      %v5018 = vpop.f32.mrb[0].mxu0
      %v5019 = vpop.f32.mrb[0].mxu0
      %v5020 = vadd.f32 0.0, %v5019
      %v5021 = vpop.f32.mrb[0].mxu0
      %5022 = vmatprep.mubr.bf16.mxu0 0
      %5023 = vmatmul.mubr.bf16.gmra.mrb[0].mxu0 %v4880
      %v5024 = vpop.f32.mrb[0].mxu0
      %v5025 = vadd.f32 0.0, %v5024
      %v5026 = vpop.f32.mrb[0].mxu0
      %v5027 = vpop.f32.mrb[0].mxu0
      %v5028 = vadd.f32 0.0, %v5027
      %v5029 = vpop.f32.mrb[0].mxu0
      %5030 = vmatprep.mubr.bf16.mxu0 0
      %5031 = vmatmul.mubr.bf16.gmra.mrb[0].mxu0 %v4894
      %v5032 = vpop.f32.mrb[0].mxu0
      %v5033 = vadd.f32 0.0, %v5032
      %v5034 = vpop.f32.mrb[0].mxu0
      %v5035 = vpop.f32.mrb[0].mxu0
      %v5036 = vpop.f32.mrb[0].mxu0
      %5037 = vdwg.mxu0
      %v5038 = vadd.f32 %v4749, %v4985
      %v5039 = vadd.f32 %v4750, %v4988
      %v5040 = vadd.f32 %v4751, %v4993
      %v5041 = vadd.f32 %v4752, %v4996
      %v5042 = vadd.f32 %v4753, %v5001
      %v5043 = vadd.f32 %v4754, %v5004
      %v5044 = vadd.f32 %v4755, %v5009
      %v5045 = vadd.f32 %v4756, %v5012
      %v5046 = vadd.f32 %v4757, %v5017
      %v5047 = vadd.f32 %v4758, %v5020
      %v5048 = vadd.f32 %v4759, %v5025
      %v5049 = vadd.f32 %v4760, %v5028
      %v5050 = vadd.f32 %v4761, %v5033
      %v5051 = vld [vmem:[%s4] sm:$0x1]
      %v5053 = vlaneseq
      %v5054 = vshrl.u32 %v5053, 7
      %v5055 = vsub.s32 0, %v5054
      %v5056 = vrot.slane %v5051, %v5055
      %v5058 = vadd.f32 %v5038, %v5056
      %v5059 = vadd.f32 %v5039, %v5056
      %v5060 = vadd.f32 %v5040, %v5056
      %v5061 = vadd.f32 %v5041, %v5056
      %v5062 = vadd.f32 %v5042, %v5056
      %v5063 = vadd.f32 %v5043, %v5056
      %v5064 = vadd.f32 %v5044, %v5056
      %v5065 = vadd.f32 %v5045, %v5056
      %v5066 = vadd.f32 %v5046, %v5056
      %v5067 = vadd.f32 %v5047, %v5056
      %v5068 = vadd.f32 %v5048, %v5056
      %v5069 = vadd.f32 %v5049, %v5056
      %v5070 = vadd.f32 %v5050, %v5056
      %v5071 = vmax.f32 %v5058, 0.0
      %v5072 = vmax.f32 %v5059, 0.0
      %v5073 = vmax.f32 %v5060, 0.0
      %v5074 = vmax.f32 %v5061, 0.0
      %v5075 = vmax.f32 %v5062, 0.0
      %v5076 = vmax.f32 %v5063, 0.0
      %v5077 = vmax.f32 %v5064, 0.0
      %v5078 = vmax.f32 %v5065, 0.0
      %v5079 = vmax.f32 %v5066, 0.0
      %v5080 = vmax.f32 %v5067, 0.0
      %v5081 = vmax.f32 %v5068, 0.0
      %v5082 = vmax.f32 %v5069, 0.0
      %v5083 = vmax.f32 %v5070, 0.0
      %v5084 = vpack.c.bf16 %v5072, %v5071
      %v5085 = vpack.c.bf16 %v5074, %v5073
      %v5086 = vpack.c.bf16 %v5076, %v5075
      %v5087 = vpack.c.bf16 %v5078, %v5077
      %v5088 = vpack.c.bf16 %v5080, %v5079
      %v5089 = vpack.c.bf16 %v5082, %v5081
      %v5090 = vpack.c.bf16 %v5083, %v5083
      %v5091 = vld [vmem:[%s5] sm:$0xf]
      %v5092 = vld [vmem:[%s5 + $0x4] sm:$0xf]
      %v5093 = vld [vmem:[%s5 + $0x8] sm:$0xf]
      %v5094 = vld [vmem:[%s5 + $0xc] sm:$0xf]
      %v5095 = vld [vmem:[%s5 + $0x10] sm:$0xf]
      %v5096 = vld [vmem:[%s5 + $0x14] sm:$0xf]
      %v5097 = vld [vmem:[%s5 + $0x18] sm:$0xf]
      %v5098 = vld [vmem:[%s5 + $0x1c] sm:$0xf]
      %v5099 = vld [vmem:[%s5 + $0x20] sm:$0xf]
      %v5100 = vld [vmem:[%s5 + $0x24] sm:$0xf]
      %v5101 = vld [vmem:[%s5 + $0x28] sm:$0xf]
      %v5102 = vld [vmem:[%s5 + $0x2c] sm:$0xf]
      %v5103 = vld [vmem:[%s5 + $0x30] sm:$0xf]
      %v5104 = vld [vmem:[%s5 + $0x34] sm:$0xf]
      %v5105 = vld [vmem:[%s5 + $0x38] sm:$0xf]
      %v5106 = vld [vmem:[%s5 + $0x3c] sm:$0xf]
      %v5114 = vcombine.high %v355, %v355
      %v5116 = vunpack.c.l.s4 1966171168
      %v5117 = vunpack.c.0.s8 %v5116
      %v5118 = vlaneseq
      %v5119 = vshrl.u32 %v5118, 7
      %v5120 = vsub.s32 %v5117, %v5119
      %v5121 = vrot.slane %v355, %v5120
      %v5123 = vunpack.c.l.s4 1966171168
      %v5124 = vunpack.c.0.s8 %v5123
      %v5125 = vlaneseq
      %v5126 = vshrl.u32 %v5125, 7
      %v5127 = vsub.s32 %v5124, %v5126
      %v5128 = vrot.slane %v5114, %v5127
      %v5129 = vcombine.high %v5121, %v5121
      %v5130 = vcombine.high %v5128, %v5128
      %v5132 = vunpack.c.l.s4 1966171168
      %v5133 = vunpack.c.0.s8 %v5132
      %v5134 = vlaneseq
      %v5135 = vshrl.u32 %v5134, 7
      %v5136 = vsub.s32 %v5133, %v5135
      %v5137 = vrot.slane %v5121, %v5136
      %v5139 = vunpack.c.l.s4 1966171168
      %v5140 = vunpack.c.0.s8 %v5139
      %v5141 = vlaneseq
      %v5142 = vshrl.u32 %v5141, 7
      %v5143 = vsub.s32 %v5140, %v5142
      %v5144 = vrot.slane %v5128, %v5143
      %v5146 = vunpack.c.l.s4 1966171168
      %v5147 = vunpack.c.0.s8 %v5146
      %v5148 = vlaneseq
      %v5149 = vshrl.u32 %v5148, 7
      %v5150 = vsub.s32 %v5147, %v5149
      %v5151 = vrot.slane %v5129, %v5150
      %v5153 = vunpack.c.l.s4 1966171168
      %v5154 = vunpack.c.0.s8 %v5153
      %v5155 = vlaneseq
      %v5156 = vshrl.u32 %v5155, 7
      %v5157 = vsub.s32 %v5154, %v5156
      %v5158 = vrot.slane %v5130, %v5157
      %v5159 = vcombine.high %v5137, %v5137
      %v5160 = vcombine.high %v5144, %v5144
      %v5161 = vcombine.high %v5151, %v5151
      %v5162 = vcombine.high %v356, %v356
      %v5164 = vunpack.c.l.s4 1966171168
      %v5165 = vunpack.c.0.s8 %v5164
      %v5166 = vlaneseq
      %v5167 = vshrl.u32 %v5166, 7
      %v5168 = vsub.s32 %v5165, %v5167
      %v5169 = vrot.slane %v356, %v5168
      %v5171 = vunpack.c.l.s4 1966171168
      %v5172 = vunpack.c.0.s8 %v5171
      %v5173 = vlaneseq
      %v5174 = vshrl.u32 %v5173, 7
      %v5175 = vsub.s32 %v5172, %v5174
      %v5176 = vrot.slane %v5162, %v5175
      %v5177 = vcombine.high %v5169, %v5169
      %v5178 = vcombine.high %v5176, %v5176
      %v5180 = vunpack.c.l.s4 1966171168
      %v5181 = vunpack.c.0.s8 %v5180
      %v5182 = vlaneseq
      %v5183 = vshrl.u32 %v5182, 7
      %v5184 = vsub.s32 %v5181, %v5183
      %v5185 = vrot.slane %v5169, %v5184
      %v5187 = vunpack.c.l.s4 1966171168
      %v5188 = vunpack.c.0.s8 %v5187
      %v5189 = vlaneseq
      %v5190 = vshrl.u32 %v5189, 7
      %v5191 = vsub.s32 %v5188, %v5190
      %v5192 = vrot.slane %v5176, %v5191
      %v5194 = vunpack.c.l.s4 1966171168
      %v5195 = vunpack.c.0.s8 %v5194
      %v5196 = vlaneseq
      %v5197 = vshrl.u32 %v5196, 7
      %v5198 = vsub.s32 %v5195, %v5197
      %v5199 = vrot.slane %v5177, %v5198
      %v5201 = vunpack.c.l.s4 1966171168
      %v5202 = vunpack.c.0.s8 %v5201
      %v5203 = vlaneseq
      %v5204 = vshrl.u32 %v5203, 7
      %v5205 = vsub.s32 %v5202, %v5204
      %v5206 = vrot.slane %v5178, %v5205
      %v5207 = vcombine.high %v5185, %v5185
      %v5208 = vcombine.high %v5192, %v5192
      %v5209 = vcombine.high %v5199, %v5199
      %v5210 = vcombine.high %v357, %v357
      %v5212 = vunpack.c.l.s4 1966171168
      %v5213 = vunpack.c.0.s8 %v5212
      %v5214 = vlaneseq
      %v5215 = vshrl.u32 %v5214, 7
      %v5216 = vsub.s32 %v5213, %v5215
      %v5217 = vrot.slane %v357, %v5216
      %v5219 = vunpack.c.l.s4 1966171168
      %v5220 = vunpack.c.0.s8 %v5219
      %v5221 = vlaneseq
      %v5222 = vshrl.u32 %v5221, 7
      %v5223 = vsub.s32 %v5220, %v5222
      %v5224 = vrot.slane %v5210, %v5223
      %v5225 = vcombine.high %v5217, %v5217
      %v5226 = vcombine.high %v5224, %v5224
      %v5228 = vunpack.c.l.s4 1966171168
      %v5229 = vunpack.c.0.s8 %v5228
      %v5230 = vlaneseq
      %v5231 = vshrl.u32 %v5230, 7
      %v5232 = vsub.s32 %v5229, %v5231
      %v5233 = vrot.slane %v5217, %v5232
      %v5235 = vunpack.c.l.s4 1966171168
      %v5236 = vunpack.c.0.s8 %v5235
      %v5237 = vlaneseq
      %v5238 = vshrl.u32 %v5237, 7
      %v5239 = vsub.s32 %v5236, %v5238
      %v5240 = vrot.slane %v5224, %v5239
      %v5242 = vunpack.c.l.s4 1966171168
      %v5243 = vunpack.c.0.s8 %v5242
      %v5244 = vlaneseq
      %v5245 = vshrl.u32 %v5244, 7
      %v5246 = vsub.s32 %v5243, %v5245
      %v5247 = vrot.slane %v5225, %v5246
      %v5249 = vunpack.c.l.s4 1966171168
      %v5250 = vunpack.c.0.s8 %v5249
      %v5251 = vlaneseq
      %v5252 = vshrl.u32 %v5251, 7
      %v5253 = vsub.s32 %v5250, %v5252
      %v5254 = vrot.slane %v5226, %v5253
      %v5255 = vcombine.high %v5233, %v5233
      %v5256 = vcombine.high %v5240, %v5240
      %v5257 = vcombine.high %v5247, %v5247
      %v5258 = vcombine.high %v358, %v358
      %v5260 = vunpack.c.l.s4 1966171168
      %v5261 = vunpack.c.0.s8 %v5260
      %v5262 = vlaneseq
      %v5263 = vshrl.u32 %v5262, 7
      %v5264 = vsub.s32 %v5261, %v5263
      %v5265 = vrot.slane %v358, %v5264
      %v5267 = vunpack.c.l.s4 1966171168
      %v5268 = vunpack.c.0.s8 %v5267
      %v5269 = vlaneseq
      %v5270 = vshrl.u32 %v5269, 7
      %v5271 = vsub.s32 %v5268, %v5270
      %v5272 = vrot.slane %v5258, %v5271
      %v5273 = vcombine.high %v5265, %v5265
      %v5274 = vcombine.high %v5272, %v5272
      %v5276 = vunpack.c.l.s4 1966171168
      %v5277 = vunpack.c.0.s8 %v5276
      %v5278 = vlaneseq
      %v5279 = vshrl.u32 %v5278, 7
      %v5280 = vsub.s32 %v5277, %v5279
      %v5281 = vrot.slane %v5265, %v5280
      %v5283 = vunpack.c.l.s4 1966171168
      %v5284 = vunpack.c.0.s8 %v5283
      %v5285 = vlaneseq
      %v5286 = vshrl.u32 %v5285, 7
      %v5287 = vsub.s32 %v5284, %v5286
      %v5288 = vrot.slane %v5272, %v5287
      %v5290 = vunpack.c.l.s4 1966171168
      %v5291 = vunpack.c.0.s8 %v5290
      %v5292 = vlaneseq
      %v5293 = vshrl.u32 %v5292, 7
      %v5294 = vsub.s32 %v5291, %v5293
      %v5295 = vrot.slane %v5273, %v5294
      %v5297 = vunpack.c.l.s4 1966171168
      %v5298 = vunpack.c.0.s8 %v5297
      %v5299 = vlaneseq
      %v5300 = vshrl.u32 %v5299, 7
      %v5301 = vsub.s32 %v5298, %v5300
      %v5302 = vrot.slane %v5274, %v5301
      %v5303 = vcombine.high %v5281, %v5281
      %v5304 = vcombine.high %v5288, %v5288
      %v5305 = vcombine.high %v5295, %v5295
      %v5306 = vcombine.high %v359, %v359
      %v5308 = vunpack.c.l.s4 1966171168
      %v5309 = vunpack.c.0.s8 %v5308
      %v5310 = vlaneseq
      %v5311 = vshrl.u32 %v5310, 7
      %v5312 = vsub.s32 %v5309, %v5311
      %v5313 = vrot.slane %v359, %v5312
      %v5315 = vunpack.c.l.s4 1966171168
      %v5316 = vunpack.c.0.s8 %v5315
      %v5317 = vlaneseq
      %v5318 = vshrl.u32 %v5317, 7
      %v5319 = vsub.s32 %v5316, %v5318
      %v5320 = vrot.slane %v5306, %v5319
      %v5321 = vcombine.high %v5313, %v5313
      %v5322 = vcombine.high %v5320, %v5320
      %v5324 = vunpack.c.l.s4 1966171168
      %v5325 = vunpack.c.0.s8 %v5324
      %v5326 = vlaneseq
      %v5327 = vshrl.u32 %v5326, 7
      %v5328 = vsub.s32 %v5325, %v5327
      %v5329 = vrot.slane %v5313, %v5328
      %v5331 = vunpack.c.l.s4 1966171168
      %v5332 = vunpack.c.0.s8 %v5331
      %v5333 = vlaneseq
      %v5334 = vshrl.u32 %v5333, 7
      %v5335 = vsub.s32 %v5332, %v5334
      %v5336 = vrot.slane %v5320, %v5335
      %v5338 = vunpack.c.l.s4 1966171168
      %v5339 = vunpack.c.0.s8 %v5338
      %v5340 = vlaneseq
      %v5341 = vshrl.u32 %v5340, 7
      %v5342 = vsub.s32 %v5339, %v5341
      %v5343 = vrot.slane %v5321, %v5342
      %v5345 = vunpack.c.l.s4 1966171168
      %v5346 = vunpack.c.0.s8 %v5345
      %v5347 = vlaneseq
      %v5348 = vshrl.u32 %v5347, 7
      %v5349 = vsub.s32 %v5346, %v5348
      %v5350 = vrot.slane %v5322, %v5349
      %v5351 = vcombine.high %v5329, %v5329
      %v5352 = vcombine.high %v5336, %v5336
      %v5353 = vcombine.high %v5343, %v5343
      %v5354 = vcombine.high %v360, %v360
      %v5356 = vunpack.c.l.s4 1966171168
      %v5357 = vunpack.c.0.s8 %v5356
      %v5358 = vlaneseq
      %v5359 = vshrl.u32 %v5358, 7
      %v5360 = vsub.s32 %v5357, %v5359
      %v5361 = vrot.slane %v360, %v5360
      %v5363 = vunpack.c.l.s4 1966171168
      %v5364 = vunpack.c.0.s8 %v5363
      %v5365 = vlaneseq
      %v5366 = vshrl.u32 %v5365, 7
      %v5367 = vsub.s32 %v5364, %v5366
      %v5368 = vrot.slane %v5354, %v5367
      %v5369 = vcombine.high %v5361, %v5361
      %v5370 = vcombine.high %v5368, %v5368
      %v5372 = vunpack.c.l.s4 1966171168
      %v5373 = vunpack.c.0.s8 %v5372
      %v5374 = vlaneseq
      %v5375 = vshrl.u32 %v5374, 7
      %v5376 = vsub.s32 %v5373, %v5375
      %v5377 = vrot.slane %v5361, %v5376
      %v5379 = vunpack.c.l.s4 1966171168
      %v5380 = vunpack.c.0.s8 %v5379
      %v5381 = vlaneseq
      %v5382 = vshrl.u32 %v5381, 7
      %v5383 = vsub.s32 %v5380, %v5382
      %v5384 = vrot.slane %v5368, %v5383
      %v5386 = vunpack.c.l.s4 1966171168
      %v5387 = vunpack.c.0.s8 %v5386
      %v5388 = vlaneseq
      %v5389 = vshrl.u32 %v5388, 7
      %v5390 = vsub.s32 %v5387, %v5389
      %v5391 = vrot.slane %v5369, %v5390
      %v5393 = vunpack.c.l.s4 1966171168
      %v5394 = vunpack.c.0.s8 %v5393
      %v5395 = vlaneseq
      %v5396 = vshrl.u32 %v5395, 7
      %v5397 = vsub.s32 %v5394, %v5396
      %v5398 = vrot.slane %v5370, %v5397
      %v5399 = vcombine.high %v5377, %v5377
      %v5400 = vcombine.high %v5384, %v5384
      %v5401 = vcombine.high %v5391, %v5391
      %v5402 = vcombine.high %v361, %v361
      %v5404 = vunpack.c.l.s4 1966171168
      %v5405 = vunpack.c.0.s8 %v5404
      %v5406 = vlaneseq
      %v5407 = vshrl.u32 %v5406, 7
      %v5408 = vsub.s32 %v5405, %v5407
      %v5409 = vrot.slane %v361, %v5408
      %v5411 = vunpack.c.l.s4 1966171168
      %v5412 = vunpack.c.0.s8 %v5411
      %v5413 = vlaneseq
      %v5414 = vshrl.u32 %v5413, 7
      %v5415 = vsub.s32 %v5412, %v5414
      %v5416 = vrot.slane %v5402, %v5415
      %v5417 = vcombine.high %v5409, %v5409
      %v5418 = vcombine.high %v5416, %v5416
      %v5420 = vunpack.c.l.s4 1966171168
      %v5421 = vunpack.c.0.s8 %v5420
      %v5422 = vlaneseq
      %v5423 = vshrl.u32 %v5422, 7
      %v5424 = vsub.s32 %v5421, %v5423
      %v5425 = vrot.slane %v5409, %v5424
      %v5427 = vunpack.c.l.s4 1966171168
      %v5428 = vunpack.c.0.s8 %v5427
      %v5429 = vlaneseq
      %v5430 = vshrl.u32 %v5429, 7
      %v5431 = vsub.s32 %v5428, %v5430
      %v5432 = vrot.slane %v5416, %v5431
      %v5434 = vunpack.c.l.s4 1966171168
      %v5435 = vunpack.c.0.s8 %v5434
      %v5436 = vlaneseq
      %v5437 = vshrl.u32 %v5436, 7
      %v5438 = vsub.s32 %v5435, %v5437
      %v5439 = vrot.slane %v5417, %v5438
      %v5441 = vunpack.c.l.s4 1966171168
      %v5442 = vunpack.c.0.s8 %v5441
      %v5443 = vlaneseq
      %v5444 = vshrl.u32 %v5443, 7
      %v5445 = vsub.s32 %v5442, %v5444
      %v5446 = vrot.slane %v5418, %v5445
      %v5447 = vcombine.high %v5425, %v5425
      %v5448 = vcombine.high %v5432, %v5432
      %v5449 = vcombine.high %v5439, %v5439
      %v5450 = vld [vmem:[%s6] sm:$0xf]
      %v5451 = vld [vmem:[%s6 + $0x4] sm:$0xf]
      %v5452 = vcombine.low %v5137, %v5151
      %v5453 = vcombine.low %v5159, %v5161
      %v5454 = vcombine.low %v5144, %v5158
      %v5455 = vcombine.low %v5160, %v5185
      %v5457 = vunpack.c.l.s4 1966171168
      %v5458 = vunpack.c.0.s8 %v5457
      %v5459 = vlaneseq
      %v5460 = vshrl.u32 %v5459, 7
      %v5461 = vsub.s32 %v5458, %v5460
      %v5462 = vrot.slane %v5452, %v5461
      %v5464 = vunpack.c.l.s4 1966171168
      %v5465 = vunpack.c.0.s8 %v5464
      %v5466 = vlaneseq
      %v5467 = vshrl.u32 %v5466, 7
      %v5468 = vsub.s32 %v5465, %v5467
      %v5469 = vrot.slane %v5453, %v5468
      %v5471 = vunpack.c.l.s4 1966171168
      %v5472 = vunpack.c.0.s8 %v5471
      %v5473 = vlaneseq
      %v5474 = vshrl.u32 %v5473, 7
      %v5475 = vsub.s32 %v5472, %v5474
      %v5476 = vrot.slane %v5454, %v5475
      %v5478 = vunpack.c.l.s4 1966171168
      %v5479 = vunpack.c.0.s8 %v5478
      %v5480 = vlaneseq
      %v5481 = vshrl.u32 %v5480, 7
      %v5482 = vsub.s32 %v5479, %v5481
      %v5483 = vrot.slane %v5455, %v5482
      %v5484 = vcombine.low %v5462, %v5469
      %v5485 = vcombine.low %v5476, %v5483
      %v5487 = vunpack.c.l.s4 1966171168
      %v5488 = vunpack.c.0.s8 %v5487
      %v5489 = vlaneseq
      %v5490 = vshrl.u32 %v5489, 7
      %v5491 = vsub.s32 %v5488, %v5490
      %v5492 = vrot.slane %v5484, %v5491
      %v5494 = vunpack.c.l.s4 1966171168
      %v5495 = vunpack.c.0.s8 %v5494
      %v5496 = vlaneseq
      %v5497 = vshrl.u32 %v5496, 7
      %v5498 = vsub.s32 %v5495, %v5497
      %v5499 = vrot.slane %v5485, %v5498
      %v5500 = vcombine.low %v5492, %v5499
      %v5501 = vcombine.low %v5199, %v5207
      %v5502 = vcombine.low %v5209, %v5192
      %v5503 = vcombine.low %v5206, %v5208
      %v5504 = vcombine.low %v5233, %v5247
      %v5506 = vunpack.c.l.s4 1966171168
      %v5507 = vunpack.c.0.s8 %v5506
      %v5508 = vlaneseq
      %v5509 = vshrl.u32 %v5508, 7
      %v5510 = vsub.s32 %v5507, %v5509
      %v5511 = vrot.slane %v5501, %v5510
      %v5513 = vunpack.c.l.s4 1966171168
      %v5514 = vunpack.c.0.s8 %v5513
      %v5515 = vlaneseq
      %v5516 = vshrl.u32 %v5515, 7
      %v5517 = vsub.s32 %v5514, %v5516
      %v5518 = vrot.slane %v5502, %v5517
      %v5520 = vunpack.c.l.s4 1966171168
      %v5521 = vunpack.c.0.s8 %v5520
      %v5522 = vlaneseq
      %v5523 = vshrl.u32 %v5522, 7
      %v5524 = vsub.s32 %v5521, %v5523
      %v5525 = vrot.slane %v5503, %v5524
      %v5527 = vunpack.c.l.s4 1966171168
      %v5528 = vunpack.c.0.s8 %v5527
      %v5529 = vlaneseq
      %v5530 = vshrl.u32 %v5529, 7
      %v5531 = vsub.s32 %v5528, %v5530
      %v5532 = vrot.slane %v5504, %v5531
      %v5533 = vcombine.low %v5511, %v5518
      %v5534 = vcombine.low %v5525, %v5532
      %v5536 = vunpack.c.l.s4 1966171168
      %v5537 = vunpack.c.0.s8 %v5536
      %v5538 = vlaneseq
      %v5539 = vshrl.u32 %v5538, 7
      %v5540 = vsub.s32 %v5537, %v5539
      %v5541 = vrot.slane %v5533, %v5540
      %v5543 = vunpack.c.l.s4 1966171168
      %v5544 = vunpack.c.0.s8 %v5543
      %v5545 = vlaneseq
      %v5546 = vshrl.u32 %v5545, 7
      %v5547 = vsub.s32 %v5544, %v5546
      %v5548 = vrot.slane %v5534, %v5547
      %v5549 = vcombine.low %v5541, %v5548
      %v5550 = vcombine.low %v5255, %v5257
      %v5551 = vcombine.low %v5240, %v5254
      %v5552 = vcombine.low %v5256, %v5281
      %v5553 = vcombine.low %v5295, %v5303
      %v5555 = vunpack.c.l.s4 1966171168
      %v5556 = vunpack.c.0.s8 %v5555
      %v5557 = vlaneseq
      %v5558 = vshrl.u32 %v5557, 7
      %v5559 = vsub.s32 %v5556, %v5558
      %v5560 = vrot.slane %v5550, %v5559
      %v5562 = vunpack.c.l.s4 1966171168
      %v5563 = vunpack.c.0.s8 %v5562
      %v5564 = vlaneseq
      %v5565 = vshrl.u32 %v5564, 7
      %v5566 = vsub.s32 %v5563, %v5565
      %v5567 = vrot.slane %v5551, %v5566
      %v5569 = vunpack.c.l.s4 1966171168
      %v5570 = vunpack.c.0.s8 %v5569
      %v5571 = vlaneseq
      %v5572 = vshrl.u32 %v5571, 7
      %v5573 = vsub.s32 %v5570, %v5572
      %v5574 = vrot.slane %v5552, %v5573
      %v5576 = vunpack.c.l.s4 1966171168
      %v5577 = vunpack.c.0.s8 %v5576
      %v5578 = vlaneseq
      %v5579 = vshrl.u32 %v5578, 7
      %v5580 = vsub.s32 %v5577, %v5579
      %v5581 = vrot.slane %v5553, %v5580
      %v5582 = vcombine.low %v5560, %v5567
      %v5583 = vcombine.low %v5574, %v5581
      %v5585 = vunpack.c.l.s4 1966171168
      %v5586 = vunpack.c.0.s8 %v5585
      %v5587 = vlaneseq
      %v5588 = vshrl.u32 %v5587, 7
      %v5589 = vsub.s32 %v5586, %v5588
      %v5590 = vrot.slane %v5582, %v5589
      %v5592 = vunpack.c.l.s4 1966171168
      %v5593 = vunpack.c.0.s8 %v5592
      %v5594 = vlaneseq
      %v5595 = vshrl.u32 %v5594, 7
      %v5596 = vsub.s32 %v5593, %v5595
      %v5597 = vrot.slane %v5583, %v5596
      %v5598 = vcombine.low %v5590, %v5597
      %v5599 = vcombine.low %v5305, %v5288
      %v5600 = vcombine.low %v5302, %v5304
      %v5601 = vcombine.low %v5329, %v5343
      %v5602 = vcombine.low %v5351, %v5353
      %v5604 = vunpack.c.l.s4 1966171168
      %v5605 = vunpack.c.0.s8 %v5604
      %v5606 = vlaneseq
      %v5607 = vshrl.u32 %v5606, 7
      %v5608 = vsub.s32 %v5605, %v5607
      %v5609 = vrot.slane %v5599, %v5608
      %v5611 = vunpack.c.l.s4 1966171168
      %v5612 = vunpack.c.0.s8 %v5611
      %v5613 = vlaneseq
      %v5614 = vshrl.u32 %v5613, 7
      %v5615 = vsub.s32 %v5612, %v5614
      %v5616 = vrot.slane %v5600, %v5615
      %v5618 = vunpack.c.l.s4 1966171168
      %v5619 = vunpack.c.0.s8 %v5618
      %v5620 = vlaneseq
      %v5621 = vshrl.u32 %v5620, 7
      %v5622 = vsub.s32 %v5619, %v5621
      %v5623 = vrot.slane %v5601, %v5622
      %v5625 = vunpack.c.l.s4 1966171168
      %v5626 = vunpack.c.0.s8 %v5625
      %v5627 = vlaneseq
      %v5628 = vshrl.u32 %v5627, 7
      %v5629 = vsub.s32 %v5626, %v5628
      %v5630 = vrot.slane %v5602, %v5629
      %v5631 = vcombine.low %v5609, %v5616
      %v5632 = vcombine.low %v5623, %v5630
      %v5634 = vunpack.c.l.s4 1966171168
      %v5635 = vunpack.c.0.s8 %v5634
      %v5636 = vlaneseq
      %v5637 = vshrl.u32 %v5636, 7
      %v5638 = vsub.s32 %v5635, %v5637
      %v5639 = vrot.slane %v5631, %v5638
      %v5641 = vunpack.c.l.s4 1966171168
      %v5642 = vunpack.c.0.s8 %v5641
      %v5643 = vlaneseq
      %v5644 = vshrl.u32 %v5643, 7
      %v5645 = vsub.s32 %v5642, %v5644
      %v5646 = vrot.slane %v5632, %v5645
      %v5647 = vcombine.low %v5639, %v5646
      %v5648 = vcombine.low %v5336, %v5350
      %v5649 = vcombine.low %v5352, %v5377
      %v5650 = vcombine.low %v5391, %v5399
      %v5651 = vcombine.low %v5401, %v5384
      %v5653 = vunpack.c.l.s4 1966171168
      %v5654 = vunpack.c.0.s8 %v5653
      %v5655 = vlaneseq
      %v5656 = vshrl.u32 %v5655, 7
      %v5657 = vsub.s32 %v5654, %v5656
      %v5658 = vrot.slane %v5648, %v5657
      %v5660 = vunpack.c.l.s4 1966171168
      %v5661 = vunpack.c.0.s8 %v5660
      %v5662 = vlaneseq
      %v5663 = vshrl.u32 %v5662, 7
      %v5664 = vsub.s32 %v5661, %v5663
      %v5665 = vrot.slane %v5649, %v5664
      %v5667 = vunpack.c.l.s4 1966171168
      %v5668 = vunpack.c.0.s8 %v5667
      %v5669 = vlaneseq
      %v5670 = vshrl.u32 %v5669, 7
      %v5671 = vsub.s32 %v5668, %v5670
      %v5672 = vrot.slane %v5650, %v5671
      %v5674 = vunpack.c.l.s4 1966171168
      %v5675 = vunpack.c.0.s8 %v5674
      %v5676 = vlaneseq
      %v5677 = vshrl.u32 %v5676, 7
      %v5678 = vsub.s32 %v5675, %v5677
      %v5679 = vrot.slane %v5651, %v5678
      %v5680 = vcombine.low %v5658, %v5665
      %v5681 = vcombine.low %v5672, %v5679
      %v5683 = vunpack.c.l.s4 1966171168
      %v5684 = vunpack.c.0.s8 %v5683
      %v5685 = vlaneseq
      %v5686 = vshrl.u32 %v5685, 7
      %v5687 = vsub.s32 %v5684, %v5686
      %v5688 = vrot.slane %v5680, %v5687
      %v5690 = vunpack.c.l.s4 1966171168
      %v5691 = vunpack.c.0.s8 %v5690
      %v5692 = vlaneseq
      %v5693 = vshrl.u32 %v5692, 7
      %v5694 = vsub.s32 %v5691, %v5693
      %v5695 = vrot.slane %v5681, %v5694
      %v5696 = vcombine.low %v5688, %v5695
      %v5697 = vcombine.low %v5398, %v5400
      %v5698 = vcombine.low %v5425, %v5439
      %v5699 = vcombine.low %v5447, %v5449
      %v5700 = vcombine.low %v5432, %v5446
      %v5702 = vunpack.c.l.s4 1966171168
      %v5703 = vunpack.c.0.s8 %v5702
      %v5704 = vlaneseq
      %v5705 = vshrl.u32 %v5704, 7
      %v5706 = vsub.s32 %v5703, %v5705
      %v5707 = vrot.slane %v5697, %v5706
      %v5709 = vunpack.c.l.s4 1966171168
      %v5710 = vunpack.c.0.s8 %v5709
      %v5711 = vlaneseq
      %v5712 = vshrl.u32 %v5711, 7
      %v5713 = vsub.s32 %v5710, %v5712
      %v5714 = vrot.slane %v5698, %v5713
      %v5716 = vunpack.c.l.s4 1966171168
      %v5717 = vunpack.c.0.s8 %v5716
      %v5718 = vlaneseq
      %v5719 = vshrl.u32 %v5718, 7
      %v5720 = vsub.s32 %v5717, %v5719
      %v5721 = vrot.slane %v5699, %v5720
      %v5723 = vunpack.c.l.s4 1966171168
      %v5724 = vunpack.c.0.s8 %v5723
      %v5725 = vlaneseq
      %v5726 = vshrl.u32 %v5725, 7
      %v5727 = vsub.s32 %v5724, %v5726
      %v5728 = vrot.slane %v5700, %v5727
      %v5729 = vcombine.low %v5707, %v5714
      %v5730 = vcombine.low %v5721, %v5728
      %v5732 = vunpack.c.l.s4 1966171168
      %v5733 = vunpack.c.0.s8 %v5732
      %v5734 = vlaneseq
      %v5735 = vshrl.u32 %v5734, 7
      %v5736 = vsub.s32 %v5733, %v5735
      %v5737 = vrot.slane %v5729, %v5736
      %v5739 = vunpack.c.l.s4 1966171168
      %v5740 = vunpack.c.0.s8 %v5739
      %v5741 = vlaneseq
      %v5742 = vshrl.u32 %v5741, 7
      %v5743 = vsub.s32 %v5740, %v5742
      %v5744 = vrot.slane %v5730, %v5743
      %v5745 = vcombine.low %v5737, %v5744
      %v5747 = vunpack.c.l.s4 1966171168
      %v5748 = vunpack.c.0.s8 %v5747
      %v5749 = vlaneseq
      %v5750 = vshrl.u32 %v5749, 7
      %v5751 = vsub.s32 %v5748, %v5750
      %v5752 = vrot.slane %v5448, %v5751
      %v5754 = vunpack.c.l.s4 1966171168
      %v5755 = vunpack.c.0.s8 %v5754
      %v5756 = vlaneseq
      %v5757 = vshrl.u32 %v5756, 7
      %v5758 = vsub.s32 %v5755, %v5757
      %v5759 = vrot.slane %v5752, %v5758
      %v5762 = vunpack.c.l.b16 %v5450
      %v5763 = vunpack.c.l.b16 %v5451
      %v5764 = vpack.c.b16 %v5763, %v5762
      %v5767 = vsel %vm379, %v5500, 0
      %v5770 = vsel %vm379, %v5549, 0
      %v5773 = vsel %vm379, %v5598, 0
      %v5776 = vsel %vm379, %v5647, 0
      %v5779 = vsel %vm379, %v5696, 0
      %v5782 = vsel %vm379, %v5745, 0
      %v5785 = vsel %vm379, %v5759, 0
      %5787 = vmatprep.subr.bf16.mxu0 0
      %5788 = vmatpush1.bf16.msra.mxu0 %v5764
      %5789 = vmatprep.subr.bf16.mxu0 0
      %5790 = vmatpush1.bf16.msra.mxu0 0
      %5791 = vmatprep.subr.bf16.mxu0 0
      %5792 = vmatpush1.bf16.msra.mxu0 0
      %5793 = vmatprep.subr.bf16.mxu0 0
      %5794 = vmatpush1.bf16.msra.mxu0 0
      %5795 = vmatprep.subr.bf16.mxu0 0
      %5796 = vmatpush1.bf16.msra.mxu0 0
      %5797 = vmatprep.subr.bf16.mxu0 0
      %5798 = vmatpush1.bf16.msra.mxu0 0
      %5799 = vmatprep.subr.bf16.mxu0 0
      %5800 = vmatpush1.bf16.msra.mxu0 0
      %5801 = vmatprep.subr.bf16.mxu0 0
      %5802 = vmatpush1.bf16.msra.mxu0 0
      %5803 = vmatprep.subr.bf16.mxu0 0
      %5804 = vmatpush1.bf16.msra.mxu0 0
      %5805 = vmatprep.subr.bf16.mxu0 0
      %5806 = vmatpush1.bf16.msra.mxu0 0
      %5807 = vmatprep.subr.bf16.mxu0 0
      %5808 = vmatpush1.bf16.msra.mxu0 0
      %5809 = vmatprep.subr.bf16.mxu0 0
      %5810 = vmatpush1.bf16.msra.mxu0 0
      %5811 = vmatprep.subr.bf16.mxu0 0
      %5812 = vmatpush1.bf16.msra.mxu0 0
      %5813 = vmatprep.subr.bf16.mxu0 0
      %5814 = vmatpush1.bf16.msra.mxu0 0
      %5815 = vmatprep.subr.bf16.mxu0 0
      %5816 = vmatpush1.bf16.msra.mxu0 0
      %5817 = vmatprep.subr.bf16.mxu0 0
      %5818 = vmatpush1.bf16.msra.mxu0 0
      %5819 = vmatprep.mubr.bf16.mxu0 0
      %5820 = vmatmul.mubr.bf16.gmra.mrb[0].mxu0 %v5767
      %v5821 = vpop.f32.mrb[0].mxu0
      %v5822 = vadd.f32 0.0, %v5821
      %v5823 = vpop.f32.mrb[0].mxu0
      %v5824 = vpop.f32.mrb[0].mxu0
      %v5825 = vadd.f32 0.0, %v5824
      %v5826 = vpop.f32.mrb[0].mxu0
      %5827 = vmatprep.mubr.bf16.mxu0 0
      %5828 = vmatmul.mubr.bf16.gmra.mrb[0].mxu0 %v5770
      %v5829 = vpop.f32.mrb[0].mxu0
      %v5830 = vadd.f32 0.0, %v5829
      %v5831 = vpop.f32.mrb[0].mxu0
      %v5832 = vpop.f32.mrb[0].mxu0
      %v5833 = vadd.f32 0.0, %v5832
      %v5834 = vpop.f32.mrb[0].mxu0
      %5835 = vmatprep.mubr.bf16.mxu0 0
      %5836 = vmatmul.mubr.bf16.gmra.mrb[0].mxu0 %v5773
      %v5837 = vpop.f32.mrb[0].mxu0
      %v5838 = vadd.f32 0.0, %v5837
      %v5839 = vpop.f32.mrb[0].mxu0
      %v5840 = vpop.f32.mrb[0].mxu0
      %v5841 = vadd.f32 0.0, %v5840
      %v5842 = vpop.f32.mrb[0].mxu0
      %5843 = vmatprep.mubr.bf16.mxu0 0
      %5844 = vmatmul.mubr.bf16.gmra.mrb[0].mxu0 %v5776
      %v5845 = vpop.f32.mrb[0].mxu0
      %v5846 = vadd.f32 0.0, %v5845
      %v5847 = vpop.f32.mrb[0].mxu0
      %v5848 = vpop.f32.mrb[0].mxu0
      %v5849 = vadd.f32 0.0, %v5848
      %v5850 = vpop.f32.mrb[0].mxu0
      %5851 = vmatprep.mubr.bf16.mxu0 0
      %5852 = vmatmul.mubr.bf16.gmra.mrb[0].mxu0 %v5779
      %v5853 = vpop.f32.mrb[0].mxu0
      %v5854 = vadd.f32 0.0, %v5853
      %v5855 = vpop.f32.mrb[0].mxu0
      %v5856 = vpop.f32.mrb[0].mxu0
      %v5857 = vadd.f32 0.0, %v5856
      %v5858 = vpop.f32.mrb[0].mxu0
      %5859 = vmatprep.mubr.bf16.mxu0 0
      %5860 = vmatmul.mubr.bf16.gmra.mrb[0].mxu0 %v5782
      %v5861 = vpop.f32.mrb[0].mxu0
      %v5862 = vadd.f32 0.0, %v5861
      %v5863 = vpop.f32.mrb[0].mxu0
      %v5864 = vpop.f32.mrb[0].mxu0
      %v5865 = vadd.f32 0.0, %v5864
      %v5866 = vpop.f32.mrb[0].mxu0
      %5867 = vmatprep.mubr.bf16.mxu0 0
      %5868 = vmatmul.mubr.bf16.gmra.mrb[0].mxu0 %v5785
      %v5869 = vpop.f32.mrb[0].mxu0
      %v5870 = vadd.f32 0.0, %v5869
      %v5871 = vpop.f32.mrb[0].mxu0
      %v5872 = vpop.f32.mrb[0].mxu0
      %v5873 = vpop.f32.mrb[0].mxu0
      %5874 = vdwg.mxu0
      %v5891 = vunpack.c.l.b16 %v5091
      %v5892 = vunpack.c.l.b16 %v5092
      %v5893 = vunpack.c.l.b16 %v5093
      %v5894 = vunpack.c.l.b16 %v5094
      %v5895 = vunpack.c.l.b16 %v5095
      %v5896 = vunpack.c.l.b16 %v5096
      %v5897 = vunpack.c.l.b16 %v5097
      %v5898 = vunpack.c.l.b16 %v5098
      %v5899 = vunpack.c.l.b16 %v5099
      %v5900 = vunpack.c.l.b16 %v5100
      %v5901 = vunpack.c.l.b16 %v5101
      %v5902 = vunpack.c.l.b16 %v5102
      %v5903 = vunpack.c.l.b16 %v5103
      %v5904 = vunpack.c.l.b16 %v5104
      %v5905 = vunpack.c.l.b16 %v5105
      %v5906 = vunpack.c.l.b16 %v5106
      %v5907 = vpack.c.b16 %v5892, %v5891
      %v5908 = vpack.c.b16 %v5894, %v5893
      %v5909 = vpack.c.b16 %v5896, %v5895
      %v5910 = vpack.c.b16 %v5898, %v5897
      %v5911 = vpack.c.b16 %v5900, %v5899
      %v5912 = vpack.c.b16 %v5902, %v5901
      %v5913 = vpack.c.b16 %v5904, %v5903
      %v5914 = vpack.c.b16 %v5906, %v5905
      %5923 = vmatprep.subr.bf16.mxu0 0
      %5924 = vmatpush1.bf16.msra.mxu0 %v5907
      %5925 = vmatprep.subr.bf16.mxu0 0
      %5926 = vmatpush1.bf16.msra.mxu0 %v5908
      %5927 = vmatprep.subr.bf16.mxu0 0
      %5928 = vmatpush1.bf16.msra.mxu0 %v5909
      %5929 = vmatprep.subr.bf16.mxu0 0
      %5930 = vmatpush1.bf16.msra.mxu0 %v5910
      %5931 = vmatprep.subr.bf16.mxu0 0
      %5932 = vmatpush1.bf16.msra.mxu0 %v5911
      %5933 = vmatprep.subr.bf16.mxu0 0
      %5934 = vmatpush1.bf16.msra.mxu0 %v5912
      %5935 = vmatprep.subr.bf16.mxu0 0
      %5936 = vmatpush1.bf16.msra.mxu0 %v5913
      %5937 = vmatprep.subr.bf16.mxu0 0
      %5938 = vmatpush1.bf16.msra.mxu0 %v5914
      %5939 = vmatprep.subr.bf16.mxu0 0
      %5940 = vmatpush1.bf16.msra.mxu0 0
      %5941 = vmatprep.subr.bf16.mxu0 0
      %5942 = vmatpush1.bf16.msra.mxu0 0
      %5943 = vmatprep.subr.bf16.mxu0 0
      %5944 = vmatpush1.bf16.msra.mxu0 0
      %5945 = vmatprep.subr.bf16.mxu0 0
      %5946 = vmatpush1.bf16.msra.mxu0 0
      %5947 = vmatprep.subr.bf16.mxu0 0
      %5948 = vmatpush1.bf16.msra.mxu0 0
      %5949 = vmatprep.subr.bf16.mxu0 0
      %5950 = vmatpush1.bf16.msra.mxu0 0
      %5951 = vmatprep.subr.bf16.mxu0 0
      %5952 = vmatpush1.bf16.msra.mxu0 0
      %5953 = vmatprep.subr.bf16.mxu0 0
      %5954 = vmatpush1.bf16.msra.mxu0 0
      %5955 = vmatprep.mubr.bf16.mxu0 0
      %5956 = vmatmul.mubr.bf16.gmra.mrb[0].mxu0 %v5084
      %v5957 = vpop.f32.mrb[0].mxu0
      %v5958 = vadd.f32 %v5822, %v5957
      %v5959 = vpop.f32.mrb[0].mxu0
      %v5960 = vpop.f32.mrb[0].mxu0
      %v5961 = vadd.f32 %v5825, %v5960
      %v5962 = vpop.f32.mrb[0].mxu0
      %5963 = vmatprep.mubr.bf16.mxu0 0
      %5964 = vmatmul.mubr.bf16.gmra.mrb[0].mxu0 %v5085
      %v5965 = vpop.f32.mrb[0].mxu0
      %v5966 = vadd.f32 %v5830, %v5965
      %v5967 = vpop.f32.mrb[0].mxu0
      %v5968 = vpop.f32.mrb[0].mxu0
      %v5969 = vadd.f32 %v5833, %v5968
      %v5970 = vpop.f32.mrb[0].mxu0
      %5971 = vmatprep.mubr.bf16.mxu0 0
      %5972 = vmatmul.mubr.bf16.gmra.mrb[0].mxu0 %v5086
      %v5973 = vpop.f32.mrb[0].mxu0
      %v5974 = vadd.f32 %v5838, %v5973
      %v5975 = vpop.f32.mrb[0].mxu0
      %v5976 = vpop.f32.mrb[0].mxu0
      %v5977 = vadd.f32 %v5841, %v5976
      %v5978 = vpop.f32.mrb[0].mxu0
      %5979 = vmatprep.mubr.bf16.mxu0 0
      %5980 = vmatmul.mubr.bf16.gmra.mrb[0].mxu0 %v5087
      %v5981 = vpop.f32.mrb[0].mxu0
      %v5982 = vadd.f32 %v5846, %v5981
      %v5983 = vpop.f32.mrb[0].mxu0
      %v5984 = vpop.f32.mrb[0].mxu0
      %v5985 = vadd.f32 %v5849, %v5984
      %v5986 = vpop.f32.mrb[0].mxu0
      %5987 = vmatprep.mubr.bf16.mxu0 0
      %5988 = vmatmul.mubr.bf16.gmra.mrb[0].mxu0 %v5088
      %v5989 = vpop.f32.mrb[0].mxu0
      %v5990 = vadd.f32 %v5854, %v5989
      %v5991 = vpop.f32.mrb[0].mxu0
      %v5992 = vpop.f32.mrb[0].mxu0
      %v5993 = vadd.f32 %v5857, %v5992
      %v5994 = vpop.f32.mrb[0].mxu0
      %5995 = vmatprep.mubr.bf16.mxu0 0
      %5996 = vmatmul.mubr.bf16.gmra.mrb[0].mxu0 %v5089
      %v5997 = vpop.f32.mrb[0].mxu0
      %v5998 = vadd.f32 %v5862, %v5997
      %v5999 = vpop.f32.mrb[0].mxu0
      %v6000 = vpop.f32.mrb[0].mxu0
      %v6001 = vadd.f32 %v5865, %v6000
      %v6002 = vpop.f32.mrb[0].mxu0
      %6003 = vmatprep.mubr.bf16.mxu0 0
      %6004 = vmatmul.mubr.bf16.gmra.mrb[0].mxu0 %v5090
      %v6005 = vpop.f32.mrb[0].mxu0
      %v6006 = vadd.f32 %v5870, %v6005
      %v6007 = vpop.f32.mrb[0].mxu0
      %v6008 = vpop.f32.mrb[0].mxu0
      %v6009 = vpop.f32.mrb[0].mxu0
      %6010 = vdwg.mxu0
      %v6011 = vcombine.high %v5158, %v5158
      %v6012 = vcombine.high %v5206, %v5206
      %v6013 = vcombine.high %v5254, %v5254
      %v6014 = vcombine.high %v5302, %v5302
      %v6015 = vcombine.high %v5350, %v5350
      %v6016 = vcombine.high %v5398, %v5398
      %v6017 = vcombine.high %v5446, %v5446
      %v6019 = vshrl.u32 %v5137, 16
      %v6021 = vrot.slane %v6019, 7
      %v6022 = vrot.slane %v6021, 1
      %v6024 = vshll.u32 %v5151, 16
      %v6026 = vsel %vm919, %v6022, %v6024
      %v6027 = vshrl.u32 %v5151, 16
      %v6029 = vrot.slane %v6027, 7
      %v6030 = vrot.slane %v6029, 1
      %v6032 = vshll.u32 %v5159, 16
      %v6034 = vsel %vm919, %v6030, %v6032
      %v6035 = vshrl.u32 %v5159, 16
      %v6037 = vrot.slane %v6035, 7
      %v6038 = vrot.slane %v6037, 1
      %v6040 = vshll.u32 %v5161, 16
      %v6042 = vsel %vm919, %v6038, %v6040
      %v6043 = vshrl.u32 %v5161, 16
      %v6045 = vrot.slane %v6043, 7
      %v6046 = vrot.slane %v6045, 1
      %v6048 = vshll.u32 %v5144, 16
      %v6050 = vsel %vm919, %v6046, %v6048
      %v6051 = vshrl.u32 %v5144, 16
      %v6053 = vrot.slane %v6051, 7
      %v6054 = vrot.slane %v6053, 1
      %v6056 = vshll.u32 %v5158, 16
      %v6058 = vsel %vm919, %v6054, %v6056
      %v6059 = vshrl.u32 %v5158, 16
      %v6061 = vrot.slane %v6059, 7
      %v6062 = vrot.slane %v6061, 1
      %v6064 = vshll.u32 %v5160, 16
      %v6066 = vsel %vm919, %v6062, %v6064
      %v6067 = vshrl.u32 %v5160, 16
      %v6069 = vrot.slane %v6067, 7
      %v6070 = vrot.slane %v6069, 1
      %v6072 = vshll.u32 %v6011, 16
      %v6074 = vsel %vm919, %v6070, %v6072
      %v6076 = vshrl.u32 %v5185, 16
      %v6078 = vrot.slane %v6076, 7
      %v6079 = vrot.slane %v6078, 1
      %v6081 = vshll.u32 %v5199, 16
      %v6083 = vsel %vm919, %v6079, %v6081
      %v6084 = vshrl.u32 %v5199, 16
      %v6086 = vrot.slane %v6084, 7
      %v6087 = vrot.slane %v6086, 1
      %v6089 = vshll.u32 %v5207, 16
      %v6091 = vsel %vm919, %v6087, %v6089
      %v6092 = vshrl.u32 %v5207, 16
      %v6094 = vrot.slane %v6092, 7
      %v6095 = vrot.slane %v6094, 1
      %v6097 = vshll.u32 %v5209, 16
      %v6099 = vsel %vm919, %v6095, %v6097
      %v6100 = vshrl.u32 %v5209, 16
      %v6102 = vrot.slane %v6100, 7
      %v6103 = vrot.slane %v6102, 1
      %v6105 = vshll.u32 %v5192, 16
      %v6107 = vsel %vm919, %v6103, %v6105
      %v6108 = vshrl.u32 %v5192, 16
      %v6110 = vrot.slane %v6108, 7
      %v6111 = vrot.slane %v6110, 1
      %v6113 = vshll.u32 %v5206, 16
      %v6115 = vsel %vm919, %v6111, %v6113
      %v6116 = vshrl.u32 %v5206, 16
      %v6118 = vrot.slane %v6116, 7
      %v6119 = vrot.slane %v6118, 1
      %v6121 = vshll.u32 %v5208, 16
      %v6123 = vsel %vm919, %v6119, %v6121
      %v6124 = vshrl.u32 %v5208, 16
      %v6126 = vrot.slane %v6124, 7
      %v6127 = vrot.slane %v6126, 1
      %v6129 = vshll.u32 %v6012, 16
      %v6131 = vsel %vm919, %v6127, %v6129
      %v6133 = vshrl.u32 %v5233, 16
      %v6135 = vrot.slane %v6133, 7
      %v6136 = vrot.slane %v6135, 1
      %v6138 = vshll.u32 %v5247, 16
      %v6140 = vsel %vm919, %v6136, %v6138
      %v6141 = vshrl.u32 %v5247, 16
      %v6143 = vrot.slane %v6141, 7
      %v6144 = vrot.slane %v6143, 1
      %v6146 = vshll.u32 %v5255, 16
      %v6148 = vsel %vm919, %v6144, %v6146
      %v6149 = vshrl.u32 %v5255, 16
      %v6151 = vrot.slane %v6149, 7
      %v6152 = vrot.slane %v6151, 1
      %v6154 = vshll.u32 %v5257, 16
      %v6156 = vsel %vm919, %v6152, %v6154
      %v6157 = vshrl.u32 %v5257, 16
      %v6159 = vrot.slane %v6157, 7
      %v6160 = vrot.slane %v6159, 1
      %v6162 = vshll.u32 %v5240, 16
      %v6164 = vsel %vm919, %v6160, %v6162
      %v6165 = vshrl.u32 %v5240, 16
      %v6167 = vrot.slane %v6165, 7
      %v6168 = vrot.slane %v6167, 1
      %v6170 = vshll.u32 %v5254, 16
      %v6172 = vsel %vm919, %v6168, %v6170
      %v6173 = vshrl.u32 %v5254, 16
      %v6175 = vrot.slane %v6173, 7
      %v6176 = vrot.slane %v6175, 1
      %v6178 = vshll.u32 %v5256, 16
      %v6180 = vsel %vm919, %v6176, %v6178
      %v6181 = vshrl.u32 %v5256, 16
      %v6183 = vrot.slane %v6181, 7
      %v6184 = vrot.slane %v6183, 1
      %v6186 = vshll.u32 %v6013, 16
      %v6188 = vsel %vm919, %v6184, %v6186
      %v6190 = vshrl.u32 %v5281, 16
      %v6192 = vrot.slane %v6190, 7
      %v6193 = vrot.slane %v6192, 1
      %v6195 = vshll.u32 %v5295, 16
      %v6197 = vsel %vm919, %v6193, %v6195
      %v6198 = vshrl.u32 %v5295, 16
      %v6200 = vrot.slane %v6198, 7
      %v6201 = vrot.slane %v6200, 1
      %v6203 = vshll.u32 %v5303, 16
      %v6205 = vsel %vm919, %v6201, %v6203
      %v6206 = vshrl.u32 %v5303, 16
      %v6208 = vrot.slane %v6206, 7
      %v6209 = vrot.slane %v6208, 1
      %v6211 = vshll.u32 %v5305, 16
      %v6213 = vsel %vm919, %v6209, %v6211
      %v6214 = vshrl.u32 %v5305, 16
      %v6216 = vrot.slane %v6214, 7
      %v6217 = vrot.slane %v6216, 1
      %v6219 = vshll.u32 %v5288, 16
      %v6221 = vsel %vm919, %v6217, %v6219
      %v6222 = vshrl.u32 %v5288, 16
      %v6224 = vrot.slane %v6222, 7
      %v6225 = vrot.slane %v6224, 1
      %v6227 = vshll.u32 %v5302, 16
      %v6229 = vsel %vm919, %v6225, %v6227
      %v6230 = vshrl.u32 %v5302, 16
      %v6232 = vrot.slane %v6230, 7
      %v6233 = vrot.slane %v6232, 1
      %v6235 = vshll.u32 %v5304, 16
      %v6237 = vsel %vm919, %v6233, %v6235
      %v6238 = vshrl.u32 %v5304, 16
      %v6240 = vrot.slane %v6238, 7
      %v6241 = vrot.slane %v6240, 1
      %v6243 = vshll.u32 %v6014, 16
      %v6245 = vsel %vm919, %v6241, %v6243
      %v6247 = vshrl.u32 %v5329, 16
      %v6249 = vrot.slane %v6247, 7
      %v6250 = vrot.slane %v6249, 1
      %v6252 = vshll.u32 %v5343, 16
      %v6254 = vsel %vm919, %v6250, %v6252
      %v6255 = vshrl.u32 %v5343, 16
      %v6257 = vrot.slane %v6255, 7
      %v6258 = vrot.slane %v6257, 1
      %v6260 = vshll.u32 %v5351, 16
      %v6262 = vsel %vm919, %v6258, %v6260
      %v6263 = vshrl.u32 %v5351, 16
      %v6265 = vrot.slane %v6263, 7
      %v6266 = vrot.slane %v6265, 1
      %v6268 = vshll.u32 %v5353, 16
      %v6270 = vsel %vm919, %v6266, %v6268
      %v6271 = vshrl.u32 %v5353, 16
      %v6273 = vrot.slane %v6271, 7
      %v6274 = vrot.slane %v6273, 1
      %v6276 = vshll.u32 %v5336, 16
      %v6278 = vsel %vm919, %v6274, %v6276
      %v6279 = vshrl.u32 %v5336, 16
      %v6281 = vrot.slane %v6279, 7
      %v6282 = vrot.slane %v6281, 1
      %v6284 = vshll.u32 %v5350, 16
      %v6286 = vsel %vm919, %v6282, %v6284
      %v6287 = vshrl.u32 %v5350, 16
      %v6289 = vrot.slane %v6287, 7
      %v6290 = vrot.slane %v6289, 1
      %v6292 = vshll.u32 %v5352, 16
      %v6294 = vsel %vm919, %v6290, %v6292
      %v6295 = vshrl.u32 %v5352, 16
      %v6297 = vrot.slane %v6295, 7
      %v6298 = vrot.slane %v6297, 1
      %v6300 = vshll.u32 %v6015, 16
      %v6302 = vsel %vm919, %v6298, %v6300
      %v6304 = vshrl.u32 %v5377, 16
      %v6306 = vrot.slane %v6304, 7
      %v6307 = vrot.slane %v6306, 1
      %v6309 = vshll.u32 %v5391, 16
      %v6311 = vsel %vm919, %v6307, %v6309
      %v6312 = vshrl.u32 %v5391, 16
      %v6314 = vrot.slane %v6312, 7
      %v6315 = vrot.slane %v6314, 1
      %v6317 = vshll.u32 %v5399, 16
      %v6319 = vsel %vm919, %v6315, %v6317
      %v6320 = vshrl.u32 %v5399, 16
      %v6322 = vrot.slane %v6320, 7
      %v6323 = vrot.slane %v6322, 1
      %v6325 = vshll.u32 %v5401, 16
      %v6327 = vsel %vm919, %v6323, %v6325
      %v6328 = vshrl.u32 %v5401, 16
      %v6330 = vrot.slane %v6328, 7
      %v6331 = vrot.slane %v6330, 1
      %v6333 = vshll.u32 %v5384, 16
      %v6335 = vsel %vm919, %v6331, %v6333
      %v6336 = vshrl.u32 %v5384, 16
      %v6338 = vrot.slane %v6336, 7
      %v6339 = vrot.slane %v6338, 1
      %v6341 = vshll.u32 %v5398, 16
      %v6343 = vsel %vm919, %v6339, %v6341
      %v6344 = vshrl.u32 %v5398, 16
      %v6346 = vrot.slane %v6344, 7
      %v6347 = vrot.slane %v6346, 1
      %v6349 = vshll.u32 %v5400, 16
      %v6351 = vsel %vm919, %v6347, %v6349
      %v6352 = vshrl.u32 %v5400, 16
      %v6354 = vrot.slane %v6352, 7
      %v6355 = vrot.slane %v6354, 1
      %v6357 = vshll.u32 %v6016, 16
      %v6359 = vsel %vm919, %v6355, %v6357
      %v6361 = vshrl.u32 %v5425, 16
      %v6363 = vrot.slane %v6361, 7
      %v6364 = vrot.slane %v6363, 1
      %v6366 = vshll.u32 %v5439, 16
      %v6368 = vsel %vm919, %v6364, %v6366
      %v6369 = vshrl.u32 %v5439, 16
      %v6371 = vrot.slane %v6369, 7
      %v6372 = vrot.slane %v6371, 1
      %v6374 = vshll.u32 %v5447, 16
      %v6376 = vsel %vm919, %v6372, %v6374
      %v6377 = vshrl.u32 %v5447, 16
      %v6379 = vrot.slane %v6377, 7
      %v6380 = vrot.slane %v6379, 1
      %v6382 = vshll.u32 %v5449, 16
      %v6384 = vsel %vm919, %v6380, %v6382
      %v6385 = vshrl.u32 %v5449, 16
      %v6387 = vrot.slane %v6385, 7
      %v6388 = vrot.slane %v6387, 1
      %v6390 = vshll.u32 %v5432, 16
      %v6392 = vsel %vm919, %v6388, %v6390
      %v6393 = vshrl.u32 %v5432, 16
      %v6395 = vrot.slane %v6393, 7
      %v6396 = vrot.slane %v6395, 1
      %v6398 = vshll.u32 %v5446, 16
      %v6400 = vsel %vm919, %v6396, %v6398
      %v6401 = vshrl.u32 %v5446, 16
      %v6403 = vrot.slane %v6401, 7
      %v6404 = vrot.slane %v6403, 1
      %v6406 = vshll.u32 %v5448, 16
      %v6408 = vsel %vm919, %v6404, %v6406
      %v6409 = vshrl.u32 %v5448, 16
      %v6411 = vrot.slane %v6409, 7
      %v6412 = vrot.slane %v6411, 1
      %v6414 = vshll.u32 %v6017, 16
      %v6416 = vsel %vm919, %v6412, %v6414
      %s6417 = scalar_lea.vmem %s6, 8
      %v6418 = vld [vmem:[%s6417] sm:$0xf]
      %v6419 = vld [vmem:[%s6417 + $0x4] sm:$0xf]
      %v6420 = vcombine.low %v6026, %v6034
      %v6421 = vcombine.low %v6042, %v6050
      %v6422 = vcombine.low %v6058, %v6066
      %v6423 = vcombine.low %v6074, %v6083
      %v6425 = vunpack.c.l.s4 1966171168
      %v6426 = vunpack.c.0.s8 %v6425
      %v6427 = vlaneseq
      %v6428 = vshrl.u32 %v6427, 7
      %v6429 = vsub.s32 %v6426, %v6428
      %v6430 = vrot.slane %v6420, %v6429
      %v6432 = vunpack.c.l.s4 1966171168
      %v6433 = vunpack.c.0.s8 %v6432
      %v6434 = vlaneseq
      %v6435 = vshrl.u32 %v6434, 7
      %v6436 = vsub.s32 %v6433, %v6435
      %v6437 = vrot.slane %v6421, %v6436
      %v6439 = vunpack.c.l.s4 1966171168
      %v6440 = vunpack.c.0.s8 %v6439
      %v6441 = vlaneseq
      %v6442 = vshrl.u32 %v6441, 7
      %v6443 = vsub.s32 %v6440, %v6442
      %v6444 = vrot.slane %v6422, %v6443
      %v6446 = vunpack.c.l.s4 1966171168
      %v6447 = vunpack.c.0.s8 %v6446
      %v6448 = vlaneseq
      %v6449 = vshrl.u32 %v6448, 7
      %v6450 = vsub.s32 %v6447, %v6449
      %v6451 = vrot.slane %v6423, %v6450
      %v6452 = vcombine.low %v6430, %v6437
      %v6453 = vcombine.low %v6444, %v6451
      %v6455 = vunpack.c.l.s4 1966171168
      %v6456 = vunpack.c.0.s8 %v6455
      %v6457 = vlaneseq
      %v6458 = vshrl.u32 %v6457, 7
      %v6459 = vsub.s32 %v6456, %v6458
      %v6460 = vrot.slane %v6452, %v6459
      %v6462 = vunpack.c.l.s4 1966171168
      %v6463 = vunpack.c.0.s8 %v6462
      %v6464 = vlaneseq
      %v6465 = vshrl.u32 %v6464, 7
      %v6466 = vsub.s32 %v6463, %v6465
      %v6467 = vrot.slane %v6453, %v6466
      %v6468 = vcombine.low %v6460, %v6467
      %v6469 = vcombine.low %v6091, %v6099
      %v6470 = vcombine.low %v6107, %v6115
      %v6471 = vcombine.low %v6123, %v6131
      %v6472 = vcombine.low %v6140, %v6148
      %v6474 = vunpack.c.l.s4 1966171168
      %v6475 = vunpack.c.0.s8 %v6474
      %v6476 = vlaneseq
      %v6477 = vshrl.u32 %v6476, 7
      %v6478 = vsub.s32 %v6475, %v6477
      %v6479 = vrot.slane %v6469, %v6478
      %v6481 = vunpack.c.l.s4 1966171168
      %v6482 = vunpack.c.0.s8 %v6481
      %v6483 = vlaneseq
      %v6484 = vshrl.u32 %v6483, 7
      %v6485 = vsub.s32 %v6482, %v6484
      %v6486 = vrot.slane %v6470, %v6485
      %v6488 = vunpack.c.l.s4 1966171168
      %v6489 = vunpack.c.0.s8 %v6488
      %v6490 = vlaneseq
      %v6491 = vshrl.u32 %v6490, 7
      %v6492 = vsub.s32 %v6489, %v6491
      %v6493 = vrot.slane %v6471, %v6492
      %v6495 = vunpack.c.l.s4 1966171168
      %v6496 = vunpack.c.0.s8 %v6495
      %v6497 = vlaneseq
      %v6498 = vshrl.u32 %v6497, 7
      %v6499 = vsub.s32 %v6496, %v6498
      %v6500 = vrot.slane %v6472, %v6499
      %v6501 = vcombine.low %v6479, %v6486
      %v6502 = vcombine.low %v6493, %v6500
      %v6504 = vunpack.c.l.s4 1966171168
      %v6505 = vunpack.c.0.s8 %v6504
      %v6506 = vlaneseq
      %v6507 = vshrl.u32 %v6506, 7
      %v6508 = vsub.s32 %v6505, %v6507
      %v6509 = vrot.slane %v6501, %v6508
      %v6511 = vunpack.c.l.s4 1966171168
      %v6512 = vunpack.c.0.s8 %v6511
      %v6513 = vlaneseq
      %v6514 = vshrl.u32 %v6513, 7
      %v6515 = vsub.s32 %v6512, %v6514
      %v6516 = vrot.slane %v6502, %v6515
      %v6517 = vcombine.low %v6509, %v6516
      %v6518 = vcombine.low %v6156, %v6164
      %v6519 = vcombine.low %v6172, %v6180
      %v6520 = vcombine.low %v6188, %v6197
      %v6521 = vcombine.low %v6205, %v6213
      %v6523 = vunpack.c.l.s4 1966171168
      %v6524 = vunpack.c.0.s8 %v6523
      %v6525 = vlaneseq
      %v6526 = vshrl.u32 %v6525, 7
      %v6527 = vsub.s32 %v6524, %v6526
      %v6528 = vrot.slane %v6518, %v6527
      %v6530 = vunpack.c.l.s4 1966171168
      %v6531 = vunpack.c.0.s8 %v6530
      %v6532 = vlaneseq
      %v6533 = vshrl.u32 %v6532, 7
      %v6534 = vsub.s32 %v6531, %v6533
      %v6535 = vrot.slane %v6519, %v6534
      %v6537 = vunpack.c.l.s4 1966171168
      %v6538 = vunpack.c.0.s8 %v6537
      %v6539 = vlaneseq
      %v6540 = vshrl.u32 %v6539, 7
      %v6541 = vsub.s32 %v6538, %v6540
      %v6542 = vrot.slane %v6520, %v6541
      %v6544 = vunpack.c.l.s4 1966171168
      %v6545 = vunpack.c.0.s8 %v6544
      %v6546 = vlaneseq
      %v6547 = vshrl.u32 %v6546, 7
      %v6548 = vsub.s32 %v6545, %v6547
      %v6549 = vrot.slane %v6521, %v6548
      %v6550 = vcombine.low %v6528, %v6535
      %v6551 = vcombine.low %v6542, %v6549
      %v6553 = vunpack.c.l.s4 1966171168
      %v6554 = vunpack.c.0.s8 %v6553
      %v6555 = vlaneseq
      %v6556 = vshrl.u32 %v6555, 7
      %v6557 = vsub.s32 %v6554, %v6556
      %v6558 = vrot.slane %v6550, %v6557
      %v6560 = vunpack.c.l.s4 1966171168
      %v6561 = vunpack.c.0.s8 %v6560
      %v6562 = vlaneseq
      %v6563 = vshrl.u32 %v6562, 7
      %v6564 = vsub.s32 %v6561, %v6563
      %v6565 = vrot.slane %v6551, %v6564
      %v6566 = vcombine.low %v6558, %v6565
      %v6567 = vcombine.low %v6221, %v6229
      %v6568 = vcombine.low %v6237, %v6245
      %v6569 = vcombine.low %v6254, %v6262
      %v6570 = vcombine.low %v6270, %v6278
      %v6572 = vunpack.c.l.s4 1966171168
      %v6573 = vunpack.c.0.s8 %v6572
      %v6574 = vlaneseq
      %v6575 = vshrl.u32 %v6574, 7
      %v6576 = vsub.s32 %v6573, %v6575
      %v6577 = vrot.slane %v6567, %v6576
      %v6579 = vunpack.c.l.s4 1966171168
      %v6580 = vunpack.c.0.s8 %v6579
      %v6581 = vlaneseq
      %v6582 = vshrl.u32 %v6581, 7
      %v6583 = vsub.s32 %v6580, %v6582
      %v6584 = vrot.slane %v6568, %v6583
      %v6586 = vunpack.c.l.s4 1966171168
      %v6587 = vunpack.c.0.s8 %v6586
      %v6588 = vlaneseq
      %v6589 = vshrl.u32 %v6588, 7
      %v6590 = vsub.s32 %v6587, %v6589
      %v6591 = vrot.slane %v6569, %v6590
      %v6593 = vunpack.c.l.s4 1966171168
      %v6594 = vunpack.c.0.s8 %v6593
      %v6595 = vlaneseq
      %v6596 = vshrl.u32 %v6595, 7
      %v6597 = vsub.s32 %v6594, %v6596
      %v6598 = vrot.slane %v6570, %v6597
      %v6599 = vcombine.low %v6577, %v6584
      %v6600 = vcombine.low %v6591, %v6598
      %v6602 = vunpack.c.l.s4 1966171168
      %v6603 = vunpack.c.0.s8 %v6602
      %v6604 = vlaneseq
      %v6605 = vshrl.u32 %v6604, 7
      %v6606 = vsub.s32 %v6603, %v6605
      %v6607 = vrot.slane %v6599, %v6606
      %v6609 = vunpack.c.l.s4 1966171168
      %v6610 = vunpack.c.0.s8 %v6609
      %v6611 = vlaneseq
      %v6612 = vshrl.u32 %v6611, 7
      %v6613 = vsub.s32 %v6610, %v6612
      %v6614 = vrot.slane %v6600, %v6613
      %v6615 = vcombine.low %v6607, %v6614
      %v6616 = vcombine.low %v6286, %v6294
      %v6617 = vcombine.low %v6302, %v6311
      %v6618 = vcombine.low %v6319, %v6327
      %v6619 = vcombine.low %v6335, %v6343
      %v6621 = vunpack.c.l.s4 1966171168
      %v6622 = vunpack.c.0.s8 %v6621
      %v6623 = vlaneseq
      %v6624 = vshrl.u32 %v6623, 7
      %v6625 = vsub.s32 %v6622, %v6624
      %v6626 = vrot.slane %v6616, %v6625
      %v6628 = vunpack.c.l.s4 1966171168
      %v6629 = vunpack.c.0.s8 %v6628
      %v6630 = vlaneseq
      %v6631 = vshrl.u32 %v6630, 7
      %v6632 = vsub.s32 %v6629, %v6631
      %v6633 = vrot.slane %v6617, %v6632
      %v6635 = vunpack.c.l.s4 1966171168
      %v6636 = vunpack.c.0.s8 %v6635
      %v6637 = vlaneseq
      %v6638 = vshrl.u32 %v6637, 7
      %v6639 = vsub.s32 %v6636, %v6638
      %v6640 = vrot.slane %v6618, %v6639
      %v6642 = vunpack.c.l.s4 1966171168
      %v6643 = vunpack.c.0.s8 %v6642
      %v6644 = vlaneseq
      %v6645 = vshrl.u32 %v6644, 7
      %v6646 = vsub.s32 %v6643, %v6645
      %v6647 = vrot.slane %v6619, %v6646
      %v6648 = vcombine.low %v6626, %v6633
      %v6649 = vcombine.low %v6640, %v6647
      %v6651 = vunpack.c.l.s4 1966171168
      %v6652 = vunpack.c.0.s8 %v6651
      %v6653 = vlaneseq
      %v6654 = vshrl.u32 %v6653, 7
      %v6655 = vsub.s32 %v6652, %v6654
      %v6656 = vrot.slane %v6648, %v6655
      %v6658 = vunpack.c.l.s4 1966171168
      %v6659 = vunpack.c.0.s8 %v6658
      %v6660 = vlaneseq
      %v6661 = vshrl.u32 %v6660, 7
      %v6662 = vsub.s32 %v6659, %v6661
      %v6663 = vrot.slane %v6649, %v6662
      %v6664 = vcombine.low %v6656, %v6663
      %v6665 = vcombine.low %v6351, %v6359
      %v6666 = vcombine.low %v6368, %v6376
      %v6667 = vcombine.low %v6384, %v6392
      %v6668 = vcombine.low %v6400, %v6408
      %v6670 = vunpack.c.l.s4 1966171168
      %v6671 = vunpack.c.0.s8 %v6670
      %v6672 = vlaneseq
      %v6673 = vshrl.u32 %v6672, 7
      %v6674 = vsub.s32 %v6671, %v6673
      %v6675 = vrot.slane %v6665, %v6674
      %v6677 = vunpack.c.l.s4 1966171168
      %v6678 = vunpack.c.0.s8 %v6677
      %v6679 = vlaneseq
      %v6680 = vshrl.u32 %v6679, 7
      %v6681 = vsub.s32 %v6678, %v6680
      %v6682 = vrot.slane %v6666, %v6681
      %v6684 = vunpack.c.l.s4 1966171168
      %v6685 = vunpack.c.0.s8 %v6684
      %v6686 = vlaneseq
      %v6687 = vshrl.u32 %v6686, 7
      %v6688 = vsub.s32 %v6685, %v6687
      %v6689 = vrot.slane %v6667, %v6688
      %v6691 = vunpack.c.l.s4 1966171168
      %v6692 = vunpack.c.0.s8 %v6691
      %v6693 = vlaneseq
      %v6694 = vshrl.u32 %v6693, 7
      %v6695 = vsub.s32 %v6692, %v6694
      %v6696 = vrot.slane %v6668, %v6695
      %v6697 = vcombine.low %v6675, %v6682
      %v6698 = vcombine.low %v6689, %v6696
      %v6700 = vunpack.c.l.s4 1966171168
      %v6701 = vunpack.c.0.s8 %v6700
      %v6702 = vlaneseq
      %v6703 = vshrl.u32 %v6702, 7
      %v6704 = vsub.s32 %v6701, %v6703
      %v6705 = vrot.slane %v6697, %v6704
      %v6707 = vunpack.c.l.s4 1966171168
      %v6708 = vunpack.c.0.s8 %v6707
      %v6709 = vlaneseq
      %v6710 = vshrl.u32 %v6709, 7
      %v6711 = vsub.s32 %v6708, %v6710
      %v6712 = vrot.slane %v6698, %v6711
      %v6713 = vcombine.low %v6705, %v6712
      %v6715 = vunpack.c.l.s4 1966171168
      %v6716 = vunpack.c.0.s8 %v6715
      %v6717 = vlaneseq
      %v6718 = vshrl.u32 %v6717, 7
      %v6719 = vsub.s32 %v6716, %v6718
      %v6720 = vrot.slane %v6416, %v6719
      %v6722 = vunpack.c.l.s4 1966171168
      %v6723 = vunpack.c.0.s8 %v6722
      %v6724 = vlaneseq
      %v6725 = vshrl.u32 %v6724, 7
      %v6726 = vsub.s32 %v6723, %v6725
      %v6727 = vrot.slane %v6720, %v6726
      %v6730 = vunpack.c.l.b16 %v6418
      %v6731 = vunpack.c.l.b16 %v6419
      %v6732 = vpack.c.b16 %v6731, %v6730
      %v6735 = vsel %vm379, %v6468, 0
      %v6738 = vsel %vm379, %v6517, 0
      %v6741 = vsel %vm379, %v6566, 0
      %v6744 = vsel %vm379, %v6615, 0
      %v6747 = vsel %vm379, %v6664, 0
      %v6750 = vsel %vm379, %v6713, 0
      %v6753 = vsel %vm379, %v6727, 0
      %6755 = vmatprep.subr.bf16.mxu0 0
      %6756 = vmatpush1.bf16.msra.mxu0 %v6732
      %6757 = vmatprep.subr.bf16.mxu0 0
      %6758 = vmatpush1.bf16.msra.mxu0 0
      %6759 = vmatprep.subr.bf16.mxu0 0
      %6760 = vmatpush1.bf16.msra.mxu0 0
      %6761 = vmatprep.subr.bf16.mxu0 0
      %6762 = vmatpush1.bf16.msra.mxu0 0
      %6763 = vmatprep.subr.bf16.mxu0 0
      %6764 = vmatpush1.bf16.msra.mxu0 0
      %6765 = vmatprep.subr.bf16.mxu0 0
      %6766 = vmatpush1.bf16.msra.mxu0 0
      %6767 = vmatprep.subr.bf16.mxu0 0
      %6768 = vmatpush1.bf16.msra.mxu0 0
      %6769 = vmatprep.subr.bf16.mxu0 0
      %6770 = vmatpush1.bf16.msra.mxu0 0
      %6771 = vmatprep.subr.bf16.mxu0 0
      %6772 = vmatpush1.bf16.msra.mxu0 0
      %6773 = vmatprep.subr.bf16.mxu0 0
      %6774 = vmatpush1.bf16.msra.mxu0 0
      %6775 = vmatprep.subr.bf16.mxu0 0
      %6776 = vmatpush1.bf16.msra.mxu0 0
      %6777 = vmatprep.subr.bf16.mxu0 0
      %6778 = vmatpush1.bf16.msra.mxu0 0
      %6779 = vmatprep.subr.bf16.mxu0 0
      %6780 = vmatpush1.bf16.msra.mxu0 0
      %6781 = vmatprep.subr.bf16.mxu0 0
      %6782 = vmatpush1.bf16.msra.mxu0 0
      %6783 = vmatprep.subr.bf16.mxu0 0
      %6784 = vmatpush1.bf16.msra.mxu0 0
      %6785 = vmatprep.subr.bf16.mxu0 0
      %6786 = vmatpush1.bf16.msra.mxu0 0
      %6787 = vmatprep.mubr.bf16.mxu0 0
      %6788 = vmatmul.mubr.bf16.gmra.mrb[0].mxu0 %v6735
      %v6789 = vpop.f32.mrb[0].mxu0
      %v6790 = vadd.f32 0.0, %v6789
      %v6791 = vpop.f32.mrb[0].mxu0
      %v6792 = vpop.f32.mrb[0].mxu0
      %v6793 = vadd.f32 0.0, %v6792
      %v6794 = vpop.f32.mrb[0].mxu0
      %6795 = vmatprep.mubr.bf16.mxu0 0
      %6796 = vmatmul.mubr.bf16.gmra.mrb[0].mxu0 %v6738
      %v6797 = vpop.f32.mrb[0].mxu0
      %v6798 = vadd.f32 0.0, %v6797
      %v6799 = vpop.f32.mrb[0].mxu0
      %v6800 = vpop.f32.mrb[0].mxu0
      %v6801 = vadd.f32 0.0, %v6800
      %v6802 = vpop.f32.mrb[0].mxu0
      %6803 = vmatprep.mubr.bf16.mxu0 0
      %6804 = vmatmul.mubr.bf16.gmra.mrb[0].mxu0 %v6741
      %v6805 = vpop.f32.mrb[0].mxu0
      %v6806 = vadd.f32 0.0, %v6805
      %v6807 = vpop.f32.mrb[0].mxu0
      %v6808 = vpop.f32.mrb[0].mxu0
      %v6809 = vadd.f32 0.0, %v6808
      %v6810 = vpop.f32.mrb[0].mxu0
      %6811 = vmatprep.mubr.bf16.mxu0 0
      %6812 = vmatmul.mubr.bf16.gmra.mrb[0].mxu0 %v6744
      %v6813 = vpop.f32.mrb[0].mxu0
      %v6814 = vadd.f32 0.0, %v6813
      %v6815 = vpop.f32.mrb[0].mxu0
      %v6816 = vpop.f32.mrb[0].mxu0
      %v6817 = vadd.f32 0.0, %v6816
      %v6818 = vpop.f32.mrb[0].mxu0
      %6819 = vmatprep.mubr.bf16.mxu0 0
      %6820 = vmatmul.mubr.bf16.gmra.mrb[0].mxu0 %v6747
      %v6821 = vpop.f32.mrb[0].mxu0
      %v6822 = vadd.f32 0.0, %v6821
      %v6823 = vpop.f32.mrb[0].mxu0
      %v6824 = vpop.f32.mrb[0].mxu0
      %v6825 = vadd.f32 0.0, %v6824
      %v6826 = vpop.f32.mrb[0].mxu0
      %6827 = vmatprep.mubr.bf16.mxu0 0
      %6828 = vmatmul.mubr.bf16.gmra.mrb[0].mxu0 %v6750
      %v6829 = vpop.f32.mrb[0].mxu0
      %v6830 = vadd.f32 0.0, %v6829
      %v6831 = vpop.f32.mrb[0].mxu0
      %v6832 = vpop.f32.mrb[0].mxu0
      %v6833 = vadd.f32 0.0, %v6832
      %v6834 = vpop.f32.mrb[0].mxu0
      %6835 = vmatprep.mubr.bf16.mxu0 0
      %6836 = vmatmul.mubr.bf16.gmra.mrb[0].mxu0 %v6753
      %v6837 = vpop.f32.mrb[0].mxu0
      %v6838 = vadd.f32 0.0, %v6837
      %v6839 = vpop.f32.mrb[0].mxu0
      %v6840 = vpop.f32.mrb[0].mxu0
      %v6841 = vpop.f32.mrb[0].mxu0
      %6842 = vdwg.mxu0
      %v6843 = vadd.f32 %v5958, %v6790
      %v6844 = vadd.f32 %v5961, %v6793
      %v6845 = vadd.f32 %v5966, %v6798
      %v6846 = vadd.f32 %v5969, %v6801
      %v6847 = vadd.f32 %v5974, %v6806
      %v6848 = vadd.f32 %v5977, %v6809
      %v6849 = vadd.f32 %v5982, %v6814
      %v6850 = vadd.f32 %v5985, %v6817
      %v6851 = vadd.f32 %v5990, %v6822
      %v6852 = vadd.f32 %v5993, %v6825
      %v6853 = vadd.f32 %v5998, %v6830
      %v6854 = vadd.f32 %v6001, %v6833
      %v6855 = vadd.f32 %v6006, %v6838
      %s6856 = scalar_lea.vmem %s6, 16
      %v6857 = vld [vmem:[%s6856] sm:$0xf]
      %v6858 = vld [vmem:[%s6856 + $0x4] sm:$0xf]
      %v6859 = vcombine.low %v5151, %v5159
      %v6860 = vcombine.low %v5161, %v5144
      %v6861 = vcombine.low %v5158, %v5160
      %v6862 = vcombine.low %v6011, %v5199
      %v6864 = vunpack.c.l.s4 1966171168
      %v6865 = vunpack.c.0.s8 %v6864
      %v6866 = vlaneseq
      %v6867 = vshrl.u32 %v6866, 7
      %v6868 = vsub.s32 %v6865, %v6867
      %v6869 = vrot.slane %v6859, %v6868
      %v6871 = vunpack.c.l.s4 1966171168
      %v6872 = vunpack.c.0.s8 %v6871
      %v6873 = vlaneseq
      %v6874 = vshrl.u32 %v6873, 7
      %v6875 = vsub.s32 %v6872, %v6874
      %v6876 = vrot.slane %v6860, %v6875
      %v6878 = vunpack.c.l.s4 1966171168
      %v6879 = vunpack.c.0.s8 %v6878
      %v6880 = vlaneseq
      %v6881 = vshrl.u32 %v6880, 7
      %v6882 = vsub.s32 %v6879, %v6881
      %v6883 = vrot.slane %v6861, %v6882
      %v6885 = vunpack.c.l.s4 1966171168
      %v6886 = vunpack.c.0.s8 %v6885
      %v6887 = vlaneseq
      %v6888 = vshrl.u32 %v6887, 7
      %v6889 = vsub.s32 %v6886, %v6888
      %v6890 = vrot.slane %v6862, %v6889
      %v6891 = vcombine.low %v6869, %v6876
      %v6892 = vcombine.low %v6883, %v6890
      %v6894 = vunpack.c.l.s4 1966171168
      %v6895 = vunpack.c.0.s8 %v6894
      %v6896 = vlaneseq
      %v6897 = vshrl.u32 %v6896, 7
      %v6898 = vsub.s32 %v6895, %v6897
      %v6899 = vrot.slane %v6891, %v6898
      %v6901 = vunpack.c.l.s4 1966171168
      %v6902 = vunpack.c.0.s8 %v6901
      %v6903 = vlaneseq
      %v6904 = vshrl.u32 %v6903, 7
      %v6905 = vsub.s32 %v6902, %v6904
      %v6906 = vrot.slane %v6892, %v6905
      %v6907 = vcombine.low %v6899, %v6906
      %v6908 = vcombine.low %v5207, %v5209
      %v6909 = vcombine.low %v5192, %v5206
      %v6910 = vcombine.low %v5208, %v6012
      %v6911 = vcombine.low %v5247, %v5255
      %v6913 = vunpack.c.l.s4 1966171168
      %v6914 = vunpack.c.0.s8 %v6913
      %v6915 = vlaneseq
      %v6916 = vshrl.u32 %v6915, 7
      %v6917 = vsub.s32 %v6914, %v6916
      %v6918 = vrot.slane %v6908, %v6917
      %v6920 = vunpack.c.l.s4 1966171168
      %v6921 = vunpack.c.0.s8 %v6920
      %v6922 = vlaneseq
      %v6923 = vshrl.u32 %v6922, 7
      %v6924 = vsub.s32 %v6921, %v6923
      %v6925 = vrot.slane %v6909, %v6924
      %v6927 = vunpack.c.l.s4 1966171168
      %v6928 = vunpack.c.0.s8 %v6927
      %v6929 = vlaneseq
      %v6930 = vshrl.u32 %v6929, 7
      %v6931 = vsub.s32 %v6928, %v6930
      %v6932 = vrot.slane %v6910, %v6931
      %v6934 = vunpack.c.l.s4 1966171168
      %v6935 = vunpack.c.0.s8 %v6934
      %v6936 = vlaneseq
      %v6937 = vshrl.u32 %v6936, 7
      %v6938 = vsub.s32 %v6935, %v6937
      %v6939 = vrot.slane %v6911, %v6938
      %v6940 = vcombine.low %v6918, %v6925
      %v6941 = vcombine.low %v6932, %v6939
      %v6943 = vunpack.c.l.s4 1966171168
      %v6944 = vunpack.c.0.s8 %v6943
      %v6945 = vlaneseq
      %v6946 = vshrl.u32 %v6945, 7
      %v6947 = vsub.s32 %v6944, %v6946
      %v6948 = vrot.slane %v6940, %v6947
      %v6950 = vunpack.c.l.s4 1966171168
      %v6951 = vunpack.c.0.s8 %v6950
      %v6952 = vlaneseq
      %v6953 = vshrl.u32 %v6952, 7
      %v6954 = vsub.s32 %v6951, %v6953
      %v6955 = vrot.slane %v6941, %v6954
      %v6956 = vcombine.low %v6948, %v6955
      %v6957 = vcombine.low %v5257, %v5240
      %v6958 = vcombine.low %v5254, %v5256
      %v6959 = vcombine.low %v6013, %v5295
      %v6960 = vcombine.low %v5303, %v5305
      %v6962 = vunpack.c.l.s4 1966171168
      %v6963 = vunpack.c.0.s8 %v6962
      %v6964 = vlaneseq
      %v6965 = vshrl.u32 %v6964, 7
      %v6966 = vsub.s32 %v6963, %v6965
      %v6967 = vrot.slane %v6957, %v6966
      %v6969 = vunpack.c.l.s4 1966171168
      %v6970 = vunpack.c.0.s8 %v6969
      %v6971 = vlaneseq
      %v6972 = vshrl.u32 %v6971, 7
      %v6973 = vsub.s32 %v6970, %v6972
      %v6974 = vrot.slane %v6958, %v6973
      %v6976 = vunpack.c.l.s4 1966171168
      %v6977 = vunpack.c.0.s8 %v6976
      %v6978 = vlaneseq
      %v6979 = vshrl.u32 %v6978, 7
      %v6980 = vsub.s32 %v6977, %v6979
      %v6981 = vrot.slane %v6959, %v6980
      %v6983 = vunpack.c.l.s4 1966171168
      %v6984 = vunpack.c.0.s8 %v6983
      %v6985 = vlaneseq
      %v6986 = vshrl.u32 %v6985, 7
      %v6987 = vsub.s32 %v6984, %v6986
      %v6988 = vrot.slane %v6960, %v6987
      %v6989 = vcombine.low %v6967, %v6974
      %v6990 = vcombine.low %v6981, %v6988
      %v6992 = vunpack.c.l.s4 1966171168
      %v6993 = vunpack.c.0.s8 %v6992
      %v6994 = vlaneseq
      %v6995 = vshrl.u32 %v6994, 7
      %v6996 = vsub.s32 %v6993, %v6995
      %v6997 = vrot.slane %v6989, %v6996
      %v6999 = vunpack.c.l.s4 1966171168
      %v7000 = vunpack.c.0.s8 %v6999
      %v7001 = vlaneseq
      %v7002 = vshrl.u32 %v7001, 7
      %v7003 = vsub.s32 %v7000, %v7002
      %v7004 = vrot.slane %v6990, %v7003
      %v7005 = vcombine.low %v6997, %v7004
      %v7006 = vcombine.low %v5288, %v5302
      %v7007 = vcombine.low %v5304, %v6014
      %v7008 = vcombine.low %v5343, %v5351
      %v7009 = vcombine.low %v5353, %v5336
      %v7011 = vunpack.c.l.s4 1966171168
      %v7012 = vunpack.c.0.s8 %v7011
      %v7013 = vlaneseq
      %v7014 = vshrl.u32 %v7013, 7
      %v7015 = vsub.s32 %v7012, %v7014
      %v7016 = vrot.slane %v7006, %v7015
      %v7018 = vunpack.c.l.s4 1966171168
      %v7019 = vunpack.c.0.s8 %v7018
      %v7020 = vlaneseq
      %v7021 = vshrl.u32 %v7020, 7
      %v7022 = vsub.s32 %v7019, %v7021
      %v7023 = vrot.slane %v7007, %v7022
      %v7025 = vunpack.c.l.s4 1966171168
      %v7026 = vunpack.c.0.s8 %v7025
      %v7027 = vlaneseq
      %v7028 = vshrl.u32 %v7027, 7
      %v7029 = vsub.s32 %v7026, %v7028
      %v7030 = vrot.slane %v7008, %v7029
      %v7032 = vunpack.c.l.s4 1966171168
      %v7033 = vunpack.c.0.s8 %v7032
      %v7034 = vlaneseq
      %v7035 = vshrl.u32 %v7034, 7
      %v7036 = vsub.s32 %v7033, %v7035
      %v7037 = vrot.slane %v7009, %v7036
      %v7038 = vcombine.low %v7016, %v7023
      %v7039 = vcombine.low %v7030, %v7037
      %v7041 = vunpack.c.l.s4 1966171168
      %v7042 = vunpack.c.0.s8 %v7041
      %v7043 = vlaneseq
      %v7044 = vshrl.u32 %v7043, 7
      %v7045 = vsub.s32 %v7042, %v7044
      %v7046 = vrot.slane %v7038, %v7045
      %v7048 = vunpack.c.l.s4 1966171168
      %v7049 = vunpack.c.0.s8 %v7048
      %v7050 = vlaneseq
      %v7051 = vshrl.u32 %v7050, 7
      %v7052 = vsub.s32 %v7049, %v7051
      %v7053 = vrot.slane %v7039, %v7052
      %v7054 = vcombine.low %v7046, %v7053
      %v7055 = vcombine.low %v5350, %v5352
      %v7056 = vcombine.low %v6015, %v5391
      %v7057 = vcombine.low %v5399, %v5401
      %v7058 = vcombine.low %v5384, %v5398
      %v7060 = vunpack.c.l.s4 1966171168
      %v7061 = vunpack.c.0.s8 %v7060
      %v7062 = vlaneseq
      %v7063 = vshrl.u32 %v7062, 7
      %v7064 = vsub.s32 %v7061, %v7063
      %v7065 = vrot.slane %v7055, %v7064
      %v7067 = vunpack.c.l.s4 1966171168
      %v7068 = vunpack.c.0.s8 %v7067
      %v7069 = vlaneseq
      %v7070 = vshrl.u32 %v7069, 7
      %v7071 = vsub.s32 %v7068, %v7070
      %v7072 = vrot.slane %v7056, %v7071
      %v7074 = vunpack.c.l.s4 1966171168
      %v7075 = vunpack.c.0.s8 %v7074
      %v7076 = vlaneseq
      %v7077 = vshrl.u32 %v7076, 7
      %v7078 = vsub.s32 %v7075, %v7077
      %v7079 = vrot.slane %v7057, %v7078
      %v7081 = vunpack.c.l.s4 1966171168
      %v7082 = vunpack.c.0.s8 %v7081
      %v7083 = vlaneseq
      %v7084 = vshrl.u32 %v7083, 7
      %v7085 = vsub.s32 %v7082, %v7084
      %v7086 = vrot.slane %v7058, %v7085
      %v7087 = vcombine.low %v7065, %v7072
      %v7088 = vcombine.low %v7079, %v7086
      %v7090 = vunpack.c.l.s4 1966171168
      %v7091 = vunpack.c.0.s8 %v7090
      %v7092 = vlaneseq
      %v7093 = vshrl.u32 %v7092, 7
      %v7094 = vsub.s32 %v7091, %v7093
      %v7095 = vrot.slane %v7087, %v7094
      %v7097 = vunpack.c.l.s4 1966171168
      %v7098 = vunpack.c.0.s8 %v7097
      %v7099 = vlaneseq
      %v7100 = vshrl.u32 %v7099, 7
      %v7101 = vsub.s32 %v7098, %v7100
      %v7102 = vrot.slane %v7088, %v7101
      %v7103 = vcombine.low %v7095, %v7102
      %v7104 = vcombine.low %v5400, %v6016
      %v7105 = vcombine.low %v5439, %v5447
      %v7106 = vcombine.low %v5449, %v5432
      %v7107 = vcombine.low %v5446, %v5448
      %v7109 = vunpack.c.l.s4 1966171168
      %v7110 = vunpack.c.0.s8 %v7109
      %v7111 = vlaneseq
      %v7112 = vshrl.u32 %v7111, 7
      %v7113 = vsub.s32 %v7110, %v7112
      %v7114 = vrot.slane %v7104, %v7113
      %v7116 = vunpack.c.l.s4 1966171168
      %v7117 = vunpack.c.0.s8 %v7116
      %v7118 = vlaneseq
      %v7119 = vshrl.u32 %v7118, 7
      %v7120 = vsub.s32 %v7117, %v7119
      %v7121 = vrot.slane %v7105, %v7120
      %v7123 = vunpack.c.l.s4 1966171168
      %v7124 = vunpack.c.0.s8 %v7123
      %v7125 = vlaneseq
      %v7126 = vshrl.u32 %v7125, 7
      %v7127 = vsub.s32 %v7124, %v7126
      %v7128 = vrot.slane %v7106, %v7127
      %v7130 = vunpack.c.l.s4 1966171168
      %v7131 = vunpack.c.0.s8 %v7130
      %v7132 = vlaneseq
      %v7133 = vshrl.u32 %v7132, 7
      %v7134 = vsub.s32 %v7131, %v7133
      %v7135 = vrot.slane %v7107, %v7134
      %v7136 = vcombine.low %v7114, %v7121
      %v7137 = vcombine.low %v7128, %v7135
      %v7139 = vunpack.c.l.s4 1966171168
      %v7140 = vunpack.c.0.s8 %v7139
      %v7141 = vlaneseq
      %v7142 = vshrl.u32 %v7141, 7
      %v7143 = vsub.s32 %v7140, %v7142
      %v7144 = vrot.slane %v7136, %v7143
      %v7146 = vunpack.c.l.s4 1966171168
      %v7147 = vunpack.c.0.s8 %v7146
      %v7148 = vlaneseq
      %v7149 = vshrl.u32 %v7148, 7
      %v7150 = vsub.s32 %v7147, %v7149
      %v7151 = vrot.slane %v7137, %v7150
      %v7152 = vcombine.low %v7144, %v7151
      %v7154 = vunpack.c.l.s4 1966171168
      %v7155 = vunpack.c.0.s8 %v7154
      %v7156 = vlaneseq
      %v7157 = vshrl.u32 %v7156, 7
      %v7158 = vsub.s32 %v7155, %v7157
      %v7159 = vrot.slane %v6017, %v7158
      %v7161 = vunpack.c.l.s4 1966171168
      %v7162 = vunpack.c.0.s8 %v7161
      %v7163 = vlaneseq
      %v7164 = vshrl.u32 %v7163, 7
      %v7165 = vsub.s32 %v7162, %v7164
      %v7166 = vrot.slane %v7159, %v7165
      %v7169 = vunpack.c.l.b16 %v6857
      %v7170 = vunpack.c.l.b16 %v6858
      %v7171 = vpack.c.b16 %v7170, %v7169
      %v7174 = vsel %vm379, %v6907, 0
      %v7177 = vsel %vm379, %v6956, 0
      %v7180 = vsel %vm379, %v7005, 0
      %v7183 = vsel %vm379, %v7054, 0
      %v7186 = vsel %vm379, %v7103, 0
      %v7189 = vsel %vm379, %v7152, 0
      %v7192 = vsel %vm379, %v7166, 0
      %7194 = vmatprep.subr.bf16.mxu0 0
      %7195 = vmatpush1.bf16.msra.mxu0 %v7171
      %7196 = vmatprep.subr.bf16.mxu0 0
      %7197 = vmatpush1.bf16.msra.mxu0 0
      %7198 = vmatprep.subr.bf16.mxu0 0
      %7199 = vmatpush1.bf16.msra.mxu0 0
      %7200 = vmatprep.subr.bf16.mxu0 0
      %7201 = vmatpush1.bf16.msra.mxu0 0
      %7202 = vmatprep.subr.bf16.mxu0 0
      %7203 = vmatpush1.bf16.msra.mxu0 0
      %7204 = vmatprep.subr.bf16.mxu0 0
      %7205 = vmatpush1.bf16.msra.mxu0 0
      %7206 = vmatprep.subr.bf16.mxu0 0
      %7207 = vmatpush1.bf16.msra.mxu0 0
      %7208 = vmatprep.subr.bf16.mxu0 0
      %7209 = vmatpush1.bf16.msra.mxu0 0
      %7210 = vmatprep.subr.bf16.mxu0 0
      %7211 = vmatpush1.bf16.msra.mxu0 0
      %7212 = vmatprep.subr.bf16.mxu0 0
      %7213 = vmatpush1.bf16.msra.mxu0 0
      %7214 = vmatprep.subr.bf16.mxu0 0
      %7215 = vmatpush1.bf16.msra.mxu0 0
      %7216 = vmatprep.subr.bf16.mxu0 0
      %7217 = vmatpush1.bf16.msra.mxu0 0
      %7218 = vmatprep.subr.bf16.mxu0 0
      %7219 = vmatpush1.bf16.msra.mxu0 0
      %7220 = vmatprep.subr.bf16.mxu0 0
      %7221 = vmatpush1.bf16.msra.mxu0 0
      %7222 = vmatprep.subr.bf16.mxu0 0
      %7223 = vmatpush1.bf16.msra.mxu0 0
      %7224 = vmatprep.subr.bf16.mxu0 0
      %7225 = vmatpush1.bf16.msra.mxu0 0
      %7226 = vmatprep.mubr.bf16.mxu0 0
      %7227 = vmatmul.mubr.bf16.gmra.mrb[0].mxu0 %v7174
      %v7228 = vpop.f32.mrb[0].mxu0
      %v7229 = vadd.f32 0.0, %v7228
      %v7230 = vpop.f32.mrb[0].mxu0
      %v7231 = vpop.f32.mrb[0].mxu0
      %v7232 = vadd.f32 0.0, %v7231
      %v7233 = vpop.f32.mrb[0].mxu0
      %7234 = vmatprep.mubr.bf16.mxu0 0
      %7235 = vmatmul.mubr.bf16.gmra.mrb[0].mxu0 %v7177
      %v7236 = vpop.f32.mrb[0].mxu0
      %v7237 = vadd.f32 0.0, %v7236
      %v7238 = vpop.f32.mrb[0].mxu0
      %v7239 = vpop.f32.mrb[0].mxu0
      %v7240 = vadd.f32 0.0, %v7239
      %v7241 = vpop.f32.mrb[0].mxu0
      %7242 = vmatprep.mubr.bf16.mxu0 0
      %7243 = vmatmul.mubr.bf16.gmra.mrb[0].mxu0 %v7180
      %v7244 = vpop.f32.mrb[0].mxu0
      %v7245 = vadd.f32 0.0, %v7244
      %v7246 = vpop.f32.mrb[0].mxu0
      %v7247 = vpop.f32.mrb[0].mxu0
      %v7248 = vadd.f32 0.0, %v7247
      %v7249 = vpop.f32.mrb[0].mxu0
      %7250 = vmatprep.mubr.bf16.mxu0 0
      %7251 = vmatmul.mubr.bf16.gmra.mrb[0].mxu0 %v7183
      %v7252 = vpop.f32.mrb[0].mxu0
      %v7253 = vadd.f32 0.0, %v7252
      %v7254 = vpop.f32.mrb[0].mxu0
      %v7255 = vpop.f32.mrb[0].mxu0
      %v7256 = vadd.f32 0.0, %v7255
      %v7257 = vpop.f32.mrb[0].mxu0
      %7258 = vmatprep.mubr.bf16.mxu0 0
      %7259 = vmatmul.mubr.bf16.gmra.mrb[0].mxu0 %v7186
      %v7260 = vpop.f32.mrb[0].mxu0
      %v7261 = vadd.f32 0.0, %v7260
      %v7262 = vpop.f32.mrb[0].mxu0
      %v7263 = vpop.f32.mrb[0].mxu0
      %v7264 = vadd.f32 0.0, %v7263
      %v7265 = vpop.f32.mrb[0].mxu0
      %7266 = vmatprep.mubr.bf16.mxu0 0
      %7267 = vmatmul.mubr.bf16.gmra.mrb[0].mxu0 %v7189
      %v7268 = vpop.f32.mrb[0].mxu0
      %v7269 = vadd.f32 0.0, %v7268
      %v7270 = vpop.f32.mrb[0].mxu0
      %v7271 = vpop.f32.mrb[0].mxu0
      %v7272 = vadd.f32 0.0, %v7271
      %v7273 = vpop.f32.mrb[0].mxu0
      %7274 = vmatprep.mubr.bf16.mxu0 0
      %7275 = vmatmul.mubr.bf16.gmra.mrb[0].mxu0 %v7192
      %v7276 = vpop.f32.mrb[0].mxu0
      %v7277 = vadd.f32 0.0, %v7276
      %v7278 = vpop.f32.mrb[0].mxu0
      %v7279 = vpop.f32.mrb[0].mxu0
      %v7280 = vpop.f32.mrb[0].mxu0
      %7281 = vdwg.mxu0
      %v7282 = vadd.f32 %v6843, %v7229
      %v7283 = vadd.f32 %v6844, %v7232
      %v7284 = vadd.f32 %v6845, %v7237
      %v7285 = vadd.f32 %v6846, %v7240
      %v7286 = vadd.f32 %v6847, %v7245
      %v7287 = vadd.f32 %v6848, %v7248
      %v7288 = vadd.f32 %v6849, %v7253
      %v7289 = vadd.f32 %v6850, %v7256
      %v7290 = vadd.f32 %v6851, %v7261
      %v7291 = vadd.f32 %v6852, %v7264
      %v7292 = vadd.f32 %v6853, %v7269
      %v7293 = vadd.f32 %v6854, %v7272
      %v7294 = vadd.f32 %v6855, %v7277
      %v7296 = vcombine.high %v362, %v362
      %v7298 = vunpack.c.l.s4 1966171168
      %v7299 = vunpack.c.0.s8 %v7298
      %v7300 = vlaneseq
      %v7301 = vshrl.u32 %v7300, 7
      %v7302 = vsub.s32 %v7299, %v7301
      %v7303 = vrot.slane %v362, %v7302
      %v7305 = vunpack.c.l.s4 1966171168
      %v7306 = vunpack.c.0.s8 %v7305
      %v7307 = vlaneseq
      %v7308 = vshrl.u32 %v7307, 7
      %v7309 = vsub.s32 %v7306, %v7308
      %v7310 = vrot.slane %v7296, %v7309
      %v7311 = vcombine.high %v7303, %v7303
      %v7312 = vcombine.high %v7310, %v7310
      %v7314 = vunpack.c.l.s4 1966171168
      %v7315 = vunpack.c.0.s8 %v7314
      %v7316 = vlaneseq
      %v7317 = vshrl.u32 %v7316, 7
      %v7318 = vsub.s32 %v7315, %v7317
      %v7319 = vrot.slane %v7303, %v7318
      %v7321 = vunpack.c.l.s4 1966171168
      %v7322 = vunpack.c.0.s8 %v7321
      %v7323 = vlaneseq
      %v7324 = vshrl.u32 %v7323, 7
      %v7325 = vsub.s32 %v7322, %v7324
      %v7326 = vrot.slane %v7310, %v7325
      %v7328 = vunpack.c.l.s4 1966171168
      %v7329 = vunpack.c.0.s8 %v7328
      %v7330 = vlaneseq
      %v7331 = vshrl.u32 %v7330, 7
      %v7332 = vsub.s32 %v7329, %v7331
      %v7333 = vrot.slane %v7311, %v7332
      %v7335 = vunpack.c.l.s4 1966171168
      %v7336 = vunpack.c.0.s8 %v7335
      %v7337 = vlaneseq
      %v7338 = vshrl.u32 %v7337, 7
      %v7339 = vsub.s32 %v7336, %v7338
      %v7340 = vrot.slane %v7312, %v7339
      %v7341 = vcombine.high %v7319, %v7319
      %v7342 = vcombine.high %v7326, %v7326
      %v7343 = vcombine.high %v7333, %v7333
      %s7344 = scalar_lea.vmem %s6, 24
      %v7345 = vld [vmem:[%s7344] sm:$0xf]
      %v7346 = vld [vmem:[%s7344 + $0x4] sm:$0xf]
      %v7347 = vcombine.low %v5185, %v5199
      %v7348 = vcombine.low %v5208, %v5233
      %v7350 = vunpack.c.l.s4 1966171168
      %v7351 = vunpack.c.0.s8 %v7350
      %v7352 = vlaneseq
      %v7353 = vshrl.u32 %v7352, 7
      %v7354 = vsub.s32 %v7351, %v7353
      %v7355 = vrot.slane %v7347, %v7354
      %v7357 = vunpack.c.l.s4 1966171168
      %v7358 = vunpack.c.0.s8 %v7357
      %v7359 = vlaneseq
      %v7360 = vshrl.u32 %v7359, 7
      %v7361 = vsub.s32 %v7358, %v7360
      %v7362 = vrot.slane %v7348, %v7361
      %v7363 = vcombine.low %v7355, %v6918
      %v7364 = vcombine.low %v6925, %v7362
      %v7366 = vunpack.c.l.s4 1966171168
      %v7367 = vunpack.c.0.s8 %v7366
      %v7368 = vlaneseq
      %v7369 = vshrl.u32 %v7368, 7
      %v7370 = vsub.s32 %v7367, %v7369
      %v7371 = vrot.slane %v7363, %v7370
      %v7373 = vunpack.c.l.s4 1966171168
      %v7374 = vunpack.c.0.s8 %v7373
      %v7375 = vlaneseq
      %v7376 = vshrl.u32 %v7375, 7
      %v7377 = vsub.s32 %v7374, %v7376
      %v7378 = vrot.slane %v7364, %v7377
      %v7379 = vcombine.low %v7371, %v7378
      %v7380 = vcombine.low %v5281, %v5295
      %v7382 = vunpack.c.l.s4 1966171168
      %v7383 = vunpack.c.0.s8 %v7382
      %v7384 = vlaneseq
      %v7385 = vshrl.u32 %v7384, 7
      %v7386 = vsub.s32 %v7383, %v7385
      %v7387 = vrot.slane %v7380, %v7386
      %v7388 = vcombine.low %v6939, %v6967
      %v7389 = vcombine.low %v6974, %v7387
      %v7391 = vunpack.c.l.s4 1966171168
      %v7392 = vunpack.c.0.s8 %v7391
      %v7393 = vlaneseq
      %v7394 = vshrl.u32 %v7393, 7
      %v7395 = vsub.s32 %v7392, %v7394
      %v7396 = vrot.slane %v7388, %v7395
      %v7398 = vunpack.c.l.s4 1966171168
      %v7399 = vunpack.c.0.s8 %v7398
      %v7400 = vlaneseq
      %v7401 = vshrl.u32 %v7400, 7
      %v7402 = vsub.s32 %v7399, %v7401
      %v7403 = vrot.slane %v7389, %v7402
      %v7404 = vcombine.low %v7396, %v7403
      %v7405 = vcombine.low %v5304, %v5329
      %v7407 = vunpack.c.l.s4 1966171168
      %v7408 = vunpack.c.0.s8 %v7407
      %v7409 = vlaneseq
      %v7410 = vshrl.u32 %v7409, 7
      %v7411 = vsub.s32 %v7408, %v7410
      %v7412 = vrot.slane %v7405, %v7411
      %v7413 = vcombine.low %v6988, %v7016
      %v7414 = vcombine.low %v7412, %v7030
      %v7416 = vunpack.c.l.s4 1966171168
      %v7417 = vunpack.c.0.s8 %v7416
      %v7418 = vlaneseq
      %v7419 = vshrl.u32 %v7418, 7
      %v7420 = vsub.s32 %v7417, %v7419
      %v7421 = vrot.slane %v7413, %v7420
      %v7423 = vunpack.c.l.s4 1966171168
      %v7424 = vunpack.c.0.s8 %v7423
      %v7425 = vlaneseq
      %v7426 = vshrl.u32 %v7425, 7
      %v7427 = vsub.s32 %v7424, %v7426
      %v7428 = vrot.slane %v7414, %v7427
      %v7429 = vcombine.low %v7421, %v7428
      %v7430 = vcombine.low %v5377, %v5391
      %v7432 = vunpack.c.l.s4 1966171168
      %v7433 = vunpack.c.0.s8 %v7432
      %v7434 = vlaneseq
      %v7435 = vshrl.u32 %v7434, 7
      %v7436 = vsub.s32 %v7433, %v7435
      %v7437 = vrot.slane %v7430, %v7436
      %v7438 = vcombine.low %v7037, %v7065
      %v7439 = vcombine.low %v7437, %v7079
      %v7441 = vunpack.c.l.s4 1966171168
      %v7442 = vunpack.c.0.s8 %v7441
      %v7443 = vlaneseq
      %v7444 = vshrl.u32 %v7443, 7
      %v7445 = vsub.s32 %v7442, %v7444
      %v7446 = vrot.slane %v7438, %v7445
      %v7448 = vunpack.c.l.s4 1966171168
      %v7449 = vunpack.c.0.s8 %v7448
      %v7450 = vlaneseq
      %v7451 = vshrl.u32 %v7450, 7
      %v7452 = vsub.s32 %v7449, %v7451
      %v7453 = vrot.slane %v7439, %v7452
      %v7454 = vcombine.low %v7446, %v7453
      %v7455 = vcombine.low %v5400, %v5425
      %v7457 = vunpack.c.l.s4 1966171168
      %v7458 = vunpack.c.0.s8 %v7457
      %v7459 = vlaneseq
      %v7460 = vshrl.u32 %v7459, 7
      %v7461 = vsub.s32 %v7458, %v7460
      %v7462 = vrot.slane %v7455, %v7461
      %v7463 = vcombine.low %v7086, %v7462
      %v7464 = vcombine.low %v7121, %v7128
      %v7466 = vunpack.c.l.s4 1966171168
      %v7467 = vunpack.c.0.s8 %v7466
      %v7468 = vlaneseq
      %v7469 = vshrl.u32 %v7468, 7
      %v7470 = vsub.s32 %v7467, %v7469
      %v7471 = vrot.slane %v7463, %v7470
      %v7473 = vunpack.c.l.s4 1966171168
      %v7474 = vunpack.c.0.s8 %v7473
      %v7475 = vlaneseq
      %v7476 = vshrl.u32 %v7475, 7
      %v7477 = vsub.s32 %v7474, %v7476
      %v7478 = vrot.slane %v7464, %v7477
      %v7479 = vcombine.low %v7471, %v7478
      %v7480 = vcombine.low %v7319, %v7333
      %v7481 = vcombine.low %v7341, %v7343
      %v7482 = vcombine.low %v7326, %v7340
      %v7484 = vunpack.c.l.s4 1966171168
      %v7485 = vunpack.c.0.s8 %v7484
      %v7486 = vlaneseq
      %v7487 = vshrl.u32 %v7486, 7
      %v7488 = vsub.s32 %v7485, %v7487
      %v7489 = vrot.slane %v7480, %v7488
      %v7491 = vunpack.c.l.s4 1966171168
      %v7492 = vunpack.c.0.s8 %v7491
      %v7493 = vlaneseq
      %v7494 = vshrl.u32 %v7493, 7
      %v7495 = vsub.s32 %v7492, %v7494
      %v7496 = vrot.slane %v7481, %v7495
      %v7498 = vunpack.c.l.s4 1966171168
      %v7499 = vunpack.c.0.s8 %v7498
      %v7500 = vlaneseq
      %v7501 = vshrl.u32 %v7500, 7
      %v7502 = vsub.s32 %v7499, %v7501
      %v7503 = vrot.slane %v7482, %v7502
      %v7504 = vcombine.low %v7135, %v7489
      %v7505 = vcombine.low %v7496, %v7503
      %v7507 = vunpack.c.l.s4 1966171168
      %v7508 = vunpack.c.0.s8 %v7507
      %v7509 = vlaneseq
      %v7510 = vshrl.u32 %v7509, 7
      %v7511 = vsub.s32 %v7508, %v7510
      %v7512 = vrot.slane %v7504, %v7511
      %v7514 = vunpack.c.l.s4 1966171168
      %v7515 = vunpack.c.0.s8 %v7514
      %v7516 = vlaneseq
      %v7517 = vshrl.u32 %v7516, 7
      %v7518 = vsub.s32 %v7515, %v7517
      %v7519 = vrot.slane %v7505, %v7518
      %v7520 = vcombine.low %v7512, %v7519
      %v7522 = vunpack.c.l.s4 1966171168
      %v7523 = vunpack.c.0.s8 %v7522
      %v7524 = vlaneseq
      %v7525 = vshrl.u32 %v7524, 7
      %v7526 = vsub.s32 %v7523, %v7525
      %v7527 = vrot.slane %v7342, %v7526
      %v7529 = vunpack.c.l.s4 1966171168
      %v7530 = vunpack.c.0.s8 %v7529
      %v7531 = vlaneseq
      %v7532 = vshrl.u32 %v7531, 7
      %v7533 = vsub.s32 %v7530, %v7532
      %v7534 = vrot.slane %v7527, %v7533
      %v7537 = vunpack.c.l.b16 %v7345
      %v7538 = vunpack.c.l.b16 %v7346
      %v7539 = vpack.c.b16 %v7538, %v7537
      %v7542 = vsel %vm379, %v7379, 0
      %v7545 = vsel %vm379, %v7404, 0
      %v7548 = vsel %vm379, %v7429, 0
      %v7551 = vsel %vm379, %v7454, 0
      %v7554 = vsel %vm379, %v7479, 0
      %v7557 = vsel %vm379, %v7520, 0
      %v7560 = vsel %vm379, %v7534, 0
      %7562 = vmatprep.subr.bf16.mxu0 0
      %7563 = vmatpush1.bf16.msra.mxu0 %v7539
      %7564 = vmatprep.subr.bf16.mxu0 0
      %7565 = vmatpush1.bf16.msra.mxu0 0
      %7566 = vmatprep.subr.bf16.mxu0 0
      %7567 = vmatpush1.bf16.msra.mxu0 0
      %7568 = vmatprep.subr.bf16.mxu0 0
      %7569 = vmatpush1.bf16.msra.mxu0 0
      %7570 = vmatprep.subr.bf16.mxu0 0
      %7571 = vmatpush1.bf16.msra.mxu0 0
      %7572 = vmatprep.subr.bf16.mxu0 0
      %7573 = vmatpush1.bf16.msra.mxu0 0
      %7574 = vmatprep.subr.bf16.mxu0 0
      %7575 = vmatpush1.bf16.msra.mxu0 0
      %7576 = vmatprep.subr.bf16.mxu0 0
      %7577 = vmatpush1.bf16.msra.mxu0 0
      %7578 = vmatprep.subr.bf16.mxu0 0
      %7579 = vmatpush1.bf16.msra.mxu0 0
      %7580 = vmatprep.subr.bf16.mxu0 0
      %7581 = vmatpush1.bf16.msra.mxu0 0
      %7582 = vmatprep.subr.bf16.mxu0 0
      %7583 = vmatpush1.bf16.msra.mxu0 0
      %7584 = vmatprep.subr.bf16.mxu0 0
      %7585 = vmatpush1.bf16.msra.mxu0 0
      %7586 = vmatprep.subr.bf16.mxu0 0
      %7587 = vmatpush1.bf16.msra.mxu0 0
      %7588 = vmatprep.subr.bf16.mxu0 0
      %7589 = vmatpush1.bf16.msra.mxu0 0
      %7590 = vmatprep.subr.bf16.mxu0 0
      %7591 = vmatpush1.bf16.msra.mxu0 0
      %7592 = vmatprep.subr.bf16.mxu0 0
      %7593 = vmatpush1.bf16.msra.mxu0 0
      %7594 = vmatprep.mubr.bf16.mxu0 0
      %7595 = vmatmul.mubr.bf16.gmra.mrb[0].mxu0 %v7542
      %v7596 = vpop.f32.mrb[0].mxu0
      %v7597 = vadd.f32 0.0, %v7596
      %v7598 = vpop.f32.mrb[0].mxu0
      %v7599 = vpop.f32.mrb[0].mxu0
      %v7600 = vadd.f32 0.0, %v7599
      %v7601 = vpop.f32.mrb[0].mxu0
      %7602 = vmatprep.mubr.bf16.mxu0 0
      %7603 = vmatmul.mubr.bf16.gmra.mrb[0].mxu0 %v7545
      %v7604 = vpop.f32.mrb[0].mxu0
      %v7605 = vadd.f32 0.0, %v7604
      %v7606 = vpop.f32.mrb[0].mxu0
      %v7607 = vpop.f32.mrb[0].mxu0
      %v7608 = vadd.f32 0.0, %v7607
      %v7609 = vpop.f32.mrb[0].mxu0
      %7610 = vmatprep.mubr.bf16.mxu0 0
      %7611 = vmatmul.mubr.bf16.gmra.mrb[0].mxu0 %v7548
      %v7612 = vpop.f32.mrb[0].mxu0
      %v7613 = vadd.f32 0.0, %v7612
      %v7614 = vpop.f32.mrb[0].mxu0
      %v7615 = vpop.f32.mrb[0].mxu0
      %v7616 = vadd.f32 0.0, %v7615
      %v7617 = vpop.f32.mrb[0].mxu0
      %7618 = vmatprep.mubr.bf16.mxu0 0
      %7619 = vmatmul.mubr.bf16.gmra.mrb[0].mxu0 %v7551
      %v7620 = vpop.f32.mrb[0].mxu0
      %v7621 = vadd.f32 0.0, %v7620
      %v7622 = vpop.f32.mrb[0].mxu0
      %v7623 = vpop.f32.mrb[0].mxu0
      %v7624 = vadd.f32 0.0, %v7623
      %v7625 = vpop.f32.mrb[0].mxu0
      %7626 = vmatprep.mubr.bf16.mxu0 0
      %7627 = vmatmul.mubr.bf16.gmra.mrb[0].mxu0 %v7554
      %v7628 = vpop.f32.mrb[0].mxu0
      %v7629 = vadd.f32 0.0, %v7628
      %v7630 = vpop.f32.mrb[0].mxu0
      %v7631 = vpop.f32.mrb[0].mxu0
      %v7632 = vadd.f32 0.0, %v7631
      %v7633 = vpop.f32.mrb[0].mxu0
      %7634 = vmatprep.mubr.bf16.mxu0 0
      %7635 = vmatmul.mubr.bf16.gmra.mrb[0].mxu0 %v7557
      %v7636 = vpop.f32.mrb[0].mxu0
      %v7637 = vadd.f32 0.0, %v7636
      %v7638 = vpop.f32.mrb[0].mxu0
      %v7639 = vpop.f32.mrb[0].mxu0
      %v7640 = vadd.f32 0.0, %v7639
      %v7641 = vpop.f32.mrb[0].mxu0
      %7642 = vmatprep.mubr.bf16.mxu0 0
      %7643 = vmatmul.mubr.bf16.gmra.mrb[0].mxu0 %v7560
      %v7644 = vpop.f32.mrb[0].mxu0
      %v7645 = vadd.f32 0.0, %v7644
      %v7646 = vpop.f32.mrb[0].mxu0
      %v7647 = vpop.f32.mrb[0].mxu0
      %v7648 = vpop.f32.mrb[0].mxu0
      %7649 = vdwg.mxu0
      %v7650 = vadd.f32 %v7282, %v7597
      %v7651 = vadd.f32 %v7283, %v7600
      %v7652 = vadd.f32 %v7284, %v7605
      %v7653 = vadd.f32 %v7285, %v7608
      %v7654 = vadd.f32 %v7286, %v7613
      %v7655 = vadd.f32 %v7287, %v7616
      %v7656 = vadd.f32 %v7288, %v7621
      %v7657 = vadd.f32 %v7289, %v7624
      %v7658 = vadd.f32 %v7290, %v7629
      %v7659 = vadd.f32 %v7291, %v7632
      %v7660 = vadd.f32 %v7292, %v7637
      %v7661 = vadd.f32 %v7293, %v7640
      %v7662 = vadd.f32 %v7294, %v7645
      %v7663 = vcombine.high %v7340, %v7340
      %v7665 = vshrl.u32 %v7319, 16
      %v7667 = vrot.slane %v7665, 7
      %v7668 = vrot.slane %v7667, 1
      %v7670 = vshll.u32 %v7333, 16
      %v7672 = vsel %vm919, %v7668, %v7670
      %v7673 = vshrl.u32 %v7333, 16
      %v7675 = vrot.slane %v7673, 7
      %v7676 = vrot.slane %v7675, 1
      %v7678 = vshll.u32 %v7341, 16
      %v7680 = vsel %vm919, %v7676, %v7678
      %v7681 = vshrl.u32 %v7341, 16
      %v7683 = vrot.slane %v7681, 7
      %v7684 = vrot.slane %v7683, 1
      %v7686 = vshll.u32 %v7343, 16
      %v7688 = vsel %vm919, %v7684, %v7686
      %v7689 = vshrl.u32 %v7343, 16
      %v7691 = vrot.slane %v7689, 7
      %v7692 = vrot.slane %v7691, 1
      %v7694 = vshll.u32 %v7326, 16
      %v7696 = vsel %vm919, %v7692, %v7694
      %v7697 = vshrl.u32 %v7326, 16
      %v7699 = vrot.slane %v7697, 7
      %v7700 = vrot.slane %v7699, 1
      %v7702 = vshll.u32 %v7340, 16
      %v7704 = vsel %vm919, %v7700, %v7702
      %v7705 = vshrl.u32 %v7340, 16
      %v7707 = vrot.slane %v7705, 7
      %v7708 = vrot.slane %v7707, 1
      %v7710 = vshll.u32 %v7342, 16
      %v7712 = vsel %vm919, %v7708, %v7710
      %v7713 = vshrl.u32 %v7342, 16
      %v7715 = vrot.slane %v7713, 7
      %v7716 = vrot.slane %v7715, 1
      %v7718 = vshll.u32 %v7663, 16
      %v7720 = vsel %vm919, %v7716, %v7718
      %s7721 = scalar_lea.vmem %s6, 32
      %v7722 = vld [vmem:[%s7721] sm:$0xf]
      %v7723 = vld [vmem:[%s7721 + $0x4] sm:$0xf]
      %v7724 = vcombine.low %v6083, %v6091
      %v7725 = vcombine.low %v6099, %v6107
      %v7726 = vcombine.low %v6115, %v6123
      %v7727 = vcombine.low %v6131, %v6140
      %v7729 = vunpack.c.l.s4 1966171168
      %v7730 = vunpack.c.0.s8 %v7729
      %v7731 = vlaneseq
      %v7732 = vshrl.u32 %v7731, 7
      %v7733 = vsub.s32 %v7730, %v7732
      %v7734 = vrot.slane %v7724, %v7733
      %v7736 = vunpack.c.l.s4 1966171168
      %v7737 = vunpack.c.0.s8 %v7736
      %v7738 = vlaneseq
      %v7739 = vshrl.u32 %v7738, 7
      %v7740 = vsub.s32 %v7737, %v7739
      %v7741 = vrot.slane %v7725, %v7740
      %v7743 = vunpack.c.l.s4 1966171168
      %v7744 = vunpack.c.0.s8 %v7743
      %v7745 = vlaneseq
      %v7746 = vshrl.u32 %v7745, 7
      %v7747 = vsub.s32 %v7744, %v7746
      %v7748 = vrot.slane %v7726, %v7747
      %v7750 = vunpack.c.l.s4 1966171168
      %v7751 = vunpack.c.0.s8 %v7750
      %v7752 = vlaneseq
      %v7753 = vshrl.u32 %v7752, 7
      %v7754 = vsub.s32 %v7751, %v7753
      %v7755 = vrot.slane %v7727, %v7754
      %v7756 = vcombine.low %v7734, %v7741
      %v7757 = vcombine.low %v7748, %v7755
      %v7759 = vunpack.c.l.s4 1966171168
      %v7760 = vunpack.c.0.s8 %v7759
      %v7761 = vlaneseq
      %v7762 = vshrl.u32 %v7761, 7
      %v7763 = vsub.s32 %v7760, %v7762
      %v7764 = vrot.slane %v7756, %v7763
      %v7766 = vunpack.c.l.s4 1966171168
      %v7767 = vunpack.c.0.s8 %v7766
      %v7768 = vlaneseq
      %v7769 = vshrl.u32 %v7768, 7
      %v7770 = vsub.s32 %v7767, %v7769
      %v7771 = vrot.slane %v7757, %v7770
      %v7772 = vcombine.low %v7764, %v7771
      %v7773 = vcombine.low %v6148, %v6156
      %v7774 = vcombine.low %v6164, %v6172
      %v7775 = vcombine.low %v6180, %v6188
      %v7776 = vcombine.low %v6197, %v6205
      %v7778 = vunpack.c.l.s4 1966171168
      %v7779 = vunpack.c.0.s8 %v7778
      %v7780 = vlaneseq
      %v7781 = vshrl.u32 %v7780, 7
      %v7782 = vsub.s32 %v7779, %v7781
      %v7783 = vrot.slane %v7773, %v7782
      %v7785 = vunpack.c.l.s4 1966171168
      %v7786 = vunpack.c.0.s8 %v7785
      %v7787 = vlaneseq
      %v7788 = vshrl.u32 %v7787, 7
      %v7789 = vsub.s32 %v7786, %v7788
      %v7790 = vrot.slane %v7774, %v7789
      %v7792 = vunpack.c.l.s4 1966171168
      %v7793 = vunpack.c.0.s8 %v7792
      %v7794 = vlaneseq
      %v7795 = vshrl.u32 %v7794, 7
      %v7796 = vsub.s32 %v7793, %v7795
      %v7797 = vrot.slane %v7775, %v7796
      %v7799 = vunpack.c.l.s4 1966171168
      %v7800 = vunpack.c.0.s8 %v7799
      %v7801 = vlaneseq
      %v7802 = vshrl.u32 %v7801, 7
      %v7803 = vsub.s32 %v7800, %v7802
      %v7804 = vrot.slane %v7776, %v7803
      %v7805 = vcombine.low %v7783, %v7790
      %v7806 = vcombine.low %v7797, %v7804
      %v7808 = vunpack.c.l.s4 1966171168
      %v7809 = vunpack.c.0.s8 %v7808
      %v7810 = vlaneseq
      %v7811 = vshrl.u32 %v7810, 7
      %v7812 = vsub.s32 %v7809, %v7811
      %v7813 = vrot.slane %v7805, %v7812
      %v7815 = vunpack.c.l.s4 1966171168
      %v7816 = vunpack.c.0.s8 %v7815
      %v7817 = vlaneseq
      %v7818 = vshrl.u32 %v7817, 7
      %v7819 = vsub.s32 %v7816, %v7818
      %v7820 = vrot.slane %v7806, %v7819
      %v7821 = vcombine.low %v7813, %v7820
      %v7822 = vcombine.low %v6213, %v6221
      %v7823 = vcombine.low %v6229, %v6237
      %v7824 = vcombine.low %v6245, %v6254
      %v7825 = vcombine.low %v6262, %v6270
      %v7827 = vunpack.c.l.s4 1966171168
      %v7828 = vunpack.c.0.s8 %v7827
      %v7829 = vlaneseq
      %v7830 = vshrl.u32 %v7829, 7
      %v7831 = vsub.s32 %v7828, %v7830
      %v7832 = vrot.slane %v7822, %v7831
      %v7834 = vunpack.c.l.s4 1966171168
      %v7835 = vunpack.c.0.s8 %v7834
      %v7836 = vlaneseq
      %v7837 = vshrl.u32 %v7836, 7
      %v7838 = vsub.s32 %v7835, %v7837
      %v7839 = vrot.slane %v7823, %v7838
      %v7841 = vunpack.c.l.s4 1966171168
      %v7842 = vunpack.c.0.s8 %v7841
      %v7843 = vlaneseq
      %v7844 = vshrl.u32 %v7843, 7
      %v7845 = vsub.s32 %v7842, %v7844
      %v7846 = vrot.slane %v7824, %v7845
      %v7848 = vunpack.c.l.s4 1966171168
      %v7849 = vunpack.c.0.s8 %v7848
      %v7850 = vlaneseq
      %v7851 = vshrl.u32 %v7850, 7
      %v7852 = vsub.s32 %v7849, %v7851
      %v7853 = vrot.slane %v7825, %v7852
      %v7854 = vcombine.low %v7832, %v7839
      %v7855 = vcombine.low %v7846, %v7853
      %v7857 = vunpack.c.l.s4 1966171168
      %v7858 = vunpack.c.0.s8 %v7857
      %v7859 = vlaneseq
      %v7860 = vshrl.u32 %v7859, 7
      %v7861 = vsub.s32 %v7858, %v7860
      %v7862 = vrot.slane %v7854, %v7861
      %v7864 = vunpack.c.l.s4 1966171168
      %v7865 = vunpack.c.0.s8 %v7864
      %v7866 = vlaneseq
      %v7867 = vshrl.u32 %v7866, 7
      %v7868 = vsub.s32 %v7865, %v7867
      %v7869 = vrot.slane %v7855, %v7868
      %v7870 = vcombine.low %v7862, %v7869
      %v7871 = vcombine.low %v6278, %v6286
      %v7872 = vcombine.low %v6294, %v6302
      %v7873 = vcombine.low %v6311, %v6319
      %v7874 = vcombine.low %v6327, %v6335
      %v7876 = vunpack.c.l.s4 1966171168
      %v7877 = vunpack.c.0.s8 %v7876
      %v7878 = vlaneseq
      %v7879 = vshrl.u32 %v7878, 7
      %v7880 = vsub.s32 %v7877, %v7879
      %v7881 = vrot.slane %v7871, %v7880
      %v7883 = vunpack.c.l.s4 1966171168
      %v7884 = vunpack.c.0.s8 %v7883
      %v7885 = vlaneseq
      %v7886 = vshrl.u32 %v7885, 7
      %v7887 = vsub.s32 %v7884, %v7886
      %v7888 = vrot.slane %v7872, %v7887
      %v7890 = vunpack.c.l.s4 1966171168
      %v7891 = vunpack.c.0.s8 %v7890
      %v7892 = vlaneseq
      %v7893 = vshrl.u32 %v7892, 7
      %v7894 = vsub.s32 %v7891, %v7893
      %v7895 = vrot.slane %v7873, %v7894
      %v7897 = vunpack.c.l.s4 1966171168
      %v7898 = vunpack.c.0.s8 %v7897
      %v7899 = vlaneseq
      %v7900 = vshrl.u32 %v7899, 7
      %v7901 = vsub.s32 %v7898, %v7900
      %v7902 = vrot.slane %v7874, %v7901
      %v7903 = vcombine.low %v7881, %v7888
      %v7904 = vcombine.low %v7895, %v7902
      %v7906 = vunpack.c.l.s4 1966171168
      %v7907 = vunpack.c.0.s8 %v7906
      %v7908 = vlaneseq
      %v7909 = vshrl.u32 %v7908, 7
      %v7910 = vsub.s32 %v7907, %v7909
      %v7911 = vrot.slane %v7903, %v7910
      %v7913 = vunpack.c.l.s4 1966171168
      %v7914 = vunpack.c.0.s8 %v7913
      %v7915 = vlaneseq
      %v7916 = vshrl.u32 %v7915, 7
      %v7917 = vsub.s32 %v7914, %v7916
      %v7918 = vrot.slane %v7904, %v7917
      %v7919 = vcombine.low %v7911, %v7918
      %v7920 = vcombine.low %v6343, %v6351
      %v7921 = vcombine.low %v6359, %v6368
      %v7922 = vcombine.low %v6376, %v6384
      %v7923 = vcombine.low %v6392, %v6400
      %v7925 = vunpack.c.l.s4 1966171168
      %v7926 = vunpack.c.0.s8 %v7925
      %v7927 = vlaneseq
      %v7928 = vshrl.u32 %v7927, 7
      %v7929 = vsub.s32 %v7926, %v7928
      %v7930 = vrot.slane %v7920, %v7929
      %v7932 = vunpack.c.l.s4 1966171168
      %v7933 = vunpack.c.0.s8 %v7932
      %v7934 = vlaneseq
      %v7935 = vshrl.u32 %v7934, 7
      %v7936 = vsub.s32 %v7933, %v7935
      %v7937 = vrot.slane %v7921, %v7936
      %v7939 = vunpack.c.l.s4 1966171168
      %v7940 = vunpack.c.0.s8 %v7939
      %v7941 = vlaneseq
      %v7942 = vshrl.u32 %v7941, 7
      %v7943 = vsub.s32 %v7940, %v7942
      %v7944 = vrot.slane %v7922, %v7943
      %v7946 = vunpack.c.l.s4 1966171168
      %v7947 = vunpack.c.0.s8 %v7946
      %v7948 = vlaneseq
      %v7949 = vshrl.u32 %v7948, 7
      %v7950 = vsub.s32 %v7947, %v7949
      %v7951 = vrot.slane %v7923, %v7950
      %v7952 = vcombine.low %v7930, %v7937
      %v7953 = vcombine.low %v7944, %v7951
      %v7955 = vunpack.c.l.s4 1966171168
      %v7956 = vunpack.c.0.s8 %v7955
      %v7957 = vlaneseq
      %v7958 = vshrl.u32 %v7957, 7
      %v7959 = vsub.s32 %v7956, %v7958
      %v7960 = vrot.slane %v7952, %v7959
      %v7962 = vunpack.c.l.s4 1966171168
      %v7963 = vunpack.c.0.s8 %v7962
      %v7964 = vlaneseq
      %v7965 = vshrl.u32 %v7964, 7
      %v7966 = vsub.s32 %v7963, %v7965
      %v7967 = vrot.slane %v7953, %v7966
      %v7968 = vcombine.low %v7960, %v7967
      %v7969 = vcombine.low %v6408, %v6416
      %v7970 = vcombine.low %v7672, %v7680
      %v7971 = vcombine.low %v7688, %v7696
      %v7972 = vcombine.low %v7704, %v7712
      %v7974 = vunpack.c.l.s4 1966171168
      %v7975 = vunpack.c.0.s8 %v7974
      %v7976 = vlaneseq
      %v7977 = vshrl.u32 %v7976, 7
      %v7978 = vsub.s32 %v7975, %v7977
      %v7979 = vrot.slane %v7969, %v7978
      %v7981 = vunpack.c.l.s4 1966171168
      %v7982 = vunpack.c.0.s8 %v7981
      %v7983 = vlaneseq
      %v7984 = vshrl.u32 %v7983, 7
      %v7985 = vsub.s32 %v7982, %v7984
      %v7986 = vrot.slane %v7970, %v7985
      %v7988 = vunpack.c.l.s4 1966171168
      %v7989 = vunpack.c.0.s8 %v7988
      %v7990 = vlaneseq
      %v7991 = vshrl.u32 %v7990, 7
      %v7992 = vsub.s32 %v7989, %v7991
      %v7993 = vrot.slane %v7971, %v7992
      %v7995 = vunpack.c.l.s4 1966171168
      %v7996 = vunpack.c.0.s8 %v7995
      %v7997 = vlaneseq
      %v7998 = vshrl.u32 %v7997, 7
      %v7999 = vsub.s32 %v7996, %v7998
      %v8000 = vrot.slane %v7972, %v7999
      %v8001 = vcombine.low %v7979, %v7986
      %v8002 = vcombine.low %v7993, %v8000
      %v8004 = vunpack.c.l.s4 1966171168
      %v8005 = vunpack.c.0.s8 %v8004
      %v8006 = vlaneseq
      %v8007 = vshrl.u32 %v8006, 7
      %v8008 = vsub.s32 %v8005, %v8007
      %v8009 = vrot.slane %v8001, %v8008
      %v8011 = vunpack.c.l.s4 1966171168
      %v8012 = vunpack.c.0.s8 %v8011
      %v8013 = vlaneseq
      %v8014 = vshrl.u32 %v8013, 7
      %v8015 = vsub.s32 %v8012, %v8014
      %v8016 = vrot.slane %v8002, %v8015
      %v8017 = vcombine.low %v8009, %v8016
      %v8019 = vunpack.c.l.s4 1966171168
      %v8020 = vunpack.c.0.s8 %v8019
      %v8021 = vlaneseq
      %v8022 = vshrl.u32 %v8021, 7
      %v8023 = vsub.s32 %v8020, %v8022
      %v8024 = vrot.slane %v7720, %v8023
      %v8026 = vunpack.c.l.s4 1966171168
      %v8027 = vunpack.c.0.s8 %v8026
      %v8028 = vlaneseq
      %v8029 = vshrl.u32 %v8028, 7
      %v8030 = vsub.s32 %v8027, %v8029
      %v8031 = vrot.slane %v8024, %v8030
      %v8034 = vunpack.c.l.b16 %v7722
      %v8035 = vunpack.c.l.b16 %v7723
      %v8036 = vpack.c.b16 %v8035, %v8034
      %v8039 = vsel %vm379, %v7772, 0
      %v8042 = vsel %vm379, %v7821, 0
      %v8045 = vsel %vm379, %v7870, 0
      %v8048 = vsel %vm379, %v7919, 0
      %v8051 = vsel %vm379, %v7968, 0
      %v8054 = vsel %vm379, %v8017, 0
      %v8057 = vsel %vm379, %v8031, 0
      %8059 = vmatprep.subr.bf16.mxu0 0
      %8060 = vmatpush1.bf16.msra.mxu0 %v8036
      %8061 = vmatprep.subr.bf16.mxu0 0
      %8062 = vmatpush1.bf16.msra.mxu0 0
      %8063 = vmatprep.subr.bf16.mxu0 0
      %8064 = vmatpush1.bf16.msra.mxu0 0
      %8065 = vmatprep.subr.bf16.mxu0 0
      %8066 = vmatpush1.bf16.msra.mxu0 0
      %8067 = vmatprep.subr.bf16.mxu0 0
      %8068 = vmatpush1.bf16.msra.mxu0 0
      %8069 = vmatprep.subr.bf16.mxu0 0
      %8070 = vmatpush1.bf16.msra.mxu0 0
      %8071 = vmatprep.subr.bf16.mxu0 0
      %8072 = vmatpush1.bf16.msra.mxu0 0
      %8073 = vmatprep.subr.bf16.mxu0 0
      %8074 = vmatpush1.bf16.msra.mxu0 0
      %8075 = vmatprep.subr.bf16.mxu0 0
      %8076 = vmatpush1.bf16.msra.mxu0 0
      %8077 = vmatprep.subr.bf16.mxu0 0
      %8078 = vmatpush1.bf16.msra.mxu0 0
      %8079 = vmatprep.subr.bf16.mxu0 0
      %8080 = vmatpush1.bf16.msra.mxu0 0
      %8081 = vmatprep.subr.bf16.mxu0 0
      %8082 = vmatpush1.bf16.msra.mxu0 0
      %8083 = vmatprep.subr.bf16.mxu0 0
      %8084 = vmatpush1.bf16.msra.mxu0 0
      %8085 = vmatprep.subr.bf16.mxu0 0
      %8086 = vmatpush1.bf16.msra.mxu0 0
      %8087 = vmatprep.subr.bf16.mxu0 0
      %8088 = vmatpush1.bf16.msra.mxu0 0
      %8089 = vmatprep.subr.bf16.mxu0 0
      %8090 = vmatpush1.bf16.msra.mxu0 0
      %8091 = vmatprep.mubr.bf16.mxu0 0
      %8092 = vmatmul.mubr.bf16.gmra.mrb[0].mxu0 %v8039
      %v8093 = vpop.f32.mrb[0].mxu0
      %v8094 = vadd.f32 0.0, %v8093
      %v8095 = vpop.f32.mrb[0].mxu0
      %v8096 = vpop.f32.mrb[0].mxu0
      %v8097 = vadd.f32 0.0, %v8096
      %v8098 = vpop.f32.mrb[0].mxu0
      %8099 = vmatprep.mubr.bf16.mxu0 0
      %8100 = vmatmul.mubr.bf16.gmra.mrb[0].mxu0 %v8042
      %v8101 = vpop.f32.mrb[0].mxu0
      %v8102 = vadd.f32 0.0, %v8101
      %v8103 = vpop.f32.mrb[0].mxu0
      %v8104 = vpop.f32.mrb[0].mxu0
      %v8105 = vadd.f32 0.0, %v8104
      %v8106 = vpop.f32.mrb[0].mxu0
      %8107 = vmatprep.mubr.bf16.mxu0 0
      %8108 = vmatmul.mubr.bf16.gmra.mrb[0].mxu0 %v8045
      %v8109 = vpop.f32.mrb[0].mxu0
      %v8110 = vadd.f32 0.0, %v8109
      %v8111 = vpop.f32.mrb[0].mxu0
      %v8112 = vpop.f32.mrb[0].mxu0
      %v8113 = vadd.f32 0.0, %v8112
      %v8114 = vpop.f32.mrb[0].mxu0
      %8115 = vmatprep.mubr.bf16.mxu0 0
      %8116 = vmatmul.mubr.bf16.gmra.mrb[0].mxu0 %v8048
      %v8117 = vpop.f32.mrb[0].mxu0
      %v8118 = vadd.f32 0.0, %v8117
      %v8119 = vpop.f32.mrb[0].mxu0
      %v8120 = vpop.f32.mrb[0].mxu0
      %v8121 = vadd.f32 0.0, %v8120
      %v8122 = vpop.f32.mrb[0].mxu0
      %8123 = vmatprep.mubr.bf16.mxu0 0
      %8124 = vmatmul.mubr.bf16.gmra.mrb[0].mxu0 %v8051
      %v8125 = vpop.f32.mrb[0].mxu0
      %v8126 = vadd.f32 0.0, %v8125
      %v8127 = vpop.f32.mrb[0].mxu0
      %v8128 = vpop.f32.mrb[0].mxu0
      %v8129 = vadd.f32 0.0, %v8128
      %v8130 = vpop.f32.mrb[0].mxu0
      %8131 = vmatprep.mubr.bf16.mxu0 0
      %8132 = vmatmul.mubr.bf16.gmra.mrb[0].mxu0 %v8054
      %v8133 = vpop.f32.mrb[0].mxu0
      %v8134 = vadd.f32 0.0, %v8133
      %v8135 = vpop.f32.mrb[0].mxu0
      %v8136 = vpop.f32.mrb[0].mxu0
      %v8137 = vadd.f32 0.0, %v8136
      %v8138 = vpop.f32.mrb[0].mxu0
      %8139 = vmatprep.mubr.bf16.mxu0 0
      %8140 = vmatmul.mubr.bf16.gmra.mrb[0].mxu0 %v8057
      %v8141 = vpop.f32.mrb[0].mxu0
      %v8142 = vadd.f32 0.0, %v8141
      %v8143 = vpop.f32.mrb[0].mxu0
      %v8144 = vpop.f32.mrb[0].mxu0
      %v8145 = vpop.f32.mrb[0].mxu0
      %8146 = vdwg.mxu0
      %v8147 = vadd.f32 %v7650, %v8094
      %v8148 = vadd.f32 %v7651, %v8097
      %v8149 = vadd.f32 %v7652, %v8102
      %v8150 = vadd.f32 %v7653, %v8105
      %v8151 = vadd.f32 %v7654, %v8110
      %v8152 = vadd.f32 %v7655, %v8113
      %v8153 = vadd.f32 %v7656, %v8118
      %v8154 = vadd.f32 %v7657, %v8121
      %v8155 = vadd.f32 %v7658, %v8126
      %v8156 = vadd.f32 %v7659, %v8129
      %v8157 = vadd.f32 %v7660, %v8134
      %v8158 = vadd.f32 %v7661, %v8137
      %v8159 = vadd.f32 %v7662, %v8142
      %s8160 = scalar_lea.vmem %s6, 40
      %v8161 = vld [vmem:[%s8160] sm:$0xf]
      %v8162 = vld [vmem:[%s8160 + $0x4] sm:$0xf]
      %v8163 = vcombine.low %v6012, %v5247
      %v8165 = vunpack.c.l.s4 1966171168
      %v8166 = vunpack.c.0.s8 %v8165
      %v8167 = vlaneseq
      %v8168 = vshrl.u32 %v8167, 7
      %v8169 = vsub.s32 %v8166, %v8168
      %v8170 = vrot.slane %v8163, %v8169
      %v8171 = vcombine.low %v5525, %v8170
      %v8173 = vunpack.c.l.s4 1966171168
      %v8174 = vunpack.c.0.s8 %v8173
      %v8175 = vlaneseq
      %v8176 = vshrl.u32 %v8175, 7
      %v8177 = vsub.s32 %v8174, %v8176
      %v8178 = vrot.slane %v8171, %v8177
      %v8179 = vcombine.low %v5541, %v8178
      %v8180 = vcombine.low %v5256, %v6013
      %v8182 = vunpack.c.l.s4 1966171168
      %v8183 = vunpack.c.0.s8 %v8182
      %v8184 = vlaneseq
      %v8185 = vshrl.u32 %v8184, 7
      %v8186 = vsub.s32 %v8183, %v8185
      %v8187 = vrot.slane %v8180, %v8186
      %v8188 = vcombine.low %v8187, %v5581
      %v8190 = vunpack.c.l.s4 1966171168
      %v8191 = vunpack.c.0.s8 %v8190
      %v8192 = vlaneseq
      %v8193 = vshrl.u32 %v8192, 7
      %v8194 = vsub.s32 %v8191, %v8193
      %v8195 = vrot.slane %v8188, %v8194
      %v8196 = vcombine.low %v5590, %v8195
      %v8197 = vcombine.low %v6014, %v5343
      %v8199 = vunpack.c.l.s4 1966171168
      %v8200 = vunpack.c.0.s8 %v8199
      %v8201 = vlaneseq
      %v8202 = vshrl.u32 %v8201, 7
      %v8203 = vsub.s32 %v8200, %v8202
      %v8204 = vrot.slane %v8197, %v8203
      %v8205 = vcombine.low %v8204, %v5630
      %v8207 = vunpack.c.l.s4 1966171168
      %v8208 = vunpack.c.0.s8 %v8207
      %v8209 = vlaneseq
      %v8210 = vshrl.u32 %v8209, 7
      %v8211 = vsub.s32 %v8208, %v8210
      %v8212 = vrot.slane %v8205, %v8211
      %v8213 = vcombine.low %v5639, %v8212
      %v8214 = vcombine.low %v5352, %v6015
      %v8216 = vunpack.c.l.s4 1966171168
      %v8217 = vunpack.c.0.s8 %v8216
      %v8218 = vlaneseq
      %v8219 = vshrl.u32 %v8218, 7
      %v8220 = vsub.s32 %v8217, %v8219
      %v8221 = vrot.slane %v8214, %v8220
      %v8222 = vcombine.low %v5658, %v8221
      %v8224 = vunpack.c.l.s4 1966171168
      %v8225 = vunpack.c.0.s8 %v8224
      %v8226 = vlaneseq
      %v8227 = vshrl.u32 %v8226, 7
      %v8228 = vsub.s32 %v8225, %v8227
      %v8229 = vrot.slane %v8222, %v8228
      %v8230 = vcombine.low %v8229, %v5695
      %v8231 = vcombine.low %v6016, %v5439
      %v8233 = vunpack.c.l.s4 1966171168
      %v8234 = vunpack.c.0.s8 %v8233
      %v8235 = vlaneseq
      %v8236 = vshrl.u32 %v8235, 7
      %v8237 = vsub.s32 %v8234, %v8236
      %v8238 = vrot.slane %v8231, %v8237
      %v8239 = vcombine.low %v5707, %v8238
      %v8241 = vunpack.c.l.s4 1966171168
      %v8242 = vunpack.c.0.s8 %v8241
      %v8243 = vlaneseq
      %v8244 = vshrl.u32 %v8243, 7
      %v8245 = vsub.s32 %v8242, %v8244
      %v8246 = vrot.slane %v8239, %v8245
      %v8247 = vcombine.low %v8246, %v5744
      %v8248 = vcombine.low %v5448, %v6017
      %v8249 = vcombine.low %v7333, %v7341
      %v8250 = vcombine.low %v7343, %v7326
      %v8251 = vcombine.low %v7340, %v7342
      %v8253 = vunpack.c.l.s4 1966171168
      %v8254 = vunpack.c.0.s8 %v8253
      %v8255 = vlaneseq
      %v8256 = vshrl.u32 %v8255, 7
      %v8257 = vsub.s32 %v8254, %v8256
      %v8258 = vrot.slane %v8248, %v8257
      %v8260 = vunpack.c.l.s4 1966171168
      %v8261 = vunpack.c.0.s8 %v8260
      %v8262 = vlaneseq
      %v8263 = vshrl.u32 %v8262, 7
      %v8264 = vsub.s32 %v8261, %v8263
      %v8265 = vrot.slane %v8249, %v8264
      %v8267 = vunpack.c.l.s4 1966171168
      %v8268 = vunpack.c.0.s8 %v8267
      %v8269 = vlaneseq
      %v8270 = vshrl.u32 %v8269, 7
      %v8271 = vsub.s32 %v8268, %v8270
      %v8272 = vrot.slane %v8250, %v8271
      %v8274 = vunpack.c.l.s4 1966171168
      %v8275 = vunpack.c.0.s8 %v8274
      %v8276 = vlaneseq
      %v8277 = vshrl.u32 %v8276, 7
      %v8278 = vsub.s32 %v8275, %v8277
      %v8279 = vrot.slane %v8251, %v8278
      %v8280 = vcombine.low %v8258, %v8265
      %v8281 = vcombine.low %v8272, %v8279
      %v8283 = vunpack.c.l.s4 1966171168
      %v8284 = vunpack.c.0.s8 %v8283
      %v8285 = vlaneseq
      %v8286 = vshrl.u32 %v8285, 7
      %v8287 = vsub.s32 %v8284, %v8286
      %v8288 = vrot.slane %v8280, %v8287
      %v8290 = vunpack.c.l.s4 1966171168
      %v8291 = vunpack.c.0.s8 %v8290
      %v8292 = vlaneseq
      %v8293 = vshrl.u32 %v8292, 7
      %v8294 = vsub.s32 %v8291, %v8293
      %v8295 = vrot.slane %v8281, %v8294
      %v8296 = vcombine.low %v8288, %v8295
      %v8298 = vunpack.c.l.s4 1966171168
      %v8299 = vunpack.c.0.s8 %v8298
      %v8300 = vlaneseq
      %v8301 = vshrl.u32 %v8300, 7
      %v8302 = vsub.s32 %v8299, %v8301
      %v8303 = vrot.slane %v7663, %v8302
      %v8305 = vunpack.c.l.s4 1966171168
      %v8306 = vunpack.c.0.s8 %v8305
      %v8307 = vlaneseq
      %v8308 = vshrl.u32 %v8307, 7
      %v8309 = vsub.s32 %v8306, %v8308
      %v8310 = vrot.slane %v8303, %v8309
      %v8313 = vunpack.c.l.b16 %v8161
      %v8314 = vunpack.c.l.b16 %v8162
      %v8315 = vpack.c.b16 %v8314, %v8313
      %v8318 = vsel %vm379, %v8179, 0
      %v8321 = vsel %vm379, %v8196, 0
      %v8324 = vsel %vm379, %v8213, 0
      %v8327 = vsel %vm379, %v8230, 0
      %v8330 = vsel %vm379, %v8247, 0
      %v8333 = vsel %vm379, %v8296, 0
      %v8336 = vsel %vm379, %v8310, 0
      %8338 = vmatprep.subr.bf16.mxu0 0
      %8339 = vmatpush1.bf16.msra.mxu0 %v8315
      %8340 = vmatprep.subr.bf16.mxu0 0
      %8341 = vmatpush1.bf16.msra.mxu0 0
      %8342 = vmatprep.subr.bf16.mxu0 0
      %8343 = vmatpush1.bf16.msra.mxu0 0
      %8344 = vmatprep.subr.bf16.mxu0 0
      %8345 = vmatpush1.bf16.msra.mxu0 0
      %8346 = vmatprep.subr.bf16.mxu0 0
      %8347 = vmatpush1.bf16.msra.mxu0 0
      %8348 = vmatprep.subr.bf16.mxu0 0
      %8349 = vmatpush1.bf16.msra.mxu0 0
      %8350 = vmatprep.subr.bf16.mxu0 0
      %8351 = vmatpush1.bf16.msra.mxu0 0
      %8352 = vmatprep.subr.bf16.mxu0 0
      %8353 = vmatpush1.bf16.msra.mxu0 0
      %8354 = vmatprep.subr.bf16.mxu0 0
      %8355 = vmatpush1.bf16.msra.mxu0 0
      %8356 = vmatprep.subr.bf16.mxu0 0
      %8357 = vmatpush1.bf16.msra.mxu0 0
      %8358 = vmatprep.subr.bf16.mxu0 0
      %8359 = vmatpush1.bf16.msra.mxu0 0
      %8360 = vmatprep.subr.bf16.mxu0 0
      %8361 = vmatpush1.bf16.msra.mxu0 0
      %8362 = vmatprep.subr.bf16.mxu0 0
      %8363 = vmatpush1.bf16.msra.mxu0 0
      %8364 = vmatprep.subr.bf16.mxu0 0
      %8365 = vmatpush1.bf16.msra.mxu0 0
      %8366 = vmatprep.subr.bf16.mxu0 0
      %8367 = vmatpush1.bf16.msra.mxu0 0
      %8368 = vmatprep.subr.bf16.mxu0 0
      %8369 = vmatpush1.bf16.msra.mxu0 0
      %8370 = vmatprep.mubr.bf16.mxu0 0
      %8371 = vmatmul.mubr.bf16.gmra.mrb[0].mxu0 %v8318
      %v8372 = vpop.f32.mrb[0].mxu0
      %v8373 = vadd.f32 0.0, %v8372
      %v8374 = vpop.f32.mrb[0].mxu0
      %v8375 = vpop.f32.mrb[0].mxu0
      %v8376 = vadd.f32 0.0, %v8375
      %v8377 = vpop.f32.mrb[0].mxu0
      %8378 = vmatprep.mubr.bf16.mxu0 0
      %8379 = vmatmul.mubr.bf16.gmra.mrb[0].mxu0 %v8321
      %v8380 = vpop.f32.mrb[0].mxu0
      %v8381 = vadd.f32 0.0, %v8380
      %v8382 = vpop.f32.mrb[0].mxu0
      %v8383 = vpop.f32.mrb[0].mxu0
      %v8384 = vadd.f32 0.0, %v8383
      %v8385 = vpop.f32.mrb[0].mxu0
      %8386 = vmatprep.mubr.bf16.mxu0 0
      %8387 = vmatmul.mubr.bf16.gmra.mrb[0].mxu0 %v8324
      %v8388 = vpop.f32.mrb[0].mxu0
      %v8389 = vadd.f32 0.0, %v8388
      %v8390 = vpop.f32.mrb[0].mxu0
      %v8391 = vpop.f32.mrb[0].mxu0
      %v8392 = vadd.f32 0.0, %v8391
      %v8393 = vpop.f32.mrb[0].mxu0
      %8394 = vmatprep.mubr.bf16.mxu0 0
      %8395 = vmatmul.mubr.bf16.gmra.mrb[0].mxu0 %v8327
      %v8396 = vpop.f32.mrb[0].mxu0
      %v8397 = vadd.f32 0.0, %v8396
      %v8398 = vpop.f32.mrb[0].mxu0
      %v8399 = vpop.f32.mrb[0].mxu0
      %v8400 = vadd.f32 0.0, %v8399
      %v8401 = vpop.f32.mrb[0].mxu0
      %8402 = vmatprep.mubr.bf16.mxu0 0
      %8403 = vmatmul.mubr.bf16.gmra.mrb[0].mxu0 %v8330
      %v8404 = vpop.f32.mrb[0].mxu0
      %v8405 = vadd.f32 0.0, %v8404
      %v8406 = vpop.f32.mrb[0].mxu0
      %v8407 = vpop.f32.mrb[0].mxu0
      %v8408 = vadd.f32 0.0, %v8407
      %v8409 = vpop.f32.mrb[0].mxu0
      %8410 = vmatprep.mubr.bf16.mxu0 0
      %8411 = vmatmul.mubr.bf16.gmra.mrb[0].mxu0 %v8333
      %v8412 = vpop.f32.mrb[0].mxu0
      %v8413 = vadd.f32 0.0, %v8412
      %v8414 = vpop.f32.mrb[0].mxu0
      %v8415 = vpop.f32.mrb[0].mxu0
      %v8416 = vadd.f32 0.0, %v8415
      %v8417 = vpop.f32.mrb[0].mxu0
      %8418 = vmatprep.mubr.bf16.mxu0 0
      %8419 = vmatmul.mubr.bf16.gmra.mrb[0].mxu0 %v8336
      %v8420 = vpop.f32.mrb[0].mxu0
      %v8421 = vadd.f32 0.0, %v8420
      %v8422 = vpop.f32.mrb[0].mxu0
      %v8423 = vpop.f32.mrb[0].mxu0
      %v8424 = vpop.f32.mrb[0].mxu0
      %8425 = vdwg.mxu0
      %v8426 = vadd.f32 %v8147, %v8373
      %v8427 = vadd.f32 %v8148, %v8376
      %v8428 = vadd.f32 %v8149, %v8381
      %v8429 = vadd.f32 %v8150, %v8384
      %v8430 = vadd.f32 %v8151, %v8389
      %v8431 = vadd.f32 %v8152, %v8392
      %v8432 = vadd.f32 %v8153, %v8397
      %v8433 = vadd.f32 %v8154, %v8400
      %v8434 = vadd.f32 %v8155, %v8405
      %v8435 = vadd.f32 %v8156, %v8408
      %v8436 = vadd.f32 %v8157, %v8413
      %v8437 = vadd.f32 %v8158, %v8416
      %v8438 = vadd.f32 %v8159, %v8421
      %v8440 = vcombine.high %v363, %v363
      %v8442 = vunpack.c.l.s4 1966171168
      %v8443 = vunpack.c.0.s8 %v8442
      %v8444 = vlaneseq
      %v8445 = vshrl.u32 %v8444, 7
      %v8446 = vsub.s32 %v8443, %v8445
      %v8447 = vrot.slane %v363, %v8446
      %v8449 = vunpack.c.l.s4 1966171168
      %v8450 = vunpack.c.0.s8 %v8449
      %v8451 = vlaneseq
      %v8452 = vshrl.u32 %v8451, 7
      %v8453 = vsub.s32 %v8450, %v8452
      %v8454 = vrot.slane %v8440, %v8453
      %v8455 = vcombine.high %v8447, %v8447
      %v8456 = vcombine.high %v8454, %v8454
      %v8458 = vunpack.c.l.s4 1966171168
      %v8459 = vunpack.c.0.s8 %v8458
      %v8460 = vlaneseq
      %v8461 = vshrl.u32 %v8460, 7
      %v8462 = vsub.s32 %v8459, %v8461
      %v8463 = vrot.slane %v8447, %v8462
      %v8465 = vunpack.c.l.s4 1966171168
      %v8466 = vunpack.c.0.s8 %v8465
      %v8467 = vlaneseq
      %v8468 = vshrl.u32 %v8467, 7
      %v8469 = vsub.s32 %v8466, %v8468
      %v8470 = vrot.slane %v8454, %v8469
      %v8472 = vunpack.c.l.s4 1966171168
      %v8473 = vunpack.c.0.s8 %v8472
      %v8474 = vlaneseq
      %v8475 = vshrl.u32 %v8474, 7
      %v8476 = vsub.s32 %v8473, %v8475
      %v8477 = vrot.slane %v8455, %v8476
      %v8479 = vunpack.c.l.s4 1966171168
      %v8480 = vunpack.c.0.s8 %v8479
      %v8481 = vlaneseq
      %v8482 = vshrl.u32 %v8481, 7
      %v8483 = vsub.s32 %v8480, %v8482
      %v8484 = vrot.slane %v8456, %v8483
      %v8485 = vcombine.high %v8463, %v8463
      %v8486 = vcombine.high %v8470, %v8470
      %v8487 = vcombine.high %v8477, %v8477
      %s8488 = scalar_lea.vmem %s6, 48
      %v8489 = vld [vmem:[%s8488] sm:$0xf]
      %v8490 = vld [vmem:[%s8488 + $0x4] sm:$0xf]
      %v8491 = vcombine.low %v5532, %v5560
      %v8492 = vcombine.low %v5567, %v5574
      %v8494 = vunpack.c.l.s4 1966171168
      %v8495 = vunpack.c.0.s8 %v8494
      %v8496 = vlaneseq
      %v8497 = vshrl.u32 %v8496, 7
      %v8498 = vsub.s32 %v8495, %v8497
      %v8499 = vrot.slane %v8491, %v8498
      %v8501 = vunpack.c.l.s4 1966171168
      %v8502 = vunpack.c.0.s8 %v8501
      %v8503 = vlaneseq
      %v8504 = vshrl.u32 %v8503, 7
      %v8505 = vsub.s32 %v8502, %v8504
      %v8506 = vrot.slane %v8492, %v8505
      %v8507 = vcombine.low %v8499, %v8506
      %v8508 = vcombine.low %v5581, %v5609
      %v8509 = vcombine.low %v5616, %v5623
      %v8511 = vunpack.c.l.s4 1966171168
      %v8512 = vunpack.c.0.s8 %v8511
      %v8513 = vlaneseq
      %v8514 = vshrl.u32 %v8513, 7
      %v8515 = vsub.s32 %v8512, %v8514
      %v8516 = vrot.slane %v8508, %v8515
      %v8518 = vunpack.c.l.s4 1966171168
      %v8519 = vunpack.c.0.s8 %v8518
      %v8520 = vlaneseq
      %v8521 = vshrl.u32 %v8520, 7
      %v8522 = vsub.s32 %v8519, %v8521
      %v8523 = vrot.slane %v8509, %v8522
      %v8524 = vcombine.low %v8516, %v8523
      %v8525 = vcombine.low %v5630, %v5658
      %v8526 = vcombine.low %v5665, %v5672
      %v8528 = vunpack.c.l.s4 1966171168
      %v8529 = vunpack.c.0.s8 %v8528
      %v8530 = vlaneseq
      %v8531 = vshrl.u32 %v8530, 7
      %v8532 = vsub.s32 %v8529, %v8531
      %v8533 = vrot.slane %v8525, %v8532
      %v8535 = vunpack.c.l.s4 1966171168
      %v8536 = vunpack.c.0.s8 %v8535
      %v8537 = vlaneseq
      %v8538 = vshrl.u32 %v8537, 7
      %v8539 = vsub.s32 %v8536, %v8538
      %v8540 = vrot.slane %v8526, %v8539
      %v8541 = vcombine.low %v8533, %v8540
      %v8542 = vcombine.low %v5679, %v5707
      %v8543 = vcombine.low %v5714, %v5721
      %v8545 = vunpack.c.l.s4 1966171168
      %v8546 = vunpack.c.0.s8 %v8545
      %v8547 = vlaneseq
      %v8548 = vshrl.u32 %v8547, 7
      %v8549 = vsub.s32 %v8546, %v8548
      %v8550 = vrot.slane %v8542, %v8549
      %v8552 = vunpack.c.l.s4 1966171168
      %v8553 = vunpack.c.0.s8 %v8552
      %v8554 = vlaneseq
      %v8555 = vshrl.u32 %v8554, 7
      %v8556 = vsub.s32 %v8553, %v8555
      %v8557 = vrot.slane %v8543, %v8556
      %v8558 = vcombine.low %v8550, %v8557
      %v8559 = vcombine.low %v5448, %v7319
      %v8561 = vunpack.c.l.s4 1966171168
      %v8562 = vunpack.c.0.s8 %v8561
      %v8563 = vlaneseq
      %v8564 = vshrl.u32 %v8563, 7
      %v8565 = vsub.s32 %v8562, %v8564
      %v8566 = vrot.slane %v8559, %v8565
      %v8567 = vcombine.low %v5728, %v8566
      %v8568 = vcombine.low %v8265, %v8272
      %v8570 = vunpack.c.l.s4 1966171168
      %v8571 = vunpack.c.0.s8 %v8570
      %v8572 = vlaneseq
      %v8573 = vshrl.u32 %v8572, 7
      %v8574 = vsub.s32 %v8571, %v8573
      %v8575 = vrot.slane %v8567, %v8574
      %v8577 = vunpack.c.l.s4 1966171168
      %v8578 = vunpack.c.0.s8 %v8577
      %v8579 = vlaneseq
      %v8580 = vshrl.u32 %v8579, 7
      %v8581 = vsub.s32 %v8578, %v8580
      %v8582 = vrot.slane %v8568, %v8581
      %v8583 = vcombine.low %v8575, %v8582
      %v8584 = vcombine.low %v8463, %v8477
      %v8585 = vcombine.low %v8485, %v8487
      %v8586 = vcombine.low %v8470, %v8484
      %v8588 = vunpack.c.l.s4 1966171168
      %v8589 = vunpack.c.0.s8 %v8588
      %v8590 = vlaneseq
      %v8591 = vshrl.u32 %v8590, 7
      %v8592 = vsub.s32 %v8589, %v8591
      %v8593 = vrot.slane %v8584, %v8592
      %v8595 = vunpack.c.l.s4 1966171168
      %v8596 = vunpack.c.0.s8 %v8595
      %v8597 = vlaneseq
      %v8598 = vshrl.u32 %v8597, 7
      %v8599 = vsub.s32 %v8596, %v8598
      %v8600 = vrot.slane %v8585, %v8599
      %v8602 = vunpack.c.l.s4 1966171168
      %v8603 = vunpack.c.0.s8 %v8602
      %v8604 = vlaneseq
      %v8605 = vshrl.u32 %v8604, 7
      %v8606 = vsub.s32 %v8603, %v8605
      %v8607 = vrot.slane %v8586, %v8606
      %v8608 = vcombine.low %v8279, %v8593
      %v8609 = vcombine.low %v8600, %v8607
      %v8611 = vunpack.c.l.s4 1966171168
      %v8612 = vunpack.c.0.s8 %v8611
      %v8613 = vlaneseq
      %v8614 = vshrl.u32 %v8613, 7
      %v8615 = vsub.s32 %v8612, %v8614
      %v8616 = vrot.slane %v8608, %v8615
      %v8618 = vunpack.c.l.s4 1966171168
      %v8619 = vunpack.c.0.s8 %v8618
      %v8620 = vlaneseq
      %v8621 = vshrl.u32 %v8620, 7
      %v8622 = vsub.s32 %v8619, %v8621
      %v8623 = vrot.slane %v8609, %v8622
      %v8624 = vcombine.low %v8616, %v8623
      %v8626 = vunpack.c.l.s4 1966171168
      %v8627 = vunpack.c.0.s8 %v8626
      %v8628 = vlaneseq
      %v8629 = vshrl.u32 %v8628, 7
      %v8630 = vsub.s32 %v8627, %v8629
      %v8631 = vrot.slane %v8486, %v8630
      %v8633 = vunpack.c.l.s4 1966171168
      %v8634 = vunpack.c.0.s8 %v8633
      %v8635 = vlaneseq
      %v8636 = vshrl.u32 %v8635, 7
      %v8637 = vsub.s32 %v8634, %v8636
      %v8638 = vrot.slane %v8631, %v8637
      %v8641 = vunpack.c.l.b16 %v8489
      %v8642 = vunpack.c.l.b16 %v8490
      %v8643 = vpack.c.b16 %v8642, %v8641
      %v8646 = vsel %vm379, %v8507, 0
      %v8649 = vsel %vm379, %v8524, 0
      %v8652 = vsel %vm379, %v8541, 0
      %v8655 = vsel %vm379, %v8558, 0
      %v8658 = vsel %vm379, %v8583, 0
      %v8661 = vsel %vm379, %v8624, 0
      %v8664 = vsel %vm379, %v8638, 0
      %8666 = vmatprep.subr.bf16.mxu0 0
      %8667 = vmatpush1.bf16.msra.mxu0 %v8643
      %8668 = vmatprep.subr.bf16.mxu0 0
      %8669 = vmatpush1.bf16.msra.mxu0 0
      %8670 = vmatprep.subr.bf16.mxu0 0
      %8671 = vmatpush1.bf16.msra.mxu0 0
      %8672 = vmatprep.subr.bf16.mxu0 0
      %8673 = vmatpush1.bf16.msra.mxu0 0
      %8674 = vmatprep.subr.bf16.mxu0 0
      %8675 = vmatpush1.bf16.msra.mxu0 0
      %8676 = vmatprep.subr.bf16.mxu0 0
      %8677 = vmatpush1.bf16.msra.mxu0 0
      %8678 = vmatprep.subr.bf16.mxu0 0
      %8679 = vmatpush1.bf16.msra.mxu0 0
      %8680 = vmatprep.subr.bf16.mxu0 0
      %8681 = vmatpush1.bf16.msra.mxu0 0
      %8682 = vmatprep.subr.bf16.mxu0 0
      %8683 = vmatpush1.bf16.msra.mxu0 0
      %8684 = vmatprep.subr.bf16.mxu0 0
      %8685 = vmatpush1.bf16.msra.mxu0 0
      %8686 = vmatprep.subr.bf16.mxu0 0
      %8687 = vmatpush1.bf16.msra.mxu0 0
      %8688 = vmatprep.subr.bf16.mxu0 0
      %8689 = vmatpush1.bf16.msra.mxu0 0
      %8690 = vmatprep.subr.bf16.mxu0 0
      %8691 = vmatpush1.bf16.msra.mxu0 0
      %8692 = vmatprep.subr.bf16.mxu0 0
      %8693 = vmatpush1.bf16.msra.mxu0 0
      %8694 = vmatprep.subr.bf16.mxu0 0
      %8695 = vmatpush1.bf16.msra.mxu0 0
      %8696 = vmatprep.subr.bf16.mxu0 0
      %8697 = vmatpush1.bf16.msra.mxu0 0
      %8698 = vmatprep.mubr.bf16.mxu0 0
      %8699 = vmatmul.mubr.bf16.gmra.mrb[0].mxu0 %v8646
      %v8700 = vpop.f32.mrb[0].mxu0
      %v8701 = vadd.f32 0.0, %v8700
      %v8702 = vpop.f32.mrb[0].mxu0
      %v8703 = vpop.f32.mrb[0].mxu0
      %v8704 = vadd.f32 0.0, %v8703
      %v8705 = vpop.f32.mrb[0].mxu0
      %8706 = vmatprep.mubr.bf16.mxu0 0
      %8707 = vmatmul.mubr.bf16.gmra.mrb[0].mxu0 %v8649
      %v8708 = vpop.f32.mrb[0].mxu0
      %v8709 = vadd.f32 0.0, %v8708
      %v8710 = vpop.f32.mrb[0].mxu0
      %v8711 = vpop.f32.mrb[0].mxu0
      %v8712 = vadd.f32 0.0, %v8711
      %v8713 = vpop.f32.mrb[0].mxu0
      %8714 = vmatprep.mubr.bf16.mxu0 0
      %8715 = vmatmul.mubr.bf16.gmra.mrb[0].mxu0 %v8652
      %v8716 = vpop.f32.mrb[0].mxu0
      %v8717 = vadd.f32 0.0, %v8716
      %v8718 = vpop.f32.mrb[0].mxu0
      %v8719 = vpop.f32.mrb[0].mxu0
      %v8720 = vadd.f32 0.0, %v8719
      %v8721 = vpop.f32.mrb[0].mxu0
      %8722 = vmatprep.mubr.bf16.mxu0 0
      %8723 = vmatmul.mubr.bf16.gmra.mrb[0].mxu0 %v8655
      %v8724 = vpop.f32.mrb[0].mxu0
      %v8725 = vadd.f32 0.0, %v8724
      %v8726 = vpop.f32.mrb[0].mxu0
      %v8727 = vpop.f32.mrb[0].mxu0
      %v8728 = vadd.f32 0.0, %v8727
      %v8729 = vpop.f32.mrb[0].mxu0
      %8730 = vmatprep.mubr.bf16.mxu0 0
      %8731 = vmatmul.mubr.bf16.gmra.mrb[0].mxu0 %v8658
      %v8732 = vpop.f32.mrb[0].mxu0
      %v8733 = vadd.f32 0.0, %v8732
      %v8734 = vpop.f32.mrb[0].mxu0
      %v8735 = vpop.f32.mrb[0].mxu0
      %v8736 = vadd.f32 0.0, %v8735
      %v8737 = vpop.f32.mrb[0].mxu0
      %8738 = vmatprep.mubr.bf16.mxu0 0
      %8739 = vmatmul.mubr.bf16.gmra.mrb[0].mxu0 %v8661
      %v8740 = vpop.f32.mrb[0].mxu0
      %v8741 = vadd.f32 0.0, %v8740
      %v8742 = vpop.f32.mrb[0].mxu0
      %v8743 = vpop.f32.mrb[0].mxu0
      %v8744 = vadd.f32 0.0, %v8743
      %v8745 = vpop.f32.mrb[0].mxu0
      %8746 = vmatprep.mubr.bf16.mxu0 0
      %8747 = vmatmul.mubr.bf16.gmra.mrb[0].mxu0 %v8664
      %v8748 = vpop.f32.mrb[0].mxu0
      %v8749 = vadd.f32 0.0, %v8748
      %v8750 = vpop.f32.mrb[0].mxu0
      %v8751 = vpop.f32.mrb[0].mxu0
      %v8752 = vpop.f32.mrb[0].mxu0
      %8753 = vdwg.mxu0
      %v8754 = vadd.f32 %v8426, %v8701
      %v8755 = vadd.f32 %v8427, %v8704
      %v8756 = vadd.f32 %v8428, %v8709
      %v8757 = vadd.f32 %v8429, %v8712
      %v8758 = vadd.f32 %v8430, %v8717
      %v8759 = vadd.f32 %v8431, %v8720
      %v8760 = vadd.f32 %v8432, %v8725
      %v8761 = vadd.f32 %v8433, %v8728
      %v8762 = vadd.f32 %v8434, %v8733
      %v8763 = vadd.f32 %v8435, %v8736
      %v8764 = vadd.f32 %v8436, %v8741
      %v8765 = vadd.f32 %v8437, %v8744
      %v8766 = vadd.f32 %v8438, %v8749
      %v8767 = vcombine.high %v8484, %v8484
      %v8769 = vshrl.u32 %v8463, 16
      %v8771 = vrot.slane %v8769, 7
      %v8772 = vrot.slane %v8771, 1
      %v8774 = vshll.u32 %v8477, 16
      %v8776 = vsel %vm919, %v8772, %v8774
      %v8777 = vshrl.u32 %v8477, 16
      %v8779 = vrot.slane %v8777, 7
      %v8780 = vrot.slane %v8779, 1
      %v8782 = vshll.u32 %v8485, 16
      %v8784 = vsel %vm919, %v8780, %v8782
      %v8785 = vshrl.u32 %v8485, 16
      %v8787 = vrot.slane %v8785, 7
      %v8788 = vrot.slane %v8787, 1
      %v8790 = vshll.u32 %v8487, 16
      %v8792 = vsel %vm919, %v8788, %v8790
      %v8793 = vshrl.u32 %v8487, 16
      %v8795 = vrot.slane %v8793, 7
      %v8796 = vrot.slane %v8795, 1
      %v8798 = vshll.u32 %v8470, 16
      %v8800 = vsel %vm919, %v8796, %v8798
      %v8801 = vshrl.u32 %v8470, 16
      %v8803 = vrot.slane %v8801, 7
      %v8804 = vrot.slane %v8803, 1
      %v8806 = vshll.u32 %v8484, 16
      %v8808 = vsel %vm919, %v8804, %v8806
      %v8809 = vshrl.u32 %v8484, 16
      %v8811 = vrot.slane %v8809, 7
      %v8812 = vrot.slane %v8811, 1
      %v8814 = vshll.u32 %v8486, 16
      %v8816 = vsel %vm919, %v8812, %v8814
      %v8817 = vshrl.u32 %v8486, 16
      %v8819 = vrot.slane %v8817, 7
      %v8820 = vrot.slane %v8819, 1
      %v8822 = vshll.u32 %v8767, 16
      %v8824 = vsel %vm919, %v8820, %v8822
      %s8825 = scalar_lea.vmem %s6, 56
      %v8826 = vld [vmem:[%s8825] sm:$0xf]
      %v8827 = vld [vmem:[%s8825 + $0x4] sm:$0xf]
      %v8828 = vcombine.low %v6500, %v6528
      %v8829 = vcombine.low %v6535, %v6542
      %v8831 = vunpack.c.l.s4 1966171168
      %v8832 = vunpack.c.0.s8 %v8831
      %v8833 = vlaneseq
      %v8834 = vshrl.u32 %v8833, 7
      %v8835 = vsub.s32 %v8832, %v8834
      %v8836 = vrot.slane %v8828, %v8835
      %v8838 = vunpack.c.l.s4 1966171168
      %v8839 = vunpack.c.0.s8 %v8838
      %v8840 = vlaneseq
      %v8841 = vshrl.u32 %v8840, 7
      %v8842 = vsub.s32 %v8839, %v8841
      %v8843 = vrot.slane %v8829, %v8842
      %v8844 = vcombine.low %v8836, %v8843
      %v8845 = vcombine.low %v6549, %v6577
      %v8846 = vcombine.low %v6584, %v6591
      %v8848 = vunpack.c.l.s4 1966171168
      %v8849 = vunpack.c.0.s8 %v8848
      %v8850 = vlaneseq
      %v8851 = vshrl.u32 %v8850, 7
      %v8852 = vsub.s32 %v8849, %v8851
      %v8853 = vrot.slane %v8845, %v8852
      %v8855 = vunpack.c.l.s4 1966171168
      %v8856 = vunpack.c.0.s8 %v8855
      %v8857 = vlaneseq
      %v8858 = vshrl.u32 %v8857, 7
      %v8859 = vsub.s32 %v8856, %v8858
      %v8860 = vrot.slane %v8846, %v8859
      %v8861 = vcombine.low %v8853, %v8860
      %v8862 = vcombine.low %v6598, %v6626
      %v8863 = vcombine.low %v6633, %v6640
      %v8865 = vunpack.c.l.s4 1966171168
      %v8866 = vunpack.c.0.s8 %v8865
      %v8867 = vlaneseq
      %v8868 = vshrl.u32 %v8867, 7
      %v8869 = vsub.s32 %v8866, %v8868
      %v8870 = vrot.slane %v8862, %v8869
      %v8872 = vunpack.c.l.s4 1966171168
      %v8873 = vunpack.c.0.s8 %v8872
      %v8874 = vlaneseq
      %v8875 = vshrl.u32 %v8874, 7
      %v8876 = vsub.s32 %v8873, %v8875
      %v8877 = vrot.slane %v8863, %v8876
      %v8878 = vcombine.low %v8870, %v8877
      %v8879 = vcombine.low %v6647, %v6675
      %v8880 = vcombine.low %v6682, %v6689
      %v8882 = vunpack.c.l.s4 1966171168
      %v8883 = vunpack.c.0.s8 %v8882
      %v8884 = vlaneseq
      %v8885 = vshrl.u32 %v8884, 7
      %v8886 = vsub.s32 %v8883, %v8885
      %v8887 = vrot.slane %v8879, %v8886
      %v8889 = vunpack.c.l.s4 1966171168
      %v8890 = vunpack.c.0.s8 %v8889
      %v8891 = vlaneseq
      %v8892 = vshrl.u32 %v8891, 7
      %v8893 = vsub.s32 %v8890, %v8892
      %v8894 = vrot.slane %v8880, %v8893
      %v8895 = vcombine.low %v8887, %v8894
      %v8896 = vcombine.low %v6416, %v7672
      %v8897 = vcombine.low %v7680, %v7688
      %v8898 = vcombine.low %v7696, %v7704
      %v8900 = vunpack.c.l.s4 1966171168
      %v8901 = vunpack.c.0.s8 %v8900
      %v8902 = vlaneseq
      %v8903 = vshrl.u32 %v8902, 7
      %v8904 = vsub.s32 %v8901, %v8903
      %v8905 = vrot.slane %v8896, %v8904
      %v8907 = vunpack.c.l.s4 1966171168
      %v8908 = vunpack.c.0.s8 %v8907
      %v8909 = vlaneseq
      %v8910 = vshrl.u32 %v8909, 7
      %v8911 = vsub.s32 %v8908, %v8910
      %v8912 = vrot.slane %v8897, %v8911
      %v8914 = vunpack.c.l.s4 1966171168
      %v8915 = vunpack.c.0.s8 %v8914
      %v8916 = vlaneseq
      %v8917 = vshrl.u32 %v8916, 7
      %v8918 = vsub.s32 %v8915, %v8917
      %v8919 = vrot.slane %v8898, %v8918
      %v8920 = vcombine.low %v6696, %v8905
      %v8921 = vcombine.low %v8912, %v8919
      %v8923 = vunpack.c.l.s4 1966171168
      %v8924 = vunpack.c.0.s8 %v8923
      %v8925 = vlaneseq
      %v8926 = vshrl.u32 %v8925, 7
      %v8927 = vsub.s32 %v8924, %v8926
      %v8928 = vrot.slane %v8920, %v8927
      %v8930 = vunpack.c.l.s4 1966171168
      %v8931 = vunpack.c.0.s8 %v8930
      %v8932 = vlaneseq
      %v8933 = vshrl.u32 %v8932, 7
      %v8934 = vsub.s32 %v8931, %v8933
      %v8935 = vrot.slane %v8921, %v8934
      %v8936 = vcombine.low %v8928, %v8935
      %v8937 = vcombine.low %v7712, %v7720
      %v8938 = vcombine.low %v8776, %v8784
      %v8939 = vcombine.low %v8792, %v8800
      %v8940 = vcombine.low %v8808, %v8816
      %v8942 = vunpack.c.l.s4 1966171168
      %v8943 = vunpack.c.0.s8 %v8942
      %v8944 = vlaneseq
      %v8945 = vshrl.u32 %v8944, 7
      %v8946 = vsub.s32 %v8943, %v8945
      %v8947 = vrot.slane %v8937, %v8946
      %v8949 = vunpack.c.l.s4 1966171168
      %v8950 = vunpack.c.0.s8 %v8949
      %v8951 = vlaneseq
      %v8952 = vshrl.u32 %v8951, 7
      %v8953 = vsub.s32 %v8950, %v8952
      %v8954 = vrot.slane %v8938, %v8953
      %v8956 = vunpack.c.l.s4 1966171168
      %v8957 = vunpack.c.0.s8 %v8956
      %v8958 = vlaneseq
      %v8959 = vshrl.u32 %v8958, 7
      %v8960 = vsub.s32 %v8957, %v8959
      %v8961 = vrot.slane %v8939, %v8960
      %v8963 = vunpack.c.l.s4 1966171168
      %v8964 = vunpack.c.0.s8 %v8963
      %v8965 = vlaneseq
      %v8966 = vshrl.u32 %v8965, 7
      %v8967 = vsub.s32 %v8964, %v8966
      %v8968 = vrot.slane %v8940, %v8967
      %v8969 = vcombine.low %v8947, %v8954
      %v8970 = vcombine.low %v8961, %v8968
      %v8972 = vunpack.c.l.s4 1966171168
      %v8973 = vunpack.c.0.s8 %v8972
      %v8974 = vlaneseq
      %v8975 = vshrl.u32 %v8974, 7
      %v8976 = vsub.s32 %v8973, %v8975
      %v8977 = vrot.slane %v8969, %v8976
      %v8979 = vunpack.c.l.s4 1966171168
      %v8980 = vunpack.c.0.s8 %v8979
      %v8981 = vlaneseq
      %v8982 = vshrl.u32 %v8981, 7
      %v8983 = vsub.s32 %v8980, %v8982
      %v8984 = vrot.slane %v8970, %v8983
      %v8985 = vcombine.low %v8977, %v8984
      %v8987 = vunpack.c.l.s4 1966171168
      %v8988 = vunpack.c.0.s8 %v8987
      %v8989 = vlaneseq
      %v8990 = vshrl.u32 %v8989, 7
      %v8991 = vsub.s32 %v8988, %v8990
      %v8992 = vrot.slane %v8824, %v8991
      %v8994 = vunpack.c.l.s4 1966171168
      %v8995 = vunpack.c.0.s8 %v8994
      %v8996 = vlaneseq
      %v8997 = vshrl.u32 %v8996, 7
      %v8998 = vsub.s32 %v8995, %v8997
      %v8999 = vrot.slane %v8992, %v8998
      %v9002 = vunpack.c.l.b16 %v8826
      %v9003 = vunpack.c.l.b16 %v8827
      %v9004 = vpack.c.b16 %v9003, %v9002
      %v9007 = vsel %vm379, %v8844, 0
      %v9010 = vsel %vm379, %v8861, 0
      %v9013 = vsel %vm379, %v8878, 0
      %v9016 = vsel %vm379, %v8895, 0
      %v9019 = vsel %vm379, %v8936, 0
      %v9022 = vsel %vm379, %v8985, 0
      %v9025 = vsel %vm379, %v8999, 0
      %9027 = vmatprep.subr.bf16.mxu0 0
      %9028 = vmatpush1.bf16.msra.mxu0 %v9004
      %9029 = vmatprep.subr.bf16.mxu0 0
      %9030 = vmatpush1.bf16.msra.mxu0 0
      %9031 = vmatprep.subr.bf16.mxu0 0
      %9032 = vmatpush1.bf16.msra.mxu0 0
      %9033 = vmatprep.subr.bf16.mxu0 0
      %9034 = vmatpush1.bf16.msra.mxu0 0
      %9035 = vmatprep.subr.bf16.mxu0 0
      %9036 = vmatpush1.bf16.msra.mxu0 0
      %9037 = vmatprep.subr.bf16.mxu0 0
      %9038 = vmatpush1.bf16.msra.mxu0 0
      %9039 = vmatprep.subr.bf16.mxu0 0
      %9040 = vmatpush1.bf16.msra.mxu0 0
      %9041 = vmatprep.subr.bf16.mxu0 0
      %9042 = vmatpush1.bf16.msra.mxu0 0
      %9043 = vmatprep.subr.bf16.mxu0 0
      %9044 = vmatpush1.bf16.msra.mxu0 0
      %9045 = vmatprep.subr.bf16.mxu0 0
      %9046 = vmatpush1.bf16.msra.mxu0 0
      %9047 = vmatprep.subr.bf16.mxu0 0
      %9048 = vmatpush1.bf16.msra.mxu0 0
      %9049 = vmatprep.subr.bf16.mxu0 0
      %9050 = vmatpush1.bf16.msra.mxu0 0
      %9051 = vmatprep.subr.bf16.mxu0 0
      %9052 = vmatpush1.bf16.msra.mxu0 0
      %9053 = vmatprep.subr.bf16.mxu0 0
      %9054 = vmatpush1.bf16.msra.mxu0 0
      %9055 = vmatprep.subr.bf16.mxu0 0
      %9056 = vmatpush1.bf16.msra.mxu0 0
      %9057 = vmatprep.subr.bf16.mxu0 0
      %9058 = vmatpush1.bf16.msra.mxu0 0
      %9059 = vmatprep.mubr.bf16.mxu0 0
      %9060 = vmatmul.mubr.bf16.gmra.mrb[0].mxu0 %v9007
      %v9061 = vpop.f32.mrb[0].mxu0
      %v9062 = vadd.f32 0.0, %v9061
      %v9063 = vpop.f32.mrb[0].mxu0
      %v9064 = vpop.f32.mrb[0].mxu0
      %v9065 = vadd.f32 0.0, %v9064
      %v9066 = vpop.f32.mrb[0].mxu0
      %9067 = vmatprep.mubr.bf16.mxu0 0
      %9068 = vmatmul.mubr.bf16.gmra.mrb[0].mxu0 %v9010
      %v9069 = vpop.f32.mrb[0].mxu0
      %v9070 = vadd.f32 0.0, %v9069
      %v9071 = vpop.f32.mrb[0].mxu0
      %v9072 = vpop.f32.mrb[0].mxu0
      %v9073 = vadd.f32 0.0, %v9072
      %v9074 = vpop.f32.mrb[0].mxu0
      %9075 = vmatprep.mubr.bf16.mxu0 0
      %9076 = vmatmul.mubr.bf16.gmra.mrb[0].mxu0 %v9013
      %v9077 = vpop.f32.mrb[0].mxu0
      %v9078 = vadd.f32 0.0, %v9077
      %v9079 = vpop.f32.mrb[0].mxu0
      %v9080 = vpop.f32.mrb[0].mxu0
      %v9081 = vadd.f32 0.0, %v9080
      %v9082 = vpop.f32.mrb[0].mxu0
      %9083 = vmatprep.mubr.bf16.mxu0 0
      %9084 = vmatmul.mubr.bf16.gmra.mrb[0].mxu0 %v9016
      %v9085 = vpop.f32.mrb[0].mxu0
      %v9086 = vadd.f32 0.0, %v9085
      %v9087 = vpop.f32.mrb[0].mxu0
      %v9088 = vpop.f32.mrb[0].mxu0
      %v9089 = vadd.f32 0.0, %v9088
      %v9090 = vpop.f32.mrb[0].mxu0
      %9091 = vmatprep.mubr.bf16.mxu0 0
      %9092 = vmatmul.mubr.bf16.gmra.mrb[0].mxu0 %v9019
      %v9093 = vpop.f32.mrb[0].mxu0
      %v9094 = vadd.f32 0.0, %v9093
      %v9095 = vpop.f32.mrb[0].mxu0
      %v9096 = vpop.f32.mrb[0].mxu0
      %v9097 = vadd.f32 0.0, %v9096
      %v9098 = vpop.f32.mrb[0].mxu0
      %9099 = vmatprep.mubr.bf16.mxu0 0
      %9100 = vmatmul.mubr.bf16.gmra.mrb[0].mxu0 %v9022
      %v9101 = vpop.f32.mrb[0].mxu0
      %v9102 = vadd.f32 0.0, %v9101
      %v9103 = vpop.f32.mrb[0].mxu0
      %v9104 = vpop.f32.mrb[0].mxu0
      %v9105 = vadd.f32 0.0, %v9104
      %v9106 = vpop.f32.mrb[0].mxu0
      %9107 = vmatprep.mubr.bf16.mxu0 0
      %9108 = vmatmul.mubr.bf16.gmra.mrb[0].mxu0 %v9025
      %v9109 = vpop.f32.mrb[0].mxu0
      %v9110 = vadd.f32 0.0, %v9109
      %v9111 = vpop.f32.mrb[0].mxu0
      %v9112 = vpop.f32.mrb[0].mxu0
      %v9113 = vpop.f32.mrb[0].mxu0
      %9114 = vdwg.mxu0
      %v9115 = vadd.f32 %v8754, %v9062
      %v9116 = vadd.f32 %v8755, %v9065
      %v9117 = vadd.f32 %v8756, %v9070
      %v9118 = vadd.f32 %v8757, %v9073
      %v9119 = vadd.f32 %v8758, %v9078
      %v9120 = vadd.f32 %v8759, %v9081
      %v9121 = vadd.f32 %v8760, %v9086
      %v9122 = vadd.f32 %v8761, %v9089
      %v9123 = vadd.f32 %v8762, %v9094
      %v9124 = vadd.f32 %v8763, %v9097
      %v9125 = vadd.f32 %v8764, %v9102
      %v9126 = vadd.f32 %v8765, %v9105
      %v9127 = vadd.f32 %v8766, %v9110
      %s9128 = scalar_lea.vmem %s6, 64
      %v9129 = vld [vmem:[%s9128] sm:$0xf]
      %v9130 = vld [vmem:[%s9128 + $0x4] sm:$0xf]
      %v9131 = vcombine.low %v6974, %v6981
      %v9133 = vunpack.c.l.s4 1966171168
      %v9134 = vunpack.c.0.s8 %v9133
      %v9135 = vlaneseq
      %v9136 = vshrl.u32 %v9135, 7
      %v9137 = vsub.s32 %v9134, %v9136
      %v9138 = vrot.slane %v9131, %v9137
      %v9139 = vcombine.low %v7396, %v9138
      %v9140 = vcombine.low %v7023, %v7030
      %v9142 = vunpack.c.l.s4 1966171168
      %v9143 = vunpack.c.0.s8 %v9142
      %v9144 = vlaneseq
      %v9145 = vshrl.u32 %v9144, 7
      %v9146 = vsub.s32 %v9143, %v9145
      %v9147 = vrot.slane %v9140, %v9146
      %v9148 = vcombine.low %v7421, %v9147
      %v9149 = vcombine.low %v7072, %v7079
      %v9151 = vunpack.c.l.s4 1966171168
      %v9152 = vunpack.c.0.s8 %v9151
      %v9153 = vlaneseq
      %v9154 = vshrl.u32 %v9153, 7
      %v9155 = vsub.s32 %v9152, %v9154
      %v9156 = vrot.slane %v9149, %v9155
      %v9157 = vcombine.low %v7446, %v9156
      %v9158 = vcombine.low %v7086, %v7114
      %v9160 = vunpack.c.l.s4 1966171168
      %v9161 = vunpack.c.0.s8 %v9160
      %v9162 = vlaneseq
      %v9163 = vshrl.u32 %v9162, 7
      %v9164 = vsub.s32 %v9161, %v9163
      %v9165 = vrot.slane %v9158, %v9164
      %v9166 = vcombine.low %v9165, %v7478
      %v9167 = vcombine.low %v6017, %v7333
      %v9169 = vunpack.c.l.s4 1966171168
      %v9170 = vunpack.c.0.s8 %v9169
      %v9171 = vlaneseq
      %v9172 = vshrl.u32 %v9171, 7
      %v9173 = vsub.s32 %v9170, %v9172
      %v9174 = vrot.slane %v9167, %v9173
      %v9175 = vcombine.low %v7135, %v9174
      %v9177 = vunpack.c.l.s4 1966171168
      %v9178 = vunpack.c.0.s8 %v9177
      %v9179 = vlaneseq
      %v9180 = vshrl.u32 %v9179, 7
      %v9181 = vsub.s32 %v9178, %v9180
      %v9182 = vrot.slane %v9175, %v9181
      %v9183 = vcombine.low %v9182, %v7519
      %v9184 = vcombine.low %v7342, %v7663
      %v9185 = vcombine.low %v8477, %v8485
      %v9186 = vcombine.low %v8487, %v8470
      %v9187 = vcombine.low %v8484, %v8486
      %v9189 = vunpack.c.l.s4 1966171168
      %v9190 = vunpack.c.0.s8 %v9189
      %v9191 = vlaneseq
      %v9192 = vshrl.u32 %v9191, 7
      %v9193 = vsub.s32 %v9190, %v9192
      %v9194 = vrot.slane %v9184, %v9193
      %v9196 = vunpack.c.l.s4 1966171168
      %v9197 = vunpack.c.0.s8 %v9196
      %v9198 = vlaneseq
      %v9199 = vshrl.u32 %v9198, 7
      %v9200 = vsub.s32 %v9197, %v9199
      %v9201 = vrot.slane %v9185, %v9200
      %v9203 = vunpack.c.l.s4 1966171168
      %v9204 = vunpack.c.0.s8 %v9203
      %v9205 = vlaneseq
      %v9206 = vshrl.u32 %v9205, 7
      %v9207 = vsub.s32 %v9204, %v9206
      %v9208 = vrot.slane %v9186, %v9207
      %v9210 = vunpack.c.l.s4 1966171168
      %v9211 = vunpack.c.0.s8 %v9210
      %v9212 = vlaneseq
      %v9213 = vshrl.u32 %v9212, 7
      %v9214 = vsub.s32 %v9211, %v9213
      %v9215 = vrot.slane %v9187, %v9214
      %v9216 = vcombine.low %v9194, %v9201
      %v9217 = vcombine.low %v9208, %v9215
      %v9219 = vunpack.c.l.s4 1966171168
      %v9220 = vunpack.c.0.s8 %v9219
      %v9221 = vlaneseq
      %v9222 = vshrl.u32 %v9221, 7
      %v9223 = vsub.s32 %v9220, %v9222
      %v9224 = vrot.slane %v9216, %v9223
      %v9226 = vunpack.c.l.s4 1966171168
      %v9227 = vunpack.c.0.s8 %v9226
      %v9228 = vlaneseq
      %v9229 = vshrl.u32 %v9228, 7
      %v9230 = vsub.s32 %v9227, %v9229
      %v9231 = vrot.slane %v9217, %v9230
      %v9232 = vcombine.low %v9224, %v9231
      %v9234 = vunpack.c.l.s4 1966171168
      %v9235 = vunpack.c.0.s8 %v9234
      %v9236 = vlaneseq
      %v9237 = vshrl.u32 %v9236, 7
      %v9238 = vsub.s32 %v9235, %v9237
      %v9239 = vrot.slane %v8767, %v9238
      %v9241 = vunpack.c.l.s4 1966171168
      %v9242 = vunpack.c.0.s8 %v9241
      %v9243 = vlaneseq
      %v9244 = vshrl.u32 %v9243, 7
      %v9245 = vsub.s32 %v9242, %v9244
      %v9246 = vrot.slane %v9239, %v9245
      %v9249 = vunpack.c.l.b16 %v9129
      %v9250 = vunpack.c.l.b16 %v9130
      %v9251 = vpack.c.b16 %v9250, %v9249
      %v9254 = vsel %vm379, %v9139, 0
      %v9257 = vsel %vm379, %v9148, 0
      %v9260 = vsel %vm379, %v9157, 0
      %v9263 = vsel %vm379, %v9166, 0
      %v9266 = vsel %vm379, %v9183, 0
      %v9269 = vsel %vm379, %v9232, 0
      %v9272 = vsel %vm379, %v9246, 0
      %9274 = vmatprep.subr.bf16.mxu0 0
      %9275 = vmatpush1.bf16.msra.mxu0 %v9251
      %9276 = vmatprep.subr.bf16.mxu0 0
      %9277 = vmatpush1.bf16.msra.mxu0 0
      %9278 = vmatprep.subr.bf16.mxu0 0
      %9279 = vmatpush1.bf16.msra.mxu0 0
      %9280 = vmatprep.subr.bf16.mxu0 0
      %9281 = vmatpush1.bf16.msra.mxu0 0
      %9282 = vmatprep.subr.bf16.mxu0 0
      %9283 = vmatpush1.bf16.msra.mxu0 0
      %9284 = vmatprep.subr.bf16.mxu0 0
      %9285 = vmatpush1.bf16.msra.mxu0 0
      %9286 = vmatprep.subr.bf16.mxu0 0
      %9287 = vmatpush1.bf16.msra.mxu0 0
      %9288 = vmatprep.subr.bf16.mxu0 0
      %9289 = vmatpush1.bf16.msra.mxu0 0
      %9290 = vmatprep.subr.bf16.mxu0 0
      %9291 = vmatpush1.bf16.msra.mxu0 0
      %9292 = vmatprep.subr.bf16.mxu0 0
      %9293 = vmatpush1.bf16.msra.mxu0 0
      %9294 = vmatprep.subr.bf16.mxu0 0
      %9295 = vmatpush1.bf16.msra.mxu0 0
      %9296 = vmatprep.subr.bf16.mxu0 0
      %9297 = vmatpush1.bf16.msra.mxu0 0
      %9298 = vmatprep.subr.bf16.mxu0 0
      %9299 = vmatpush1.bf16.msra.mxu0 0
      %9300 = vmatprep.subr.bf16.mxu0 0
      %9301 = vmatpush1.bf16.msra.mxu0 0
      %9302 = vmatprep.subr.bf16.mxu0 0
      %9303 = vmatpush1.bf16.msra.mxu0 0
      %9304 = vmatprep.subr.bf16.mxu0 0
      %9305 = vmatpush1.bf16.msra.mxu0 0
      %9306 = vmatprep.mubr.bf16.mxu0 0
      %9307 = vmatmul.mubr.bf16.gmra.mrb[0].mxu0 %v9254
      %v9308 = vpop.f32.mrb[0].mxu0
      %v9309 = vadd.f32 0.0, %v9308
      %v9310 = vpop.f32.mrb[0].mxu0
      %v9311 = vpop.f32.mrb[0].mxu0
      %v9312 = vadd.f32 0.0, %v9311
      %v9313 = vpop.f32.mrb[0].mxu0
      %9314 = vmatprep.mubr.bf16.mxu0 0
      %9315 = vmatmul.mubr.bf16.gmra.mrb[0].mxu0 %v9257
      %v9316 = vpop.f32.mrb[0].mxu0
      %v9317 = vadd.f32 0.0, %v9316
      %v9318 = vpop.f32.mrb[0].mxu0
      %v9319 = vpop.f32.mrb[0].mxu0
      %v9320 = vadd.f32 0.0, %v9319
      %v9321 = vpop.f32.mrb[0].mxu0
      %9322 = vmatprep.mubr.bf16.mxu0 0
      %9323 = vmatmul.mubr.bf16.gmra.mrb[0].mxu0 %v9260
      %v9324 = vpop.f32.mrb[0].mxu0
      %v9325 = vadd.f32 0.0, %v9324
      %v9326 = vpop.f32.mrb[0].mxu0
      %v9327 = vpop.f32.mrb[0].mxu0
      %v9328 = vadd.f32 0.0, %v9327
      %v9329 = vpop.f32.mrb[0].mxu0
      %9330 = vmatprep.mubr.bf16.mxu0 0
      %9331 = vmatmul.mubr.bf16.gmra.mrb[0].mxu0 %v9263
      %v9332 = vpop.f32.mrb[0].mxu0
      %v9333 = vadd.f32 0.0, %v9332
      %v9334 = vpop.f32.mrb[0].mxu0
      %v9335 = vpop.f32.mrb[0].mxu0
      %v9336 = vadd.f32 0.0, %v9335
      %v9337 = vpop.f32.mrb[0].mxu0
      %9338 = vmatprep.mubr.bf16.mxu0 0
      %9339 = vmatmul.mubr.bf16.gmra.mrb[0].mxu0 %v9266
      %v9340 = vpop.f32.mrb[0].mxu0
      %v9341 = vadd.f32 0.0, %v9340
      %v9342 = vpop.f32.mrb[0].mxu0
      %v9343 = vpop.f32.mrb[0].mxu0
      %v9344 = vadd.f32 0.0, %v9343
      %v9345 = vpop.f32.mrb[0].mxu0
      %9346 = vmatprep.mubr.bf16.mxu0 0
      %9347 = vmatmul.mubr.bf16.gmra.mrb[0].mxu0 %v9269
      %v9348 = vpop.f32.mrb[0].mxu0
      %v9349 = vadd.f32 0.0, %v9348
      %v9350 = vpop.f32.mrb[0].mxu0
      %v9351 = vpop.f32.mrb[0].mxu0
      %v9352 = vadd.f32 0.0, %v9351
      %v9353 = vpop.f32.mrb[0].mxu0
      %9354 = vmatprep.mubr.bf16.mxu0 0
      %9355 = vmatmul.mubr.bf16.gmra.mrb[0].mxu0 %v9272
      %v9356 = vpop.f32.mrb[0].mxu0
      %v9357 = vadd.f32 0.0, %v9356
      %v9358 = vpop.f32.mrb[0].mxu0
      %v9359 = vpop.f32.mrb[0].mxu0
      %v9360 = vpop.f32.mrb[0].mxu0
      %9361 = vdwg.mxu0
      %v9362 = vadd.f32 %v9115, %v9309
      %v9363 = vadd.f32 %v9116, %v9312
      %v9364 = vadd.f32 %v9117, %v9317
      %v9365 = vadd.f32 %v9118, %v9320
      %v9366 = vadd.f32 %v9119, %v9325
      %v9367 = vadd.f32 %v9120, %v9328
      %v9368 = vadd.f32 %v9121, %v9333
      %v9369 = vadd.f32 %v9122, %v9336
      %v9370 = vadd.f32 %v9123, %v9341
      %v9371 = vadd.f32 %v9124, %v9344
      %v9372 = vadd.f32 %v9125, %v9349
      %v9373 = vadd.f32 %v9126, %v9352
      %v9374 = vadd.f32 %v9127, %v9357
      %v9375 = vld [vmem:[%s7] sm:$0x1]
      %v9377 = vlaneseq
      %v9378 = vshrl.u32 %v9377, 7
      %v9379 = vsub.s32 0, %v9378
      %v9380 = vrot.slane %v9375, %v9379
      %v9382 = vadd.f32 %v9362, %v9380
      %v9383 = vadd.f32 %v9363, %v9380
      %v9384 = vadd.f32 %v9364, %v9380
      %v9385 = vadd.f32 %v9365, %v9380
      %v9386 = vadd.f32 %v9366, %v9380
      %v9387 = vadd.f32 %v9367, %v9380
      %v9388 = vadd.f32 %v9368, %v9380
      %v9389 = vadd.f32 %v9369, %v9380
      %v9390 = vadd.f32 %v9370, %v9380
      %v9391 = vadd.f32 %v9371, %v9380
      %v9392 = vadd.f32 %v9372, %v9380
      %v9393 = vadd.f32 %v9373, %v9380
      %v9394 = vadd.f32 %v9374, %v9380
      %v9395 = vmax.f32 %v9382, 0.0
      %v9396 = vmax.f32 %v9383, 0.0
      %v9397 = vmax.f32 %v9384, 0.0
      %v9398 = vmax.f32 %v9385, 0.0
      %v9399 = vmax.f32 %v9386, 0.0
      %v9400 = vmax.f32 %v9387, 0.0
      %v9401 = vmax.f32 %v9388, 0.0
      %v9402 = vmax.f32 %v9389, 0.0
      %v9403 = vmax.f32 %v9390, 0.0
      %v9404 = vmax.f32 %v9391, 0.0
      %v9405 = vmax.f32 %v9392, 0.0
      %v9406 = vmax.f32 %v9393, 0.0
      %v9407 = vmax.f32 %v9394, 0.0
      %v9421 = vcombine.high %v9395, %v9395
      %v9423 = vunpack.c.l.s4 1983009808
      %v9424 = vunpack.c.0.s8 %v9423
      %v9425 = vlaneseq
      %v9426 = vshrl.u32 %v9425, 7
      %v9427 = vsub.s32 %v9424, %v9426
      %v9428 = vrot.slane %v9395, %v9427
      %v9430 = vunpack.c.l.s4 1983009808
      %v9431 = vunpack.c.0.s8 %v9430
      %v9432 = vlaneseq
      %v9433 = vshrl.u32 %v9432, 7
      %v9434 = vsub.s32 %v9431, %v9433
      %v9435 = vrot.slane %v9421, %v9434
      %v9436 = vcombine.high %v9428, %v9428
      %v9437 = vcombine.high %v9435, %v9435
      %v9438 = vcombine.high %v9396, %v9396
      %v9440 = vunpack.c.l.s4 1983009808
      %v9441 = vunpack.c.0.s8 %v9440
      %v9442 = vlaneseq
      %v9443 = vshrl.u32 %v9442, 7
      %v9444 = vsub.s32 %v9441, %v9443
      %v9445 = vrot.slane %v9396, %v9444
      %v9447 = vunpack.c.l.s4 1983009808
      %v9448 = vunpack.c.0.s8 %v9447
      %v9449 = vlaneseq
      %v9450 = vshrl.u32 %v9449, 7
      %v9451 = vsub.s32 %v9448, %v9450
      %v9452 = vrot.slane %v9438, %v9451
      %v9453 = vcombine.high %v9445, %v9445
      %v9454 = vcombine.high %v9452, %v9452
      %v9455 = vcombine.high %v9397, %v9397
      %v9457 = vunpack.c.l.s4 1983009808
      %v9458 = vunpack.c.0.s8 %v9457
      %v9459 = vlaneseq
      %v9460 = vshrl.u32 %v9459, 7
      %v9461 = vsub.s32 %v9458, %v9460
      %v9462 = vrot.slane %v9397, %v9461
      %v9464 = vunpack.c.l.s4 1983009808
      %v9465 = vunpack.c.0.s8 %v9464
      %v9466 = vlaneseq
      %v9467 = vshrl.u32 %v9466, 7
      %v9468 = vsub.s32 %v9465, %v9467
      %v9469 = vrot.slane %v9455, %v9468
      %v9470 = vcombine.high %v9462, %v9462
      %v9471 = vcombine.high %v9469, %v9469
      %v9472 = vcombine.high %v9398, %v9398
      %v9474 = vunpack.c.l.s4 1983009808
      %v9475 = vunpack.c.0.s8 %v9474
      %v9476 = vlaneseq
      %v9477 = vshrl.u32 %v9476, 7
      %v9478 = vsub.s32 %v9475, %v9477
      %v9479 = vrot.slane %v9398, %v9478
      %v9481 = vunpack.c.l.s4 1983009808
      %v9482 = vunpack.c.0.s8 %v9481
      %v9483 = vlaneseq
      %v9484 = vshrl.u32 %v9483, 7
      %v9485 = vsub.s32 %v9482, %v9484
      %v9486 = vrot.slane %v9472, %v9485
      %v9487 = vcombine.high %v9479, %v9479
      %v9488 = vcombine.high %v9486, %v9486
      %v9489 = vcombine.high %v9399, %v9399
      %v9491 = vunpack.c.l.s4 1983009808
      %v9492 = vunpack.c.0.s8 %v9491
      %v9493 = vlaneseq
      %v9494 = vshrl.u32 %v9493, 7
      %v9495 = vsub.s32 %v9492, %v9494
      %v9496 = vrot.slane %v9399, %v9495
      %v9498 = vunpack.c.l.s4 1983009808
      %v9499 = vunpack.c.0.s8 %v9498
      %v9500 = vlaneseq
      %v9501 = vshrl.u32 %v9500, 7
      %v9502 = vsub.s32 %v9499, %v9501
      %v9503 = vrot.slane %v9489, %v9502
      %v9504 = vcombine.high %v9496, %v9496
      %v9505 = vcombine.high %v9503, %v9503
      %v9506 = vcombine.high %v9400, %v9400
      %v9508 = vunpack.c.l.s4 1983009808
      %v9509 = vunpack.c.0.s8 %v9508
      %v9510 = vlaneseq
      %v9511 = vshrl.u32 %v9510, 7
      %v9512 = vsub.s32 %v9509, %v9511
      %v9513 = vrot.slane %v9400, %v9512
      %v9515 = vunpack.c.l.s4 1983009808
      %v9516 = vunpack.c.0.s8 %v9515
      %v9517 = vlaneseq
      %v9518 = vshrl.u32 %v9517, 7
      %v9519 = vsub.s32 %v9516, %v9518
      %v9520 = vrot.slane %v9506, %v9519
      %v9521 = vcombine.high %v9513, %v9513
      %v9522 = vcombine.high %v9520, %v9520
      %v9523 = vcombine.high %v9401, %v9401
      %v9525 = vunpack.c.l.s4 1983009808
      %v9526 = vunpack.c.0.s8 %v9525
      %v9527 = vlaneseq
      %v9528 = vshrl.u32 %v9527, 7
      %v9529 = vsub.s32 %v9526, %v9528
      %v9530 = vrot.slane %v9401, %v9529
      %v9532 = vunpack.c.l.s4 1983009808
      %v9533 = vunpack.c.0.s8 %v9532
      %v9534 = vlaneseq
      %v9535 = vshrl.u32 %v9534, 7
      %v9536 = vsub.s32 %v9533, %v9535
      %v9537 = vrot.slane %v9523, %v9536
      %v9538 = vcombine.high %v9530, %v9530
      %v9539 = vcombine.high %v9537, %v9537
      %v9540 = vcombine.high %v9402, %v9402
      %v9542 = vunpack.c.l.s4 1983009808
      %v9543 = vunpack.c.0.s8 %v9542
      %v9544 = vlaneseq
      %v9545 = vshrl.u32 %v9544, 7
      %v9546 = vsub.s32 %v9543, %v9545
      %v9547 = vrot.slane %v9402, %v9546
      %v9549 = vunpack.c.l.s4 1983009808
      %v9550 = vunpack.c.0.s8 %v9549
      %v9551 = vlaneseq
      %v9552 = vshrl.u32 %v9551, 7
      %v9553 = vsub.s32 %v9550, %v9552
      %v9554 = vrot.slane %v9540, %v9553
      %v9555 = vcombine.high %v9547, %v9547
      %v9556 = vcombine.high %v9554, %v9554
      %v9557 = vcombine.high %v9403, %v9403
      %v9559 = vunpack.c.l.s4 1983009808
      %v9560 = vunpack.c.0.s8 %v9559
      %v9561 = vlaneseq
      %v9562 = vshrl.u32 %v9561, 7
      %v9563 = vsub.s32 %v9560, %v9562
      %v9564 = vrot.slane %v9403, %v9563
      %v9566 = vunpack.c.l.s4 1983009808
      %v9567 = vunpack.c.0.s8 %v9566
      %v9568 = vlaneseq
      %v9569 = vshrl.u32 %v9568, 7
      %v9570 = vsub.s32 %v9567, %v9569
      %v9571 = vrot.slane %v9557, %v9570
      %v9572 = vcombine.high %v9564, %v9564
      %v9573 = vcombine.high %v9571, %v9571
      %v9574 = vcombine.high %v9404, %v9404
      %v9576 = vunpack.c.l.s4 1983009808
      %v9577 = vunpack.c.0.s8 %v9576
      %v9578 = vlaneseq
      %v9579 = vshrl.u32 %v9578, 7
      %v9580 = vsub.s32 %v9577, %v9579
      %v9581 = vrot.slane %v9404, %v9580
      %v9583 = vunpack.c.l.s4 1983009808
      %v9584 = vunpack.c.0.s8 %v9583
      %v9585 = vlaneseq
      %v9586 = vshrl.u32 %v9585, 7
      %v9587 = vsub.s32 %v9584, %v9586
      %v9588 = vrot.slane %v9574, %v9587
      %v9589 = vcombine.high %v9581, %v9581
      %v9590 = vcombine.high %v9588, %v9588
      %v9591 = vcombine.high %v9405, %v9405
      %v9593 = vunpack.c.l.s4 1983009808
      %v9594 = vunpack.c.0.s8 %v9593
      %v9595 = vlaneseq
      %v9596 = vshrl.u32 %v9595, 7
      %v9597 = vsub.s32 %v9594, %v9596
      %v9598 = vrot.slane %v9405, %v9597
      %v9600 = vunpack.c.l.s4 1983009808
      %v9601 = vunpack.c.0.s8 %v9600
      %v9602 = vlaneseq
      %v9603 = vshrl.u32 %v9602, 7
      %v9604 = vsub.s32 %v9601, %v9603
      %v9605 = vrot.slane %v9591, %v9604
      %v9606 = vcombine.high %v9598, %v9598
      %v9607 = vcombine.high %v9605, %v9605
      %v9608 = vcombine.high %v9406, %v9406
      %v9610 = vunpack.c.l.s4 1983009808
      %v9611 = vunpack.c.0.s8 %v9610
      %v9612 = vlaneseq
      %v9613 = vshrl.u32 %v9612, 7
      %v9614 = vsub.s32 %v9611, %v9613
      %v9615 = vrot.slane %v9406, %v9614
      %v9617 = vunpack.c.l.s4 1983009808
      %v9618 = vunpack.c.0.s8 %v9617
      %v9619 = vlaneseq
      %v9620 = vshrl.u32 %v9619, 7
      %v9621 = vsub.s32 %v9618, %v9620
      %v9622 = vrot.slane %v9608, %v9621
      %v9623 = vcombine.high %v9615, %v9615
      %v9624 = vcombine.high %v9622, %v9622
      %v9626 = vunpack.c.l.s4 1983009808
      %v9627 = vunpack.c.0.s8 %v9626
      %v9628 = vlaneseq
      %v9629 = vshrl.u32 %v9628, 7
      %v9630 = vsub.s32 %v9627, %v9629
      %v9631 = vrot.slane %v9407, %v9630
      %v9632 = vcombine.low %v9428, %v9436
      %v9633 = vcombine.low %v9435, %v9437
      %v9635 = vunpack.c.l.s4 1983009808
      %v9636 = vunpack.c.0.s8 %v9635
      %v9637 = vlaneseq
      %v9638 = vshrl.u32 %v9637, 7
      %v9639 = vsub.s32 %v9636, %v9638
      %v9640 = vrot.slane %v9632, %v9639
      %v9642 = vunpack.c.l.s4 1983009808
      %v9643 = vunpack.c.0.s8 %v9642
      %v9644 = vlaneseq
      %v9645 = vshrl.u32 %v9644, 7
      %v9646 = vsub.s32 %v9643, %v9645
      %v9647 = vrot.slane %v9633, %v9646
      %v9648 = vcombine.low %v9640, %v9647
      %v9649 = vcombine.low %v9445, %v9453
      %v9651 = vunpack.c.l.s4 1983009808
      %v9652 = vunpack.c.0.s8 %v9651
      %v9653 = vlaneseq
      %v9654 = vshrl.u32 %v9653, 7
      %v9655 = vsub.s32 %v9652, %v9654
      %v9656 = vrot.slane %v9649, %v9655
      %v9658 = vunpack.c.l.s4 1983009808
      %v9659 = vunpack.c.0.s8 %v9658
      %v9660 = vlaneseq
      %v9661 = vshrl.u32 %v9660, 7
      %v9662 = vsub.s32 %v9659, %v9661
      %v9663 = vrot.slane %v9452, %v9662
      %v9664 = vcombine.low %v9656, %v9663
      %v9665 = vcombine.low %v9454, %v9462
      %v9666 = vcombine.low %v9470, %v9469
      %v9668 = vunpack.c.l.s4 1983009808
      %v9669 = vunpack.c.0.s8 %v9668
      %v9670 = vlaneseq
      %v9671 = vshrl.u32 %v9670, 7
      %v9672 = vsub.s32 %v9669, %v9671
      %v9673 = vrot.slane %v9665, %v9672
      %v9675 = vunpack.c.l.s4 1983009808
      %v9676 = vunpack.c.0.s8 %v9675
      %v9677 = vlaneseq
      %v9678 = vshrl.u32 %v9677, 7
      %v9679 = vsub.s32 %v9676, %v9678
      %v9680 = vrot.slane %v9666, %v9679
      %v9681 = vcombine.low %v9673, %v9680
      %v9682 = vcombine.low %v9471, %v9479
      %v9684 = vunpack.c.l.s4 1983009808
      %v9685 = vunpack.c.0.s8 %v9684
      %v9686 = vlaneseq
      %v9687 = vshrl.u32 %v9686, 7
      %v9688 = vsub.s32 %v9685, %v9687
      %v9689 = vrot.slane %v9682, %v9688
      %v9691 = vunpack.c.l.s4 1983009808
      %v9692 = vunpack.c.0.s8 %v9691
      %v9693 = vlaneseq
      %v9694 = vshrl.u32 %v9693, 7
      %v9695 = vsub.s32 %v9692, %v9694
      %v9696 = vrot.slane %v9487, %v9695
      %v9697 = vcombine.low %v9689, %v9696
      %v9698 = vcombine.low %v9486, %v9488
      %v9699 = vcombine.low %v9496, %v9504
      %v9701 = vunpack.c.l.s4 1983009808
      %v9702 = vunpack.c.0.s8 %v9701
      %v9703 = vlaneseq
      %v9704 = vshrl.u32 %v9703, 7
      %v9705 = vsub.s32 %v9702, %v9704
      %v9706 = vrot.slane %v9698, %v9705
      %v9708 = vunpack.c.l.s4 1983009808
      %v9709 = vunpack.c.0.s8 %v9708
      %v9710 = vlaneseq
      %v9711 = vshrl.u32 %v9710, 7
      %v9712 = vsub.s32 %v9709, %v9711
      %v9713 = vrot.slane %v9699, %v9712
      %v9714 = vcombine.low %v9706, %v9713
      %v9715 = vcombine.low %v9503, %v9505
      %v9717 = vunpack.c.l.s4 1983009808
      %v9718 = vunpack.c.0.s8 %v9717
      %v9719 = vlaneseq
      %v9720 = vshrl.u32 %v9719, 7
      %v9721 = vsub.s32 %v9718, %v9720
      %v9722 = vrot.slane %v9715, %v9721
      %v9724 = vunpack.c.l.s4 1983009808
      %v9725 = vunpack.c.0.s8 %v9724
      %v9726 = vlaneseq
      %v9727 = vshrl.u32 %v9726, 7
      %v9728 = vsub.s32 %v9725, %v9727
      %v9729 = vrot.slane %v9513, %v9728
      %v9730 = vcombine.low %v9722, %v9729
      %v9731 = vcombine.low %v9521, %v9520
      %v9732 = vcombine.low %v9522, %v9530
      %v9734 = vunpack.c.l.s4 1983009808
      %v9735 = vunpack.c.0.s8 %v9734
      %v9736 = vlaneseq
      %v9737 = vshrl.u32 %v9736, 7
      %v9738 = vsub.s32 %v9735, %v9737
      %v9739 = vrot.slane %v9731, %v9738
      %v9741 = vunpack.c.l.s4 1983009808
      %v9742 = vunpack.c.0.s8 %v9741
      %v9743 = vlaneseq
      %v9744 = vshrl.u32 %v9743, 7
      %v9745 = vsub.s32 %v9742, %v9744
      %v9746 = vrot.slane %v9732, %v9745
      %v9747 = vcombine.low %v9739, %v9746
      %v9748 = vcombine.low %v9538, %v9537
      %v9750 = vunpack.c.l.s4 1983009808
      %v9751 = vunpack.c.0.s8 %v9750
      %v9752 = vlaneseq
      %v9753 = vshrl.u32 %v9752, 7
      %v9754 = vsub.s32 %v9751, %v9753
      %v9755 = vrot.slane %v9748, %v9754
      %v9757 = vunpack.c.l.s4 1983009808
      %v9758 = vunpack.c.0.s8 %v9757
      %v9759 = vlaneseq
      %v9760 = vshrl.u32 %v9759, 7
      %v9761 = vsub.s32 %v9758, %v9760
      %v9762 = vrot.slane %v9539, %v9761
      %v9763 = vcombine.low %v9755, %v9762
      %v9764 = vcombine.low %v9547, %v9555
      %v9765 = vcombine.low %v9554, %v9556
      %v9767 = vunpack.c.l.s4 1983009808
      %v9768 = vunpack.c.0.s8 %v9767
      %v9769 = vlaneseq
      %v9770 = vshrl.u32 %v9769, 7
      %v9771 = vsub.s32 %v9768, %v9770
      %v9772 = vrot.slane %v9764, %v9771
      %v9774 = vunpack.c.l.s4 1983009808
      %v9775 = vunpack.c.0.s8 %v9774
      %v9776 = vlaneseq
      %v9777 = vshrl.u32 %v9776, 7
      %v9778 = vsub.s32 %v9775, %v9777
      %v9779 = vrot.slane %v9765, %v9778
      %v9780 = vcombine.low %v9772, %v9779
      %v9781 = vcombine.low %v9564, %v9572
      %v9783 = vunpack.c.l.s4 1983009808
      %v9784 = vunpack.c.0.s8 %v9783
      %v9785 = vlaneseq
      %v9786 = vshrl.u32 %v9785, 7
      %v9787 = vsub.s32 %v9784, %v9786
      %v9788 = vrot.slane %v9781, %v9787
      %v9790 = vunpack.c.l.s4 1983009808
      %v9791 = vunpack.c.0.s8 %v9790
      %v9792 = vlaneseq
      %v9793 = vshrl.u32 %v9792, 7
      %v9794 = vsub.s32 %v9791, %v9793
      %v9795 = vrot.slane %v9571, %v9794
      %v9796 = vcombine.low %v9788, %v9795
      %v9797 = vcombine.low %v9573, %v9581
      %v9798 = vcombine.low %v9589, %v9588
      %v9800 = vunpack.c.l.s4 1983009808
      %v9801 = vunpack.c.0.s8 %v9800
      %v9802 = vlaneseq
      %v9803 = vshrl.u32 %v9802, 7
      %v9804 = vsub.s32 %v9801, %v9803
      %v9805 = vrot.slane %v9797, %v9804
      %v9807 = vunpack.c.l.s4 1983009808
      %v9808 = vunpack.c.0.s8 %v9807
      %v9809 = vlaneseq
      %v9810 = vshrl.u32 %v9809, 7
      %v9811 = vsub.s32 %v9808, %v9810
      %v9812 = vrot.slane %v9798, %v9811
      %v9813 = vcombine.low %v9805, %v9812
      %v9814 = vcombine.low %v9590, %v9598
      %v9816 = vunpack.c.l.s4 1983009808
      %v9817 = vunpack.c.0.s8 %v9816
      %v9818 = vlaneseq
      %v9819 = vshrl.u32 %v9818, 7
      %v9820 = vsub.s32 %v9817, %v9819
      %v9821 = vrot.slane %v9814, %v9820
      %v9823 = vunpack.c.l.s4 1983009808
      %v9824 = vunpack.c.0.s8 %v9823
      %v9825 = vlaneseq
      %v9826 = vshrl.u32 %v9825, 7
      %v9827 = vsub.s32 %v9824, %v9826
      %v9828 = vrot.slane %v9606, %v9827
      %v9829 = vcombine.low %v9821, %v9828
      %v9830 = vcombine.low %v9605, %v9607
      %v9831 = vcombine.low %v9615, %v9623
      %v9833 = vunpack.c.l.s4 1983009808
      %v9834 = vunpack.c.0.s8 %v9833
      %v9835 = vlaneseq
      %v9836 = vshrl.u32 %v9835, 7
      %v9837 = vsub.s32 %v9834, %v9836
      %v9838 = vrot.slane %v9830, %v9837
      %v9840 = vunpack.c.l.s4 1983009808
      %v9841 = vunpack.c.0.s8 %v9840
      %v9842 = vlaneseq
      %v9843 = vshrl.u32 %v9842, 7
      %v9844 = vsub.s32 %v9841, %v9843
      %v9845 = vrot.slane %v9831, %v9844
      %v9846 = vcombine.low %v9838, %v9845
      %v9847 = vcombine.low %v9622, %v9624
      %v9849 = vunpack.c.l.s4 1983009808
      %v9850 = vunpack.c.0.s8 %v9849
      %v9851 = vlaneseq
      %v9852 = vshrl.u32 %v9851, 7
      %v9853 = vsub.s32 %v9850, %v9852
      %v9854 = vrot.slane %v9847, %v9853
      %v9856 = vunpack.c.l.s4 1983009808
      %v9857 = vunpack.c.0.s8 %v9856
      %v9858 = vlaneseq
      %v9859 = vshrl.u32 %v9858, 7
      %v9860 = vsub.s32 %v9857, %v9859
      %v9861 = vrot.slane %v9631, %v9860
      %v9862 = vcombine.low %v9854, %v9861
      %9877 = vst [vmem:[%s283] sm:$0xff] %v9648
      %9878 = vst [vmem:[%s283 + $0x8] sm:$0x3f] %v9664
      %9879 = vst [vmem:[%s283 + $0x10] sm:$0xff] %v9681
      %9880 = vst [vmem:[%s283 + $0x18] sm:$0x3f] %v9697
      %9881 = vst [vmem:[%s283 + $0x20] sm:$0xff] %v9714
      %9882 = vst [vmem:[%s283 + $0x28] sm:$0x3f] %v9730
      %9883 = vst [vmem:[%s283 + $0x30] sm:$0xff] %v9747
      %9884 = vst [vmem:[%s283 + $0x38] sm:$0x3f] %v9763
      %9885 = vst [vmem:[%s283 + $0x40] sm:$0xff] %v9780
      %9886 = vst [vmem:[%s283 + $0x48] sm:$0x3f] %v9796
      %9887 = vst [vmem:[%s283 + $0x50] sm:$0xff] %v9813
      %9888 = vst [vmem:[%s283 + $0x58] sm:$0x3f] %v9829
      %9889 = vst [vmem:[%s283 + $0x60] sm:$0xff] %v9846
      %9890 = vst [vmem:[%s283 + $0x68] sm:$0x3f] %v9862
      %s9891 = smul.u32 7, %s24
      %p9892 = scmp.lt.s32.totalorder %s23, 1
      %s9893 = scalar_select %p9892, %s23, 1
      %p9894 = scmp.lt.s32.totalorder %s9891, 13
      %s9895 = scalar_select %p9894, %s9891, 13
      %s9896 = smul.addr %s9895, 2
      %s9897 = smul.addr %s9893, 28
      %s9898 = sadd.s32 %s9896, %s9897
      %s9899 = smul.addr %s9898, 8
      %s9900 = scalar_lea.vmem %s8, %s9899
      // Predicated region
      $region83: #{bottleneck_pallas.1} parent=47 // pred_check
        %p9901 = pneg %p198
      $region84: #{bottleneck_pallas.1} parent=47 // pred_check_branch
        %9903 = sbr.rel (%p9901) target = $region86
      $region85: #{bottleneck_pallas.1} parent=47 // pred_region
        %s9904 = smul.u32 7, %s24
      $region86: #{bottleneck_pallas.1} parent=47 // pred_fallthru
        _
    $region48: #{bottleneck_pallas.1} parent=5 // pred_fallthru
      _
    %p9905 = scmp.le.s32.totalorder 2, %s14
    // Predicated region
    $region87: #{bottleneck_pallas.1} parent=5 // pred_check
      %p9906 = pneg %p9905
    $region88: #{bottleneck_pallas.1} parent=5 // pred_check_branch
      %9908 = sbr.rel (%p9906) target = $region90
    $region89: #{bottleneck_pallas.1} parent=5 // pred_region
      %s9909 = ssub.s32 %s14, 2
      // Predicated region
      $region91: #{bottleneck_pallas.1} parent=89 // pred_check
        %p9910 = pneg %p204
      $region92: #{bottleneck_pallas.1} parent=89 // pred_check_branch
        %9912 = sbr.rel (%p9910) target = $region94
      $region93: #{bottleneck_pallas.1} parent=89 // pred_region
        %s9913 = smul.u32 7, %s26
        %p9914 = scmp.lt.s32.totalorder %s25, 1
        %s9915 = scalar_select %p9914, %s25, 1
        %p9916 = scmp.lt.s32.totalorder %s9913, 13
        %s9917 = scalar_select %p9916, %s9913, 13
        %s9918 = smul.addr %s9917, 2
        %s9919 = smul.addr %s9915, 28
        %s9920 = sadd.s32 %s9918, %s9919
        %s9921 = smul.addr %s9920, 8
        %s9922 = scalar_lea.vmem %s8, %s9921
      $region94: #{bottleneck_pallas.1} parent=89 // pred_fallthru
        _
    $region90: #{bottleneck_pallas.1} parent=5 // pred_fallthru
      _
  $region6: #{bottleneck_pallas.1} parent=0 // loop_footer
    %s18 = sadd.s32 1, %s14
  $region7: #{bottleneck_pallas.1} parent=0 // loop_footer_branch
    %13 = sbr.rel target = $region3
  $region8: #{bottleneck_pallas.1} parent=0 // loop_exit
    _
  %9923 = vsyncmov [#allocation3]
  %s9924 = vpop.sfrf %9923
  %p9925 = scmp.eq.s32.totalorder %s9924, 0
  %p9926 = pneg %p9925
  %9928 = shalt.err (%p9926)

</llo_original>
